<compile_context>
chip_gen: v7x
topology: tpu7x:2x2x1
jax: 0.10.0
libtpu: 0.0.40
codegen_flags: <defaults>
</compile_context>

<pallas_src>
from functools import partial

import numpy as np
import jax
import jax.numpy as jnp
from jax.experimental import pallas as pl
from jax.experimental.pallas import tpu as pltpu

# ---------------------------------------------------------------------------
# Architecture constants (hard-coded by the PyTorch module)
# ---------------------------------------------------------------------------
INPUT_DIM = 2334
CIN_TOTAL = INPUT_DIM * 2        # 4668 channels into conv1
BN_EPS = 1e-5

# (C_in, C_out, apply_relu) following PointNetEncoder.forward order:
# conv1..conv4, conv9, conv10, conv5..conv8
CONV_CFG = [
    (CIN_TOTAL, 128, True),
    (128, 128, True),
    (128, 256, True),
    (256, 512, True),
    (512, 1024, True),
    (1024, 512, True),
    (512, 256, True),
    (256, 128, True),
    (128, 128, True),
    (128, INPUT_DIM, False),
]


def _round_up(x, m):
    return ((x + m - 1) // m) * m


# ---------------------------------------------------------------------------
# Fused Pallas kernel: all 10 (conv1x1 + BN + [ReLU]) layers in one call
# ---------------------------------------------------------------------------
def _encoder_kernel(*refs, n_valid, relus):
    """refs = [x, w0, p0, w1, p1, ..., w9, p9, out].

    x   : (Tp, Cin0p)     f32 tokens x channels (zero-padded rows / cols)
    w_i : (Cin_i, Cout_i) bf16 conv weight, stored transposed (X @ W)
    p_i : (3, Cout_i)     f32 rows = [conv bias, bn gamma, bn beta]
    out : (Tp, Cout_last) f32
    """
    x_ref, o_ref = refs[0], refs[-1]
    layer_refs = refs[1:-1]
    n_layers = len(layer_refs) // 2

    y = x_ref[...]                                 # f32 (Tp, Cin0p)
    tp = y.shape[0]
    if tp == n_valid:                              # static: no token padding
        mask = None
        inv_n = 1.0 / tp
    else:
        mask = (jax.lax.broadcasted_iota(jnp.int32, (tp, 1), 0)
                < n_valid).astype(jnp.float32)
        inv_n = 1.0 / n_valid

    for li in range(n_layers):
        w = layer_refs[2 * li][...]                # bf16 (Cin, Cout)
        p = layer_refs[2 * li + 1][...]            # f32  (3, Cout)

        # 1x1 conv == token-major matmul: bf16 operands, f32 MXU accumulation.
        y = jnp.dot(y.astype(jnp.bfloat16), w,
                    preferred_element_type=jnp.float32)
        y = y + p[0:1, :]                          # conv bias

        # BatchNorm1d training-mode stats: mean / biased var over (B, L)
        # tokens per channel, computed in f32 on the VPU.
        if mask is None:
            mean = jnp.mean(y, axis=0, keepdims=True)
            cen = y - mean
            var = jnp.mean(cen * cen, axis=0, keepdims=True)
        else:
            mean = jnp.sum(y * mask, axis=0, keepdims=True) * inv_n
            cen = (y - mean) * mask
            var = jnp.sum(cen * cen, axis=0, keepdims=True) * inv_n
        y = (y - mean) * jax.lax.rsqrt(var + BN_EPS)
        y = y * p[1:2, :] + p[2:3, :]              # BN affine
        if relus[li]:
            y = jnp.maximum(y, 0.0)
        if mask is not None:
            y = y * mask                           # keep padded rows inert

    o_ref[...] = y.astype(o_ref.dtype)


# ---------------------------------------------------------------------------
# Wrapper
# ---------------------------------------------------------------------------
def pointnet_encoder_forward(params, x):
    """x: (B, 2*input_dim, L) NCL  ->  (B, input_dim, L)."""
    B, C, L = x.shape
    assert C == CONV_CFG[0][0], (C, CONV_CFG[0][0])
    T = B * L
    Tp = _round_up(max(T, 8), 8)
    Cin0p = params[0]["w"].shape[0]                # conv1 Cin, lane-padded
    Cout_last = CONV_CFG[-1][1]

    # NCL -> token-major (B*L, C); pad tokens to a sublane multiple and
    # channels up to the (pre-padded) conv1 weight rows.  This is ~150 KB of
    # one-off XLA glue; all weights were padded once at init.
    x_tok = jnp.transpose(x, (0, 2, 1)).reshape(T, C).astype(jnp.float32)
    x_tok = jnp.pad(x_tok, ((0, Tp - T), (0, Cin0p - C)))

    relus = tuple(r for _, _, r in CONV_CFG)
    kernel = partial(_encoder_kernel, n_valid=T, relus=relus)

    inputs = [x_tok]
    in_specs = [pl.BlockSpec((Tp, Cin0p), lambda i: (0, 0))]
    for layer in params:
        inputs += [layer["w"], layer["p"]]
        in_specs += [pl.BlockSpec(layer["w"].shape, lambda i: (0, 0)),
                     pl.BlockSpec(layer["p"].shape, lambda i: (0, 0))]

    out = pl.pallas_call(
        kernel,
        out_shape=jax.ShapeDtypeStruct((Tp, Cout_last), jnp.float32),
        grid=(1,),
        in_specs=in_specs,
        out_specs=pl.BlockSpec((Tp, Cout_last), lambda i: (0, 0)),
        compiler_params=pltpu.CompilerParams(
            dimension_semantics=("arbitrary",),
            # ~4.6 MB bf16 weights (double-buffered ~9.3 MB) + tiny
            # activations: safe on v5e/v6e (128 MiB) and v7x (64 MiB).
            vmem_limit_bytes=40 * 1024 * 1024,
        ),
    )(*inputs)

    out = out[:T]                                  # drop padded token rows
    return jnp.transpose(out.reshape(B, L, Cout_last), (0, 2, 1))


# ---------------------------------------------------------------------------
# Parameter init (deterministic, PyTorch-default-style scales)
# ---------------------------------------------------------------------------
def init_params(key):
    keys = jax.random.split(key, len(CONV_CFG))
    layers = []
    for i, (ci, co, _) in enumerate(CONV_CFG):
        kw, kb, kg, kbb = jax.random.split(keys[i], 4)
        bound = 1.0 / np.sqrt(ci)
        w = jax.random.uniform(kw, (ci, co), jnp.float32, -bound, bound)
        b = jax.random.uniform(kb, (co,), jnp.float32, -bound, bound)
        gamma = 1.0 + 0.1 * jax.random.normal(kg, (co,), jnp.float32)
        beta = 0.05 * jax.random.normal(kbb, (co,), jnp.float32)
        # Pre-pad Cin to a lane multiple ONCE (only conv1 needs it) and store
        # transposed (Cin, Cout) in bf16 for weight streaming.
        ci_pad = _round_up(ci, 128)
        if ci_pad != ci:
            w = jnp.zeros((ci_pad, co), jnp.float32).at[:ci].set(w)
        layers.append({
            "w": w.astype(jnp.bfloat16),                 # (Cin_pad, Cout) bf16
            "p": jnp.stack([b, gamma, beta], axis=0),    # (3, Cout) f32
        })
    return layers


# ---------------------------------------------------------------------------
# Pure-JAX reference (same bf16-weight math) for a correctness check
# ---------------------------------------------------------------------------
def pointnet_encoder_reference(params, x):
    B, C, L = x.shape
    y = jnp.transpose(x, (0, 2, 1)).reshape(B * L, C).astype(jnp.float32)
    co = C
    for layer, (ci, co, relu) in zip(params, CONV_CFG):
        w = layer["w"][:ci]                              # bf16 (ci, co)
        b, g, bb = layer["p"][0], layer["p"][1], layer["p"][2]
        y = jnp.dot(y.astype(jnp.bfloat16), w,
                    preferred_element_type=jnp.float32) + b
        mean = jnp.mean(y, axis=0, keepdims=True)
        var = jnp.mean(jnp.square(y - mean), axis=0, keepdims=True)
        y = (y - mean) * jax.lax.rsqrt(var + BN_EPS) * g + bb
        if relu:
            y = jnp.maximum(y, 0.0)
    return jnp.transpose(y.reshape(B, L, co), (0, 2, 1))


# ---------------------------------------------------------------------------
# Demo
# ---------------------------------------------------------------------------
if __name__ == "__main__":
    key = jax.random.PRNGKey(0)
    kx, kp = jax.random.split(key)

    # Small shapes implied by the module: input channels are fixed at
    # input_dim*2 = 4668 by conv1; keep batch and length small.
    B, L = 2, 4
    x = jax.random.normal(kx, (B, CIN_TOTAL, L), jnp.float32)

    params = init_params(kp)

    out = jax.jit(pointnet_encoder_forward)(params, x)
    out = jax.block_until_ready(out)

    assert out.shape == (B, INPUT_DIM, L), out.shape
    assert bool(jnp.isfinite(out).all())

    ref = jax.jit(pointnet_encoder_reference)(params, x)
    ref = jax.block_until_ready(ref)
    assert bool(jnp.allclose(out, ref, atol=5e-2, rtol=5e-2))

    print("KERNEL_OK")
</pallas_src>

<mosaic_0001>
module attributes {stable_mosaic.version = 11 : i64} {
  func.func @_encoder_kernel(%arg0: i32, %arg1: memref<8x4736xf32, #tpu.memory_space<vmem>>, %arg2: memref<4736x128xbf16, #tpu.memory_space<vmem>>, %arg3: memref<3x128xf32, #tpu.memory_space<vmem>>, %arg4: memref<128x128xbf16, #tpu.memory_space<vmem>>, %arg5: memref<3x128xf32, #tpu.memory_space<vmem>>, %arg6: memref<128x256xbf16, #tpu.memory_space<vmem>>, %arg7: memref<3x256xf32, #tpu.memory_space<vmem>>, %arg8: memref<256x512xbf16, #tpu.memory_space<vmem>>, %arg9: memref<3x512xf32, #tpu.memory_space<vmem>>, %arg10: memref<512x1024xbf16, #tpu.memory_space<vmem>>, %arg11: memref<3x1024xf32, #tpu.memory_space<vmem>>, %arg12: memref<1024x512xbf16, #tpu.memory_space<vmem>>, %arg13: memref<3x512xf32, #tpu.memory_space<vmem>>, %arg14: memref<512x256xbf16, #tpu.memory_space<vmem>>, %arg15: memref<3x256xf32, #tpu.memory_space<vmem>>, %arg16: memref<256x128xbf16, #tpu.memory_space<vmem>>, %arg17: memref<3x128xf32, #tpu.memory_space<vmem>>, %arg18: memref<128x128xbf16, #tpu.memory_space<vmem>>, %arg19: memref<3x128xf32, #tpu.memory_space<vmem>>, %arg20: memref<128x2334xbf16, #tpu.memory_space<vmem>>, %arg21: memref<3x2334xf32, #tpu.memory_space<vmem>>, %arg22: memref<8x2334xf32, #tpu.memory_space<vmem>>) attributes {dimension_semantics = [#tpu.dimension_semantics<arbitrary>], iteration_bounds = array<i64: 1>, scalar_prefetch = 0 : i64, scratch_operands = 0 : i64, tpu.core_type = #tpu.core_type<tc>, window_params = [{pipeline_mode = #tpu.pipeline_mode<synchronous>, transform_indices = @transform_0, window_bounds = array<i64: 8, 4736>}, {pipeline_mode = #tpu.pipeline_mode<synchronous>, transform_indices = @transform_1, window_bounds = array<i64: 4736, 128>}, {pipeline_mode = #tpu.pipeline_mode<synchronous>, transform_indices = @transform_2, window_bounds = array<i64: 3, 128>}, {pipeline_mode = #tpu.pipeline_mode<synchronous>, transform_indices = @transform_3, window_bounds = array<i64: 128, 128>}, {pipeline_mode = #tpu.pipeline_mode<synchronous>, transform_indices = @transform_4, window_bounds = array<i64: 3, 128>}, {pipeline_mode = #tpu.pipeline_mode<synchronous>, transform_indices = @transform_5, window_bounds = array<i64: 128, 256>}, {pipeline_mode = #tpu.pipeline_mode<synchronous>, transform_indices = @transform_6, window_bounds = array<i64: 3, 256>}, {pipeline_mode = #tpu.pipeline_mode<synchronous>, transform_indices = @transform_7, window_bounds = array<i64: 256, 512>}, {pipeline_mode = #tpu.pipeline_mode<synchronous>, transform_indices = @transform_8, window_bounds = array<i64: 3, 512>}, {pipeline_mode = #tpu.pipeline_mode<synchronous>, transform_indices = @transform_9, window_bounds = array<i64: 512, 1024>}, {pipeline_mode = #tpu.pipeline_mode<synchronous>, transform_indices = @transform_10, window_bounds = array<i64: 3, 1024>}, {pipeline_mode = #tpu.pipeline_mode<synchronous>, transform_indices = @transform_11, window_bounds = array<i64: 1024, 512>}, {pipeline_mode = #tpu.pipeline_mode<synchronous>, transform_indices = @transform_12, window_bounds = array<i64: 3, 512>}, {pipeline_mode = #tpu.pipeline_mode<synchronous>, transform_indices = @transform_13, window_bounds = array<i64: 512, 256>}, {pipeline_mode = #tpu.pipeline_mode<synchronous>, transform_indices = @transform_14, window_bounds = array<i64: 3, 256>}, {pipeline_mode = #tpu.pipeline_mode<synchronous>, transform_indices = @transform_15, window_bounds = array<i64: 256, 128>}, {pipeline_mode = #tpu.pipeline_mode<synchronous>, transform_indices = @transform_16, window_bounds = array<i64: 3, 128>}, {pipeline_mode = #tpu.pipeline_mode<synchronous>, transform_indices = @transform_17, window_bounds = array<i64: 128, 128>}, {pipeline_mode = #tpu.pipeline_mode<synchronous>, transform_indices = @transform_18, window_bounds = array<i64: 3, 128>}, {pipeline_mode = #tpu.pipeline_mode<synchronous>, transform_indices = @transform_19, window_bounds = array<i64: 128, 2334>}, {pipeline_mode = #tpu.pipeline_mode<synchronous>, transform_indices = @transform_20, window_bounds = array<i64: 3, 2334>}, {pipeline_mode = #tpu.pipeline_mode<synchronous>, transform_indices = @transform_21, window_bounds = array<i64: 8, 2334>}]} {
    %c0 = arith.constant 0 : index
    %c0_0 = arith.constant 0 : index
    %0 = vector.load %arg1[%c0, %c0_0] : memref<8x4736xf32, #tpu.memory_space<vmem>>, vector<8x4736xf32>
    %c0_1 = arith.constant 0 : index
    %c0_2 = arith.constant 0 : index
    %1 = vector.load %arg2[%c0_1, %c0_2] : memref<4736x128xbf16, #tpu.memory_space<vmem>>, vector<4736x128xbf16>
    %c0_3 = arith.constant 0 : index
    %c0_4 = arith.constant 0 : index
    %2 = vector.load %arg3[%c0_3, %c0_4] : memref<3x128xf32, #tpu.memory_space<vmem>>, vector<3x128xf32>
    %3 = arith.truncf %0 : vector<8x4736xf32> to vector<8x4736xbf16>
    %cst = arith.constant dense<0.000000e+00> : vector<8x128xf32>
    %4 = tpu.matmul %3, %1, %cst {dimension_numbers = #tpu.dot_dimension_numbers<[1], [0], [0], [1], [0, 0, 1, 1], [], []>} : vector<8x4736xbf16>, vector<4736x128xbf16>, vector<8x128xf32> -> vector<8x128xf32>
    %5 = vector.extract_strided_slice %2 {offsets = [0, 0], sizes = [1, 128], strides = [1, 1]} : vector<3x128xf32> to vector<1x128xf32>
    %6 = vector.broadcast %5 : vector<1x128xf32> to vector<8x128xf32>
    %7 = arith.addf %4, %6 : vector<8x128xf32>
    %cst_5 = arith.constant dense<0.000000e+00> : vector<128xf32>
    %8 = vector.multi_reduction <add>, %7, %cst_5 [0] : vector<8x128xf32> to vector<128xf32>
    %9 = vector.shape_cast %8 : vector<128xf32> to vector<1x128xf32>
    %cst_6 = arith.constant 8.000000e+00 : f32
    %10 = vector.broadcast %cst_6 : f32 to vector<1x128xf32>
    %11 = arith.divf %9, %10 : vector<1x128xf32>
    %12 = vector.broadcast %11 : vector<1x128xf32> to vector<8x128xf32>
    %13 = arith.subf %7, %12 : vector<8x128xf32>
    %14 = arith.mulf %13, %13 : vector<8x128xf32>
    %cst_7 = arith.constant dense<0.000000e+00> : vector<128xf32>
    %15 = vector.multi_reduction <add>, %14, %cst_7 [0] : vector<8x128xf32> to vector<128xf32>
    %16 = vector.shape_cast %15 : vector<128xf32> to vector<1x128xf32>
    %cst_8 = arith.constant 8.000000e+00 : f32
    %17 = vector.broadcast %cst_8 : f32 to vector<1x128xf32>
    %18 = arith.divf %16, %17 : vector<1x128xf32>
    %19 = vector.broadcast %11 : vector<1x128xf32> to vector<8x128xf32>
    %20 = arith.subf %7, %19 : vector<8x128xf32>
    %cst_9 = arith.constant 9.99999974E-6 : f32
    %21 = vector.broadcast %cst_9 : f32 to vector<1x128xf32>
    %22 = arith.addf %18, %21 : vector<1x128xf32>
    %23 = math.rsqrt %22 : vector<1x128xf32>
    %24 = vector.broadcast %23 : vector<1x128xf32> to vector<8x128xf32>
    %25 = arith.mulf %20, %24 : vector<8x128xf32>
    %26 = vector.extract_strided_slice %2 {offsets = [1, 0], sizes = [1, 128], strides = [1, 1]} : vector<3x128xf32> to vector<1x128xf32>
    %27 = vector.broadcast %26 : vector<1x128xf32> to vector<8x128xf32>
    %28 = arith.mulf %25, %27 : vector<8x128xf32>
    %29 = vector.extract_strided_slice %2 {offsets = [2, 0], sizes = [1, 128], strides = [1, 1]} : vector<3x128xf32> to vector<1x128xf32>
    %30 = vector.broadcast %29 : vector<1x128xf32> to vector<8x128xf32>
    %31 = arith.addf %28, %30 : vector<8x128xf32>
    %cst_10 = arith.constant 0.000000e+00 : f32
    %32 = vector.broadcast %cst_10 : f32 to vector<8x128xf32>
    %33 = arith.maximumf %31, %32 : vector<8x128xf32>
    %c0_11 = arith.constant 0 : index
    %c0_12 = arith.constant 0 : index
    %34 = vector.load %arg4[%c0_11, %c0_12] : memref<128x128xbf16, #tpu.memory_space<vmem>>, vector<128x128xbf16>
    %c0_13 = arith.constant 0 : index
    %c0_14 = arith.constant 0 : index
    %35 = vector.load %arg5[%c0_13, %c0_14] : memref<3x128xf32, #tpu.memory_space<vmem>>, vector<3x128xf32>
    %36 = arith.truncf %33 : vector<8x128xf32> to vector<8x128xbf16>
    %cst_15 = arith.constant dense<0.000000e+00> : vector<8x128xf32>
    %37 = tpu.matmul %36, %34, %cst_15 {dimension_numbers = #tpu.dot_dimension_numbers<[1], [0], [0], [1], [0, 0, 1, 1], [], []>} : vector<8x128xbf16>, vector<128x128xbf16>, vector<8x128xf32> -> vector<8x128xf32>
    %38 = vector.extract_strided_slice %35 {offsets = [0, 0], sizes = [1, 128], strides = [1, 1]} : vector<3x128xf32> to vector<1x128xf32>
    %39 = vector.broadcast %38 : vector<1x128xf32> to vector<8x128xf32>
    %40 = arith.addf %37, %39 : vector<8x128xf32>
    %cst_16 = arith.constant dense<0.000000e+00> : vector<128xf32>
    %41 = vector.multi_reduction <add>, %40, %cst_16 [0] : vector<8x128xf32> to vector<128xf32>
    %42 = vector.shape_cast %41 : vector<128xf32> to vector<1x128xf32>
    %cst_17 = arith.constant 8.000000e+00 : f32
    %43 = vector.broadcast %cst_17 : f32 to vector<1x128xf32>
    %44 = arith.divf %42, %43 : vector<1x128xf32>
    %45 = vector.broadcast %44 : vector<1x128xf32> to vector<8x128xf32>
    %46 = arith.subf %40, %45 : vector<8x128xf32>
    %47 = arith.mulf %46, %46 : vector<8x128xf32>
    %cst_18 = arith.constant dense<0.000000e+00> : vector<128xf32>
    %48 = vector.multi_reduction <add>, %47, %cst_18 [0] : vector<8x128xf32> to vector<128xf32>
    %49 = vector.shape_cast %48 : vector<128xf32> to vector<1x128xf32>
    %cst_19 = arith.constant 8.000000e+00 : f32
    %50 = vector.broadcast %cst_19 : f32 to vector<1x128xf32>
    %51 = arith.divf %49, %50 : vector<1x128xf32>
    %52 = vector.broadcast %44 : vector<1x128xf32> to vector<8x128xf32>
    %53 = arith.subf %40, %52 : vector<8x128xf32>
    %cst_20 = arith.constant 9.99999974E-6 : f32
    %54 = vector.broadcast %cst_20 : f32 to vector<1x128xf32>
    %55 = arith.addf %51, %54 : vector<1x128xf32>
    %56 = math.rsqrt %55 : vector<1x128xf32>
    %57 = vector.broadcast %56 : vector<1x128xf32> to vector<8x128xf32>
    %58 = arith.mulf %53, %57 : vector<8x128xf32>
    %59 = vector.extract_strided_slice %35 {offsets = [1, 0], sizes = [1, 128], strides = [1, 1]} : vector<3x128xf32> to vector<1x128xf32>
    %60 = vector.broadcast %59 : vector<1x128xf32> to vector<8x128xf32>
    %61 = arith.mulf %58, %60 : vector<8x128xf32>
    %62 = vector.extract_strided_slice %35 {offsets = [2, 0], sizes = [1, 128], strides = [1, 1]} : vector<3x128xf32> to vector<1x128xf32>
    %63 = vector.broadcast %62 : vector<1x128xf32> to vector<8x128xf32>
    %64 = arith.addf %61, %63 : vector<8x128xf32>
    %cst_21 = arith.constant 0.000000e+00 : f32
    %65 = vector.broadcast %cst_21 : f32 to vector<8x128xf32>
    %66 = arith.maximumf %64, %65 : vector<8x128xf32>
    %c0_22 = arith.constant 0 : index
    %c0_23 = arith.constant 0 : index
    %67 = vector.load %arg6[%c0_22, %c0_23] : memref<128x256xbf16, #tpu.memory_space<vmem>>, vector<128x256xbf16>
    %c0_24 = arith.constant 0 : index
    %c0_25 = arith.constant 0 : index
    %68 = vector.load %arg7[%c0_24, %c0_25] : memref<3x256xf32, #tpu.memory_space<vmem>>, vector<3x256xf32>
    %69 = arith.truncf %66 : vector<8x128xf32> to vector<8x128xbf16>
    %cst_26 = arith.constant dense<0.000000e+00> : vector<8x256xf32>
    %70 = tpu.matmul %69, %67, %cst_26 {dimension_numbers = #tpu.dot_dimension_numbers<[1], [0], [0], [1], [0, 0, 1, 1], [], []>} : vector<8x128xbf16>, vector<128x256xbf16>, vector<8x256xf32> -> vector<8x256xf32>
    %71 = vector.extract_strided_slice %68 {offsets = [0, 0], sizes = [1, 256], strides = [1, 1]} : vector<3x256xf32> to vector<1x256xf32>
    %72 = vector.broadcast %71 : vector<1x256xf32> to vector<8x256xf32>
    %73 = arith.addf %70, %72 : vector<8x256xf32>
    %cst_27 = arith.constant dense<0.000000e+00> : vector<256xf32>
    %74 = vector.multi_reduction <add>, %73, %cst_27 [0] : vector<8x256xf32> to vector<256xf32>
    %75 = vector.shape_cast %74 : vector<256xf32> to vector<1x256xf32>
    %cst_28 = arith.constant 8.000000e+00 : f32
    %76 = vector.broadcast %cst_28 : f32 to vector<1x256xf32>
    %77 = arith.divf %75, %76 : vector<1x256xf32>
    %78 = vector.broadcast %77 : vector<1x256xf32> to vector<8x256xf32>
    %79 = arith.subf %73, %78 : vector<8x256xf32>
    %80 = arith.mulf %79, %79 : vector<8x256xf32>
    %cst_29 = arith.constant dense<0.000000e+00> : vector<256xf32>
    %81 = vector.multi_reduction <add>, %80, %cst_29 [0] : vector<8x256xf32> to vector<256xf32>
    %82 = vector.shape_cast %81 : vector<256xf32> to vector<1x256xf32>
    %cst_30 = arith.constant 8.000000e+00 : f32
    %83 = vector.broadcast %cst_30 : f32 to vector<1x256xf32>
    %84 = arith.divf %82, %83 : vector<1x256xf32>
    %85 = vector.broadcast %77 : vector<1x256xf32> to vector<8x256xf32>
    %86 = arith.subf %73, %85 : vector<8x256xf32>
    %cst_31 = arith.constant 9.99999974E-6 : f32
    %87 = vector.broadcast %cst_31 : f32 to vector<1x256xf32>
    %88 = arith.addf %84, %87 : vector<1x256xf32>
    %89 = math.rsqrt %88 : vector<1x256xf32>
    %90 = vector.broadcast %89 : vector<1x256xf32> to vector<8x256xf32>
    %91 = arith.mulf %86, %90 : vector<8x256xf32>
    %92 = vector.extract_strided_slice %68 {offsets = [1, 0], sizes = [1, 256], strides = [1, 1]} : vector<3x256xf32> to vector<1x256xf32>
    %93 = vector.broadcast %92 : vector<1x256xf32> to vector<8x256xf32>
    %94 = arith.mulf %91, %93 : vector<8x256xf32>
    %95 = vector.extract_strided_slice %68 {offsets = [2, 0], sizes = [1, 256], strides = [1, 1]} : vector<3x256xf32> to vector<1x256xf32>
    %96 = vector.broadcast %95 : vector<1x256xf32> to vector<8x256xf32>
    %97 = arith.addf %94, %96 : vector<8x256xf32>
    %cst_32 = arith.constant 0.000000e+00 : f32
    %98 = vector.broadcast %cst_32 : f32 to vector<8x256xf32>
    %99 = arith.maximumf %97, %98 : vector<8x256xf32>
    %c0_33 = arith.constant 0 : index
    %c0_34 = arith.constant 0 : index
    %100 = vector.load %arg8[%c0_33, %c0_34] : memref<256x512xbf16, #tpu.memory_space<vmem>>, vector<256x512xbf16>
    %c0_35 = arith.constant 0 : index
    %c0_36 = arith.constant 0 : index
    %101 = vector.load %arg9[%c0_35, %c0_36] : memref<3x512xf32, #tpu.memory_space<vmem>>, vector<3x512xf32>
    %102 = arith.truncf %99 : vector<8x256xf32> to vector<8x256xbf16>
    %cst_37 = arith.constant dense<0.000000e+00> : vector<8x512xf32>
    %103 = tpu.matmul %102, %100, %cst_37 {dimension_numbers = #tpu.dot_dimension_numbers<[1], [0], [0], [1], [0, 0, 1, 1], [], []>} : vector<8x256xbf16>, vector<256x512xbf16>, vector<8x512xf32> -> vector<8x512xf32>
    %104 = vector.extract_strided_slice %101 {offsets = [0, 0], sizes = [1, 512], strides = [1, 1]} : vector<3x512xf32> to vector<1x512xf32>
    %105 = vector.broadcast %104 : vector<1x512xf32> to vector<8x512xf32>
    %106 = arith.addf %103, %105 : vector<8x512xf32>
    %cst_38 = arith.constant dense<0.000000e+00> : vector<512xf32>
    %107 = vector.multi_reduction <add>, %106, %cst_38 [0] : vector<8x512xf32> to vector<512xf32>
    %108 = vector.shape_cast %107 : vector<512xf32> to vector<1x512xf32>
    %cst_39 = arith.constant 8.000000e+00 : f32
    %109 = vector.broadcast %cst_39 : f32 to vector<1x512xf32>
    %110 = arith.divf %108, %109 : vector<1x512xf32>
    %111 = vector.broadcast %110 : vector<1x512xf32> to vector<8x512xf32>
    %112 = arith.subf %106, %111 : vector<8x512xf32>
    %113 = arith.mulf %112, %112 : vector<8x512xf32>
    %cst_40 = arith.constant dense<0.000000e+00> : vector<512xf32>
    %114 = vector.multi_reduction <add>, %113, %cst_40 [0] : vector<8x512xf32> to vector<512xf32>
    %115 = vector.shape_cast %114 : vector<512xf32> to vector<1x512xf32>
    %cst_41 = arith.constant 8.000000e+00 : f32
    %116 = vector.broadcast %cst_41 : f32 to vector<1x512xf32>
    %117 = arith.divf %115, %116 : vector<1x512xf32>
    %118 = vector.broadcast %110 : vector<1x512xf32> to vector<8x512xf32>
    %119 = arith.subf %106, %118 : vector<8x512xf32>
    %cst_42 = arith.constant 9.99999974E-6 : f32
    %120 = vector.broadcast %cst_42 : f32 to vector<1x512xf32>
    %121 = arith.addf %117, %120 : vector<1x512xf32>
    %122 = math.rsqrt %121 : vector<1x512xf32>
    %123 = vector.broadcast %122 : vector<1x512xf32> to vector<8x512xf32>
    %124 = arith.mulf %119, %123 : vector<8x512xf32>
    %125 = vector.extract_strided_slice %101 {offsets = [1, 0], sizes = [1, 512], strides = [1, 1]} : vector<3x512xf32> to vector<1x512xf32>
    %126 = vector.broadcast %125 : vector<1x512xf32> to vector<8x512xf32>
    %127 = arith.mulf %124, %126 : vector<8x512xf32>
    %128 = vector.extract_strided_slice %101 {offsets = [2, 0], sizes = [1, 512], strides = [1, 1]} : vector<3x512xf32> to vector<1x512xf32>
    %129 = vector.broadcast %128 : vector<1x512xf32> to vector<8x512xf32>
    %130 = arith.addf %127, %129 : vector<8x512xf32>
    %cst_43 = arith.constant 0.000000e+00 : f32
    %131 = vector.broadcast %cst_43 : f32 to vector<8x512xf32>
    %132 = arith.maximumf %130, %131 : vector<8x512xf32>
    %c0_44 = arith.constant 0 : index
    %c0_45 = arith.constant 0 : index
    %133 = vector.load %arg10[%c0_44, %c0_45] : memref<512x1024xbf16, #tpu.memory_space<vmem>>, vector<512x1024xbf16>
    %c0_46 = arith.constant 0 : index
    %c0_47 = arith.constant 0 : index
    %134 = vector.load %arg11[%c0_46, %c0_47] : memref<3x1024xf32, #tpu.memory_space<vmem>>, vector<3x1024xf32>
    %135 = arith.truncf %132 : vector<8x512xf32> to vector<8x512xbf16>
    %cst_48 = arith.constant dense<0.000000e+00> : vector<8x1024xf32>
    %136 = tpu.matmul %135, %133, %cst_48 {dimension_numbers = #tpu.dot_dimension_numbers<[1], [0], [0], [1], [0, 0, 1, 1], [], []>} : vector<8x512xbf16>, vector<512x1024xbf16>, vector<8x1024xf32> -> vector<8x1024xf32>
    %137 = vector.extract_strided_slice %134 {offsets = [0, 0], sizes = [1, 1024], strides = [1, 1]} : vector<3x1024xf32> to vector<1x1024xf32>
    %138 = vector.broadcast %137 : vector<1x1024xf32> to vector<8x1024xf32>
    %139 = arith.addf %136, %138 : vector<8x1024xf32>
    %cst_49 = arith.constant dense<0.000000e+00> : vector<1024xf32>
    %140 = vector.multi_reduction <add>, %139, %cst_49 [0] : vector<8x1024xf32> to vector<1024xf32>
    %141 = vector.shape_cast %140 : vector<1024xf32> to vector<1x1024xf32>
    %cst_50 = arith.constant 8.000000e+00 : f32
    %142 = vector.broadcast %cst_50 : f32 to vector<1x1024xf32>
    %143 = arith.divf %141, %142 : vector<1x1024xf32>
    %144 = vector.broadcast %143 : vector<1x1024xf32> to vector<8x1024xf32>
    %145 = arith.subf %139, %144 : vector<8x1024xf32>
    %146 = arith.mulf %145, %145 : vector<8x1024xf32>
    %cst_51 = arith.constant dense<0.000000e+00> : vector<1024xf32>
    %147 = vector.multi_reduction <add>, %146, %cst_51 [0] : vector<8x1024xf32> to vector<1024xf32>
    %148 = vector.shape_cast %147 : vector<1024xf32> to vector<1x1024xf32>
    %cst_52 = arith.constant 8.000000e+00 : f32
    %149 = vector.broadcast %cst_52 : f32 to vector<1x1024xf32>
    %150 = arith.divf %148, %149 : vector<1x1024xf32>
    %151 = vector.broadcast %143 : vector<1x1024xf32> to vector<8x1024xf32>
    %152 = arith.subf %139, %151 : vector<8x1024xf32>
    %cst_53 = arith.constant 9.99999974E-6 : f32
    %153 = vector.broadcast %cst_53 : f32 to vector<1x1024xf32>
    %154 = arith.addf %150, %153 : vector<1x1024xf32>
    %155 = math.rsqrt %154 : vector<1x1024xf32>
    %156 = vector.broadcast %155 : vector<1x1024xf32> to vector<8x1024xf32>
    %157 = arith.mulf %152, %156 : vector<8x1024xf32>
    %158 = vector.extract_strided_slice %134 {offsets = [1, 0], sizes = [1, 1024], strides = [1, 1]} : vector<3x1024xf32> to vector<1x1024xf32>
    %159 = vector.broadcast %158 : vector<1x1024xf32> to vector<8x1024xf32>
    %160 = arith.mulf %157, %159 : vector<8x1024xf32>
    %161 = vector.extract_strided_slice %134 {offsets = [2, 0], sizes = [1, 1024], strides = [1, 1]} : vector<3x1024xf32> to vector<1x1024xf32>
    %162 = vector.broadcast %161 : vector<1x1024xf32> to vector<8x1024xf32>
    %163 = arith.addf %160, %162 : vector<8x1024xf32>
    %cst_54 = arith.constant 0.000000e+00 : f32
    %164 = vector.broadcast %cst_54 : f32 to vector<8x1024xf32>
    %165 = arith.maximumf %163, %164 : vector<8x1024xf32>
    %c0_55 = arith.constant 0 : index
    %c0_56 = arith.constant 0 : index
    %166 = vector.load %arg12[%c0_55, %c0_56] : memref<1024x512xbf16, #tpu.memory_space<vmem>>, vector<1024x512xbf16>
    %c0_57 = arith.constant 0 : index
    %c0_58 = arith.constant 0 : index
    %167 = vector.load %arg13[%c0_57, %c0_58] : memref<3x512xf32, #tpu.memory_space<vmem>>, vector<3x512xf32>
    %168 = arith.truncf %165 : vector<8x1024xf32> to vector<8x1024xbf16>
    %cst_59 = arith.constant dense<0.000000e+00> : vector<8x512xf32>
    %169 = tpu.matmul %168, %166, %cst_59 {dimension_numbers = #tpu.dot_dimension_numbers<[1], [0], [0], [1], [0, 0, 1, 1], [], []>} : vector<8x1024xbf16>, vector<1024x512xbf16>, vector<8x512xf32> -> vector<8x512xf32>
    %170 = vector.extract_strided_slice %167 {offsets = [0, 0], sizes = [1, 512], strides = [1, 1]} : vector<3x512xf32> to vector<1x512xf32>
    %171 = vector.broadcast %170 : vector<1x512xf32> to vector<8x512xf32>
    %172 = arith.addf %169, %171 : vector<8x512xf32>
    %cst_60 = arith.constant dense<0.000000e+00> : vector<512xf32>
    %173 = vector.multi_reduction <add>, %172, %cst_60 [0] : vector<8x512xf32> to vector<512xf32>
    %174 = vector.shape_cast %173 : vector<512xf32> to vector<1x512xf32>
    %cst_61 = arith.constant 8.000000e+00 : f32
    %175 = vector.broadcast %cst_61 : f32 to vector<1x512xf32>
    %176 = arith.divf %174, %175 : vector<1x512xf32>
    %177 = vector.broadcast %176 : vector<1x512xf32> to vector<8x512xf32>
    %178 = arith.subf %172, %177 : vector<8x512xf32>
    %179 = arith.mulf %178, %178 : vector<8x512xf32>
    %cst_62 = arith.constant dense<0.000000e+00> : vector<512xf32>
    %180 = vector.multi_reduction <add>, %179, %cst_62 [0] : vector<8x512xf32> to vector<512xf32>
    %181 = vector.shape_cast %180 : vector<512xf32> to vector<1x512xf32>
    %cst_63 = arith.constant 8.000000e+00 : f32
    %182 = vector.broadcast %cst_63 : f32 to vector<1x512xf32>
    %183 = arith.divf %181, %182 : vector<1x512xf32>
    %184 = vector.broadcast %176 : vector<1x512xf32> to vector<8x512xf32>
    %185 = arith.subf %172, %184 : vector<8x512xf32>
    %cst_64 = arith.constant 9.99999974E-6 : f32
    %186 = vector.broadcast %cst_64 : f32 to vector<1x512xf32>
    %187 = arith.addf %183, %186 : vector<1x512xf32>
    %188 = math.rsqrt %187 : vector<1x512xf32>
    %189 = vector.broadcast %188 : vector<1x512xf32> to vector<8x512xf32>
    %190 = arith.mulf %185, %189 : vector<8x512xf32>
    %191 = vector.extract_strided_slice %167 {offsets = [1, 0], sizes = [1, 512], strides = [1, 1]} : vector<3x512xf32> to vector<1x512xf32>
    %192 = vector.broadcast %191 : vector<1x512xf32> to vector<8x512xf32>
    %193 = arith.mulf %190, %192 : vector<8x512xf32>
    %194 = vector.extract_strided_slice %167 {offsets = [2, 0], sizes = [1, 512], strides = [1, 1]} : vector<3x512xf32> to vector<1x512xf32>
    %195 = vector.broadcast %194 : vector<1x512xf32> to vector<8x512xf32>
    %196 = arith.addf %193, %195 : vector<8x512xf32>
    %cst_65 = arith.constant 0.000000e+00 : f32
    %197 = vector.broadcast %cst_65 : f32 to vector<8x512xf32>
    %198 = arith.maximumf %196, %197 : vector<8x512xf32>
    %c0_66 = arith.constant 0 : index
    %c0_67 = arith.constant 0 : index
    %199 = vector.load %arg14[%c0_66, %c0_67] : memref<512x256xbf16, #tpu.memory_space<vmem>>, vector<512x256xbf16>
    %c0_68 = arith.constant 0 : index
    %c0_69 = arith.constant 0 : index
    %200 = vector.load %arg15[%c0_68, %c0_69] : memref<3x256xf32, #tpu.memory_space<vmem>>, vector<3x256xf32>
    %201 = arith.truncf %198 : vector<8x512xf32> to vector<8x512xbf16>
    %cst_70 = arith.constant dense<0.000000e+00> : vector<8x256xf32>
    %202 = tpu.matmul %201, %199, %cst_70 {dimension_numbers = #tpu.dot_dimension_numbers<[1], [0], [0], [1], [0, 0, 1, 1], [], []>} : vector<8x512xbf16>, vector<512x256xbf16>, vector<8x256xf32> -> vector<8x256xf32>
    %203 = vector.extract_strided_slice %200 {offsets = [0, 0], sizes = [1, 256], strides = [1, 1]} : vector<3x256xf32> to vector<1x256xf32>
    %204 = vector.broadcast %203 : vector<1x256xf32> to vector<8x256xf32>
    %205 = arith.addf %202, %204 : vector<8x256xf32>
    %cst_71 = arith.constant dense<0.000000e+00> : vector<256xf32>
    %206 = vector.multi_reduction <add>, %205, %cst_71 [0] : vector<8x256xf32> to vector<256xf32>
    %207 = vector.shape_cast %206 : vector<256xf32> to vector<1x256xf32>
    %cst_72 = arith.constant 8.000000e+00 : f32
    %208 = vector.broadcast %cst_72 : f32 to vector<1x256xf32>
    %209 = arith.divf %207, %208 : vector<1x256xf32>
    %210 = vector.broadcast %209 : vector<1x256xf32> to vector<8x256xf32>
    %211 = arith.subf %205, %210 : vector<8x256xf32>
    %212 = arith.mulf %211, %211 : vector<8x256xf32>
    %cst_73 = arith.constant dense<0.000000e+00> : vector<256xf32>
    %213 = vector.multi_reduction <add>, %212, %cst_73 [0] : vector<8x256xf32> to vector<256xf32>
    %214 = vector.shape_cast %213 : vector<256xf32> to vector<1x256xf32>
    %cst_74 = arith.constant 8.000000e+00 : f32
    %215 = vector.broadcast %cst_74 : f32 to vector<1x256xf32>
    %216 = arith.divf %214, %215 : vector<1x256xf32>
    %217 = vector.broadcast %209 : vector<1x256xf32> to vector<8x256xf32>
    %218 = arith.subf %205, %217 : vector<8x256xf32>
    %cst_75 = arith.constant 9.99999974E-6 : f32
    %219 = vector.broadcast %cst_75 : f32 to vector<1x256xf32>
    %220 = arith.addf %216, %219 : vector<1x256xf32>
    %221 = math.rsqrt %220 : vector<1x256xf32>
    %222 = vector.broadcast %221 : vector<1x256xf32> to vector<8x256xf32>
    %223 = arith.mulf %218, %222 : vector<8x256xf32>
    %224 = vector.extract_strided_slice %200 {offsets = [1, 0], sizes = [1, 256], strides = [1, 1]} : vector<3x256xf32> to vector<1x256xf32>
    %225 = vector.broadcast %224 : vector<1x256xf32> to vector<8x256xf32>
    %226 = arith.mulf %223, %225 : vector<8x256xf32>
    %227 = vector.extract_strided_slice %200 {offsets = [2, 0], sizes = [1, 256], strides = [1, 1]} : vector<3x256xf32> to vector<1x256xf32>
    %228 = vector.broadcast %227 : vector<1x256xf32> to vector<8x256xf32>
    %229 = arith.addf %226, %228 : vector<8x256xf32>
    %cst_76 = arith.constant 0.000000e+00 : f32
    %230 = vector.broadcast %cst_76 : f32 to vector<8x256xf32>
    %231 = arith.maximumf %229, %230 : vector<8x256xf32>
    %c0_77 = arith.constant 0 : index
    %c0_78 = arith.constant 0 : index
    %232 = vector.load %arg16[%c0_77, %c0_78] : memref<256x128xbf16, #tpu.memory_space<vmem>>, vector<256x128xbf16>
    %c0_79 = arith.constant 0 : index
    %c0_80 = arith.constant 0 : index
    %233 = vector.load %arg17[%c0_79, %c0_80] : memref<3x128xf32, #tpu.memory_space<vmem>>, vector<3x128xf32>
    %234 = arith.truncf %231 : vector<8x256xf32> to vector<8x256xbf16>
    %cst_81 = arith.constant dense<0.000000e+00> : vector<8x128xf32>
    %235 = tpu.matmul %234, %232, %cst_81 {dimension_numbers = #tpu.dot_dimension_numbers<[1], [0], [0], [1], [0, 0, 1, 1], [], []>} : vector<8x256xbf16>, vector<256x128xbf16>, vector<8x128xf32> -> vector<8x128xf32>
    %236 = vector.extract_strided_slice %233 {offsets = [0, 0], sizes = [1, 128], strides = [1, 1]} : vector<3x128xf32> to vector<1x128xf32>
    %237 = vector.broadcast %236 : vector<1x128xf32> to vector<8x128xf32>
    %238 = arith.addf %235, %237 : vector<8x128xf32>
    %cst_82 = arith.constant dense<0.000000e+00> : vector<128xf32>
    %239 = vector.multi_reduction <add>, %238, %cst_82 [0] : vector<8x128xf32> to vector<128xf32>
    %240 = vector.shape_cast %239 : vector<128xf32> to vector<1x128xf32>
    %cst_83 = arith.constant 8.000000e+00 : f32
    %241 = vector.broadcast %cst_83 : f32 to vector<1x128xf32>
    %242 = arith.divf %240, %241 : vector<1x128xf32>
    %243 = vector.broadcast %242 : vector<1x128xf32> to vector<8x128xf32>
    %244 = arith.subf %238, %243 : vector<8x128xf32>
    %245 = arith.mulf %244, %244 : vector<8x128xf32>
    %cst_84 = arith.constant dense<0.000000e+00> : vector<128xf32>
    %246 = vector.multi_reduction <add>, %245, %cst_84 [0] : vector<8x128xf32> to vector<128xf32>
    %247 = vector.shape_cast %246 : vector<128xf32> to vector<1x128xf32>
    %cst_85 = arith.constant 8.000000e+00 : f32
    %248 = vector.broadcast %cst_85 : f32 to vector<1x128xf32>
    %249 = arith.divf %247, %248 : vector<1x128xf32>
    %250 = vector.broadcast %242 : vector<1x128xf32> to vector<8x128xf32>
    %251 = arith.subf %238, %250 : vector<8x128xf32>
    %cst_86 = arith.constant 9.99999974E-6 : f32
    %252 = vector.broadcast %cst_86 : f32 to vector<1x128xf32>
    %253 = arith.addf %249, %252 : vector<1x128xf32>
    %254 = math.rsqrt %253 : vector<1x128xf32>
    %255 = vector.broadcast %254 : vector<1x128xf32> to vector<8x128xf32>
    %256 = arith.mulf %251, %255 : vector<8x128xf32>
    %257 = vector.extract_strided_slice %233 {offsets = [1, 0], sizes = [1, 128], strides = [1, 1]} : vector<3x128xf32> to vector<1x128xf32>
    %258 = vector.broadcast %257 : vector<1x128xf32> to vector<8x128xf32>
    %259 = arith.mulf %256, %258 : vector<8x128xf32>
    %260 = vector.extract_strided_slice %233 {offsets = [2, 0], sizes = [1, 128], strides = [1, 1]} : vector<3x128xf32> to vector<1x128xf32>
    %261 = vector.broadcast %260 : vector<1x128xf32> to vector<8x128xf32>
    %262 = arith.addf %259, %261 : vector<8x128xf32>
    %cst_87 = arith.constant 0.000000e+00 : f32
    %263 = vector.broadcast %cst_87 : f32 to vector<8x128xf32>
    %264 = arith.maximumf %262, %263 : vector<8x128xf32>
    %c0_88 = arith.constant 0 : index
    %c0_89 = arith.constant 0 : index
    %265 = vector.load %arg18[%c0_88, %c0_89] : memref<128x128xbf16, #tpu.memory_space<vmem>>, vector<128x128xbf16>
    %c0_90 = arith.constant 0 : index
    %c0_91 = arith.constant 0 : index
    %266 = vector.load %arg19[%c0_90, %c0_91] : memref<3x128xf32, #tpu.memory_space<vmem>>, vector<3x128xf32>
    %267 = arith.truncf %264 : vector<8x128xf32> to vector<8x128xbf16>
    %cst_92 = arith.constant dense<0.000000e+00> : vector<8x128xf32>
    %268 = tpu.matmul %267, %265, %cst_92 {dimension_numbers = #tpu.dot_dimension_numbers<[1], [0], [0], [1], [0, 0, 1, 1], [], []>} : vector<8x128xbf16>, vector<128x128xbf16>, vector<8x128xf32> -> vector<8x128xf32>
    %269 = vector.extract_strided_slice %266 {offsets = [0, 0], sizes = [1, 128], strides = [1, 1]} : vector<3x128xf32> to vector<1x128xf32>
    %270 = vector.broadcast %269 : vector<1x128xf32> to vector<8x128xf32>
    %271 = arith.addf %268, %270 : vector<8x128xf32>
    %cst_93 = arith.constant dense<0.000000e+00> : vector<128xf32>
    %272 = vector.multi_reduction <add>, %271, %cst_93 [0] : vector<8x128xf32> to vector<128xf32>
    %273 = vector.shape_cast %272 : vector<128xf32> to vector<1x128xf32>
    %cst_94 = arith.constant 8.000000e+00 : f32
    %274 = vector.broadcast %cst_94 : f32 to vector<1x128xf32>
    %275 = arith.divf %273, %274 : vector<1x128xf32>
    %276 = vector.broadcast %275 : vector<1x128xf32> to vector<8x128xf32>
    %277 = arith.subf %271, %276 : vector<8x128xf32>
    %278 = arith.mulf %277, %277 : vector<8x128xf32>
    %cst_95 = arith.constant dense<0.000000e+00> : vector<128xf32>
    %279 = vector.multi_reduction <add>, %278, %cst_95 [0] : vector<8x128xf32> to vector<128xf32>
    %280 = vector.shape_cast %279 : vector<128xf32> to vector<1x128xf32>
    %cst_96 = arith.constant 8.000000e+00 : f32
    %281 = vector.broadcast %cst_96 : f32 to vector<1x128xf32>
    %282 = arith.divf %280, %281 : vector<1x128xf32>
    %283 = vector.broadcast %275 : vector<1x128xf32> to vector<8x128xf32>
    %284 = arith.subf %271, %283 : vector<8x128xf32>
    %cst_97 = arith.constant 9.99999974E-6 : f32
    %285 = vector.broadcast %cst_97 : f32 to vector<1x128xf32>
    %286 = arith.addf %282, %285 : vector<1x128xf32>
    %287 = math.rsqrt %286 : vector<1x128xf32>
    %288 = vector.broadcast %287 : vector<1x128xf32> to vector<8x128xf32>
    %289 = arith.mulf %284, %288 : vector<8x128xf32>
    %290 = vector.extract_strided_slice %266 {offsets = [1, 0], sizes = [1, 128], strides = [1, 1]} : vector<3x128xf32> to vector<1x128xf32>
    %291 = vector.broadcast %290 : vector<1x128xf32> to vector<8x128xf32>
    %292 = arith.mulf %289, %291 : vector<8x128xf32>
    %293 = vector.extract_strided_slice %266 {offsets = [2, 0], sizes = [1, 128], strides = [1, 1]} : vector<3x128xf32> to vector<1x128xf32>
    %294 = vector.broadcast %293 : vector<1x128xf32> to vector<8x128xf32>
    %295 = arith.addf %292, %294 : vector<8x128xf32>
    %cst_98 = arith.constant 0.000000e+00 : f32
    %296 = vector.broadcast %cst_98 : f32 to vector<8x128xf32>
    %297 = arith.maximumf %295, %296 : vector<8x128xf32>
    %c0_99 = arith.constant 0 : index
    %c0_100 = arith.constant 0 : index
    %298 = vector.load %arg20[%c0_99, %c0_100] : memref<128x2334xbf16, #tpu.memory_space<vmem>>, vector<128x2334xbf16>
    %c0_101 = arith.constant 0 : index
    %c0_102 = arith.constant 0 : index
    %299 = vector.load %arg21[%c0_101, %c0_102] : memref<3x2334xf32, #tpu.memory_space<vmem>>, vector<3x2334xf32>
    %300 = arith.truncf %297 : vector<8x128xf32> to vector<8x128xbf16>
    %cst_103 = arith.constant dense<0.000000e+00> : vector<8x2334xf32>
    %301 = tpu.matmul %300, %298, %cst_103 {dimension_numbers = #tpu.dot_dimension_numbers<[1], [0], [0], [1], [0, 0, 1, 1], [], []>} : vector<8x128xbf16>, vector<128x2334xbf16>, vector<8x2334xf32> -> vector<8x2334xf32>
    %302 = vector.extract_strided_slice %299 {offsets = [0, 0], sizes = [1, 2334], strides = [1, 1]} : vector<3x2334xf32> to vector<1x2334xf32>
    %303 = vector.broadcast %302 : vector<1x2334xf32> to vector<8x2334xf32>
    %304 = arith.addf %301, %303 : vector<8x2334xf32>
    %cst_104 = arith.constant dense<0.000000e+00> : vector<2334xf32>
    %305 = vector.multi_reduction <add>, %304, %cst_104 [0] : vector<8x2334xf32> to vector<2334xf32>
    %306 = vector.shape_cast %305 : vector<2334xf32> to vector<1x2334xf32>
    %cst_105 = arith.constant 8.000000e+00 : f32
    %307 = vector.broadcast %cst_105 : f32 to vector<1x2334xf32>
    %308 = arith.divf %306, %307 : vector<1x2334xf32>
    %309 = vector.broadcast %308 : vector<1x2334xf32> to vector<8x2334xf32>
    %310 = arith.subf %304, %309 : vector<8x2334xf32>
    %311 = arith.mulf %310, %310 : vector<8x2334xf32>
    %cst_106 = arith.constant dense<0.000000e+00> : vector<2334xf32>
    %312 = vector.multi_reduction <add>, %311, %cst_106 [0] : vector<8x2334xf32> to vector<2334xf32>
    %313 = vector.shape_cast %312 : vector<2334xf32> to vector<1x2334xf32>
    %cst_107 = arith.constant 8.000000e+00 : f32
    %314 = vector.broadcast %cst_107 : f32 to vector<1x2334xf32>
    %315 = arith.divf %313, %314 : vector<1x2334xf32>
    %316 = vector.broadcast %308 : vector<1x2334xf32> to vector<8x2334xf32>
    %317 = arith.subf %304, %316 : vector<8x2334xf32>
    %cst_108 = arith.constant 9.99999974E-6 : f32
    %318 = vector.broadcast %cst_108 : f32 to vector<1x2334xf32>
    %319 = arith.addf %315, %318 : vector<1x2334xf32>
    %320 = math.rsqrt %319 : vector<1x2334xf32>
    %321 = vector.broadcast %320 : vector<1x2334xf32> to vector<8x2334xf32>
    %322 = arith.mulf %317, %321 : vector<8x2334xf32>
    %323 = vector.extract_strided_slice %299 {offsets = [1, 0], sizes = [1, 2334], strides = [1, 1]} : vector<3x2334xf32> to vector<1x2334xf32>
    %324 = vector.broadcast %323 : vector<1x2334xf32> to vector<8x2334xf32>
    %325 = arith.mulf %322, %324 : vector<8x2334xf32>
    %326 = vector.extract_strided_slice %299 {offsets = [2, 0], sizes = [1, 2334], strides = [1, 1]} : vector<3x2334xf32> to vector<1x2334xf32>
    %327 = vector.broadcast %326 : vector<1x2334xf32> to vector<8x2334xf32>
    %328 = arith.addf %325, %327 : vector<8x2334xf32>
    %c0_109 = arith.constant 0 : index
    %c0_110 = arith.constant 0 : index
    %329 = vector.load %arg22[%c0_109, %c0_110] : memref<8x2334xf32, #tpu.memory_space<vmem>>, vector<8x2334xf32>
    tpu.vector_store %arg22[%c0_109, %c0_110], %328 {strides = array<i32>} : memref<8x2334xf32, #tpu.memory_space<vmem>>, vector<8x2334xf32>,
    return
  }
  func.func @transform_0(%arg0: i32) -> (i32, i32) {
    %c0_i32 = arith.constant 0 : i32
    %c0_i32_0 = arith.constant 0 : i32
    %c0_i32_1 = arith.constant 0 : i32
    return %c0_i32, %c0_i32_0 : i32, i32
  }
  func.func @transform_1(%arg0: i32) -> (i32, i32) {
    %c0_i32 = arith.constant 0 : i32
    %c0_i32_0 = arith.constant 0 : i32
    %c0_i32_1 = arith.constant 0 : i32
    return %c0_i32, %c0_i32_0 : i32, i32
  }
  func.func @transform_2(%arg0: i32) -> (i32, i32) {
    %c0_i32 = arith.constant 0 : i32
    %c0_i32_0 = arith.constant 0 : i32
    %c0_i32_1 = arith.constant 0 : i32
    return %c0_i32, %c0_i32_0 : i32, i32
  }
  func.func @transform_3(%arg0: i32) -> (i32, i32) {
    %c0_i32 = arith.constant 0 : i32
    %c0_i32_0 = arith.constant 0 : i32
    %c0_i32_1 = arith.constant 0 : i32
    return %c0_i32, %c0_i32_0 : i32, i32
  }
  func.func @transform_4(%arg0: i32) -> (i32, i32) {
    %c0_i32 = arith.constant 0 : i32
    %c0_i32_0 = arith.constant 0 : i32
    %c0_i32_1 = arith.constant 0 : i32
    return %c0_i32, %c0_i32_0 : i32, i32
  }
  func.func @transform_5(%arg0: i32) -> (i32, i32) {
    %c0_i32 = arith.constant 0 : i32
    %c0_i32_0 = arith.constant 0 : i32
    %c0_i32_1 = arith.constant 0 : i32
    return %c0_i32, %c0_i32_0 : i32, i32
  }
  func.func @transform_6(%arg0: i32) -> (i32, i32) {
    %c0_i32 = arith.constant 0 : i32
    %c0_i32_0 = arith.constant 0 : i32
    %c0_i32_1 = arith.constant 0 : i32
    return %c0_i32, %c0_i32_0 : i32, i32
  }
  func.func @transform_7(%arg0: i32) -> (i32, i32) {
    %c0_i32 = arith.constant 0 : i32
    %c0_i32_0 = arith.constant 0 : i32
    %c0_i32_1 = arith.constant 0 : i32
    return %c0_i32, %c0_i32_0 : i32, i32
  }
  func.func @transform_8(%arg0: i32) -> (i32, i32) {
    %c0_i32 = arith.constant 0 : i32
    %c0_i32_0 = arith.constant 0 : i32
    %c0_i32_1 = arith.constant 0 : i32
    return %c0_i32, %c0_i32_0 : i32, i32
  }
  func.func @transform_9(%arg0: i32) -> (i32, i32) {
    %c0_i32 = arith.constant 0 : i32
    %c0_i32_0 = arith.constant 0 : i32
    %c0_i32_1 = arith.constant 0 : i32
    return %c0_i32, %c0_i32_0 : i32, i32
  }
  func.func @transform_10(%arg0: i32) -> (i32, i32) {
    %c0_i32 = arith.constant 0 : i32
    %c0_i32_0 = arith.constant 0 : i32
    %c0_i32_1 = arith.constant 0 : i32
    return %c0_i32, %c0_i32_0 : i32, i32
  }
  func.func @transform_11(%arg0: i32) -> (i32, i32) {
    %c0_i32 = arith.constant 0 : i32
    %c0_i32_0 = arith.constant 0 : i32
    %c0_i32_1 = arith.constant 0 : i32
    return %c0_i32, %c0_i32_0 : i32, i32
  }
  func.func @transform_12(%arg0: i32) -> (i32, i32) {
    %c0_i32 = arith.constant 0 : i32
    %c0_i32_0 = arith.constant 0 : i32
    %c0_i32_1 = arith.constant 0 : i32
    return %c0_i32, %c0_i32_0 : i32, i32
  }
  func.func @transform_13(%arg0: i32) -> (i32, i32) {
    %c0_i32 = arith.constant 0 : i32
    %c0_i32_0 = arith.constant 0 : i32
    %c0_i32_1 = arith.constant 0 : i32
    return %c0_i32, %c0_i32_0 : i32, i32
  }
  func.func @transform_14(%arg0: i32) -> (i32, i32) {
    %c0_i32 = arith.constant 0 : i32
    %c0_i32_0 = arith.constant 0 : i32
    %c0_i32_1 = arith.constant 0 : i32
    return %c0_i32, %c0_i32_0 : i32, i32
  }
  func.func @transform_15(%arg0: i32) -> (i32, i32) {
    %c0_i32 = arith.constant 0 : i32
    %c0_i32_0 = arith.constant 0 : i32
    %c0_i32_1 = arith.constant 0 : i32
    return %c0_i32, %c0_i32_0 : i32, i32
  }
  func.func @transform_16(%arg0: i32) -> (i32, i32) {
    %c0_i32 = arith.constant 0 : i32
    %c0_i32_0 = arith.constant 0 : i32
    %c0_i32_1 = arith.constant 0 : i32
    return %c0_i32, %c0_i32_0 : i32, i32
  }
  func.func @transform_17(%arg0: i32) -> (i32, i32) {
    %c0_i32 = arith.constant 0 : i32
    %c0_i32_0 = arith.constant 0 : i32
    %c0_i32_1 = arith.constant 0 : i32
    return %c0_i32, %c0_i32_0 : i32, i32
  }
  func.func @transform_18(%arg0: i32) -> (i32, i32) {
    %c0_i32 = arith.constant 0 : i32
    %c0_i32_0 = arith.constant 0 : i32
    %c0_i32_1 = arith.constant 0 : i32
    return %c0_i32, %c0_i32_0 : i32, i32
  }
  func.func @transform_19(%arg0: i32) -> (i32, i32) {
    %c0_i32 = arith.constant 0 : i32
    %c0_i32_0 = arith.constant 0 : i32
    %c0_i32_1 = arith.constant 0 : i32
    return %c0_i32, %c0_i32_0 : i32, i32
  }
  func.func @transform_20(%arg0: i32) -> (i32, i32) {
    %c0_i32 = arith.constant 0 : i32
    %c0_i32_0 = arith.constant 0 : i32
    %c0_i32_1 = arith.constant 0 : i32
    return %c0_i32, %c0_i32_0 : i32, i32
  }
  func.func @transform_21(%arg0: i32) -> (i32, i32) {
    %c0_i32 = arith.constant 0 : i32
    %c0_i32_0 = arith.constant 0 : i32
    %c0_i32_1 = arith.constant 0 : i32
    return %c0_i32, %c0_i32_0 : i32, i32
  }
}

</mosaic_0001>

<llo_original>
// kernel: pointnet_encoder_forward.1
$region0: #{pointnet_encoder_forward.1}
  #allocation0 [shape = 'u32[]', space=smem, size = 0x4, offset = 0x4, fixed_abs, tag = 'smem constant byte address 0x4 - core index']
  #allocation1 [shape = 'u32[144,128]{1,0:T(1,128)}', space=vmem, size = 0x12000, scoped, tag = 'internal scratch']
  %s0 = inlined_call_operand.vmem [shape: f32[8,4736], index: 0, kind: input, shape index: {}]
  %s1 = inlined_call_operand.vmem [shape: bf16[4736,128], index: 1, kind: input, shape index: {}]
  %s2 = inlined_call_operand.vmem [shape: f32[3,128], index: 2, kind: input, shape index: {}]
  %s3 = inlined_call_operand.hbm [shape: bf16[128,128], index: 3, kind: input, shape index: {}]
  %s4 = inlined_call_operand.hbm [shape: f32[3,128], index: 4, kind: input, shape index: {}]
  %s5 = inlined_call_operand.vmem [shape: bf16[128,256], index: 5, kind: input, shape index: {}]
  %s6 = inlined_call_operand.vmem [shape: f32[3,256], index: 6, kind: input, shape index: {}]
  %s7 = inlined_call_operand.vmem [shape: bf16[256,512], index: 7, kind: input, shape index: {}]
  %s8 = inlined_call_operand.hbm [shape: f32[3,512], index: 8, kind: input, shape index: {}]
  %s9 = inlined_call_operand.hbm [shape: bf16[512,1024], index: 9, kind: input, shape index: {}]
  %s10 = inlined_call_operand.vmem [shape: f32[3,1024], index: 10, kind: input, shape index: {}]
  %s11 = inlined_call_operand.hbm [shape: bf16[1024,512], index: 11, kind: input, shape index: {}]
  %s12 = inlined_call_operand.hbm [shape: f32[3,512], index: 12, kind: input, shape index: {}]
  %s13 = inlined_call_operand.vmem [shape: bf16[512,256], index: 13, kind: input, shape index: {}]
  %s14 = inlined_call_operand.hbm [shape: f32[3,256], index: 14, kind: input, shape index: {}]
  %s15 = inlined_call_operand.hbm [shape: bf16[256,128], index: 15, kind: input, shape index: {}]
  %s16 = inlined_call_operand.hbm [shape: f32[3,128], index: 16, kind: input, shape index: {}]
  %s17 = inlined_call_operand.hbm [shape: bf16[128,128], index: 17, kind: input, shape index: {}]
  %s18 = inlined_call_operand.hbm [shape: f32[3,128], index: 18, kind: input, shape index: {}]
  %s19 = inlined_call_operand.vmem [shape: bf16[128,2334], index: 19, kind: input, shape index: {}]
  %s20 = inlined_call_operand.vmem [shape: f32[3,2334], index: 20, kind: input, shape index: {}]
  %s21 = inlined_call_operand.vmem [shape: f32[8,2334], index: 21, kind: output, shape index: {}]
  %s22 = sld [smem:[#allocation0]]
  $region138: #{pointnet_encoder_forward.1} parent=0
    _
  %s24 = ssub.s32 1, %s22
  %s25 = scalar_select 0, %s24, %s22
  $region1: #{pointnet_encoder_forward.1} parent=0
    #allocation2 [shape = 'u8[32768]{0}', space=vmem, size = 0x8000, scoped, tag = 'input window, operand 3, single buffered']
    #allocation3 [shape = 's32[1]{0}', space=sflag, size = 0x4, scoped, tag = 'scoped memory for pointnet_encoder_forward.1']
    #allocation4 [shape = 'u8[2048]{0}', space=vmem, size = 0x800, scoped, tag = 'input window, operand 4, single buffered']
    #allocation5 [shape = 's32[1]{0}', space=sflag, size = 0x4, scoped, tag = 'scoped memory for pointnet_encoder_forward.1']
    #allocation6 [shape = 'u8[8192]{0}', space=vmem, size = 0x2000, scoped, tag = 'input window, operand 8, single buffered']
    #allocation7 [shape = 'u8[1048576]{0}', space=vmem, size = 0x100000, scoped, tag = 'input window, operand 9, single buffered']
    #allocation8 [shape = 's32[1]{0}', space=sflag, size = 0x4, scoped, tag = 'scoped memory for pointnet_encoder_forward.1']
    #allocation9 [shape = 'u8[1048576]{0}', space=vmem, size = 0x100000, scoped, tag = 'input window, operand 11, single buffered']
    #allocation10 [shape = 'u8[8192]{0}', space=vmem, size = 0x2000, scoped, tag = 'input window, operand 12, single buffered']
    #allocation11 [shape = 's32[1]{0}', space=sflag, size = 0x4, scoped, tag = 'scoped memory for pointnet_encoder_forward.1']
    #allocation12 [shape = 'u8[4096]{0}', space=vmem, size = 0x1000, scoped, tag = 'input window, operand 14, single buffered']
    #allocation13 [shape = 'u8[65536]{0}', space=vmem, size = 0x10000, scoped, tag = 'input window, operand 15, single buffered']
    #allocation14 [shape = 's32[1]{0}', space=sflag, size = 0x4, scoped, tag = 'scoped memory for pointnet_encoder_forward.1']
    #allocation15 [shape = 'u8[2048]{0}', space=vmem, size = 0x800, scoped, tag = 'input window, operand 16, single buffered']
    #allocation16 [shape = 'u8[32768]{0}', space=vmem, size = 0x8000, scoped, tag = 'input window, operand 17, single buffered']
    #allocation17 [shape = 's32[1]{0}', space=sflag, size = 0x4, scoped, tag = 'scoped memory for pointnet_encoder_forward.1']
    #allocation18 [shape = 'u8[2048]{0}', space=vmem, size = 0x800, scoped, tag = 'input window, operand 18, single buffered']
    %26 = vsyncpa [#allocation3], 0
    %27 = vsyncpa [#allocation5], 0
    %28 = vsyncpa [#allocation8], 0
    %29 = vsyncpa [#allocation11], 0
    %30 = vsyncpa [#allocation14], 0
    %31 = vsyncpa [#allocation17], 0
    // Predicated region
    $region2: #{pointnet_encoder_forward.1} parent=1 // pred_check
      _
    $region3: #{pointnet_encoder_forward.1} parent=1 // pred_check_branch
      %33 = sbr.rel (0) target = $region5
    $region4: #{pointnet_encoder_forward.1} parent=1 // pred_region
      _
    $region5: #{pointnet_encoder_forward.1} parent=1 // pred_fallthru
      _
    // Predicated region
    $region6: #{pointnet_encoder_forward.1} parent=1 // pred_check
      _
    $region7: #{pointnet_encoder_forward.1} parent=1 // pred_check_branch
      %35 = sbr.rel (0) target = $region9
    $region8: #{pointnet_encoder_forward.1} parent=1 // pred_region
      _
    $region9: #{pointnet_encoder_forward.1} parent=1 // pred_fallthru
      _
    // Predicated region
    $region10: #{pointnet_encoder_forward.1} parent=1 // pred_check
      _
    $region11: #{pointnet_encoder_forward.1} parent=1 // pred_check_branch
      %37 = sbr.rel (0) target = $region13
    $region12: #{pointnet_encoder_forward.1} parent=1 // pred_region
      _
    $region13: #{pointnet_encoder_forward.1} parent=1 // pred_fallthru
      _
    // Predicated region
    $region14: #{pointnet_encoder_forward.1} parent=1 // pred_check
      _
    $region15: #{pointnet_encoder_forward.1} parent=1 // pred_check_branch
      %39 = sbr.rel (0) target = $region17
    $region16: #{pointnet_encoder_forward.1} parent=1 // pred_region
      %s41 = ssub.s32 1024, 1024
      %42 = vsyncadd [#allocation3], %s41
      %s43 = sshll.u32 [#allocation2], 4
      %s44 = int_to_ptr.vmem [resolvable:$true] %s43
      %49 = dma.hbm_to_vmem [thread:$0]  %s3, 1024, %s44, [#allocation3], 64, 64, 4
    $region17: #{pointnet_encoder_forward.1} parent=1 // pred_fallthru
      _
    // Predicated region
    $region18: #{pointnet_encoder_forward.1} parent=1 // pred_check
      _
    $region19: #{pointnet_encoder_forward.1} parent=1 // pred_check_branch
      %51 = sbr.rel (0) target = $region21
    $region20: #{pointnet_encoder_forward.1} parent=1 // pred_region
      %s53 = ssub.s32 64, 64
      %54 = vsyncadd [#allocation5], %s53
      %s56 = sshll.u32 [#allocation4], 4
      %s57 = int_to_ptr.vmem [resolvable:$true] %s56
      %59 = dma.hbm_to_vmem [thread:$0]  %s4, 64, %s57, [#allocation5]
    $region21: #{pointnet_encoder_forward.1} parent=1 // pred_fallthru
      _
    // Predicated region
    $region22: #{pointnet_encoder_forward.1} parent=1 // pred_check
      _
    $region23: #{pointnet_encoder_forward.1} parent=1 // pred_check_branch
      %61 = sbr.rel (0) target = $region25
    $region24: #{pointnet_encoder_forward.1} parent=1 // pred_region
      _
    $region25: #{pointnet_encoder_forward.1} parent=1 // pred_fallthru
      _
    // Predicated region
    $region26: #{pointnet_encoder_forward.1} parent=1 // pred_check
      _
    $region27: #{pointnet_encoder_forward.1} parent=1 // pred_check_branch
      %63 = sbr.rel (0) target = $region29
    $region28: #{pointnet_encoder_forward.1} parent=1 // pred_region
      _
    $region29: #{pointnet_encoder_forward.1} parent=1 // pred_fallthru
      _
    // Predicated region
    $region30: #{pointnet_encoder_forward.1} parent=1 // pred_check
      _
    $region31: #{pointnet_encoder_forward.1} parent=1 // pred_check_branch
      %65 = sbr.rel (0) target = $region33
    $region32: #{pointnet_encoder_forward.1} parent=1 // pred_region
      _
    $region33: #{pointnet_encoder_forward.1} parent=1 // pred_fallthru
      _
    // Predicated region
    $region34: #{pointnet_encoder_forward.1} parent=1 // pred_check
      _
    $region35: #{pointnet_encoder_forward.1} parent=1 // pred_check_branch
      %67 = sbr.rel (0) target = $region37
    $region36: #{pointnet_encoder_forward.1} parent=1 // pred_region
      %s69 = ssub.s32 256, 256
      %70 = vsyncadd [#allocation5], %s69
      %s72 = sshll.u32 [#allocation6], 4
      %s73 = int_to_ptr.vmem [resolvable:$true] %s72
      %75 = dma.hbm_to_vmem [thread:$0]  %s8, 256, %s73, [#allocation5]
    $region37: #{pointnet_encoder_forward.1} parent=1 // pred_fallthru
      _
    // Predicated region
    $region38: #{pointnet_encoder_forward.1} parent=1 // pred_check
      _
    $region39: #{pointnet_encoder_forward.1} parent=1 // pred_check_branch
      %77 = sbr.rel (0) target = $region41
    $region40: #{pointnet_encoder_forward.1} parent=1 // pred_region
      %s79 = ssub.s32 32768, 32768
      %80 = vsyncadd [#allocation8], %s79
      %s81 = sshll.u32 [#allocation7], 4
      %s82 = int_to_ptr.vmem [resolvable:$true] %s81
      %87 = dma.hbm_to_vmem [thread:$0]  %s9, 32768, %s82, [#allocation8], 512, 512, 32
    $region41: #{pointnet_encoder_forward.1} parent=1 // pred_fallthru
      _
    // Predicated region
    $region42: #{pointnet_encoder_forward.1} parent=1 // pred_check
      _
    $region43: #{pointnet_encoder_forward.1} parent=1 // pred_check_branch
      %89 = sbr.rel (0) target = $region45
    $region44: #{pointnet_encoder_forward.1} parent=1 // pred_region
      _
    $region45: #{pointnet_encoder_forward.1} parent=1 // pred_fallthru
      _
    // Predicated region
    $region46: #{pointnet_encoder_forward.1} parent=1 // pred_check
      _
    $region47: #{pointnet_encoder_forward.1} parent=1 // pred_check_branch
      %91 = sbr.rel (0) target = $region49
    $region48: #{pointnet_encoder_forward.1} parent=1 // pred_region
      %s93 = ssub.s32 32768, 32768
      %94 = vsyncadd [#allocation8], %s93
      %s95 = sshll.u32 [#allocation9], 4
      %s96 = int_to_ptr.vmem [resolvable:$true] %s95
      %101 = dma.hbm_to_vmem [thread:$0]  %s11, 32768, %s96, [#allocation8], 256, 256, 16
    $region49: #{pointnet_encoder_forward.1} parent=1 // pred_fallthru
      _
    // Predicated region
    $region50: #{pointnet_encoder_forward.1} parent=1 // pred_check
      _
    $region51: #{pointnet_encoder_forward.1} parent=1 // pred_check_branch
      %103 = sbr.rel (0) target = $region53
    $region52: #{pointnet_encoder_forward.1} parent=1 // pred_region
      %s105 = ssub.s32 256, 256
      %106 = vsyncadd [#allocation11], %s105
      %s108 = sshll.u32 [#allocation10], 4
      %s109 = int_to_ptr.vmem [resolvable:$true] %s108
      %111 = dma.hbm_to_vmem [thread:$0]  %s12, 256, %s109, [#allocation11]
    $region53: #{pointnet_encoder_forward.1} parent=1 // pred_fallthru
      _
    // Predicated region
    $region54: #{pointnet_encoder_forward.1} parent=1 // pred_check
      _
    $region55: #{pointnet_encoder_forward.1} parent=1 // pred_check_branch
      %113 = sbr.rel (0) target = $region57
    $region56: #{pointnet_encoder_forward.1} parent=1 // pred_region
      _
    $region57: #{pointnet_encoder_forward.1} parent=1 // pred_fallthru
      _
    // Predicated region
    $region58: #{pointnet_encoder_forward.1} parent=1 // pred_check
      _
    $region59: #{pointnet_encoder_forward.1} parent=1 // pred_check_branch
      %115 = sbr.rel (0) target = $region61
    $region60: #{pointnet_encoder_forward.1} parent=1 // pred_region
      %s117 = ssub.s32 128, 128
      %118 = vsyncadd [#allocation11], %s117
      %s120 = sshll.u32 [#allocation12], 4
      %s121 = int_to_ptr.vmem [resolvable:$true] %s120
      %123 = dma.hbm_to_vmem [thread:$0]  %s14, 128, %s121, [#allocation11]
    $region61: #{pointnet_encoder_forward.1} parent=1 // pred_fallthru
      _
    // Predicated region
    $region62: #{pointnet_encoder_forward.1} parent=1 // pred_check
      _
    $region63: #{pointnet_encoder_forward.1} parent=1 // pred_check_branch
      %125 = sbr.rel (0) target = $region65
    $region64: #{pointnet_encoder_forward.1} parent=1 // pred_region
      %s127 = ssub.s32 2048, 2048
      %128 = vsyncadd [#allocation14], %s127
      %s129 = sshll.u32 [#allocation13], 4
      %s130 = int_to_ptr.vmem [resolvable:$true] %s129
      %135 = dma.hbm_to_vmem [thread:$0]  %s15, 2048, %s130, [#allocation14], 64, 64, 4
    $region65: #{pointnet_encoder_forward.1} parent=1 // pred_fallthru
      _
    // Predicated region
    $region66: #{pointnet_encoder_forward.1} parent=1 // pred_check
      _
    $region67: #{pointnet_encoder_forward.1} parent=1 // pred_check_branch
      %137 = sbr.rel (0) target = $region69
    $region68: #{pointnet_encoder_forward.1} parent=1 // pred_region
      %s139 = ssub.s32 64, 64
      %140 = vsyncadd [#allocation14], %s139
      %s142 = sshll.u32 [#allocation15], 4
      %s143 = int_to_ptr.vmem [resolvable:$true] %s142
      %145 = dma.hbm_to_vmem [thread:$0]  %s16, 64, %s143, [#allocation14]
    $region69: #{pointnet_encoder_forward.1} parent=1 // pred_fallthru
      _
    // Predicated region
    $region70: #{pointnet_encoder_forward.1} parent=1 // pred_check
      _
    $region71: #{pointnet_encoder_forward.1} parent=1 // pred_check_branch
      %147 = sbr.rel (0) target = $region73
    $region72: #{pointnet_encoder_forward.1} parent=1 // pred_region
      %s149 = ssub.s32 1024, 1024
      %150 = vsyncadd [#allocation17], %s149
      %s151 = sshll.u32 [#allocation16], 4
      %s152 = int_to_ptr.vmem [resolvable:$true] %s151
      %157 = dma.hbm_to_vmem [thread:$0]  %s17, 1024, %s152, [#allocation17], 64, 64, 4
    $region73: #{pointnet_encoder_forward.1} parent=1 // pred_fallthru
      _
    // Predicated region
    $region74: #{pointnet_encoder_forward.1} parent=1 // pred_check
      _
    $region75: #{pointnet_encoder_forward.1} parent=1 // pred_check_branch
      %159 = sbr.rel (0) target = $region77
    $region76: #{pointnet_encoder_forward.1} parent=1 // pred_region
      %s161 = ssub.s32 64, 64
      %162 = vsyncadd [#allocation17], %s161
      %s164 = sshll.u32 [#allocation18], 4
      %s165 = int_to_ptr.vmem [resolvable:$true] %s164
      %167 = dma.hbm_to_vmem [thread:$0]  %s18, 64, %s165, [#allocation17]
    $region77: #{pointnet_encoder_forward.1} parent=1 // pred_fallthru
      _
    // Predicated region
    $region78: #{pointnet_encoder_forward.1} parent=1 // pred_check
      _
    $region79: #{pointnet_encoder_forward.1} parent=1 // pred_check_branch
      %169 = sbr.rel (0) target = $region81
    $region80: #{pointnet_encoder_forward.1} parent=1 // pred_region
      _
    $region81: #{pointnet_encoder_forward.1} parent=1 // pred_fallthru
      _
    // Predicated region
    $region82: #{pointnet_encoder_forward.1} parent=1 // pred_check
      _
    $region83: #{pointnet_encoder_forward.1} parent=1 // pred_check_branch
      %171 = sbr.rel (0) target = $region85
    $region84: #{pointnet_encoder_forward.1} parent=1 // pred_region
      _
    $region85: #{pointnet_encoder_forward.1} parent=1 // pred_fallthru
      _
    // Predicated region
    $region86: #{pointnet_encoder_forward.1} parent=1 // pred_check
      _
    $region87: #{pointnet_encoder_forward.1} parent=1 // pred_check_branch
      %173 = sbr.rel (0) target = $region89
    $region88: #{pointnet_encoder_forward.1} parent=1 // pred_region
      %174 = dma.done [#allocation3], 1024
    $region89: #{pointnet_encoder_forward.1} parent=1 // pred_fallthru
      _
    // Predicated region
    $region90: #{pointnet_encoder_forward.1} parent=1 // pred_check
      _
    $region91: #{pointnet_encoder_forward.1} parent=1 // pred_check_branch
      %176 = sbr.rel (0) target = $region93
    $region92: #{pointnet_encoder_forward.1} parent=1 // pred_region
      %177 = dma.done [#allocation5], 64
    $region93: #{pointnet_encoder_forward.1} parent=1 // pred_fallthru
      _
    // Predicated region
    $region94: #{pointnet_encoder_forward.1} parent=1 // pred_check
      _
    $region95: #{pointnet_encoder_forward.1} parent=1 // pred_check_branch
      %179 = sbr.rel (0) target = $region97
    $region96: #{pointnet_encoder_forward.1} parent=1 // pred_region
      %180 = dma.done [#allocation5], 256
    $region97: #{pointnet_encoder_forward.1} parent=1 // pred_fallthru
      _
    // Predicated region
    $region98: #{pointnet_encoder_forward.1} parent=1 // pred_check
      _
    $region99: #{pointnet_encoder_forward.1} parent=1 // pred_check_branch
      %182 = sbr.rel (0) target = $region101
    $region100: #{pointnet_encoder_forward.1} parent=1 // pred_region
      %183 = dma.done [#allocation8], 32768
    $region101: #{pointnet_encoder_forward.1} parent=1 // pred_fallthru
      _
    // Predicated region
    $region102: #{pointnet_encoder_forward.1} parent=1 // pred_check
      _
    $region103: #{pointnet_encoder_forward.1} parent=1 // pred_check_branch
      %185 = sbr.rel (0) target = $region105
    $region104: #{pointnet_encoder_forward.1} parent=1 // pred_region
      %186 = dma.done [#allocation8], 32768
    $region105: #{pointnet_encoder_forward.1} parent=1 // pred_fallthru
      _
    // Predicated region
    $region106: #{pointnet_encoder_forward.1} parent=1 // pred_check
      _
    $region107: #{pointnet_encoder_forward.1} parent=1 // pred_check_branch
      %188 = sbr.rel (0) target = $region109
    $region108: #{pointnet_encoder_forward.1} parent=1 // pred_region
      %189 = dma.done [#allocation11], 256
    $region109: #{pointnet_encoder_forward.1} parent=1 // pred_fallthru
      _
    // Predicated region
    $region110: #{pointnet_encoder_forward.1} parent=1 // pred_check
      _
    $region111: #{pointnet_encoder_forward.1} parent=1 // pred_check_branch
      %191 = sbr.rel (0) target = $region113
    $region112: #{pointnet_encoder_forward.1} parent=1 // pred_region
      %192 = dma.done [#allocation11], 128
    $region113: #{pointnet_encoder_forward.1} parent=1 // pred_fallthru
      _
    // Predicated region
    $region114: #{pointnet_encoder_forward.1} parent=1 // pred_check
      _
    $region115: #{pointnet_encoder_forward.1} parent=1 // pred_check_branch
      %194 = sbr.rel (0) target = $region117
    $region116: #{pointnet_encoder_forward.1} parent=1 // pred_region
      %195 = dma.done [#allocation14], 2048
    $region117: #{pointnet_encoder_forward.1} parent=1 // pred_fallthru
      _
    // Predicated region
    $region118: #{pointnet_encoder_forward.1} parent=1 // pred_check
      _
    $region119: #{pointnet_encoder_forward.1} parent=1 // pred_check_branch
      %197 = sbr.rel (0) target = $region121
    $region120: #{pointnet_encoder_forward.1} parent=1 // pred_region
      %198 = dma.done [#allocation14], 64
    $region121: #{pointnet_encoder_forward.1} parent=1 // pred_fallthru
      _
    // Predicated region
    $region122: #{pointnet_encoder_forward.1} parent=1 // pred_check
      _
    $region123: #{pointnet_encoder_forward.1} parent=1 // pred_check_branch
      %200 = sbr.rel (0) target = $region125
    $region124: #{pointnet_encoder_forward.1} parent=1 // pred_region
      %201 = dma.done [#allocation17], 1024
    $region125: #{pointnet_encoder_forward.1} parent=1 // pred_fallthru
      _
    // Predicated region
    $region126: #{pointnet_encoder_forward.1} parent=1 // pred_check
      _
    $region127: #{pointnet_encoder_forward.1} parent=1 // pred_check_branch
      %203 = sbr.rel (0) target = $region129
    $region128: #{pointnet_encoder_forward.1} parent=1 // pred_region
      %204 = dma.done [#allocation17], 64
    $region129: #{pointnet_encoder_forward.1} parent=1 // pred_fallthru
      _
    %v206 = vld [vmem:[%s0] sm:$0xff]
    %v207 = vld [vmem:[%s0 + $0x8] sm:$0xff]
    %v208 = vld [vmem:[%s0 + $0x10] sm:$0xff]
    %v209 = vld [vmem:[%s0 + $0x18] sm:$0xff]
    %v210 = vld [vmem:[%s0 + $0x20] sm:$0xff]
    %v211 = vld [vmem:[%s0 + $0x28] sm:$0xff]
    %v212 = vld [vmem:[%s0 + $0x30] sm:$0xff]
    %v213 = vld [vmem:[%s0 + $0x38] sm:$0xff]
    %v214 = vld [vmem:[%s0 + $0x40] sm:$0xff]
    %v215 = vld [vmem:[%s0 + $0x48] sm:$0xff]
    %v216 = vld [vmem:[%s0 + $0x50] sm:$0xff]
    %v217 = vld [vmem:[%s0 + $0x58] sm:$0xff]
    %v218 = vld [vmem:[%s0 + $0x60] sm:$0xff]
    %v219 = vld [vmem:[%s0 + $0x68] sm:$0xff]
    %v220 = vld [vmem:[%s0 + $0x70] sm:$0xff]
    %v221 = vld [vmem:[%s0 + $0x78] sm:$0xff]
    %v222 = vld [vmem:[%s0 + $0x80] sm:$0xff]
    %v223 = vld [vmem:[%s0 + $0x88] sm:$0xff]
    %v224 = vld [vmem:[%s0 + $0x90] sm:$0xff]
    %v225 = vld [vmem:[%s0 + $0x98] sm:$0xff]
    %v226 = vld [vmem:[%s0 + $0xa0] sm:$0xff]
    %v227 = vld [vmem:[%s0 + $0xa8] sm:$0xff]
    %v228 = vld [vmem:[%s0 + $0xb0] sm:$0xff]
    %v229 = vld [vmem:[%s0 + $0xb8] sm:$0xff]
    %v230 = vld [vmem:[%s0 + $0xc0] sm:$0xff]
    %v231 = vld [vmem:[%s0 + $0xc8] sm:$0xff]
    %v232 = vld [vmem:[%s0 + $0xd0] sm:$0xff]
    %v233 = vld [vmem:[%s0 + $0xd8] sm:$0xff]
    %v234 = vld [vmem:[%s0 + $0xe0] sm:$0xff]
    %v235 = vld [vmem:[%s0 + $0xe8] sm:$0xff]
    %v236 = vld [vmem:[%s0 + $0xf0] sm:$0xff]
    %v237 = vld [vmem:[%s0 + $0xf8] sm:$0xff]
    %v238 = vld [vmem:[%s0 + $0x100] sm:$0xff]
    %v239 = vld [vmem:[%s0 + $0x108] sm:$0xff]
    %v240 = vld [vmem:[%s0 + $0x110] sm:$0xff]
    %v241 = vld [vmem:[%s0 + $0x118] sm:$0xff]
    %v242 = vld [vmem:[%s0 + $0x120] sm:$0xff]
    %v243 = vld [vmem:[%s1] sm:$0xf]
    %v244 = vld [vmem:[%s1 + $0x4] sm:$0xf]
    %v245 = vld [vmem:[%s1 + $0x8] sm:$0xf]
    %v246 = vld [vmem:[%s1 + $0xc] sm:$0xf]
    %v247 = vld [vmem:[%s1 + $0x10] sm:$0xf]
    %v248 = vld [vmem:[%s1 + $0x14] sm:$0xf]
    %v249 = vld [vmem:[%s1 + $0x18] sm:$0xf]
    %v250 = vld [vmem:[%s1 + $0x1c] sm:$0xf]
    %v251 = vld [vmem:[%s1 + $0x20] sm:$0xf]
    %v252 = vld [vmem:[%s1 + $0x24] sm:$0xf]
    %v253 = vld [vmem:[%s1 + $0x28] sm:$0xf]
    %v254 = vld [vmem:[%s1 + $0x2c] sm:$0xf]
    %v255 = vld [vmem:[%s1 + $0x30] sm:$0xf]
    %v256 = vld [vmem:[%s1 + $0x34] sm:$0xf]
    %v257 = vld [vmem:[%s1 + $0x38] sm:$0xf]
    %v258 = vld [vmem:[%s1 + $0x3c] sm:$0xf]
    %v259 = vld [vmem:[%s1 + $0x40] sm:$0xf]
    %v260 = vld [vmem:[%s1 + $0x44] sm:$0xf]
    %v261 = vld [vmem:[%s1 + $0x48] sm:$0xf]
    %v262 = vld [vmem:[%s1 + $0x4c] sm:$0xf]
    %v263 = vld [vmem:[%s1 + $0x50] sm:$0xf]
    %v264 = vld [vmem:[%s1 + $0x54] sm:$0xf]
    %v265 = vld [vmem:[%s1 + $0x58] sm:$0xf]
    %v266 = vld [vmem:[%s1 + $0x5c] sm:$0xf]
    %v267 = vld [vmem:[%s1 + $0x60] sm:$0xf]
    %v268 = vld [vmem:[%s1 + $0x64] sm:$0xf]
    %v269 = vld [vmem:[%s1 + $0x68] sm:$0xf]
    %v270 = vld [vmem:[%s1 + $0x6c] sm:$0xf]
    %v271 = vld [vmem:[%s1 + $0x70] sm:$0xf]
    %v272 = vld [vmem:[%s1 + $0x74] sm:$0xf]
    %v273 = vld [vmem:[%s1 + $0x78] sm:$0xf]
    %v274 = vld [vmem:[%s1 + $0x7c] sm:$0xf]
    %v275 = vld [vmem:[%s1 + $0x80] sm:$0xf]
    %v276 = vld [vmem:[%s1 + $0x84] sm:$0xf]
    %v277 = vld [vmem:[%s1 + $0x88] sm:$0xf]
    %v278 = vld [vmem:[%s1 + $0x8c] sm:$0xf]
    %v279 = vld [vmem:[%s1 + $0x90] sm:$0xf]
    %v280 = vld [vmem:[%s1 + $0x94] sm:$0xf]
    %v281 = vld [vmem:[%s1 + $0x98] sm:$0xf]
    %v282 = vld [vmem:[%s1 + $0x9c] sm:$0xf]
    %v283 = vld [vmem:[%s1 + $0xa0] sm:$0xf]
    %v284 = vld [vmem:[%s1 + $0xa4] sm:$0xf]
    %v285 = vld [vmem:[%s1 + $0xa8] sm:$0xf]
    %v286 = vld [vmem:[%s1 + $0xac] sm:$0xf]
    %v287 = vld [vmem:[%s1 + $0xb0] sm:$0xf]
    %v288 = vld [vmem:[%s1 + $0xb4] sm:$0xf]
    %v289 = vld [vmem:[%s1 + $0xb8] sm:$0xf]
    %v290 = vld [vmem:[%s1 + $0xbc] sm:$0xf]
    %v291 = vld [vmem:[%s1 + $0xc0] sm:$0xf]
    %v292 = vld [vmem:[%s1 + $0xc4] sm:$0xf]
    %v293 = vld [vmem:[%s1 + $0xc8] sm:$0xf]
    %v294 = vld [vmem:[%s1 + $0xcc] sm:$0xf]
    %v295 = vld [vmem:[%s1 + $0xd0] sm:$0xf]
    %v296 = vld [vmem:[%s1 + $0xd4] sm:$0xf]
    %v297 = vld [vmem:[%s1 + $0xd8] sm:$0xf]
    %v298 = vld [vmem:[%s1 + $0xdc] sm:$0xf]
    %v299 = vld [vmem:[%s1 + $0xe0] sm:$0xf]
    %v300 = vld [vmem:[%s1 + $0xe4] sm:$0xf]
    %v301 = vld [vmem:[%s1 + $0xe8] sm:$0xf]
    %v302 = vld [vmem:[%s1 + $0xec] sm:$0xf]
    %v303 = vld [vmem:[%s1 + $0xf0] sm:$0xf]
    %v304 = vld [vmem:[%s1 + $0xf4] sm:$0xf]
    %v305 = vld [vmem:[%s1 + $0xf8] sm:$0xf]
    %v306 = vld [vmem:[%s1 + $0xfc] sm:$0xf]
    %v307 = vld [vmem:[%s1 + $0x100] sm:$0xf]
    %v308 = vld [vmem:[%s1 + $0x104] sm:$0xf]
    %v309 = vld [vmem:[%s1 + $0x108] sm:$0xf]
    %v310 = vld [vmem:[%s1 + $0x10c] sm:$0xf]
    %v311 = vld [vmem:[%s1 + $0x110] sm:$0xf]
    %v312 = vld [vmem:[%s1 + $0x114] sm:$0xf]
    %v313 = vld [vmem:[%s1 + $0x118] sm:$0xf]
    %v314 = vld [vmem:[%s1 + $0x11c] sm:$0xf]
    %v315 = vld [vmem:[%s1 + $0x120] sm:$0xf]
    %v316 = vld [vmem:[%s1 + $0x124] sm:$0xf]
    %v317 = vld [vmem:[%s1 + $0x128] sm:$0xf]
    %v318 = vld [vmem:[%s1 + $0x12c] sm:$0xf]
    %v319 = vld [vmem:[%s1 + $0x130] sm:$0xf]
    %v320 = vld [vmem:[%s1 + $0x134] sm:$0xf]
    %v321 = vld [vmem:[%s1 + $0x138] sm:$0xf]
    %v322 = vld [vmem:[%s1 + $0x13c] sm:$0xf]
    %v323 = vld [vmem:[%s1 + $0x140] sm:$0xf]
    %v324 = vld [vmem:[%s1 + $0x144] sm:$0xf]
    %v325 = vld [vmem:[%s1 + $0x148] sm:$0xf]
    %v326 = vld [vmem:[%s1 + $0x14c] sm:$0xf]
    %v327 = vld [vmem:[%s1 + $0x150] sm:$0xf]
    %v328 = vld [vmem:[%s1 + $0x154] sm:$0xf]
    %v329 = vld [vmem:[%s1 + $0x158] sm:$0xf]
    %v330 = vld [vmem:[%s1 + $0x15c] sm:$0xf]
    %v331 = vld [vmem:[%s1 + $0x160] sm:$0xf]
    %v332 = vld [vmem:[%s1 + $0x164] sm:$0xf]
    %v333 = vld [vmem:[%s1 + $0x168] sm:$0xf]
    %v334 = vld [vmem:[%s1 + $0x16c] sm:$0xf]
    %v335 = vld [vmem:[%s1 + $0x170] sm:$0xf]
    %v336 = vld [vmem:[%s1 + $0x174] sm:$0xf]
    %v337 = vld [vmem:[%s1 + $0x178] sm:$0xf]
    %v338 = vld [vmem:[%s1 + $0x17c] sm:$0xf]
    %v339 = vld [vmem:[%s1 + $0x180] sm:$0xf]
    %v340 = vld [vmem:[%s1 + $0x184] sm:$0xf]
    %v341 = vld [vmem:[%s1 + $0x188] sm:$0xf]
    %v342 = vld [vmem:[%s1 + $0x18c] sm:$0xf]
    %v343 = vld [vmem:[%s1 + $0x190] sm:$0xf]
    %v344 = vld [vmem:[%s1 + $0x194] sm:$0xf]
    %v345 = vld [vmem:[%s1 + $0x198] sm:$0xf]
    %v346 = vld [vmem:[%s1 + $0x19c] sm:$0xf]
    %v347 = vld [vmem:[%s1 + $0x1a0] sm:$0xf]
    %v348 = vld [vmem:[%s1 + $0x1a4] sm:$0xf]
    %v349 = vld [vmem:[%s1 + $0x1a8] sm:$0xf]
    %v350 = vld [vmem:[%s1 + $0x1ac] sm:$0xf]
    %v351 = vld [vmem:[%s1 + $0x1b0] sm:$0xf]
    %v352 = vld [vmem:[%s1 + $0x1b4] sm:$0xf]
    %v353 = vld [vmem:[%s1 + $0x1b8] sm:$0xf]
    %v354 = vld [vmem:[%s1 + $0x1bc] sm:$0xf]
    %v355 = vld [vmem:[%s1 + $0x1c0] sm:$0xf]
    %v356 = vld [vmem:[%s1 + $0x1c4] sm:$0xf]
    %v357 = vld [vmem:[%s1 + $0x1c8] sm:$0xf]
    %v358 = vld [vmem:[%s1 + $0x1cc] sm:$0xf]
    %v359 = vld [vmem:[%s1 + $0x1d0] sm:$0xf]
    %v360 = vld [vmem:[%s1 + $0x1d4] sm:$0xf]
    %v361 = vld [vmem:[%s1 + $0x1d8] sm:$0xf]
    %v362 = vld [vmem:[%s1 + $0x1dc] sm:$0xf]
    %v363 = vld [vmem:[%s1 + $0x1e0] sm:$0xf]
    %v364 = vld [vmem:[%s1 + $0x1e4] sm:$0xf]
    %v365 = vld [vmem:[%s1 + $0x1e8] sm:$0xf]
    %v366 = vld [vmem:[%s1 + $0x1ec] sm:$0xf]
    %v367 = vld [vmem:[%s1 + $0x1f0] sm:$0xf]
    %v368 = vld [vmem:[%s1 + $0x1f4] sm:$0xf]
    %v369 = vld [vmem:[%s1 + $0x1f8] sm:$0xf]
    %v370 = vld [vmem:[%s1 + $0x1fc] sm:$0xf]
    %v371 = vld [vmem:[%s1 + $0x200] sm:$0xf]
    %v372 = vld [vmem:[%s1 + $0x204] sm:$0xf]
    %v373 = vld [vmem:[%s1 + $0x208] sm:$0xf]
    %v374 = vld [vmem:[%s1 + $0x20c] sm:$0xf]
    %v375 = vld [vmem:[%s1 + $0x210] sm:$0xf]
    %v376 = vld [vmem:[%s1 + $0x214] sm:$0xf]
    %v377 = vld [vmem:[%s1 + $0x218] sm:$0xf]
    %v378 = vld [vmem:[%s1 + $0x21c] sm:$0xf]
    %v379 = vld [vmem:[%s1 + $0x220] sm:$0xf]
    %v380 = vld [vmem:[%s1 + $0x224] sm:$0xf]
    %v381 = vld [vmem:[%s1 + $0x228] sm:$0xf]
    %v382 = vld [vmem:[%s1 + $0x22c] sm:$0xf]
    %v383 = vld [vmem:[%s1 + $0x230] sm:$0xf]
    %v384 = vld [vmem:[%s1 + $0x234] sm:$0xf]
    %v385 = vld [vmem:[%s1 + $0x238] sm:$0xf]
    %v386 = vld [vmem:[%s1 + $0x23c] sm:$0xf]
    %v387 = vld [vmem:[%s1 + $0x240] sm:$0xf]
    %v388 = vld [vmem:[%s1 + $0x244] sm:$0xf]
    %v389 = vld [vmem:[%s1 + $0x248] sm:$0xf]
    %v390 = vld [vmem:[%s1 + $0x24c] sm:$0xf]
    %v391 = vld [vmem:[%s1 + $0x250] sm:$0xf]
    %v392 = vld [vmem:[%s1 + $0x254] sm:$0xf]
    %v393 = vld [vmem:[%s1 + $0x258] sm:$0xf]
    %v394 = vld [vmem:[%s1 + $0x25c] sm:$0xf]
    %v395 = vld [vmem:[%s1 + $0x260] sm:$0xf]
    %v396 = vld [vmem:[%s1 + $0x264] sm:$0xf]
    %v397 = vld [vmem:[%s1 + $0x268] sm:$0xf]
    %v398 = vld [vmem:[%s1 + $0x26c] sm:$0xf]
    %v399 = vld [vmem:[%s1 + $0x270] sm:$0xf]
    %v400 = vld [vmem:[%s1 + $0x274] sm:$0xf]
    %v401 = vld [vmem:[%s1 + $0x278] sm:$0xf]
    %v402 = vld [vmem:[%s1 + $0x27c] sm:$0xf]
    %v403 = vld [vmem:[%s1 + $0x280] sm:$0xf]
    %v404 = vld [vmem:[%s1 + $0x284] sm:$0xf]
    %v405 = vld [vmem:[%s1 + $0x288] sm:$0xf]
    %v406 = vld [vmem:[%s1 + $0x28c] sm:$0xf]
    %v407 = vld [vmem:[%s1 + $0x290] sm:$0xf]
    %v408 = vld [vmem:[%s1 + $0x294] sm:$0xf]
    %v409 = vld [vmem:[%s1 + $0x298] sm:$0xf]
    %v410 = vld [vmem:[%s1 + $0x29c] sm:$0xf]
    %v411 = vld [vmem:[%s1 + $0x2a0] sm:$0xf]
    %v412 = vld [vmem:[%s1 + $0x2a4] sm:$0xf]
    %v413 = vld [vmem:[%s1 + $0x2a8] sm:$0xf]
    %v414 = vld [vmem:[%s1 + $0x2ac] sm:$0xf]
    %v415 = vld [vmem:[%s1 + $0x2b0] sm:$0xf]
    %v416 = vld [vmem:[%s1 + $0x2b4] sm:$0xf]
    %v417 = vld [vmem:[%s1 + $0x2b8] sm:$0xf]
    %v418 = vld [vmem:[%s1 + $0x2bc] sm:$0xf]
    %v419 = vld [vmem:[%s1 + $0x2c0] sm:$0xf]
    %v420 = vld [vmem:[%s1 + $0x2c4] sm:$0xf]
    %v421 = vld [vmem:[%s1 + $0x2c8] sm:$0xf]
    %v422 = vld [vmem:[%s1 + $0x2cc] sm:$0xf]
    %v423 = vld [vmem:[%s1 + $0x2d0] sm:$0xf]
    %v424 = vld [vmem:[%s1 + $0x2d4] sm:$0xf]
    %v425 = vld [vmem:[%s1 + $0x2d8] sm:$0xf]
    %v426 = vld [vmem:[%s1 + $0x2dc] sm:$0xf]
    %v427 = vld [vmem:[%s1 + $0x2e0] sm:$0xf]
    %v428 = vld [vmem:[%s1 + $0x2e4] sm:$0xf]
    %v429 = vld [vmem:[%s1 + $0x2e8] sm:$0xf]
    %v430 = vld [vmem:[%s1 + $0x2ec] sm:$0xf]
    %v431 = vld [vmem:[%s1 + $0x2f0] sm:$0xf]
    %v432 = vld [vmem:[%s1 + $0x2f4] sm:$0xf]
    %v433 = vld [vmem:[%s1 + $0x2f8] sm:$0xf]
    %v434 = vld [vmem:[%s1 + $0x2fc] sm:$0xf]
    %v435 = vld [vmem:[%s1 + $0x300] sm:$0xf]
    %v436 = vld [vmem:[%s1 + $0x304] sm:$0xf]
    %v437 = vld [vmem:[%s1 + $0x308] sm:$0xf]
    %v438 = vld [vmem:[%s1 + $0x30c] sm:$0xf]
    %v439 = vld [vmem:[%s1 + $0x310] sm:$0xf]
    %v440 = vld [vmem:[%s1 + $0x314] sm:$0xf]
    %v441 = vld [vmem:[%s1 + $0x318] sm:$0xf]
    %v442 = vld [vmem:[%s1 + $0x31c] sm:$0xf]
    %v443 = vld [vmem:[%s1 + $0x320] sm:$0xf]
    %v444 = vld [vmem:[%s1 + $0x324] sm:$0xf]
    %v445 = vld [vmem:[%s1 + $0x328] sm:$0xf]
    %v446 = vld [vmem:[%s1 + $0x32c] sm:$0xf]
    %v447 = vld [vmem:[%s1 + $0x330] sm:$0xf]
    %v448 = vld [vmem:[%s1 + $0x334] sm:$0xf]
    %v449 = vld [vmem:[%s1 + $0x338] sm:$0xf]
    %v450 = vld [vmem:[%s1 + $0x33c] sm:$0xf]
    %v451 = vld [vmem:[%s1 + $0x340] sm:$0xf]
    %v452 = vld [vmem:[%s1 + $0x344] sm:$0xf]
    %v453 = vld [vmem:[%s1 + $0x348] sm:$0xf]
    %v454 = vld [vmem:[%s1 + $0x34c] sm:$0xf]
    %v455 = vld [vmem:[%s1 + $0x350] sm:$0xf]
    %v456 = vld [vmem:[%s1 + $0x354] sm:$0xf]
    %v457 = vld [vmem:[%s1 + $0x358] sm:$0xf]
    %v458 = vld [vmem:[%s1 + $0x35c] sm:$0xf]
    %v459 = vld [vmem:[%s1 + $0x360] sm:$0xf]
    %v460 = vld [vmem:[%s1 + $0x364] sm:$0xf]
    %v461 = vld [vmem:[%s1 + $0x368] sm:$0xf]
    %v462 = vld [vmem:[%s1 + $0x36c] sm:$0xf]
    %v463 = vld [vmem:[%s1 + $0x370] sm:$0xf]
    %v464 = vld [vmem:[%s1 + $0x374] sm:$0xf]
    %v465 = vld [vmem:[%s1 + $0x378] sm:$0xf]
    %v466 = vld [vmem:[%s1 + $0x37c] sm:$0xf]
    %v467 = vld [vmem:[%s1 + $0x380] sm:$0xf]
    %v468 = vld [vmem:[%s1 + $0x384] sm:$0xf]
    %v469 = vld [vmem:[%s1 + $0x388] sm:$0xf]
    %v470 = vld [vmem:[%s1 + $0x38c] sm:$0xf]
    %v471 = vld [vmem:[%s1 + $0x390] sm:$0xf]
    %v472 = vld [vmem:[%s1 + $0x394] sm:$0xf]
    %v473 = vld [vmem:[%s1 + $0x398] sm:$0xf]
    %v474 = vld [vmem:[%s1 + $0x39c] sm:$0xf]
    %v475 = vld [vmem:[%s1 + $0x3a0] sm:$0xf]
    %v476 = vld [vmem:[%s1 + $0x3a4] sm:$0xf]
    %v477 = vld [vmem:[%s1 + $0x3a8] sm:$0xf]
    %v478 = vld [vmem:[%s1 + $0x3ac] sm:$0xf]
    %v479 = vld [vmem:[%s1 + $0x3b0] sm:$0xf]
    %v480 = vld [vmem:[%s1 + $0x3b4] sm:$0xf]
    %v481 = vld [vmem:[%s1 + $0x3b8] sm:$0xf]
    %v482 = vld [vmem:[%s1 + $0x3bc] sm:$0xf]
    %v483 = vld [vmem:[%s1 + $0x3c0] sm:$0xf]
    %v484 = vld [vmem:[%s1 + $0x3c4] sm:$0xf]
    %v485 = vld [vmem:[%s1 + $0x3c8] sm:$0xf]
    %v486 = vld [vmem:[%s1 + $0x3cc] sm:$0xf]
    %v487 = vld [vmem:[%s1 + $0x3d0] sm:$0xf]
    %v488 = vld [vmem:[%s1 + $0x3d4] sm:$0xf]
    %v489 = vld [vmem:[%s1 + $0x3d8] sm:$0xf]
    %v490 = vld [vmem:[%s1 + $0x3dc] sm:$0xf]
    %v491 = vld [vmem:[%s1 + $0x3e0] sm:$0xf]
    %v492 = vld [vmem:[%s1 + $0x3e4] sm:$0xf]
    %v493 = vld [vmem:[%s1 + $0x3e8] sm:$0xf]
    %v494 = vld [vmem:[%s1 + $0x3ec] sm:$0xf]
    %v495 = vld [vmem:[%s1 + $0x3f0] sm:$0xf]
    %v496 = vld [vmem:[%s1 + $0x3f4] sm:$0xf]
    %v497 = vld [vmem:[%s1 + $0x3f8] sm:$0xf]
    %v498 = vld [vmem:[%s1 + $0x3fc] sm:$0xf]
    %v499 = vld [vmem:[%s1 + $0x400] sm:$0xf]
    %v500 = vld [vmem:[%s1 + $0x404] sm:$0xf]
    %v501 = vld [vmem:[%s1 + $0x408] sm:$0xf]
    %v502 = vld [vmem:[%s1 + $0x40c] sm:$0xf]
    %v503 = vld [vmem:[%s1 + $0x410] sm:$0xf]
    %v504 = vld [vmem:[%s1 + $0x414] sm:$0xf]
    %v505 = vld [vmem:[%s1 + $0x418] sm:$0xf]
    %v506 = vld [vmem:[%s1 + $0x41c] sm:$0xf]
    %v507 = vld [vmem:[%s1 + $0x420] sm:$0xf]
    %v508 = vld [vmem:[%s1 + $0x424] sm:$0xf]
    %v509 = vld [vmem:[%s1 + $0x428] sm:$0xf]
    %v510 = vld [vmem:[%s1 + $0x42c] sm:$0xf]
    %v511 = vld [vmem:[%s1 + $0x430] sm:$0xf]
    %v512 = vld [vmem:[%s1 + $0x434] sm:$0xf]
    %v513 = vld [vmem:[%s1 + $0x438] sm:$0xf]
    %v514 = vld [vmem:[%s1 + $0x43c] sm:$0xf]
    %v515 = vld [vmem:[%s1 + $0x440] sm:$0xf]
    %v516 = vld [vmem:[%s1 + $0x444] sm:$0xf]
    %v517 = vld [vmem:[%s1 + $0x448] sm:$0xf]
    %v518 = vld [vmem:[%s1 + $0x44c] sm:$0xf]
    %v519 = vld [vmem:[%s1 + $0x450] sm:$0xf]
    %v520 = vld [vmem:[%s1 + $0x454] sm:$0xf]
    %v521 = vld [vmem:[%s1 + $0x458] sm:$0xf]
    %v522 = vld [vmem:[%s1 + $0x45c] sm:$0xf]
    %v523 = vld [vmem:[%s1 + $0x460] sm:$0xf]
    %v524 = vld [vmem:[%s1 + $0x464] sm:$0xf]
    %v525 = vld [vmem:[%s1 + $0x468] sm:$0xf]
    %v526 = vld [vmem:[%s1 + $0x46c] sm:$0xf]
    %v527 = vld [vmem:[%s1 + $0x470] sm:$0xf]
    %v528 = vld [vmem:[%s1 + $0x474] sm:$0xf]
    %v529 = vld [vmem:[%s1 + $0x478] sm:$0xf]
    %v530 = vld [vmem:[%s1 + $0x47c] sm:$0xf]
    %v531 = vld [vmem:[%s1 + $0x480] sm:$0xf]
    %v532 = vld [vmem:[%s1 + $0x484] sm:$0xf]
    %v533 = vld [vmem:[%s1 + $0x488] sm:$0xf]
    %v534 = vld [vmem:[%s1 + $0x48c] sm:$0xf]
    %v535 = vld [vmem:[%s1 + $0x490] sm:$0xf]
    %v536 = vld [vmem:[%s1 + $0x494] sm:$0xf]
    %v537 = vld [vmem:[%s1 + $0x498] sm:$0xf]
    %v538 = vld [vmem:[%s1 + $0x49c] sm:$0xf]
    %v539 = vld [vmem:[%s1 + $0x4a0] sm:$0xf]
    %v540 = vld [vmem:[%s1 + $0x4a4] sm:$0xf]
    %v541 = vld [vmem:[%s1 + $0x4a8] sm:$0xf]
    %v542 = vld [vmem:[%s1 + $0x4ac] sm:$0xf]
    %v543 = vld [vmem:[%s1 + $0x4b0] sm:$0xf]
    %v544 = vld [vmem:[%s1 + $0x4b4] sm:$0xf]
    %v545 = vld [vmem:[%s1 + $0x4b8] sm:$0xf]
    %v546 = vld [vmem:[%s1 + $0x4bc] sm:$0xf]
    %v547 = vld [vmem:[%s1 + $0x4c0] sm:$0xf]
    %v548 = vld [vmem:[%s1 + $0x4c4] sm:$0xf]
    %v549 = vld [vmem:[%s1 + $0x4c8] sm:$0xf]
    %v550 = vld [vmem:[%s1 + $0x4cc] sm:$0xf]
    %v551 = vld [vmem:[%s1 + $0x4d0] sm:$0xf]
    %v552 = vld [vmem:[%s1 + $0x4d4] sm:$0xf]
    %v553 = vld [vmem:[%s1 + $0x4d8] sm:$0xf]
    %v554 = vld [vmem:[%s1 + $0x4dc] sm:$0xf]
    %v555 = vld [vmem:[%s1 + $0x4e0] sm:$0xf]
    %v556 = vld [vmem:[%s1 + $0x4e4] sm:$0xf]
    %v557 = vld [vmem:[%s1 + $0x4e8] sm:$0xf]
    %v558 = vld [vmem:[%s1 + $0x4ec] sm:$0xf]
    %v559 = vld [vmem:[%s1 + $0x4f0] sm:$0xf]
    %v560 = vld [vmem:[%s1 + $0x4f4] sm:$0xf]
    %v561 = vld [vmem:[%s1 + $0x4f8] sm:$0xf]
    %v562 = vld [vmem:[%s1 + $0x4fc] sm:$0xf]
    %v563 = vld [vmem:[%s1 + $0x500] sm:$0xf]
    %v564 = vld [vmem:[%s1 + $0x504] sm:$0xf]
    %v565 = vld [vmem:[%s1 + $0x508] sm:$0xf]
    %v566 = vld [vmem:[%s1 + $0x50c] sm:$0xf]
    %v567 = vld [vmem:[%s1 + $0x510] sm:$0xf]
    %v568 = vld [vmem:[%s1 + $0x514] sm:$0xf]
    %v569 = vld [vmem:[%s1 + $0x518] sm:$0xf]
    %v570 = vld [vmem:[%s1 + $0x51c] sm:$0xf]
    %v571 = vld [vmem:[%s1 + $0x520] sm:$0xf]
    %v572 = vld [vmem:[%s1 + $0x524] sm:$0xf]
    %v573 = vld [vmem:[%s1 + $0x528] sm:$0xf]
    %v574 = vld [vmem:[%s1 + $0x52c] sm:$0xf]
    %v575 = vld [vmem:[%s1 + $0x530] sm:$0xf]
    %v576 = vld [vmem:[%s1 + $0x534] sm:$0xf]
    %v577 = vld [vmem:[%s1 + $0x538] sm:$0xf]
    %v578 = vld [vmem:[%s1 + $0x53c] sm:$0xf]
    %v579 = vld [vmem:[%s1 + $0x540] sm:$0xf]
    %v580 = vld [vmem:[%s1 + $0x544] sm:$0xf]
    %v581 = vld [vmem:[%s1 + $0x548] sm:$0xf]
    %v582 = vld [vmem:[%s1 + $0x54c] sm:$0xf]
    %v583 = vld [vmem:[%s1 + $0x550] sm:$0xf]
    %v584 = vld [vmem:[%s1 + $0x554] sm:$0xf]
    %v585 = vld [vmem:[%s1 + $0x558] sm:$0xf]
    %v586 = vld [vmem:[%s1 + $0x55c] sm:$0xf]
    %v587 = vld [vmem:[%s1 + $0x560] sm:$0xf]
    %v588 = vld [vmem:[%s1 + $0x564] sm:$0xf]
    %v589 = vld [vmem:[%s1 + $0x568] sm:$0xf]
    %v590 = vld [vmem:[%s1 + $0x56c] sm:$0xf]
    %v591 = vld [vmem:[%s1 + $0x570] sm:$0xf]
    %v592 = vld [vmem:[%s1 + $0x574] sm:$0xf]
    %v593 = vld [vmem:[%s1 + $0x578] sm:$0xf]
    %v594 = vld [vmem:[%s1 + $0x57c] sm:$0xf]
    %v595 = vld [vmem:[%s1 + $0x580] sm:$0xf]
    %v596 = vld [vmem:[%s1 + $0x584] sm:$0xf]
    %v597 = vld [vmem:[%s1 + $0x588] sm:$0xf]
    %v598 = vld [vmem:[%s1 + $0x58c] sm:$0xf]
    %v599 = vld [vmem:[%s1 + $0x590] sm:$0xf]
    %v600 = vld [vmem:[%s1 + $0x594] sm:$0xf]
    %v601 = vld [vmem:[%s1 + $0x598] sm:$0xf]
    %v602 = vld [vmem:[%s1 + $0x59c] sm:$0xf]
    %v603 = vld [vmem:[%s1 + $0x5a0] sm:$0xf]
    %v604 = vld [vmem:[%s1 + $0x5a4] sm:$0xf]
    %v605 = vld [vmem:[%s1 + $0x5a8] sm:$0xf]
    %v606 = vld [vmem:[%s1 + $0x5ac] sm:$0xf]
    %v607 = vld [vmem:[%s1 + $0x5b0] sm:$0xf]
    %v608 = vld [vmem:[%s1 + $0x5b4] sm:$0xf]
    %v609 = vld [vmem:[%s1 + $0x5b8] sm:$0xf]
    %v610 = vld [vmem:[%s1 + $0x5bc] sm:$0xf]
    %v611 = vld [vmem:[%s1 + $0x5c0] sm:$0xf]
    %v612 = vld [vmem:[%s1 + $0x5c4] sm:$0xf]
    %v613 = vld [vmem:[%s1 + $0x5c8] sm:$0xf]
    %v614 = vld [vmem:[%s1 + $0x5cc] sm:$0xf]
    %v615 = vld [vmem:[%s1 + $0x5d0] sm:$0xf]
    %v616 = vld [vmem:[%s1 + $0x5d4] sm:$0xf]
    %v617 = vld [vmem:[%s1 + $0x5d8] sm:$0xf]
    %v618 = vld [vmem:[%s1 + $0x5dc] sm:$0xf]
    %v619 = vld [vmem:[%s1 + $0x5e0] sm:$0xf]
    %v620 = vld [vmem:[%s1 + $0x5e4] sm:$0xf]
    %v621 = vld [vmem:[%s1 + $0x5e8] sm:$0xf]
    %v622 = vld [vmem:[%s1 + $0x5ec] sm:$0xf]
    %v623 = vld [vmem:[%s1 + $0x5f0] sm:$0xf]
    %v624 = vld [vmem:[%s1 + $0x5f4] sm:$0xf]
    %v625 = vld [vmem:[%s1 + $0x5f8] sm:$0xf]
    %v626 = vld [vmem:[%s1 + $0x5fc] sm:$0xf]
    %v627 = vld [vmem:[%s1 + $0x600] sm:$0xf]
    %v628 = vld [vmem:[%s1 + $0x604] sm:$0xf]
    %v629 = vld [vmem:[%s1 + $0x608] sm:$0xf]
    %v630 = vld [vmem:[%s1 + $0x60c] sm:$0xf]
    %v631 = vld [vmem:[%s1 + $0x610] sm:$0xf]
    %v632 = vld [vmem:[%s1 + $0x614] sm:$0xf]
    %v633 = vld [vmem:[%s1 + $0x618] sm:$0xf]
    %v634 = vld [vmem:[%s1 + $0x61c] sm:$0xf]
    %v635 = vld [vmem:[%s1 + $0x620] sm:$0xf]
    %v636 = vld [vmem:[%s1 + $0x624] sm:$0xf]
    %v637 = vld [vmem:[%s1 + $0x628] sm:$0xf]
    %v638 = vld [vmem:[%s1 + $0x62c] sm:$0xf]
    %v639 = vld [vmem:[%s1 + $0x630] sm:$0xf]
    %v640 = vld [vmem:[%s1 + $0x634] sm:$0xf]
    %v641 = vld [vmem:[%s1 + $0x638] sm:$0xf]
    %v642 = vld [vmem:[%s1 + $0x63c] sm:$0xf]
    %v643 = vld [vmem:[%s1 + $0x640] sm:$0xf]
    %v644 = vld [vmem:[%s1 + $0x644] sm:$0xf]
    %v645 = vld [vmem:[%s1 + $0x648] sm:$0xf]
    %v646 = vld [vmem:[%s1 + $0x64c] sm:$0xf]
    %v647 = vld [vmem:[%s1 + $0x650] sm:$0xf]
    %v648 = vld [vmem:[%s1 + $0x654] sm:$0xf]
    %v649 = vld [vmem:[%s1 + $0x658] sm:$0xf]
    %v650 = vld [vmem:[%s1 + $0x65c] sm:$0xf]
    %v651 = vld [vmem:[%s1 + $0x660] sm:$0xf]
    %v652 = vld [vmem:[%s1 + $0x664] sm:$0xf]
    %v653 = vld [vmem:[%s1 + $0x668] sm:$0xf]
    %v654 = vld [vmem:[%s1 + $0x66c] sm:$0xf]
    %v655 = vld [vmem:[%s1 + $0x670] sm:$0xf]
    %v656 = vld [vmem:[%s1 + $0x674] sm:$0xf]
    %v657 = vld [vmem:[%s1 + $0x678] sm:$0xf]
    %v658 = vld [vmem:[%s1 + $0x67c] sm:$0xf]
    %v659 = vld [vmem:[%s1 + $0x680] sm:$0xf]
    %v660 = vld [vmem:[%s1 + $0x684] sm:$0xf]
    %v661 = vld [vmem:[%s1 + $0x688] sm:$0xf]
    %v662 = vld [vmem:[%s1 + $0x68c] sm:$0xf]
    %v663 = vld [vmem:[%s1 + $0x690] sm:$0xf]
    %v664 = vld [vmem:[%s1 + $0x694] sm:$0xf]
    %v665 = vld [vmem:[%s1 + $0x698] sm:$0xf]
    %v666 = vld [vmem:[%s1 + $0x69c] sm:$0xf]
    %v667 = vld [vmem:[%s1 + $0x6a0] sm:$0xf]
    %v668 = vld [vmem:[%s1 + $0x6a4] sm:$0xf]
    %v669 = vld [vmem:[%s1 + $0x6a8] sm:$0xf]
    %v670 = vld [vmem:[%s1 + $0x6ac] sm:$0xf]
    %v671 = vld [vmem:[%s1 + $0x6b0] sm:$0xf]
    %v672 = vld [vmem:[%s1 + $0x6b4] sm:$0xf]
    %v673 = vld [vmem:[%s1 + $0x6b8] sm:$0xf]
    %v674 = vld [vmem:[%s1 + $0x6bc] sm:$0xf]
    %v675 = vld [vmem:[%s1 + $0x6c0] sm:$0xf]
    %v676 = vld [vmem:[%s1 + $0x6c4] sm:$0xf]
    %v677 = vld [vmem:[%s1 + $0x6c8] sm:$0xf]
    %v678 = vld [vmem:[%s1 + $0x6cc] sm:$0xf]
    %v679 = vld [vmem:[%s1 + $0x6d0] sm:$0xf]
    %v680 = vld [vmem:[%s1 + $0x6d4] sm:$0xf]
    %v681 = vld [vmem:[%s1 + $0x6d8] sm:$0xf]
    %v682 = vld [vmem:[%s1 + $0x6dc] sm:$0xf]
    %v683 = vld [vmem:[%s1 + $0x6e0] sm:$0xf]
    %v684 = vld [vmem:[%s1 + $0x6e4] sm:$0xf]
    %v685 = vld [vmem:[%s1 + $0x6e8] sm:$0xf]
    %v686 = vld [vmem:[%s1 + $0x6ec] sm:$0xf]
    %v687 = vld [vmem:[%s1 + $0x6f0] sm:$0xf]
    %v688 = vld [vmem:[%s1 + $0x6f4] sm:$0xf]
    %v689 = vld [vmem:[%s1 + $0x6f8] sm:$0xf]
    %v690 = vld [vmem:[%s1 + $0x6fc] sm:$0xf]
    %v691 = vld [vmem:[%s1 + $0x700] sm:$0xf]
    %v692 = vld [vmem:[%s1 + $0x704] sm:$0xf]
    %v693 = vld [vmem:[%s1 + $0x708] sm:$0xf]
    %v694 = vld [vmem:[%s1 + $0x70c] sm:$0xf]
    %v695 = vld [vmem:[%s1 + $0x710] sm:$0xf]
    %v696 = vld [vmem:[%s1 + $0x714] sm:$0xf]
    %v697 = vld [vmem:[%s1 + $0x718] sm:$0xf]
    %v698 = vld [vmem:[%s1 + $0x71c] sm:$0xf]
    %v699 = vld [vmem:[%s1 + $0x720] sm:$0xf]
    %v700 = vld [vmem:[%s1 + $0x724] sm:$0xf]
    %v701 = vld [vmem:[%s1 + $0x728] sm:$0xf]
    %v702 = vld [vmem:[%s1 + $0x72c] sm:$0xf]
    %v703 = vld [vmem:[%s1 + $0x730] sm:$0xf]
    %v704 = vld [vmem:[%s1 + $0x734] sm:$0xf]
    %v705 = vld [vmem:[%s1 + $0x738] sm:$0xf]
    %v706 = vld [vmem:[%s1 + $0x73c] sm:$0xf]
    %v707 = vld [vmem:[%s1 + $0x740] sm:$0xf]
    %v708 = vld [vmem:[%s1 + $0x744] sm:$0xf]
    %v709 = vld [vmem:[%s1 + $0x748] sm:$0xf]
    %v710 = vld [vmem:[%s1 + $0x74c] sm:$0xf]
    %v711 = vld [vmem:[%s1 + $0x750] sm:$0xf]
    %v712 = vld [vmem:[%s1 + $0x754] sm:$0xf]
    %v713 = vld [vmem:[%s1 + $0x758] sm:$0xf]
    %v714 = vld [vmem:[%s1 + $0x75c] sm:$0xf]
    %v715 = vld [vmem:[%s1 + $0x760] sm:$0xf]
    %v716 = vld [vmem:[%s1 + $0x764] sm:$0xf]
    %v717 = vld [vmem:[%s1 + $0x768] sm:$0xf]
    %v718 = vld [vmem:[%s1 + $0x76c] sm:$0xf]
    %v719 = vld [vmem:[%s1 + $0x770] sm:$0xf]
    %v720 = vld [vmem:[%s1 + $0x774] sm:$0xf]
    %v721 = vld [vmem:[%s1 + $0x778] sm:$0xf]
    %v722 = vld [vmem:[%s1 + $0x77c] sm:$0xf]
    %v723 = vld [vmem:[%s1 + $0x780] sm:$0xf]
    %v724 = vld [vmem:[%s1 + $0x784] sm:$0xf]
    %v725 = vld [vmem:[%s1 + $0x788] sm:$0xf]
    %v726 = vld [vmem:[%s1 + $0x78c] sm:$0xf]
    %v727 = vld [vmem:[%s1 + $0x790] sm:$0xf]
    %v728 = vld [vmem:[%s1 + $0x794] sm:$0xf]
    %v729 = vld [vmem:[%s1 + $0x798] sm:$0xf]
    %v730 = vld [vmem:[%s1 + $0x79c] sm:$0xf]
    %v731 = vld [vmem:[%s1 + $0x7a0] sm:$0xf]
    %v732 = vld [vmem:[%s1 + $0x7a4] sm:$0xf]
    %v733 = vld [vmem:[%s1 + $0x7a8] sm:$0xf]
    %v734 = vld [vmem:[%s1 + $0x7ac] sm:$0xf]
    %v735 = vld [vmem:[%s1 + $0x7b0] sm:$0xf]
    %v736 = vld [vmem:[%s1 + $0x7b4] sm:$0xf]
    %v737 = vld [vmem:[%s1 + $0x7b8] sm:$0xf]
    %v738 = vld [vmem:[%s1 + $0x7bc] sm:$0xf]
    %v739 = vld [vmem:[%s1 + $0x7c0] sm:$0xf]
    %v740 = vld [vmem:[%s1 + $0x7c4] sm:$0xf]
    %v741 = vld [vmem:[%s1 + $0x7c8] sm:$0xf]
    %v742 = vld [vmem:[%s1 + $0x7cc] sm:$0xf]
    %v743 = vld [vmem:[%s1 + $0x7d0] sm:$0xf]
    %v744 = vld [vmem:[%s1 + $0x7d4] sm:$0xf]
    %v745 = vld [vmem:[%s1 + $0x7d8] sm:$0xf]
    %v746 = vld [vmem:[%s1 + $0x7dc] sm:$0xf]
    %v747 = vld [vmem:[%s1 + $0x7e0] sm:$0xf]
    %v748 = vld [vmem:[%s1 + $0x7e4] sm:$0xf]
    %v749 = vld [vmem:[%s1 + $0x7e8] sm:$0xf]
    %v750 = vld [vmem:[%s1 + $0x7ec] sm:$0xf]
    %v751 = vld [vmem:[%s1 + $0x7f0] sm:$0xf]
    %v752 = vld [vmem:[%s1 + $0x7f4] sm:$0xf]
    %v753 = vld [vmem:[%s1 + $0x7f8] sm:$0xf]
    %v754 = vld [vmem:[%s1 + $0x7fc] sm:$0xf]
    %v755 = vld [vmem:[%s1 + $0x800] sm:$0xf]
    %v756 = vld [vmem:[%s1 + $0x804] sm:$0xf]
    %v757 = vld [vmem:[%s1 + $0x808] sm:$0xf]
    %v758 = vld [vmem:[%s1 + $0x80c] sm:$0xf]
    %v759 = vld [vmem:[%s1 + $0x810] sm:$0xf]
    %v760 = vld [vmem:[%s1 + $0x814] sm:$0xf]
    %v761 = vld [vmem:[%s1 + $0x818] sm:$0xf]
    %v762 = vld [vmem:[%s1 + $0x81c] sm:$0xf]
    %v763 = vld [vmem:[%s1 + $0x820] sm:$0xf]
    %v764 = vld [vmem:[%s1 + $0x824] sm:$0xf]
    %v765 = vld [vmem:[%s1 + $0x828] sm:$0xf]
    %v766 = vld [vmem:[%s1 + $0x82c] sm:$0xf]
    %v767 = vld [vmem:[%s1 + $0x830] sm:$0xf]
    %v768 = vld [vmem:[%s1 + $0x834] sm:$0xf]
    %v769 = vld [vmem:[%s1 + $0x838] sm:$0xf]
    %v770 = vld [vmem:[%s1 + $0x83c] sm:$0xf]
    %v771 = vld [vmem:[%s1 + $0x840] sm:$0xf]
    %v772 = vld [vmem:[%s1 + $0x844] sm:$0xf]
    %v773 = vld [vmem:[%s1 + $0x848] sm:$0xf]
    %v774 = vld [vmem:[%s1 + $0x84c] sm:$0xf]
    %v775 = vld [vmem:[%s1 + $0x850] sm:$0xf]
    %v776 = vld [vmem:[%s1 + $0x854] sm:$0xf]
    %v777 = vld [vmem:[%s1 + $0x858] sm:$0xf]
    %v778 = vld [vmem:[%s1 + $0x85c] sm:$0xf]
    %v779 = vld [vmem:[%s1 + $0x860] sm:$0xf]
    %v780 = vld [vmem:[%s1 + $0x864] sm:$0xf]
    %v781 = vld [vmem:[%s1 + $0x868] sm:$0xf]
    %v782 = vld [vmem:[%s1 + $0x86c] sm:$0xf]
    %v783 = vld [vmem:[%s1 + $0x870] sm:$0xf]
    %v784 = vld [vmem:[%s1 + $0x874] sm:$0xf]
    %v785 = vld [vmem:[%s1 + $0x878] sm:$0xf]
    %v786 = vld [vmem:[%s1 + $0x87c] sm:$0xf]
    %v787 = vld [vmem:[%s1 + $0x880] sm:$0xf]
    %v788 = vld [vmem:[%s1 + $0x884] sm:$0xf]
    %v789 = vld [vmem:[%s1 + $0x888] sm:$0xf]
    %v790 = vld [vmem:[%s1 + $0x88c] sm:$0xf]
    %v791 = vld [vmem:[%s1 + $0x890] sm:$0xf]
    %v792 = vld [vmem:[%s1 + $0x894] sm:$0xf]
    %v793 = vld [vmem:[%s1 + $0x898] sm:$0xf]
    %v794 = vld [vmem:[%s1 + $0x89c] sm:$0xf]
    %v795 = vld [vmem:[%s1 + $0x8a0] sm:$0xf]
    %v796 = vld [vmem:[%s1 + $0x8a4] sm:$0xf]
    %v797 = vld [vmem:[%s1 + $0x8a8] sm:$0xf]
    %v798 = vld [vmem:[%s1 + $0x8ac] sm:$0xf]
    %v799 = vld [vmem:[%s1 + $0x8b0] sm:$0xf]
    %v800 = vld [vmem:[%s1 + $0x8b4] sm:$0xf]
    %v801 = vld [vmem:[%s1 + $0x8b8] sm:$0xf]
    %v802 = vld [vmem:[%s1 + $0x8bc] sm:$0xf]
    %v803 = vld [vmem:[%s1 + $0x8c0] sm:$0xf]
    %v804 = vld [vmem:[%s1 + $0x8c4] sm:$0xf]
    %v805 = vld [vmem:[%s1 + $0x8c8] sm:$0xf]
    %v806 = vld [vmem:[%s1 + $0x8cc] sm:$0xf]
    %v807 = vld [vmem:[%s1 + $0x8d0] sm:$0xf]
    %v808 = vld [vmem:[%s1 + $0x8d4] sm:$0xf]
    %v809 = vld [vmem:[%s1 + $0x8d8] sm:$0xf]
    %v810 = vld [vmem:[%s1 + $0x8dc] sm:$0xf]
    %v811 = vld [vmem:[%s1 + $0x8e0] sm:$0xf]
    %v812 = vld [vmem:[%s1 + $0x8e4] sm:$0xf]
    %v813 = vld [vmem:[%s1 + $0x8e8] sm:$0xf]
    %v814 = vld [vmem:[%s1 + $0x8ec] sm:$0xf]
    %v815 = vld [vmem:[%s1 + $0x8f0] sm:$0xf]
    %v816 = vld [vmem:[%s1 + $0x8f4] sm:$0xf]
    %v817 = vld [vmem:[%s1 + $0x8f8] sm:$0xf]
    %v818 = vld [vmem:[%s1 + $0x8fc] sm:$0xf]
    %v819 = vld [vmem:[%s1 + $0x900] sm:$0xf]
    %v820 = vld [vmem:[%s1 + $0x904] sm:$0xf]
    %v821 = vld [vmem:[%s1 + $0x908] sm:$0xf]
    %v822 = vld [vmem:[%s1 + $0x90c] sm:$0xf]
    %v823 = vld [vmem:[%s1 + $0x910] sm:$0xf]
    %v824 = vld [vmem:[%s1 + $0x914] sm:$0xf]
    %v825 = vld [vmem:[%s1 + $0x918] sm:$0xf]
    %v826 = vld [vmem:[%s1 + $0x91c] sm:$0xf]
    %v827 = vld [vmem:[%s1 + $0x920] sm:$0xf]
    %v828 = vld [vmem:[%s1 + $0x924] sm:$0xf]
    %v829 = vld [vmem:[%s1 + $0x928] sm:$0xf]
    %v830 = vld [vmem:[%s1 + $0x92c] sm:$0xf]
    %v831 = vld [vmem:[%s1 + $0x930] sm:$0xf]
    %v832 = vld [vmem:[%s1 + $0x934] sm:$0xf]
    %v833 = vld [vmem:[%s1 + $0x938] sm:$0xf]
    %v834 = vld [vmem:[%s1 + $0x93c] sm:$0xf]
    %v835 = vld [vmem:[%s2] sm:$0x7]
    %v836 = vpack.c.bf16 %v206, %v206
    %v837 = vpack.c.bf16 %v207, %v207
    %v838 = vpack.c.bf16 %v208, %v208
    %v839 = vpack.c.bf16 %v209, %v209
    %v840 = vpack.c.bf16 %v210, %v210
    %v841 = vpack.c.bf16 %v211, %v211
    %v842 = vpack.c.bf16 %v212, %v212
    %v843 = vpack.c.bf16 %v213, %v213
    %v844 = vpack.c.bf16 %v214, %v214
    %v845 = vpack.c.bf16 %v215, %v215
    %v846 = vpack.c.bf16 %v216, %v216
    %v847 = vpack.c.bf16 %v217, %v217
    %v848 = vpack.c.bf16 %v218, %v218
    %v849 = vpack.c.bf16 %v219, %v219
    %v850 = vpack.c.bf16 %v220, %v220
    %v851 = vpack.c.bf16 %v221, %v221
    %v852 = vpack.c.bf16 %v222, %v222
    %v853 = vpack.c.bf16 %v223, %v223
    %v854 = vpack.c.bf16 %v224, %v224
    %v855 = vpack.c.bf16 %v225, %v225
    %v856 = vpack.c.bf16 %v226, %v226
    %v857 = vpack.c.bf16 %v227, %v227
    %v858 = vpack.c.bf16 %v228, %v228
    %v859 = vpack.c.bf16 %v229, %v229
    %v860 = vpack.c.bf16 %v230, %v230
    %v861 = vpack.c.bf16 %v231, %v231
    %v862 = vpack.c.bf16 %v232, %v232
    %v863 = vpack.c.bf16 %v233, %v233
    %v864 = vpack.c.bf16 %v234, %v234
    %v865 = vpack.c.bf16 %v235, %v235
    %v866 = vpack.c.bf16 %v236, %v236
    %v867 = vpack.c.bf16 %v237, %v237
    %v868 = vpack.c.bf16 %v238, %v238
    %v869 = vpack.c.bf16 %v239, %v239
    %v870 = vpack.c.bf16 %v240, %v240
    %v871 = vpack.c.bf16 %v241, %v241
    %v872 = vpack.c.bf16 %v242, %v242
    %v873 = vlaneseq
    %v874 = vshrl.u32 %v873, 7
    %v875 = vsub.s32 0, %v874
    %v876 = vrot.slane %v835, %v875
    %v1469 = vunpack.c.l.b16 %v243
    %v1470 = vunpack.c.l.b16 %v244
    %v1471 = vunpack.c.l.b16 %v245
    %v1472 = vunpack.c.l.b16 %v246
    %v1473 = vunpack.c.l.b16 %v247
    %v1474 = vunpack.c.l.b16 %v248
    %v1475 = vunpack.c.l.b16 %v249
    %v1476 = vunpack.c.l.b16 %v250
    %v1477 = vunpack.c.l.b16 %v251
    %v1478 = vunpack.c.l.b16 %v252
    %v1479 = vunpack.c.l.b16 %v253
    %v1480 = vunpack.c.l.b16 %v254
    %v1481 = vunpack.c.l.b16 %v255
    %v1482 = vunpack.c.l.b16 %v256
    %v1483 = vunpack.c.l.b16 %v257
    %v1484 = vunpack.c.l.b16 %v258
    %v1485 = vunpack.c.l.b16 %v259
    %v1486 = vunpack.c.l.b16 %v260
    %v1487 = vunpack.c.l.b16 %v261
    %v1488 = vunpack.c.l.b16 %v262
    %v1489 = vunpack.c.l.b16 %v263
    %v1490 = vunpack.c.l.b16 %v264
    %v1491 = vunpack.c.l.b16 %v265
    %v1492 = vunpack.c.l.b16 %v266
    %v1493 = vunpack.c.l.b16 %v267
    %v1494 = vunpack.c.l.b16 %v268
    %v1495 = vunpack.c.l.b16 %v269
    %v1496 = vunpack.c.l.b16 %v270
    %v1497 = vunpack.c.l.b16 %v271
    %v1498 = vunpack.c.l.b16 %v272
    %v1499 = vunpack.c.l.b16 %v273
    %v1500 = vunpack.c.l.b16 %v274
    %v1501 = vunpack.c.l.b16 %v275
    %v1502 = vunpack.c.l.b16 %v276
    %v1503 = vunpack.c.l.b16 %v277
    %v1504 = vunpack.c.l.b16 %v278
    %v1505 = vunpack.c.l.b16 %v279
    %v1506 = vunpack.c.l.b16 %v280
    %v1507 = vunpack.c.l.b16 %v281
    %v1508 = vunpack.c.l.b16 %v282
    %v1509 = vunpack.c.l.b16 %v283
    %v1510 = vunpack.c.l.b16 %v284
    %v1511 = vunpack.c.l.b16 %v285
    %v1512 = vunpack.c.l.b16 %v286
    %v1513 = vunpack.c.l.b16 %v287
    %v1514 = vunpack.c.l.b16 %v288
    %v1515 = vunpack.c.l.b16 %v289
    %v1516 = vunpack.c.l.b16 %v290
    %v1517 = vunpack.c.l.b16 %v291
    %v1518 = vunpack.c.l.b16 %v292
    %v1519 = vunpack.c.l.b16 %v293
    %v1520 = vunpack.c.l.b16 %v294
    %v1521 = vunpack.c.l.b16 %v295
    %v1522 = vunpack.c.l.b16 %v296
    %v1523 = vunpack.c.l.b16 %v297
    %v1524 = vunpack.c.l.b16 %v298
    %v1525 = vunpack.c.l.b16 %v299
    %v1526 = vunpack.c.l.b16 %v300
    %v1527 = vunpack.c.l.b16 %v301
    %v1528 = vunpack.c.l.b16 %v302
    %v1529 = vunpack.c.l.b16 %v303
    %v1530 = vunpack.c.l.b16 %v304
    %v1531 = vunpack.c.l.b16 %v305
    %v1532 = vunpack.c.l.b16 %v306
    %v1533 = vunpack.c.l.b16 %v307
    %v1534 = vunpack.c.l.b16 %v308
    %v1535 = vunpack.c.l.b16 %v309
    %v1536 = vunpack.c.l.b16 %v310
    %v1537 = vunpack.c.l.b16 %v311
    %v1538 = vunpack.c.l.b16 %v312
    %v1539 = vunpack.c.l.b16 %v313
    %v1540 = vunpack.c.l.b16 %v314
    %v1541 = vunpack.c.l.b16 %v315
    %v1542 = vunpack.c.l.b16 %v316
    %v1543 = vunpack.c.l.b16 %v317
    %v1544 = vunpack.c.l.b16 %v318
    %v1545 = vunpack.c.l.b16 %v319
    %v1546 = vunpack.c.l.b16 %v320
    %v1547 = vunpack.c.l.b16 %v321
    %v1548 = vunpack.c.l.b16 %v322
    %v1549 = vunpack.c.l.b16 %v323
    %v1550 = vunpack.c.l.b16 %v324
    %v1551 = vunpack.c.l.b16 %v325
    %v1552 = vunpack.c.l.b16 %v326
    %v1553 = vunpack.c.l.b16 %v327
    %v1554 = vunpack.c.l.b16 %v328
    %v1555 = vunpack.c.l.b16 %v329
    %v1556 = vunpack.c.l.b16 %v330
    %v1557 = vunpack.c.l.b16 %v331
    %v1558 = vunpack.c.l.b16 %v332
    %v1559 = vunpack.c.l.b16 %v333
    %v1560 = vunpack.c.l.b16 %v334
    %v1561 = vunpack.c.l.b16 %v335
    %v1562 = vunpack.c.l.b16 %v336
    %v1563 = vunpack.c.l.b16 %v337
    %v1564 = vunpack.c.l.b16 %v338
    %v1565 = vunpack.c.l.b16 %v339
    %v1566 = vunpack.c.l.b16 %v340
    %v1567 = vunpack.c.l.b16 %v341
    %v1568 = vunpack.c.l.b16 %v342
    %v1569 = vunpack.c.l.b16 %v343
    %v1570 = vunpack.c.l.b16 %v344
    %v1571 = vunpack.c.l.b16 %v345
    %v1572 = vunpack.c.l.b16 %v346
    %v1573 = vunpack.c.l.b16 %v347
    %v1574 = vunpack.c.l.b16 %v348
    %v1575 = vunpack.c.l.b16 %v349
    %v1576 = vunpack.c.l.b16 %v350
    %v1577 = vunpack.c.l.b16 %v351
    %v1578 = vunpack.c.l.b16 %v352
    %v1579 = vunpack.c.l.b16 %v353
    %v1580 = vunpack.c.l.b16 %v354
    %v1581 = vunpack.c.l.b16 %v355
    %v1582 = vunpack.c.l.b16 %v356
    %v1583 = vunpack.c.l.b16 %v357
    %v1584 = vunpack.c.l.b16 %v358
    %v1585 = vunpack.c.l.b16 %v359
    %v1586 = vunpack.c.l.b16 %v360
    %v1587 = vunpack.c.l.b16 %v361
    %v1588 = vunpack.c.l.b16 %v362
    %v1589 = vunpack.c.l.b16 %v363
    %v1590 = vunpack.c.l.b16 %v364
    %v1591 = vunpack.c.l.b16 %v365
    %v1592 = vunpack.c.l.b16 %v366
    %v1593 = vunpack.c.l.b16 %v367
    %v1594 = vunpack.c.l.b16 %v368
    %v1595 = vunpack.c.l.b16 %v369
    %v1596 = vunpack.c.l.b16 %v370
    %v1597 = vunpack.c.l.b16 %v371
    %v1598 = vunpack.c.l.b16 %v372
    %v1599 = vunpack.c.l.b16 %v373
    %v1600 = vunpack.c.l.b16 %v374
    %v1601 = vunpack.c.l.b16 %v375
    %v1602 = vunpack.c.l.b16 %v376
    %v1603 = vunpack.c.l.b16 %v377
    %v1604 = vunpack.c.l.b16 %v378
    %v1605 = vunpack.c.l.b16 %v379
    %v1606 = vunpack.c.l.b16 %v380
    %v1607 = vunpack.c.l.b16 %v381
    %v1608 = vunpack.c.l.b16 %v382
    %v1609 = vunpack.c.l.b16 %v383
    %v1610 = vunpack.c.l.b16 %v384
    %v1611 = vunpack.c.l.b16 %v385
    %v1612 = vunpack.c.l.b16 %v386
    %v1613 = vunpack.c.l.b16 %v387
    %v1614 = vunpack.c.l.b16 %v388
    %v1615 = vunpack.c.l.b16 %v389
    %v1616 = vunpack.c.l.b16 %v390
    %v1617 = vunpack.c.l.b16 %v391
    %v1618 = vunpack.c.l.b16 %v392
    %v1619 = vunpack.c.l.b16 %v393
    %v1620 = vunpack.c.l.b16 %v394
    %v1621 = vunpack.c.l.b16 %v395
    %v1622 = vunpack.c.l.b16 %v396
    %v1623 = vunpack.c.l.b16 %v397
    %v1624 = vunpack.c.l.b16 %v398
    %v1625 = vunpack.c.l.b16 %v399
    %v1626 = vunpack.c.l.b16 %v400
    %v1627 = vunpack.c.l.b16 %v401
    %v1628 = vunpack.c.l.b16 %v402
    %v1629 = vunpack.c.l.b16 %v403
    %v1630 = vunpack.c.l.b16 %v404
    %v1631 = vunpack.c.l.b16 %v405
    %v1632 = vunpack.c.l.b16 %v406
    %v1633 = vunpack.c.l.b16 %v407
    %v1634 = vunpack.c.l.b16 %v408
    %v1635 = vunpack.c.l.b16 %v409
    %v1636 = vunpack.c.l.b16 %v410
    %v1637 = vunpack.c.l.b16 %v411
    %v1638 = vunpack.c.l.b16 %v412
    %v1639 = vunpack.c.l.b16 %v413
    %v1640 = vunpack.c.l.b16 %v414
    %v1641 = vunpack.c.l.b16 %v415
    %v1642 = vunpack.c.l.b16 %v416
    %v1643 = vunpack.c.l.b16 %v417
    %v1644 = vunpack.c.l.b16 %v418
    %v1645 = vunpack.c.l.b16 %v419
    %v1646 = vunpack.c.l.b16 %v420
    %v1647 = vunpack.c.l.b16 %v421
    %v1648 = vunpack.c.l.b16 %v422
    %v1649 = vunpack.c.l.b16 %v423
    %v1650 = vunpack.c.l.b16 %v424
    %v1651 = vunpack.c.l.b16 %v425
    %v1652 = vunpack.c.l.b16 %v426
    %v1653 = vunpack.c.l.b16 %v427
    %v1654 = vunpack.c.l.b16 %v428
    %v1655 = vunpack.c.l.b16 %v429
    %v1656 = vunpack.c.l.b16 %v430
    %v1657 = vunpack.c.l.b16 %v431
    %v1658 = vunpack.c.l.b16 %v432
    %v1659 = vunpack.c.l.b16 %v433
    %v1660 = vunpack.c.l.b16 %v434
    %v1661 = vunpack.c.l.b16 %v435
    %v1662 = vunpack.c.l.b16 %v436
    %v1663 = vunpack.c.l.b16 %v437
    %v1664 = vunpack.c.l.b16 %v438
    %v1665 = vunpack.c.l.b16 %v439
    %v1666 = vunpack.c.l.b16 %v440
    %v1667 = vunpack.c.l.b16 %v441
    %v1668 = vunpack.c.l.b16 %v442
    %v1669 = vunpack.c.l.b16 %v443
    %v1670 = vunpack.c.l.b16 %v444
    %v1671 = vunpack.c.l.b16 %v445
    %v1672 = vunpack.c.l.b16 %v446
    %v1673 = vunpack.c.l.b16 %v447
    %v1674 = vunpack.c.l.b16 %v448
    %v1675 = vunpack.c.l.b16 %v449
    %v1676 = vunpack.c.l.b16 %v450
    %v1677 = vunpack.c.l.b16 %v451
    %v1678 = vunpack.c.l.b16 %v452
    %v1679 = vunpack.c.l.b16 %v453
    %v1680 = vunpack.c.l.b16 %v454
    %v1681 = vunpack.c.l.b16 %v455
    %v1682 = vunpack.c.l.b16 %v456
    %v1683 = vunpack.c.l.b16 %v457
    %v1684 = vunpack.c.l.b16 %v458
    %v1685 = vunpack.c.l.b16 %v459
    %v1686 = vunpack.c.l.b16 %v460
    %v1687 = vunpack.c.l.b16 %v461
    %v1688 = vunpack.c.l.b16 %v462
    %v1689 = vunpack.c.l.b16 %v463
    %v1690 = vunpack.c.l.b16 %v464
    %v1691 = vunpack.c.l.b16 %v465
    %v1692 = vunpack.c.l.b16 %v466
    %v1693 = vunpack.c.l.b16 %v467
    %v1694 = vunpack.c.l.b16 %v468
    %v1695 = vunpack.c.l.b16 %v469
    %v1696 = vunpack.c.l.b16 %v470
    %v1697 = vunpack.c.l.b16 %v471
    %v1698 = vunpack.c.l.b16 %v472
    %v1699 = vunpack.c.l.b16 %v473
    %v1700 = vunpack.c.l.b16 %v474
    %v1701 = vunpack.c.l.b16 %v475
    %v1702 = vunpack.c.l.b16 %v476
    %v1703 = vunpack.c.l.b16 %v477
    %v1704 = vunpack.c.l.b16 %v478
    %v1705 = vunpack.c.l.b16 %v479
    %v1706 = vunpack.c.l.b16 %v480
    %v1707 = vunpack.c.l.b16 %v481
    %v1708 = vunpack.c.l.b16 %v482
    %v1709 = vunpack.c.l.b16 %v483
    %v1710 = vunpack.c.l.b16 %v484
    %v1711 = vunpack.c.l.b16 %v485
    %v1712 = vunpack.c.l.b16 %v486
    %v1713 = vunpack.c.l.b16 %v487
    %v1714 = vunpack.c.l.b16 %v488
    %v1715 = vunpack.c.l.b16 %v489
    %v1716 = vunpack.c.l.b16 %v490
    %v1717 = vunpack.c.l.b16 %v491
    %v1718 = vunpack.c.l.b16 %v492
    %v1719 = vunpack.c.l.b16 %v493
    %v1720 = vunpack.c.l.b16 %v494
    %v1721 = vunpack.c.l.b16 %v495
    %v1722 = vunpack.c.l.b16 %v496
    %v1723 = vunpack.c.l.b16 %v497
    %v1724 = vunpack.c.l.b16 %v498
    %v1725 = vunpack.c.l.b16 %v499
    %v1726 = vunpack.c.l.b16 %v500
    %v1727 = vunpack.c.l.b16 %v501
    %v1728 = vunpack.c.l.b16 %v502
    %v1729 = vunpack.c.l.b16 %v503
    %v1730 = vunpack.c.l.b16 %v504
    %v1731 = vunpack.c.l.b16 %v505
    %v1732 = vunpack.c.l.b16 %v506
    %v1733 = vunpack.c.l.b16 %v507
    %v1734 = vunpack.c.l.b16 %v508
    %v1735 = vunpack.c.l.b16 %v509
    %v1736 = vunpack.c.l.b16 %v510
    %v1737 = vunpack.c.l.b16 %v511
    %v1738 = vunpack.c.l.b16 %v512
    %v1739 = vunpack.c.l.b16 %v513
    %v1740 = vunpack.c.l.b16 %v514
    %v1741 = vunpack.c.l.b16 %v515
    %v1742 = vunpack.c.l.b16 %v516
    %v1743 = vunpack.c.l.b16 %v517
    %v1744 = vunpack.c.l.b16 %v518
    %v1745 = vunpack.c.l.b16 %v519
    %v1746 = vunpack.c.l.b16 %v520
    %v1747 = vunpack.c.l.b16 %v521
    %v1748 = vunpack.c.l.b16 %v522
    %v1749 = vunpack.c.l.b16 %v523
    %v1750 = vunpack.c.l.b16 %v524
    %v1751 = vunpack.c.l.b16 %v525
    %v1752 = vunpack.c.l.b16 %v526
    %v1753 = vunpack.c.l.b16 %v527
    %v1754 = vunpack.c.l.b16 %v528
    %v1755 = vunpack.c.l.b16 %v529
    %v1756 = vunpack.c.l.b16 %v530
    %v1757 = vunpack.c.l.b16 %v531
    %v1758 = vunpack.c.l.b16 %v532
    %v1759 = vunpack.c.l.b16 %v533
    %v1760 = vunpack.c.l.b16 %v534
    %v1761 = vunpack.c.l.b16 %v535
    %v1762 = vunpack.c.l.b16 %v536
    %v1763 = vunpack.c.l.b16 %v537
    %v1764 = vunpack.c.l.b16 %v538
    %v1765 = vunpack.c.l.b16 %v539
    %v1766 = vunpack.c.l.b16 %v540
    %v1767 = vunpack.c.l.b16 %v541
    %v1768 = vunpack.c.l.b16 %v542
    %v1769 = vunpack.c.l.b16 %v543
    %v1770 = vunpack.c.l.b16 %v544
    %v1771 = vunpack.c.l.b16 %v545
    %v1772 = vunpack.c.l.b16 %v546
    %v1773 = vunpack.c.l.b16 %v547
    %v1774 = vunpack.c.l.b16 %v548
    %v1775 = vunpack.c.l.b16 %v549
    %v1776 = vunpack.c.l.b16 %v550
    %v1777 = vunpack.c.l.b16 %v551
    %v1778 = vunpack.c.l.b16 %v552
    %v1779 = vunpack.c.l.b16 %v553
    %v1780 = vunpack.c.l.b16 %v554
    %v1781 = vunpack.c.l.b16 %v555
    %v1782 = vunpack.c.l.b16 %v556
    %v1783 = vunpack.c.l.b16 %v557
    %v1784 = vunpack.c.l.b16 %v558
    %v1785 = vunpack.c.l.b16 %v559
    %v1786 = vunpack.c.l.b16 %v560
    %v1787 = vunpack.c.l.b16 %v561
    %v1788 = vunpack.c.l.b16 %v562
    %v1789 = vunpack.c.l.b16 %v563
    %v1790 = vunpack.c.l.b16 %v564
    %v1791 = vunpack.c.l.b16 %v565
    %v1792 = vunpack.c.l.b16 %v566
    %v1793 = vunpack.c.l.b16 %v567
    %v1794 = vunpack.c.l.b16 %v568
    %v1795 = vunpack.c.l.b16 %v569
    %v1796 = vunpack.c.l.b16 %v570
    %v1797 = vunpack.c.l.b16 %v571
    %v1798 = vunpack.c.l.b16 %v572
    %v1799 = vunpack.c.l.b16 %v573
    %v1800 = vunpack.c.l.b16 %v574
    %v1801 = vunpack.c.l.b16 %v575
    %v1802 = vunpack.c.l.b16 %v576
    %v1803 = vunpack.c.l.b16 %v577
    %v1804 = vunpack.c.l.b16 %v578
    %v1805 = vunpack.c.l.b16 %v579
    %v1806 = vunpack.c.l.b16 %v580
    %v1807 = vunpack.c.l.b16 %v581
    %v1808 = vunpack.c.l.b16 %v582
    %v1809 = vunpack.c.l.b16 %v583
    %v1810 = vunpack.c.l.b16 %v584
    %v1811 = vunpack.c.l.b16 %v585
    %v1812 = vunpack.c.l.b16 %v586
    %v1813 = vunpack.c.l.b16 %v587
    %v1814 = vunpack.c.l.b16 %v588
    %v1815 = vunpack.c.l.b16 %v589
    %v1816 = vunpack.c.l.b16 %v590
    %v1817 = vunpack.c.l.b16 %v591
    %v1818 = vunpack.c.l.b16 %v592
    %v1819 = vunpack.c.l.b16 %v593
    %v1820 = vunpack.c.l.b16 %v594
    %v1821 = vunpack.c.l.b16 %v595
    %v1822 = vunpack.c.l.b16 %v596
    %v1823 = vunpack.c.l.b16 %v597
    %v1824 = vunpack.c.l.b16 %v598
    %v1825 = vunpack.c.l.b16 %v599
    %v1826 = vunpack.c.l.b16 %v600
    %v1827 = vunpack.c.l.b16 %v601
    %v1828 = vunpack.c.l.b16 %v602
    %v1829 = vunpack.c.l.b16 %v603
    %v1830 = vunpack.c.l.b16 %v604
    %v1831 = vunpack.c.l.b16 %v605
    %v1832 = vunpack.c.l.b16 %v606
    %v1833 = vunpack.c.l.b16 %v607
    %v1834 = vunpack.c.l.b16 %v608
    %v1835 = vunpack.c.l.b16 %v609
    %v1836 = vunpack.c.l.b16 %v610
    %v1837 = vunpack.c.l.b16 %v611
    %v1838 = vunpack.c.l.b16 %v612
    %v1839 = vunpack.c.l.b16 %v613
    %v1840 = vunpack.c.l.b16 %v614
    %v1841 = vunpack.c.l.b16 %v615
    %v1842 = vunpack.c.l.b16 %v616
    %v1843 = vunpack.c.l.b16 %v617
    %v1844 = vunpack.c.l.b16 %v618
    %v1845 = vunpack.c.l.b16 %v619
    %v1846 = vunpack.c.l.b16 %v620
    %v1847 = vunpack.c.l.b16 %v621
    %v1848 = vunpack.c.l.b16 %v622
    %v1849 = vunpack.c.l.b16 %v623
    %v1850 = vunpack.c.l.b16 %v624
    %v1851 = vunpack.c.l.b16 %v625
    %v1852 = vunpack.c.l.b16 %v626
    %v1853 = vunpack.c.l.b16 %v627
    %v1854 = vunpack.c.l.b16 %v628
    %v1855 = vunpack.c.l.b16 %v629
    %v1856 = vunpack.c.l.b16 %v630
    %v1857 = vunpack.c.l.b16 %v631
    %v1858 = vunpack.c.l.b16 %v632
    %v1859 = vunpack.c.l.b16 %v633
    %v1860 = vunpack.c.l.b16 %v634
    %v1861 = vunpack.c.l.b16 %v635
    %v1862 = vunpack.c.l.b16 %v636
    %v1863 = vunpack.c.l.b16 %v637
    %v1864 = vunpack.c.l.b16 %v638
    %v1865 = vunpack.c.l.b16 %v639
    %v1866 = vunpack.c.l.b16 %v640
    %v1867 = vunpack.c.l.b16 %v641
    %v1868 = vunpack.c.l.b16 %v642
    %v1869 = vunpack.c.l.b16 %v643
    %v1870 = vunpack.c.l.b16 %v644
    %v1871 = vunpack.c.l.b16 %v645
    %v1872 = vunpack.c.l.b16 %v646
    %v1873 = vunpack.c.l.b16 %v647
    %v1874 = vunpack.c.l.b16 %v648
    %v1875 = vunpack.c.l.b16 %v649
    %v1876 = vunpack.c.l.b16 %v650
    %v1877 = vunpack.c.l.b16 %v651
    %v1878 = vunpack.c.l.b16 %v652
    %v1879 = vunpack.c.l.b16 %v653
    %v1880 = vunpack.c.l.b16 %v654
    %v1881 = vunpack.c.l.b16 %v655
    %v1882 = vunpack.c.l.b16 %v656
    %v1883 = vunpack.c.l.b16 %v657
    %v1884 = vunpack.c.l.b16 %v658
    %v1885 = vunpack.c.l.b16 %v659
    %v1886 = vunpack.c.l.b16 %v660
    %v1887 = vunpack.c.l.b16 %v661
    %v1888 = vunpack.c.l.b16 %v662
    %v1889 = vunpack.c.l.b16 %v663
    %v1890 = vunpack.c.l.b16 %v664
    %v1891 = vunpack.c.l.b16 %v665
    %v1892 = vunpack.c.l.b16 %v666
    %v1893 = vunpack.c.l.b16 %v667
    %v1894 = vunpack.c.l.b16 %v668
    %v1895 = vunpack.c.l.b16 %v669
    %v1896 = vunpack.c.l.b16 %v670
    %v1897 = vunpack.c.l.b16 %v671
    %v1898 = vunpack.c.l.b16 %v672
    %v1899 = vunpack.c.l.b16 %v673
    %v1900 = vunpack.c.l.b16 %v674
    %v1901 = vunpack.c.l.b16 %v675
    %v1902 = vunpack.c.l.b16 %v676
    %v1903 = vunpack.c.l.b16 %v677
    %v1904 = vunpack.c.l.b16 %v678
    %v1905 = vunpack.c.l.b16 %v679
    %v1906 = vunpack.c.l.b16 %v680
    %v1907 = vunpack.c.l.b16 %v681
    %v1908 = vunpack.c.l.b16 %v682
    %v1909 = vunpack.c.l.b16 %v683
    %v1910 = vunpack.c.l.b16 %v684
    %v1911 = vunpack.c.l.b16 %v685
    %v1912 = vunpack.c.l.b16 %v686
    %v1913 = vunpack.c.l.b16 %v687
    %v1914 = vunpack.c.l.b16 %v688
    %v1915 = vunpack.c.l.b16 %v689
    %v1916 = vunpack.c.l.b16 %v690
    %v1917 = vunpack.c.l.b16 %v691
    %v1918 = vunpack.c.l.b16 %v692
    %v1919 = vunpack.c.l.b16 %v693
    %v1920 = vunpack.c.l.b16 %v694
    %v1921 = vunpack.c.l.b16 %v695
    %v1922 = vunpack.c.l.b16 %v696
    %v1923 = vunpack.c.l.b16 %v697
    %v1924 = vunpack.c.l.b16 %v698
    %v1925 = vunpack.c.l.b16 %v699
    %v1926 = vunpack.c.l.b16 %v700
    %v1927 = vunpack.c.l.b16 %v701
    %v1928 = vunpack.c.l.b16 %v702
    %v1929 = vunpack.c.l.b16 %v703
    %v1930 = vunpack.c.l.b16 %v704
    %v1931 = vunpack.c.l.b16 %v705
    %v1932 = vunpack.c.l.b16 %v706
    %v1933 = vunpack.c.l.b16 %v707
    %v1934 = vunpack.c.l.b16 %v708
    %v1935 = vunpack.c.l.b16 %v709
    %v1936 = vunpack.c.l.b16 %v710
    %v1937 = vunpack.c.l.b16 %v711
    %v1938 = vunpack.c.l.b16 %v712
    %v1939 = vunpack.c.l.b16 %v713
    %v1940 = vunpack.c.l.b16 %v714
    %v1941 = vunpack.c.l.b16 %v715
    %v1942 = vunpack.c.l.b16 %v716
    %v1943 = vunpack.c.l.b16 %v717
    %v1944 = vunpack.c.l.b16 %v718
    %v1945 = vunpack.c.l.b16 %v719
    %v1946 = vunpack.c.l.b16 %v720
    %v1947 = vunpack.c.l.b16 %v721
    %v1948 = vunpack.c.l.b16 %v722
    %v1949 = vunpack.c.l.b16 %v723
    %v1950 = vunpack.c.l.b16 %v724
    %v1951 = vunpack.c.l.b16 %v725
    %v1952 = vunpack.c.l.b16 %v726
    %v1953 = vunpack.c.l.b16 %v727
    %v1954 = vunpack.c.l.b16 %v728
    %v1955 = vunpack.c.l.b16 %v729
    %v1956 = vunpack.c.l.b16 %v730
    %v1957 = vunpack.c.l.b16 %v731
    %v1958 = vunpack.c.l.b16 %v732
    %v1959 = vunpack.c.l.b16 %v733
    %v1960 = vunpack.c.l.b16 %v734
    %v1961 = vunpack.c.l.b16 %v735
    %v1962 = vunpack.c.l.b16 %v736
    %v1963 = vunpack.c.l.b16 %v737
    %v1964 = vunpack.c.l.b16 %v738
    %v1965 = vunpack.c.l.b16 %v739
    %v1966 = vunpack.c.l.b16 %v740
    %v1967 = vunpack.c.l.b16 %v741
    %v1968 = vunpack.c.l.b16 %v742
    %v1969 = vunpack.c.l.b16 %v743
    %v1970 = vunpack.c.l.b16 %v744
    %v1971 = vunpack.c.l.b16 %v745
    %v1972 = vunpack.c.l.b16 %v746
    %v1973 = vunpack.c.l.b16 %v747
    %v1974 = vunpack.c.l.b16 %v748
    %v1975 = vunpack.c.l.b16 %v749
    %v1976 = vunpack.c.l.b16 %v750
    %v1977 = vunpack.c.l.b16 %v751
    %v1978 = vunpack.c.l.b16 %v752
    %v1979 = vunpack.c.l.b16 %v753
    %v1980 = vunpack.c.l.b16 %v754
    %v1981 = vunpack.c.l.b16 %v755
    %v1982 = vunpack.c.l.b16 %v756
    %v1983 = vunpack.c.l.b16 %v757
    %v1984 = vunpack.c.l.b16 %v758
    %v1985 = vunpack.c.l.b16 %v759
    %v1986 = vunpack.c.l.b16 %v760
    %v1987 = vunpack.c.l.b16 %v761
    %v1988 = vunpack.c.l.b16 %v762
    %v1989 = vunpack.c.l.b16 %v763
    %v1990 = vunpack.c.l.b16 %v764
    %v1991 = vunpack.c.l.b16 %v765
    %v1992 = vunpack.c.l.b16 %v766
    %v1993 = vunpack.c.l.b16 %v767
    %v1994 = vunpack.c.l.b16 %v768
    %v1995 = vunpack.c.l.b16 %v769
    %v1996 = vunpack.c.l.b16 %v770
    %v1997 = vunpack.c.l.b16 %v771
    %v1998 = vunpack.c.l.b16 %v772
    %v1999 = vunpack.c.l.b16 %v773
    %v2000 = vunpack.c.l.b16 %v774
    %v2001 = vunpack.c.l.b16 %v775
    %v2002 = vunpack.c.l.b16 %v776
    %v2003 = vunpack.c.l.b16 %v777
    %v2004 = vunpack.c.l.b16 %v778
    %v2005 = vunpack.c.l.b16 %v779
    %v2006 = vunpack.c.l.b16 %v780
    %v2007 = vunpack.c.l.b16 %v781
    %v2008 = vunpack.c.l.b16 %v782
    %v2009 = vunpack.c.l.b16 %v783
    %v2010 = vunpack.c.l.b16 %v784
    %v2011 = vunpack.c.l.b16 %v785
    %v2012 = vunpack.c.l.b16 %v786
    %v2013 = vunpack.c.l.b16 %v787
    %v2014 = vunpack.c.l.b16 %v788
    %v2015 = vunpack.c.l.b16 %v789
    %v2016 = vunpack.c.l.b16 %v790
    %v2017 = vunpack.c.l.b16 %v791
    %v2018 = vunpack.c.l.b16 %v792
    %v2019 = vunpack.c.l.b16 %v793
    %v2020 = vunpack.c.l.b16 %v794
    %v2021 = vunpack.c.l.b16 %v795
    %v2022 = vunpack.c.l.b16 %v796
    %v2023 = vunpack.c.l.b16 %v797
    %v2024 = vunpack.c.l.b16 %v798
    %v2025 = vunpack.c.l.b16 %v799
    %v2026 = vunpack.c.l.b16 %v800
    %v2027 = vunpack.c.l.b16 %v801
    %v2028 = vunpack.c.l.b16 %v802
    %v2029 = vunpack.c.l.b16 %v803
    %v2030 = vunpack.c.l.b16 %v804
    %v2031 = vunpack.c.l.b16 %v805
    %v2032 = vunpack.c.l.b16 %v806
    %v2033 = vunpack.c.l.b16 %v807
    %v2034 = vunpack.c.l.b16 %v808
    %v2035 = vunpack.c.l.b16 %v809
    %v2036 = vunpack.c.l.b16 %v810
    %v2037 = vunpack.c.l.b16 %v811
    %v2038 = vunpack.c.l.b16 %v812
    %v2039 = vunpack.c.l.b16 %v813
    %v2040 = vunpack.c.l.b16 %v814
    %v2041 = vunpack.c.l.b16 %v815
    %v2042 = vunpack.c.l.b16 %v816
    %v2043 = vunpack.c.l.b16 %v817
    %v2044 = vunpack.c.l.b16 %v818
    %v2045 = vunpack.c.l.b16 %v819
    %v2046 = vunpack.c.l.b16 %v820
    %v2047 = vunpack.c.l.b16 %v821
    %v2048 = vunpack.c.l.b16 %v822
    %v2049 = vunpack.c.l.b16 %v823
    %v2050 = vunpack.c.l.b16 %v824
    %v2051 = vunpack.c.l.b16 %v825
    %v2052 = vunpack.c.l.b16 %v826
    %v2053 = vunpack.c.l.b16 %v827
    %v2054 = vunpack.c.l.b16 %v828
    %v2055 = vunpack.c.l.b16 %v829
    %v2056 = vunpack.c.l.b16 %v830
    %v2057 = vunpack.c.l.b16 %v831
    %v2058 = vunpack.c.l.b16 %v832
    %v2059 = vunpack.c.l.b16 %v833
    %v2060 = vunpack.c.l.b16 %v834
    %v2061 = vpack.c.b16 %v1470, %v1469
    %v2062 = vpack.c.b16 %v1472, %v1471
    %v2063 = vpack.c.b16 %v1474, %v1473
    %v2064 = vpack.c.b16 %v1476, %v1475
    %v2065 = vpack.c.b16 %v1478, %v1477
    %v2066 = vpack.c.b16 %v1480, %v1479
    %v2067 = vpack.c.b16 %v1482, %v1481
    %v2068 = vpack.c.b16 %v1484, %v1483
    %v2069 = vpack.c.b16 %v1486, %v1485
    %v2070 = vpack.c.b16 %v1488, %v1487
    %v2071 = vpack.c.b16 %v1490, %v1489
    %v2072 = vpack.c.b16 %v1492, %v1491
    %v2073 = vpack.c.b16 %v1494, %v1493
    %v2074 = vpack.c.b16 %v1496, %v1495
    %v2075 = vpack.c.b16 %v1498, %v1497
    %v2076 = vpack.c.b16 %v1500, %v1499
    %v2077 = vpack.c.b16 %v1502, %v1501
    %v2078 = vpack.c.b16 %v1504, %v1503
    %v2079 = vpack.c.b16 %v1506, %v1505
    %v2080 = vpack.c.b16 %v1508, %v1507
    %v2081 = vpack.c.b16 %v1510, %v1509
    %v2082 = vpack.c.b16 %v1512, %v1511
    %v2083 = vpack.c.b16 %v1514, %v1513
    %v2084 = vpack.c.b16 %v1516, %v1515
    %v2085 = vpack.c.b16 %v1518, %v1517
    %v2086 = vpack.c.b16 %v1520, %v1519
    %v2087 = vpack.c.b16 %v1522, %v1521
    %v2088 = vpack.c.b16 %v1524, %v1523
    %v2089 = vpack.c.b16 %v1526, %v1525
    %v2090 = vpack.c.b16 %v1528, %v1527
    %v2091 = vpack.c.b16 %v1530, %v1529
    %v2092 = vpack.c.b16 %v1532, %v1531
    %v2093 = vpack.c.b16 %v1534, %v1533
    %v2094 = vpack.c.b16 %v1536, %v1535
    %v2095 = vpack.c.b16 %v1538, %v1537
    %v2096 = vpack.c.b16 %v1540, %v1539
    %v2097 = vpack.c.b16 %v1542, %v1541
    %v2098 = vpack.c.b16 %v1544, %v1543
    %v2099 = vpack.c.b16 %v1546, %v1545
    %v2100 = vpack.c.b16 %v1548, %v1547
    %v2101 = vpack.c.b16 %v1550, %v1549
    %v2102 = vpack.c.b16 %v1552, %v1551
    %v2103 = vpack.c.b16 %v1554, %v1553
    %v2104 = vpack.c.b16 %v1556, %v1555
    %v2105 = vpack.c.b16 %v1558, %v1557
    %v2106 = vpack.c.b16 %v1560, %v1559
    %v2107 = vpack.c.b16 %v1562, %v1561
    %v2108 = vpack.c.b16 %v1564, %v1563
    %v2109 = vpack.c.b16 %v1566, %v1565
    %v2110 = vpack.c.b16 %v1568, %v1567
    %v2111 = vpack.c.b16 %v1570, %v1569
    %v2112 = vpack.c.b16 %v1572, %v1571
    %v2113 = vpack.c.b16 %v1574, %v1573
    %v2114 = vpack.c.b16 %v1576, %v1575
    %v2115 = vpack.c.b16 %v1578, %v1577
    %v2116 = vpack.c.b16 %v1580, %v1579
    %v2117 = vpack.c.b16 %v1582, %v1581
    %v2118 = vpack.c.b16 %v1584, %v1583
    %v2119 = vpack.c.b16 %v1586, %v1585
    %v2120 = vpack.c.b16 %v1588, %v1587
    %v2121 = vpack.c.b16 %v1590, %v1589
    %v2122 = vpack.c.b16 %v1592, %v1591
    %v2123 = vpack.c.b16 %v1594, %v1593
    %v2124 = vpack.c.b16 %v1596, %v1595
    %v2125 = vpack.c.b16 %v1598, %v1597
    %v2126 = vpack.c.b16 %v1600, %v1599
    %v2127 = vpack.c.b16 %v1602, %v1601
    %v2128 = vpack.c.b16 %v1604, %v1603
    %v2129 = vpack.c.b16 %v1606, %v1605
    %v2130 = vpack.c.b16 %v1608, %v1607
    %v2131 = vpack.c.b16 %v1610, %v1609
    %v2132 = vpack.c.b16 %v1612, %v1611
    %v2133 = vpack.c.b16 %v1614, %v1613
    %v2134 = vpack.c.b16 %v1616, %v1615
    %v2135 = vpack.c.b16 %v1618, %v1617
    %v2136 = vpack.c.b16 %v1620, %v1619
    %v2137 = vpack.c.b16 %v1622, %v1621
    %v2138 = vpack.c.b16 %v1624, %v1623
    %v2139 = vpack.c.b16 %v1626, %v1625
    %v2140 = vpack.c.b16 %v1628, %v1627
    %v2141 = vpack.c.b16 %v1630, %v1629
    %v2142 = vpack.c.b16 %v1632, %v1631
    %v2143 = vpack.c.b16 %v1634, %v1633
    %v2144 = vpack.c.b16 %v1636, %v1635
    %v2145 = vpack.c.b16 %v1638, %v1637
    %v2146 = vpack.c.b16 %v1640, %v1639
    %v2147 = vpack.c.b16 %v1642, %v1641
    %v2148 = vpack.c.b16 %v1644, %v1643
    %v2149 = vpack.c.b16 %v1646, %v1645
    %v2150 = vpack.c.b16 %v1648, %v1647
    %v2151 = vpack.c.b16 %v1650, %v1649
    %v2152 = vpack.c.b16 %v1652, %v1651
    %v2153 = vpack.c.b16 %v1654, %v1653
    %v2154 = vpack.c.b16 %v1656, %v1655
    %v2155 = vpack.c.b16 %v1658, %v1657
    %v2156 = vpack.c.b16 %v1660, %v1659
    %v2157 = vpack.c.b16 %v1662, %v1661
    %v2158 = vpack.c.b16 %v1664, %v1663
    %v2159 = vpack.c.b16 %v1666, %v1665
    %v2160 = vpack.c.b16 %v1668, %v1667
    %v2161 = vpack.c.b16 %v1670, %v1669
    %v2162 = vpack.c.b16 %v1672, %v1671
    %v2163 = vpack.c.b16 %v1674, %v1673
    %v2164 = vpack.c.b16 %v1676, %v1675
    %v2165 = vpack.c.b16 %v1678, %v1677
    %v2166 = vpack.c.b16 %v1680, %v1679
    %v2167 = vpack.c.b16 %v1682, %v1681
    %v2168 = vpack.c.b16 %v1684, %v1683
    %v2169 = vpack.c.b16 %v1686, %v1685
    %v2170 = vpack.c.b16 %v1688, %v1687
    %v2171 = vpack.c.b16 %v1690, %v1689
    %v2172 = vpack.c.b16 %v1692, %v1691
    %v2173 = vpack.c.b16 %v1694, %v1693
    %v2174 = vpack.c.b16 %v1696, %v1695
    %v2175 = vpack.c.b16 %v1698, %v1697
    %v2176 = vpack.c.b16 %v1700, %v1699
    %v2177 = vpack.c.b16 %v1702, %v1701
    %v2178 = vpack.c.b16 %v1704, %v1703
    %v2179 = vpack.c.b16 %v1706, %v1705
    %v2180 = vpack.c.b16 %v1708, %v1707
    %v2181 = vpack.c.b16 %v1710, %v1709
    %v2182 = vpack.c.b16 %v1712, %v1711
    %v2183 = vpack.c.b16 %v1714, %v1713
    %v2184 = vpack.c.b16 %v1716, %v1715
    %v2185 = vpack.c.b16 %v1718, %v1717
    %v2186 = vpack.c.b16 %v1720, %v1719
    %v2187 = vpack.c.b16 %v1722, %v1721
    %v2188 = vpack.c.b16 %v1724, %v1723
    %v2189 = vpack.c.b16 %v1726, %v1725
    %v2190 = vpack.c.b16 %v1728, %v1727
    %v2191 = vpack.c.b16 %v1730, %v1729
    %v2192 = vpack.c.b16 %v1732, %v1731
    %v2193 = vpack.c.b16 %v1734, %v1733
    %v2194 = vpack.c.b16 %v1736, %v1735
    %v2195 = vpack.c.b16 %v1738, %v1737
    %v2196 = vpack.c.b16 %v1740, %v1739
    %v2197 = vpack.c.b16 %v1742, %v1741
    %v2198 = vpack.c.b16 %v1744, %v1743
    %v2199 = vpack.c.b16 %v1746, %v1745
    %v2200 = vpack.c.b16 %v1748, %v1747
    %v2201 = vpack.c.b16 %v1750, %v1749
    %v2202 = vpack.c.b16 %v1752, %v1751
    %v2203 = vpack.c.b16 %v1754, %v1753
    %v2204 = vpack.c.b16 %v1756, %v1755
    %v2205 = vpack.c.b16 %v1758, %v1757
    %v2206 = vpack.c.b16 %v1760, %v1759
    %v2207 = vpack.c.b16 %v1762, %v1761
    %v2208 = vpack.c.b16 %v1764, %v1763
    %v2209 = vpack.c.b16 %v1766, %v1765
    %v2210 = vpack.c.b16 %v1768, %v1767
    %v2211 = vpack.c.b16 %v1770, %v1769
    %v2212 = vpack.c.b16 %v1772, %v1771
    %v2213 = vpack.c.b16 %v1774, %v1773
    %v2214 = vpack.c.b16 %v1776, %v1775
    %v2215 = vpack.c.b16 %v1778, %v1777
    %v2216 = vpack.c.b16 %v1780, %v1779
    %v2217 = vpack.c.b16 %v1782, %v1781
    %v2218 = vpack.c.b16 %v1784, %v1783
    %v2219 = vpack.c.b16 %v1786, %v1785
    %v2220 = vpack.c.b16 %v1788, %v1787
    %v2221 = vpack.c.b16 %v1790, %v1789
    %v2222 = vpack.c.b16 %v1792, %v1791
    %v2223 = vpack.c.b16 %v1794, %v1793
    %v2224 = vpack.c.b16 %v1796, %v1795
    %v2225 = vpack.c.b16 %v1798, %v1797
    %v2226 = vpack.c.b16 %v1800, %v1799
    %v2227 = vpack.c.b16 %v1802, %v1801
    %v2228 = vpack.c.b16 %v1804, %v1803
    %v2229 = vpack.c.b16 %v1806, %v1805
    %v2230 = vpack.c.b16 %v1808, %v1807
    %v2231 = vpack.c.b16 %v1810, %v1809
    %v2232 = vpack.c.b16 %v1812, %v1811
    %v2233 = vpack.c.b16 %v1814, %v1813
    %v2234 = vpack.c.b16 %v1816, %v1815
    %v2235 = vpack.c.b16 %v1818, %v1817
    %v2236 = vpack.c.b16 %v1820, %v1819
    %v2237 = vpack.c.b16 %v1822, %v1821
    %v2238 = vpack.c.b16 %v1824, %v1823
    %v2239 = vpack.c.b16 %v1826, %v1825
    %v2240 = vpack.c.b16 %v1828, %v1827
    %v2241 = vpack.c.b16 %v1830, %v1829
    %v2242 = vpack.c.b16 %v1832, %v1831
    %v2243 = vpack.c.b16 %v1834, %v1833
    %v2244 = vpack.c.b16 %v1836, %v1835
    %v2245 = vpack.c.b16 %v1838, %v1837
    %v2246 = vpack.c.b16 %v1840, %v1839
    %v2247 = vpack.c.b16 %v1842, %v1841
    %v2248 = vpack.c.b16 %v1844, %v1843
    %v2249 = vpack.c.b16 %v1846, %v1845
    %v2250 = vpack.c.b16 %v1848, %v1847
    %v2251 = vpack.c.b16 %v1850, %v1849
    %v2252 = vpack.c.b16 %v1852, %v1851
    %v2253 = vpack.c.b16 %v1854, %v1853
    %v2254 = vpack.c.b16 %v1856, %v1855
    %v2255 = vpack.c.b16 %v1858, %v1857
    %v2256 = vpack.c.b16 %v1860, %v1859
    %v2257 = vpack.c.b16 %v1862, %v1861
    %v2258 = vpack.c.b16 %v1864, %v1863
    %v2259 = vpack.c.b16 %v1866, %v1865
    %v2260 = vpack.c.b16 %v1868, %v1867
    %v2261 = vpack.c.b16 %v1870, %v1869
    %v2262 = vpack.c.b16 %v1872, %v1871
    %v2263 = vpack.c.b16 %v1874, %v1873
    %v2264 = vpack.c.b16 %v1876, %v1875
    %v2265 = vpack.c.b16 %v1878, %v1877
    %v2266 = vpack.c.b16 %v1880, %v1879
    %v2267 = vpack.c.b16 %v1882, %v1881
    %v2268 = vpack.c.b16 %v1884, %v1883
    %v2269 = vpack.c.b16 %v1886, %v1885
    %v2270 = vpack.c.b16 %v1888, %v1887
    %v2271 = vpack.c.b16 %v1890, %v1889
    %v2272 = vpack.c.b16 %v1892, %v1891
    %v2273 = vpack.c.b16 %v1894, %v1893
    %v2274 = vpack.c.b16 %v1896, %v1895
    %v2275 = vpack.c.b16 %v1898, %v1897
    %v2276 = vpack.c.b16 %v1900, %v1899
    %v2277 = vpack.c.b16 %v1902, %v1901
    %v2278 = vpack.c.b16 %v1904, %v1903
    %v2279 = vpack.c.b16 %v1906, %v1905
    %v2280 = vpack.c.b16 %v1908, %v1907
    %v2281 = vpack.c.b16 %v1910, %v1909
    %v2282 = vpack.c.b16 %v1912, %v1911
    %v2283 = vpack.c.b16 %v1914, %v1913
    %v2284 = vpack.c.b16 %v1916, %v1915
    %v2285 = vpack.c.b16 %v1918, %v1917
    %v2286 = vpack.c.b16 %v1920, %v1919
    %v2287 = vpack.c.b16 %v1922, %v1921
    %v2288 = vpack.c.b16 %v1924, %v1923
    %v2289 = vpack.c.b16 %v1926, %v1925
    %v2290 = vpack.c.b16 %v1928, %v1927
    %v2291 = vpack.c.b16 %v1930, %v1929
    %v2292 = vpack.c.b16 %v1932, %v1931
    %v2293 = vpack.c.b16 %v1934, %v1933
    %v2294 = vpack.c.b16 %v1936, %v1935
    %v2295 = vpack.c.b16 %v1938, %v1937
    %v2296 = vpack.c.b16 %v1940, %v1939
    %v2297 = vpack.c.b16 %v1942, %v1941
    %v2298 = vpack.c.b16 %v1944, %v1943
    %v2299 = vpack.c.b16 %v1946, %v1945
    %v2300 = vpack.c.b16 %v1948, %v1947
    %v2301 = vpack.c.b16 %v1950, %v1949
    %v2302 = vpack.c.b16 %v1952, %v1951
    %v2303 = vpack.c.b16 %v1954, %v1953
    %v2304 = vpack.c.b16 %v1956, %v1955
    %v2305 = vpack.c.b16 %v1958, %v1957
    %v2306 = vpack.c.b16 %v1960, %v1959
    %v2307 = vpack.c.b16 %v1962, %v1961
    %v2308 = vpack.c.b16 %v1964, %v1963
    %v2309 = vpack.c.b16 %v1966, %v1965
    %v2310 = vpack.c.b16 %v1968, %v1967
    %v2311 = vpack.c.b16 %v1970, %v1969
    %v2312 = vpack.c.b16 %v1972, %v1971
    %v2313 = vpack.c.b16 %v1974, %v1973
    %v2314 = vpack.c.b16 %v1976, %v1975
    %v2315 = vpack.c.b16 %v1978, %v1977
    %v2316 = vpack.c.b16 %v1980, %v1979
    %v2317 = vpack.c.b16 %v1982, %v1981
    %v2318 = vpack.c.b16 %v1984, %v1983
    %v2319 = vpack.c.b16 %v1986, %v1985
    %v2320 = vpack.c.b16 %v1988, %v1987
    %v2321 = vpack.c.b16 %v1990, %v1989
    %v2322 = vpack.c.b16 %v1992, %v1991
    %v2323 = vpack.c.b16 %v1994, %v1993
    %v2324 = vpack.c.b16 %v1996, %v1995
    %v2325 = vpack.c.b16 %v1998, %v1997
    %v2326 = vpack.c.b16 %v2000, %v1999
    %v2327 = vpack.c.b16 %v2002, %v2001
    %v2328 = vpack.c.b16 %v2004, %v2003
    %v2329 = vpack.c.b16 %v2006, %v2005
    %v2330 = vpack.c.b16 %v2008, %v2007
    %v2331 = vpack.c.b16 %v2010, %v2009
    %v2332 = vpack.c.b16 %v2012, %v2011
    %v2333 = vpack.c.b16 %v2014, %v2013
    %v2334 = vpack.c.b16 %v2016, %v2015
    %v2335 = vpack.c.b16 %v2018, %v2017
    %v2336 = vpack.c.b16 %v2020, %v2019
    %v2337 = vpack.c.b16 %v2022, %v2021
    %v2338 = vpack.c.b16 %v2024, %v2023
    %v2339 = vpack.c.b16 %v2026, %v2025
    %v2340 = vpack.c.b16 %v2028, %v2027
    %v2341 = vpack.c.b16 %v2030, %v2029
    %v2342 = vpack.c.b16 %v2032, %v2031
    %v2343 = vpack.c.b16 %v2034, %v2033
    %v2344 = vpack.c.b16 %v2036, %v2035
    %v2345 = vpack.c.b16 %v2038, %v2037
    %v2346 = vpack.c.b16 %v2040, %v2039
    %v2347 = vpack.c.b16 %v2042, %v2041
    %v2348 = vpack.c.b16 %v2044, %v2043
    %v2349 = vpack.c.b16 %v2046, %v2045
    %v2350 = vpack.c.b16 %v2048, %v2047
    %v2351 = vpack.c.b16 %v2050, %v2049
    %v2352 = vpack.c.b16 %v2052, %v2051
    %v2353 = vpack.c.b16 %v2054, %v2053
    %v2354 = vpack.c.b16 %v2056, %v2055
    %v2355 = vpack.c.b16 %v2058, %v2057
    %v2356 = vpack.c.b16 %v2060, %v2059
    %2653 = vmatprep.subr.bf16.mxu0 0
    %2654 = vmatpush1.bf16.msra.mxu0 %v2061
    %2655 = vmatprep.subr.bf16.mxu0 0
    %2656 = vmatpush1.bf16.msra.mxu0 %v2062
    %2657 = vmatprep.subr.bf16.mxu0 0
    %2658 = vmatpush1.bf16.msra.mxu0 %v2063
    %2659 = vmatprep.subr.bf16.mxu0 0
    %2660 = vmatpush1.bf16.msra.mxu0 %v2064
    %2661 = vmatprep.subr.bf16.mxu0 0
    %2662 = vmatpush1.bf16.msra.mxu0 %v2065
    %2663 = vmatprep.subr.bf16.mxu0 0
    %2664 = vmatpush1.bf16.msra.mxu0 %v2066
    %2665 = vmatprep.subr.bf16.mxu0 0
    %2666 = vmatpush1.bf16.msra.mxu0 %v2067
    %2667 = vmatprep.subr.bf16.mxu0 0
    %2668 = vmatpush1.bf16.msra.mxu0 %v2068
    %2669 = vmatprep.subr.bf16.mxu0 0
    %2670 = vmatpush1.bf16.msra.mxu0 %v2069
    %2671 = vmatprep.subr.bf16.mxu0 0
    %2672 = vmatpush1.bf16.msra.mxu0 %v2070
    %2673 = vmatprep.subr.bf16.mxu0 0
    %2674 = vmatpush1.bf16.msra.mxu0 %v2071
    %2675 = vmatprep.subr.bf16.mxu0 0
    %2676 = vmatpush1.bf16.msra.mxu0 %v2072
    %2677 = vmatprep.subr.bf16.mxu0 0
    %2678 = vmatpush1.bf16.msra.mxu0 %v2073
    %2679 = vmatprep.subr.bf16.mxu0 0
    %2680 = vmatpush1.bf16.msra.mxu0 %v2074
    %2681 = vmatprep.subr.bf16.mxu0 0
    %2682 = vmatpush1.bf16.msra.mxu0 %v2075
    %2683 = vmatprep.subr.bf16.mxu0 0
    %2684 = vmatpush1.bf16.msra.mxu0 %v2076
    %2685 = vmatprep.mubr.bf16.mxu0 %v837
    %2686 = vmatmul.mubr.bf16.gmra.mrb[0].mxu0 %v836
    %v2687 = vpop.f32.mrb[0].mxu0
    %v2688 = vadd.f32 %v876, %v2687
    %v2689 = vpop.f32.mrb[0].mxu0
    %v2690 = vpop.f32.mrb[0].mxu0
    %v2691 = vpop.f32.mrb[0].mxu0
    %2692 = vdwg.mxu0
    %2693 = vmatprep.subr.bf16.mxu0 0
    %2694 = vmatpush1.bf16.msra.mxu0 %v2077
    %2695 = vmatprep.subr.bf16.mxu0 0
    %2696 = vmatpush1.bf16.msra.mxu0 %v2078
    %2697 = vmatprep.subr.bf16.mxu0 0
    %2698 = vmatpush1.bf16.msra.mxu0 %v2079
    %2699 = vmatprep.subr.bf16.mxu0 0
    %2700 = vmatpush1.bf16.msra.mxu0 %v2080
    %2701 = vmatprep.subr.bf16.mxu0 0
    %2702 = vmatpush1.bf16.msra.mxu0 %v2081
    %2703 = vmatprep.subr.bf16.mxu0 0
    %2704 = vmatpush1.bf16.msra.mxu0 %v2082
    %2705 = vmatprep.subr.bf16.mxu0 0
    %2706 = vmatpush1.bf16.msra.mxu0 %v2083
    %2707 = vmatprep.subr.bf16.mxu0 0
    %2708 = vmatpush1.bf16.msra.mxu0 %v2084
    %2709 = vmatprep.subr.bf16.mxu0 0
    %2710 = vmatpush1.bf16.msra.mxu0 %v2085
    %2711 = vmatprep.subr.bf16.mxu0 0
    %2712 = vmatpush1.bf16.msra.mxu0 %v2086
    %2713 = vmatprep.subr.bf16.mxu0 0
    %2714 = vmatpush1.bf16.msra.mxu0 %v2087
    %2715 = vmatprep.subr.bf16.mxu0 0
    %2716 = vmatpush1.bf16.msra.mxu0 %v2088
    %2717 = vmatprep.subr.bf16.mxu0 0
    %2718 = vmatpush1.bf16.msra.mxu0 %v2089
    %2719 = vmatprep.subr.bf16.mxu0 0
    %2720 = vmatpush1.bf16.msra.mxu0 %v2090
    %2721 = vmatprep.subr.bf16.mxu0 0
    %2722 = vmatpush1.bf16.msra.mxu0 %v2091
    %2723 = vmatprep.subr.bf16.mxu0 0
    %2724 = vmatpush1.bf16.msra.mxu0 %v2092
    %2725 = vmatprep.mubr.bf16.mxu0 %v839
    %2726 = vmatmul.mubr.bf16.gmra.mrb[0].mxu0 %v838
    %v2727 = vpop.f32.mrb[0].mxu0
    %v2728 = vadd.f32 %v2688, %v2727
    %v2729 = vpop.f32.mrb[0].mxu0
    %v2730 = vpop.f32.mrb[0].mxu0
    %v2731 = vpop.f32.mrb[0].mxu0
    %2732 = vdwg.mxu0
    %2733 = vmatprep.subr.bf16.mxu0 0
    %2734 = vmatpush1.bf16.msra.mxu0 %v2093
    %2735 = vmatprep.subr.bf16.mxu0 0
    %2736 = vmatpush1.bf16.msra.mxu0 %v2094
    %2737 = vmatprep.subr.bf16.mxu0 0
    %2738 = vmatpush1.bf16.msra.mxu0 %v2095
    %2739 = vmatprep.subr.bf16.mxu0 0
    %2740 = vmatpush1.bf16.msra.mxu0 %v2096
    %2741 = vmatprep.subr.bf16.mxu0 0
    %2742 = vmatpush1.bf16.msra.mxu0 %v2097
    %2743 = vmatprep.subr.bf16.mxu0 0
    %2744 = vmatpush1.bf16.msra.mxu0 %v2098
    %2745 = vmatprep.subr.bf16.mxu0 0
    %2746 = vmatpush1.bf16.msra.mxu0 %v2099
    %2747 = vmatprep.subr.bf16.mxu0 0
    %2748 = vmatpush1.bf16.msra.mxu0 %v2100
    %2749 = vmatprep.subr.bf16.mxu0 0
    %2750 = vmatpush1.bf16.msra.mxu0 %v2101
    %2751 = vmatprep.subr.bf16.mxu0 0
    %2752 = vmatpush1.bf16.msra.mxu0 %v2102
    %2753 = vmatprep.subr.bf16.mxu0 0
    %2754 = vmatpush1.bf16.msra.mxu0 %v2103
    %2755 = vmatprep.subr.bf16.mxu0 0
    %2756 = vmatpush1.bf16.msra.mxu0 %v2104
    %2757 = vmatprep.subr.bf16.mxu0 0
    %2758 = vmatpush1.bf16.msra.mxu0 %v2105
    %2759 = vmatprep.subr.bf16.mxu0 0
    %2760 = vmatpush1.bf16.msra.mxu0 %v2106
    %2761 = vmatprep.subr.bf16.mxu0 0
    %2762 = vmatpush1.bf16.msra.mxu0 %v2107
    %2763 = vmatprep.subr.bf16.mxu0 0
    %2764 = vmatpush1.bf16.msra.mxu0 %v2108
    %2765 = vmatprep.mubr.bf16.mxu0 %v841
    %2766 = vmatmul.mubr.bf16.gmra.mrb[0].mxu0 %v840
    %v2767 = vpop.f32.mrb[0].mxu0
    %v2768 = vadd.f32 %v2728, %v2767
    %v2769 = vpop.f32.mrb[0].mxu0
    %v2770 = vpop.f32.mrb[0].mxu0
    %v2771 = vpop.f32.mrb[0].mxu0
    %2772 = vdwg.mxu0
    %2773 = vmatprep.subr.bf16.mxu0 0
    %2774 = vmatpush1.bf16.msra.mxu0 %v2109
    %2775 = vmatprep.subr.bf16.mxu0 0
    %2776 = vmatpush1.bf16.msra.mxu0 %v2110
    %2777 = vmatprep.subr.bf16.mxu0 0
    %2778 = vmatpush1.bf16.msra.mxu0 %v2111
    %2779 = vmatprep.subr.bf16.mxu0 0
    %2780 = vmatpush1.bf16.msra.mxu0 %v2112
    %2781 = vmatprep.subr.bf16.mxu0 0
    %2782 = vmatpush1.bf16.msra.mxu0 %v2113
    %2783 = vmatprep.subr.bf16.mxu0 0
    %2784 = vmatpush1.bf16.msra.mxu0 %v2114
    %2785 = vmatprep.subr.bf16.mxu0 0
    %2786 = vmatpush1.bf16.msra.mxu0 %v2115
    %2787 = vmatprep.subr.bf16.mxu0 0
    %2788 = vmatpush1.bf16.msra.mxu0 %v2116
    %2789 = vmatprep.subr.bf16.mxu0 0
    %2790 = vmatpush1.bf16.msra.mxu0 %v2117
    %2791 = vmatprep.subr.bf16.mxu0 0
    %2792 = vmatpush1.bf16.msra.mxu0 %v2118
    %2793 = vmatprep.subr.bf16.mxu0 0
    %2794 = vmatpush1.bf16.msra.mxu0 %v2119
    %2795 = vmatprep.subr.bf16.mxu0 0
    %2796 = vmatpush1.bf16.msra.mxu0 %v2120
    %2797 = vmatprep.subr.bf16.mxu0 0
    %2798 = vmatpush1.bf16.msra.mxu0 %v2121
    %2799 = vmatprep.subr.bf16.mxu0 0
    %2800 = vmatpush1.bf16.msra.mxu0 %v2122
    %2801 = vmatprep.subr.bf16.mxu0 0
    %2802 = vmatpush1.bf16.msra.mxu0 %v2123
    %2803 = vmatprep.subr.bf16.mxu0 0
    %2804 = vmatpush1.bf16.msra.mxu0 %v2124
    %2805 = vmatprep.mubr.bf16.mxu0 %v843
    %2806 = vmatmul.mubr.bf16.gmra.mrb[0].mxu0 %v842
    %v2807 = vpop.f32.mrb[0].mxu0
    %v2808 = vadd.f32 %v2768, %v2807
    %v2809 = vpop.f32.mrb[0].mxu0
    %v2810 = vpop.f32.mrb[0].mxu0
    %v2811 = vpop.f32.mrb[0].mxu0
    %2812 = vdwg.mxu0
    %2813 = vmatprep.subr.bf16.mxu0 0
    %2814 = vmatpush1.bf16.msra.mxu0 %v2125
    %2815 = vmatprep.subr.bf16.mxu0 0
    %2816 = vmatpush1.bf16.msra.mxu0 %v2126
    %2817 = vmatprep.subr.bf16.mxu0 0
    %2818 = vmatpush1.bf16.msra.mxu0 %v2127
    %2819 = vmatprep.subr.bf16.mxu0 0
    %2820 = vmatpush1.bf16.msra.mxu0 %v2128
    %2821 = vmatprep.subr.bf16.mxu0 0
    %2822 = vmatpush1.bf16.msra.mxu0 %v2129
    %2823 = vmatprep.subr.bf16.mxu0 0
    %2824 = vmatpush1.bf16.msra.mxu0 %v2130
    %2825 = vmatprep.subr.bf16.mxu0 0
    %2826 = vmatpush1.bf16.msra.mxu0 %v2131
    %2827 = vmatprep.subr.bf16.mxu0 0
    %2828 = vmatpush1.bf16.msra.mxu0 %v2132
    %2829 = vmatprep.subr.bf16.mxu0 0
    %2830 = vmatpush1.bf16.msra.mxu0 %v2133
    %2831 = vmatprep.subr.bf16.mxu0 0
    %2832 = vmatpush1.bf16.msra.mxu0 %v2134
    %2833 = vmatprep.subr.bf16.mxu0 0
    %2834 = vmatpush1.bf16.msra.mxu0 %v2135
    %2835 = vmatprep.subr.bf16.mxu0 0
    %2836 = vmatpush1.bf16.msra.mxu0 %v2136
    %2837 = vmatprep.subr.bf16.mxu0 0
    %2838 = vmatpush1.bf16.msra.mxu0 %v2137
    %2839 = vmatprep.subr.bf16.mxu0 0
    %2840 = vmatpush1.bf16.msra.mxu0 %v2138
    %2841 = vmatprep.subr.bf16.mxu0 0
    %2842 = vmatpush1.bf16.msra.mxu0 %v2139
    %2843 = vmatprep.subr.bf16.mxu0 0
    %2844 = vmatpush1.bf16.msra.mxu0 %v2140
    %2845 = vmatprep.mubr.bf16.mxu0 %v845
    %2846 = vmatmul.mubr.bf16.gmra.mrb[0].mxu0 %v844
    %v2847 = vpop.f32.mrb[0].mxu0
    %v2848 = vadd.f32 %v2808, %v2847
    %v2849 = vpop.f32.mrb[0].mxu0
    %v2850 = vpop.f32.mrb[0].mxu0
    %v2851 = vpop.f32.mrb[0].mxu0
    %2852 = vdwg.mxu0
    %2853 = vmatprep.subr.bf16.mxu0 0
    %2854 = vmatpush1.bf16.msra.mxu0 %v2141
    %2855 = vmatprep.subr.bf16.mxu0 0
    %2856 = vmatpush1.bf16.msra.mxu0 %v2142
    %2857 = vmatprep.subr.bf16.mxu0 0
    %2858 = vmatpush1.bf16.msra.mxu0 %v2143
    %2859 = vmatprep.subr.bf16.mxu0 0
    %2860 = vmatpush1.bf16.msra.mxu0 %v2144
    %2861 = vmatprep.subr.bf16.mxu0 0
    %2862 = vmatpush1.bf16.msra.mxu0 %v2145
    %2863 = vmatprep.subr.bf16.mxu0 0
    %2864 = vmatpush1.bf16.msra.mxu0 %v2146
    %2865 = vmatprep.subr.bf16.mxu0 0
    %2866 = vmatpush1.bf16.msra.mxu0 %v2147
    %2867 = vmatprep.subr.bf16.mxu0 0
    %2868 = vmatpush1.bf16.msra.mxu0 %v2148
    %2869 = vmatprep.subr.bf16.mxu0 0
    %2870 = vmatpush1.bf16.msra.mxu0 %v2149
    %2871 = vmatprep.subr.bf16.mxu0 0
    %2872 = vmatpush1.bf16.msra.mxu0 %v2150
    %2873 = vmatprep.subr.bf16.mxu0 0
    %2874 = vmatpush1.bf16.msra.mxu0 %v2151
    %2875 = vmatprep.subr.bf16.mxu0 0
    %2876 = vmatpush1.bf16.msra.mxu0 %v2152
    %2877 = vmatprep.subr.bf16.mxu0 0
    %2878 = vmatpush1.bf16.msra.mxu0 %v2153
    %2879 = vmatprep.subr.bf16.mxu0 0
    %2880 = vmatpush1.bf16.msra.mxu0 %v2154
    %2881 = vmatprep.subr.bf16.mxu0 0
    %2882 = vmatpush1.bf16.msra.mxu0 %v2155
    %2883 = vmatprep.subr.bf16.mxu0 0
    %2884 = vmatpush1.bf16.msra.mxu0 %v2156
    %2885 = vmatprep.mubr.bf16.mxu0 %v847
    %2886 = vmatmul.mubr.bf16.gmra.mrb[0].mxu0 %v846
    %v2887 = vpop.f32.mrb[0].mxu0
    %v2888 = vadd.f32 %v2848, %v2887
    %v2889 = vpop.f32.mrb[0].mxu0
    %v2890 = vpop.f32.mrb[0].mxu0
    %v2891 = vpop.f32.mrb[0].mxu0
    %2892 = vdwg.mxu0
    %2893 = vmatprep.subr.bf16.mxu0 0
    %2894 = vmatpush1.bf16.msra.mxu0 %v2157
    %2895 = vmatprep.subr.bf16.mxu0 0
    %2896 = vmatpush1.bf16.msra.mxu0 %v2158
    %2897 = vmatprep.subr.bf16.mxu0 0
    %2898 = vmatpush1.bf16.msra.mxu0 %v2159
    %2899 = vmatprep.subr.bf16.mxu0 0
    %2900 = vmatpush1.bf16.msra.mxu0 %v2160
    %2901 = vmatprep.subr.bf16.mxu0 0
    %2902 = vmatpush1.bf16.msra.mxu0 %v2161
    %2903 = vmatprep.subr.bf16.mxu0 0
    %2904 = vmatpush1.bf16.msra.mxu0 %v2162
    %2905 = vmatprep.subr.bf16.mxu0 0
    %2906 = vmatpush1.bf16.msra.mxu0 %v2163
    %2907 = vmatprep.subr.bf16.mxu0 0
    %2908 = vmatpush1.bf16.msra.mxu0 %v2164
    %2909 = vmatprep.subr.bf16.mxu0 0
    %2910 = vmatpush1.bf16.msra.mxu0 %v2165
    %2911 = vmatprep.subr.bf16.mxu0 0
    %2912 = vmatpush1.bf16.msra.mxu0 %v2166
    %2913 = vmatprep.subr.bf16.mxu0 0
    %2914 = vmatpush1.bf16.msra.mxu0 %v2167
    %2915 = vmatprep.subr.bf16.mxu0 0
    %2916 = vmatpush1.bf16.msra.mxu0 %v2168
    %2917 = vmatprep.subr.bf16.mxu0 0
    %2918 = vmatpush1.bf16.msra.mxu0 %v2169
    %2919 = vmatprep.subr.bf16.mxu0 0
    %2920 = vmatpush1.bf16.msra.mxu0 %v2170
    %2921 = vmatprep.subr.bf16.mxu0 0
    %2922 = vmatpush1.bf16.msra.mxu0 %v2171
    %2923 = vmatprep.subr.bf16.mxu0 0
    %2924 = vmatpush1.bf16.msra.mxu0 %v2172
    %2925 = vmatprep.mubr.bf16.mxu0 %v849
    %2926 = vmatmul.mubr.bf16.gmra.mrb[0].mxu0 %v848
    %v2927 = vpop.f32.mrb[0].mxu0
    %v2928 = vadd.f32 %v2888, %v2927
    %v2929 = vpop.f32.mrb[0].mxu0
    %v2930 = vpop.f32.mrb[0].mxu0
    %v2931 = vpop.f32.mrb[0].mxu0
    %2932 = vdwg.mxu0
    %2933 = vmatprep.subr.bf16.mxu0 0
    %2934 = vmatpush1.bf16.msra.mxu0 %v2173
    %2935 = vmatprep.subr.bf16.mxu0 0
    %2936 = vmatpush1.bf16.msra.mxu0 %v2174
    %2937 = vmatprep.subr.bf16.mxu0 0
    %2938 = vmatpush1.bf16.msra.mxu0 %v2175
    %2939 = vmatprep.subr.bf16.mxu0 0
    %2940 = vmatpush1.bf16.msra.mxu0 %v2176
    %2941 = vmatprep.subr.bf16.mxu0 0
    %2942 = vmatpush1.bf16.msra.mxu0 %v2177
    %2943 = vmatprep.subr.bf16.mxu0 0
    %2944 = vmatpush1.bf16.msra.mxu0 %v2178
    %2945 = vmatprep.subr.bf16.mxu0 0
    %2946 = vmatpush1.bf16.msra.mxu0 %v2179
    %2947 = vmatprep.subr.bf16.mxu0 0
    %2948 = vmatpush1.bf16.msra.mxu0 %v2180
    %2949 = vmatprep.subr.bf16.mxu0 0
    %2950 = vmatpush1.bf16.msra.mxu0 %v2181
    %2951 = vmatprep.subr.bf16.mxu0 0
    %2952 = vmatpush1.bf16.msra.mxu0 %v2182
    %2953 = vmatprep.subr.bf16.mxu0 0
    %2954 = vmatpush1.bf16.msra.mxu0 %v2183
    %2955 = vmatprep.subr.bf16.mxu0 0
    %2956 = vmatpush1.bf16.msra.mxu0 %v2184
    %2957 = vmatprep.subr.bf16.mxu0 0
    %2958 = vmatpush1.bf16.msra.mxu0 %v2185
    %2959 = vmatprep.subr.bf16.mxu0 0
    %2960 = vmatpush1.bf16.msra.mxu0 %v2186
    %2961 = vmatprep.subr.bf16.mxu0 0
    %2962 = vmatpush1.bf16.msra.mxu0 %v2187
    %2963 = vmatprep.subr.bf16.mxu0 0
    %2964 = vmatpush1.bf16.msra.mxu0 %v2188
    %2965 = vmatprep.mubr.bf16.mxu0 %v851
    %2966 = vmatmul.mubr.bf16.gmra.mrb[0].mxu0 %v850
    %v2967 = vpop.f32.mrb[0].mxu0
    %v2968 = vadd.f32 %v2928, %v2967
    %v2969 = vpop.f32.mrb[0].mxu0
    %v2970 = vpop.f32.mrb[0].mxu0
    %v2971 = vpop.f32.mrb[0].mxu0
    %2972 = vdwg.mxu0
    %2973 = vmatprep.subr.bf16.mxu0 0
    %2974 = vmatpush1.bf16.msra.mxu0 %v2189
    %2975 = vmatprep.subr.bf16.mxu0 0
    %2976 = vmatpush1.bf16.msra.mxu0 %v2190
    %2977 = vmatprep.subr.bf16.mxu0 0
    %2978 = vmatpush1.bf16.msra.mxu0 %v2191
    %2979 = vmatprep.subr.bf16.mxu0 0
    %2980 = vmatpush1.bf16.msra.mxu0 %v2192
    %2981 = vmatprep.subr.bf16.mxu0 0
    %2982 = vmatpush1.bf16.msra.mxu0 %v2193
    %2983 = vmatprep.subr.bf16.mxu0 0
    %2984 = vmatpush1.bf16.msra.mxu0 %v2194
    %2985 = vmatprep.subr.bf16.mxu0 0
    %2986 = vmatpush1.bf16.msra.mxu0 %v2195
    %2987 = vmatprep.subr.bf16.mxu0 0
    %2988 = vmatpush1.bf16.msra.mxu0 %v2196
    %2989 = vmatprep.subr.bf16.mxu0 0
    %2990 = vmatpush1.bf16.msra.mxu0 %v2197
    %2991 = vmatprep.subr.bf16.mxu0 0
    %2992 = vmatpush1.bf16.msra.mxu0 %v2198
    %2993 = vmatprep.subr.bf16.mxu0 0
    %2994 = vmatpush1.bf16.msra.mxu0 %v2199
    %2995 = vmatprep.subr.bf16.mxu0 0
    %2996 = vmatpush1.bf16.msra.mxu0 %v2200
    %2997 = vmatprep.subr.bf16.mxu0 0
    %2998 = vmatpush1.bf16.msra.mxu0 %v2201
    %2999 = vmatprep.subr.bf16.mxu0 0
    %3000 = vmatpush1.bf16.msra.mxu0 %v2202
    %3001 = vmatprep.subr.bf16.mxu0 0
    %3002 = vmatpush1.bf16.msra.mxu0 %v2203
    %3003 = vmatprep.subr.bf16.mxu0 0
    %3004 = vmatpush1.bf16.msra.mxu0 %v2204
    %3005 = vmatprep.mubr.bf16.mxu0 %v853
    %3006 = vmatmul.mubr.bf16.gmra.mrb[0].mxu0 %v852
    %v3007 = vpop.f32.mrb[0].mxu0
    %v3008 = vadd.f32 %v2968, %v3007
    %v3009 = vpop.f32.mrb[0].mxu0
    %v3010 = vpop.f32.mrb[0].mxu0
    %v3011 = vpop.f32.mrb[0].mxu0
    %3012 = vdwg.mxu0
    %3013 = vmatprep.subr.bf16.mxu0 0
    %3014 = vmatpush1.bf16.msra.mxu0 %v2205
    %3015 = vmatprep.subr.bf16.mxu0 0
    %3016 = vmatpush1.bf16.msra.mxu0 %v2206
    %3017 = vmatprep.subr.bf16.mxu0 0
    %3018 = vmatpush1.bf16.msra.mxu0 %v2207
    %3019 = vmatprep.subr.bf16.mxu0 0
    %3020 = vmatpush1.bf16.msra.mxu0 %v2208
    %3021 = vmatprep.subr.bf16.mxu0 0
    %3022 = vmatpush1.bf16.msra.mxu0 %v2209
    %3023 = vmatprep.subr.bf16.mxu0 0
    %3024 = vmatpush1.bf16.msra.mxu0 %v2210
    %3025 = vmatprep.subr.bf16.mxu0 0
    %3026 = vmatpush1.bf16.msra.mxu0 %v2211
    %3027 = vmatprep.subr.bf16.mxu0 0
    %3028 = vmatpush1.bf16.msra.mxu0 %v2212
    %3029 = vmatprep.subr.bf16.mxu0 0
    %3030 = vmatpush1.bf16.msra.mxu0 %v2213
    %3031 = vmatprep.subr.bf16.mxu0 0
    %3032 = vmatpush1.bf16.msra.mxu0 %v2214
    %3033 = vmatprep.subr.bf16.mxu0 0
    %3034 = vmatpush1.bf16.msra.mxu0 %v2215
    %3035 = vmatprep.subr.bf16.mxu0 0
    %3036 = vmatpush1.bf16.msra.mxu0 %v2216
    %3037 = vmatprep.subr.bf16.mxu0 0
    %3038 = vmatpush1.bf16.msra.mxu0 %v2217
    %3039 = vmatprep.subr.bf16.mxu0 0
    %3040 = vmatpush1.bf16.msra.mxu0 %v2218
    %3041 = vmatprep.subr.bf16.mxu0 0
    %3042 = vmatpush1.bf16.msra.mxu0 %v2219
    %3043 = vmatprep.subr.bf16.mxu0 0
    %3044 = vmatpush1.bf16.msra.mxu0 %v2220
    %3045 = vmatprep.mubr.bf16.mxu0 %v855
    %3046 = vmatmul.mubr.bf16.gmra.mrb[0].mxu0 %v854
    %v3047 = vpop.f32.mrb[0].mxu0
    %v3048 = vadd.f32 %v3008, %v3047
    %v3049 = vpop.f32.mrb[0].mxu0
    %v3050 = vpop.f32.mrb[0].mxu0
    %v3051 = vpop.f32.mrb[0].mxu0
    %3052 = vdwg.mxu0
    %3053 = vmatprep.subr.bf16.mxu0 0
    %3054 = vmatpush1.bf16.msra.mxu0 %v2221
    %3055 = vmatprep.subr.bf16.mxu0 0
    %3056 = vmatpush1.bf16.msra.mxu0 %v2222
    %3057 = vmatprep.subr.bf16.mxu0 0
    %3058 = vmatpush1.bf16.msra.mxu0 %v2223
    %3059 = vmatprep.subr.bf16.mxu0 0
    %3060 = vmatpush1.bf16.msra.mxu0 %v2224
    %3061 = vmatprep.subr.bf16.mxu0 0
    %3062 = vmatpush1.bf16.msra.mxu0 %v2225
    %3063 = vmatprep.subr.bf16.mxu0 0
    %3064 = vmatpush1.bf16.msra.mxu0 %v2226
    %3065 = vmatprep.subr.bf16.mxu0 0
    %3066 = vmatpush1.bf16.msra.mxu0 %v2227
    %3067 = vmatprep.subr.bf16.mxu0 0
    %3068 = vmatpush1.bf16.msra.mxu0 %v2228
    %3069 = vmatprep.subr.bf16.mxu0 0
    %3070 = vmatpush1.bf16.msra.mxu0 %v2229
    %3071 = vmatprep.subr.bf16.mxu0 0
    %3072 = vmatpush1.bf16.msra.mxu0 %v2230
    %3073 = vmatprep.subr.bf16.mxu0 0
    %3074 = vmatpush1.bf16.msra.mxu0 %v2231
    %3075 = vmatprep.subr.bf16.mxu0 0
    %3076 = vmatpush1.bf16.msra.mxu0 %v2232
    %3077 = vmatprep.subr.bf16.mxu0 0
    %3078 = vmatpush1.bf16.msra.mxu0 %v2233
    %3079 = vmatprep.subr.bf16.mxu0 0
    %3080 = vmatpush1.bf16.msra.mxu0 %v2234
    %3081 = vmatprep.subr.bf16.mxu0 0
    %3082 = vmatpush1.bf16.msra.mxu0 %v2235
    %3083 = vmatprep.subr.bf16.mxu0 0
    %3084 = vmatpush1.bf16.msra.mxu0 %v2236
    %3085 = vmatprep.mubr.bf16.mxu0 %v857
    %3086 = vmatmul.mubr.bf16.gmra.mrb[0].mxu0 %v856
    %v3087 = vpop.f32.mrb[0].mxu0
    %v3088 = vadd.f32 %v3048, %v3087
    %v3089 = vpop.f32.mrb[0].mxu0
    %v3090 = vpop.f32.mrb[0].mxu0
    %v3091 = vpop.f32.mrb[0].mxu0
    %3092 = vdwg.mxu0
    %3093 = vmatprep.subr.bf16.mxu0 0
    %3094 = vmatpush1.bf16.msra.mxu0 %v2237
    %3095 = vmatprep.subr.bf16.mxu0 0
    %3096 = vmatpush1.bf16.msra.mxu0 %v2238
    %3097 = vmatprep.subr.bf16.mxu0 0
    %3098 = vmatpush1.bf16.msra.mxu0 %v2239
    %3099 = vmatprep.subr.bf16.mxu0 0
    %3100 = vmatpush1.bf16.msra.mxu0 %v2240
    %3101 = vmatprep.subr.bf16.mxu0 0
    %3102 = vmatpush1.bf16.msra.mxu0 %v2241
    %3103 = vmatprep.subr.bf16.mxu0 0
    %3104 = vmatpush1.bf16.msra.mxu0 %v2242
    %3105 = vmatprep.subr.bf16.mxu0 0
    %3106 = vmatpush1.bf16.msra.mxu0 %v2243
    %3107 = vmatprep.subr.bf16.mxu0 0
    %3108 = vmatpush1.bf16.msra.mxu0 %v2244
    %3109 = vmatprep.subr.bf16.mxu0 0
    %3110 = vmatpush1.bf16.msra.mxu0 %v2245
    %3111 = vmatprep.subr.bf16.mxu0 0
    %3112 = vmatpush1.bf16.msra.mxu0 %v2246
    %3113 = vmatprep.subr.bf16.mxu0 0
    %3114 = vmatpush1.bf16.msra.mxu0 %v2247
    %3115 = vmatprep.subr.bf16.mxu0 0
    %3116 = vmatpush1.bf16.msra.mxu0 %v2248
    %3117 = vmatprep.subr.bf16.mxu0 0
    %3118 = vmatpush1.bf16.msra.mxu0 %v2249
    %3119 = vmatprep.subr.bf16.mxu0 0
    %3120 = vmatpush1.bf16.msra.mxu0 %v2250
    %3121 = vmatprep.subr.bf16.mxu0 0
    %3122 = vmatpush1.bf16.msra.mxu0 %v2251
    %3123 = vmatprep.subr.bf16.mxu0 0
    %3124 = vmatpush1.bf16.msra.mxu0 %v2252
    %3125 = vmatprep.mubr.bf16.mxu0 %v859
    %3126 = vmatmul.mubr.bf16.gmra.mrb[0].mxu0 %v858
    %v3127 = vpop.f32.mrb[0].mxu0
    %v3128 = vadd.f32 %v3088, %v3127
    %v3129 = vpop.f32.mrb[0].mxu0
    %v3130 = vpop.f32.mrb[0].mxu0
    %v3131 = vpop.f32.mrb[0].mxu0
    %3132 = vdwg.mxu0
    %3133 = vmatprep.subr.bf16.mxu0 0
    %3134 = vmatpush1.bf16.msra.mxu0 %v2253
    %3135 = vmatprep.subr.bf16.mxu0 0
    %3136 = vmatpush1.bf16.msra.mxu0 %v2254
    %3137 = vmatprep.subr.bf16.mxu0 0
    %3138 = vmatpush1.bf16.msra.mxu0 %v2255
    %3139 = vmatprep.subr.bf16.mxu0 0
    %3140 = vmatpush1.bf16.msra.mxu0 %v2256
    %3141 = vmatprep.subr.bf16.mxu0 0
    %3142 = vmatpush1.bf16.msra.mxu0 %v2257
    %3143 = vmatprep.subr.bf16.mxu0 0
    %3144 = vmatpush1.bf16.msra.mxu0 %v2258
    %3145 = vmatprep.subr.bf16.mxu0 0
    %3146 = vmatpush1.bf16.msra.mxu0 %v2259
    %3147 = vmatprep.subr.bf16.mxu0 0
    %3148 = vmatpush1.bf16.msra.mxu0 %v2260
    %3149 = vmatprep.subr.bf16.mxu0 0
    %3150 = vmatpush1.bf16.msra.mxu0 %v2261
    %3151 = vmatprep.subr.bf16.mxu0 0
    %3152 = vmatpush1.bf16.msra.mxu0 %v2262
    %3153 = vmatprep.subr.bf16.mxu0 0
    %3154 = vmatpush1.bf16.msra.mxu0 %v2263
    %3155 = vmatprep.subr.bf16.mxu0 0
    %3156 = vmatpush1.bf16.msra.mxu0 %v2264
    %3157 = vmatprep.subr.bf16.mxu0 0
    %3158 = vmatpush1.bf16.msra.mxu0 %v2265
    %3159 = vmatprep.subr.bf16.mxu0 0
    %3160 = vmatpush1.bf16.msra.mxu0 %v2266
    %3161 = vmatprep.subr.bf16.mxu0 0
    %3162 = vmatpush1.bf16.msra.mxu0 %v2267
    %3163 = vmatprep.subr.bf16.mxu0 0
    %3164 = vmatpush1.bf16.msra.mxu0 %v2268
    %3165 = vmatprep.mubr.bf16.mxu0 %v861
    %3166 = vmatmul.mubr.bf16.gmra.mrb[0].mxu0 %v860
    %v3167 = vpop.f32.mrb[0].mxu0
    %v3168 = vadd.f32 %v3128, %v3167
    %v3169 = vpop.f32.mrb[0].mxu0
    %v3170 = vpop.f32.mrb[0].mxu0
    %v3171 = vpop.f32.mrb[0].mxu0
    %3172 = vdwg.mxu0
    %3173 = vmatprep.subr.bf16.mxu0 0
    %3174 = vmatpush1.bf16.msra.mxu0 %v2269
    %3175 = vmatprep.subr.bf16.mxu0 0
    %3176 = vmatpush1.bf16.msra.mxu0 %v2270
    %3177 = vmatprep.subr.bf16.mxu0 0
    %3178 = vmatpush1.bf16.msra.mxu0 %v2271
    %3179 = vmatprep.subr.bf16.mxu0 0
    %3180 = vmatpush1.bf16.msra.mxu0 %v2272
    %3181 = vmatprep.subr.bf16.mxu0 0
    %3182 = vmatpush1.bf16.msra.mxu0 %v2273
    %3183 = vmatprep.subr.bf16.mxu0 0
    %3184 = vmatpush1.bf16.msra.mxu0 %v2274
    %3185 = vmatprep.subr.bf16.mxu0 0
    %3186 = vmatpush1.bf16.msra.mxu0 %v2275
    %3187 = vmatprep.subr.bf16.mxu0 0
    %3188 = vmatpush1.bf16.msra.mxu0 %v2276
    %3189 = vmatprep.subr.bf16.mxu0 0
    %3190 = vmatpush1.bf16.msra.mxu0 %v2277
    %3191 = vmatprep.subr.bf16.mxu0 0
    %3192 = vmatpush1.bf16.msra.mxu0 %v2278
    %3193 = vmatprep.subr.bf16.mxu0 0
    %3194 = vmatpush1.bf16.msra.mxu0 %v2279
    %3195 = vmatprep.subr.bf16.mxu0 0
    %3196 = vmatpush1.bf16.msra.mxu0 %v2280
    %3197 = vmatprep.subr.bf16.mxu0 0
    %3198 = vmatpush1.bf16.msra.mxu0 %v2281
    %3199 = vmatprep.subr.bf16.mxu0 0
    %3200 = vmatpush1.bf16.msra.mxu0 %v2282
    %3201 = vmatprep.subr.bf16.mxu0 0
    %3202 = vmatpush1.bf16.msra.mxu0 %v2283
    %3203 = vmatprep.subr.bf16.mxu0 0
    %3204 = vmatpush1.bf16.msra.mxu0 %v2284
    %3205 = vmatprep.mubr.bf16.mxu0 %v863
    %3206 = vmatmul.mubr.bf16.gmra.mrb[0].mxu0 %v862
    %v3207 = vpop.f32.mrb[0].mxu0
    %v3208 = vadd.f32 %v3168, %v3207
    %v3209 = vpop.f32.mrb[0].mxu0
    %v3210 = vpop.f32.mrb[0].mxu0
    %v3211 = vpop.f32.mrb[0].mxu0
    %3212 = vdwg.mxu0
    %3213 = vmatprep.subr.bf16.mxu0 0
    %3214 = vmatpush1.bf16.msra.mxu0 %v2285
    %3215 = vmatprep.subr.bf16.mxu0 0
    %3216 = vmatpush1.bf16.msra.mxu0 %v2286
    %3217 = vmatprep.subr.bf16.mxu0 0
    %3218 = vmatpush1.bf16.msra.mxu0 %v2287
    %3219 = vmatprep.subr.bf16.mxu0 0
    %3220 = vmatpush1.bf16.msra.mxu0 %v2288
    %3221 = vmatprep.subr.bf16.mxu0 0
    %3222 = vmatpush1.bf16.msra.mxu0 %v2289
    %3223 = vmatprep.subr.bf16.mxu0 0
    %3224 = vmatpush1.bf16.msra.mxu0 %v2290
    %3225 = vmatprep.subr.bf16.mxu0 0
    %3226 = vmatpush1.bf16.msra.mxu0 %v2291
    %3227 = vmatprep.subr.bf16.mxu0 0
    %3228 = vmatpush1.bf16.msra.mxu0 %v2292
    %3229 = vmatprep.subr.bf16.mxu0 0
    %3230 = vmatpush1.bf16.msra.mxu0 %v2293
    %3231 = vmatprep.subr.bf16.mxu0 0
    %3232 = vmatpush1.bf16.msra.mxu0 %v2294
    %3233 = vmatprep.subr.bf16.mxu0 0
    %3234 = vmatpush1.bf16.msra.mxu0 %v2295
    %3235 = vmatprep.subr.bf16.mxu0 0
    %3236 = vmatpush1.bf16.msra.mxu0 %v2296
    %3237 = vmatprep.subr.bf16.mxu0 0
    %3238 = vmatpush1.bf16.msra.mxu0 %v2297
    %3239 = vmatprep.subr.bf16.mxu0 0
    %3240 = vmatpush1.bf16.msra.mxu0 %v2298
    %3241 = vmatprep.subr.bf16.mxu0 0
    %3242 = vmatpush1.bf16.msra.mxu0 %v2299
    %3243 = vmatprep.subr.bf16.mxu0 0
    %3244 = vmatpush1.bf16.msra.mxu0 %v2300
    %3245 = vmatprep.mubr.bf16.mxu0 %v865
    %3246 = vmatmul.mubr.bf16.gmra.mrb[0].mxu0 %v864
    %v3247 = vpop.f32.mrb[0].mxu0
    %v3248 = vadd.f32 %v3208, %v3247
    %v3249 = vpop.f32.mrb[0].mxu0
    %v3250 = vpop.f32.mrb[0].mxu0
    %v3251 = vpop.f32.mrb[0].mxu0
    %3252 = vdwg.mxu0
    %3253 = vmatprep.subr.bf16.mxu0 0
    %3254 = vmatpush1.bf16.msra.mxu0 %v2301
    %3255 = vmatprep.subr.bf16.mxu0 0
    %3256 = vmatpush1.bf16.msra.mxu0 %v2302
    %3257 = vmatprep.subr.bf16.mxu0 0
    %3258 = vmatpush1.bf16.msra.mxu0 %v2303
    %3259 = vmatprep.subr.bf16.mxu0 0
    %3260 = vmatpush1.bf16.msra.mxu0 %v2304
    %3261 = vmatprep.subr.bf16.mxu0 0
    %3262 = vmatpush1.bf16.msra.mxu0 %v2305
    %3263 = vmatprep.subr.bf16.mxu0 0
    %3264 = vmatpush1.bf16.msra.mxu0 %v2306
    %3265 = vmatprep.subr.bf16.mxu0 0
    %3266 = vmatpush1.bf16.msra.mxu0 %v2307
    %3267 = vmatprep.subr.bf16.mxu0 0
    %3268 = vmatpush1.bf16.msra.mxu0 %v2308
    %3269 = vmatprep.subr.bf16.mxu0 0
    %3270 = vmatpush1.bf16.msra.mxu0 %v2309
    %3271 = vmatprep.subr.bf16.mxu0 0
    %3272 = vmatpush1.bf16.msra.mxu0 %v2310
    %3273 = vmatprep.subr.bf16.mxu0 0
    %3274 = vmatpush1.bf16.msra.mxu0 %v2311
    %3275 = vmatprep.subr.bf16.mxu0 0
    %3276 = vmatpush1.bf16.msra.mxu0 %v2312
    %3277 = vmatprep.subr.bf16.mxu0 0
    %3278 = vmatpush1.bf16.msra.mxu0 %v2313
    %3279 = vmatprep.subr.bf16.mxu0 0
    %3280 = vmatpush1.bf16.msra.mxu0 %v2314
    %3281 = vmatprep.subr.bf16.mxu0 0
    %3282 = vmatpush1.bf16.msra.mxu0 %v2315
    %3283 = vmatprep.subr.bf16.mxu0 0
    %3284 = vmatpush1.bf16.msra.mxu0 %v2316
    %3285 = vmatprep.mubr.bf16.mxu0 %v867
    %3286 = vmatmul.mubr.bf16.gmra.mrb[0].mxu0 %v866
    %v3287 = vpop.f32.mrb[0].mxu0
    %v3288 = vadd.f32 %v3248, %v3287
    %v3289 = vpop.f32.mrb[0].mxu0
    %v3290 = vpop.f32.mrb[0].mxu0
    %v3291 = vpop.f32.mrb[0].mxu0
    %3292 = vdwg.mxu0
    %3293 = vmatprep.subr.bf16.mxu0 0
    %3294 = vmatpush1.bf16.msra.mxu0 %v2317
    %3295 = vmatprep.subr.bf16.mxu0 0
    %3296 = vmatpush1.bf16.msra.mxu0 %v2318
    %3297 = vmatprep.subr.bf16.mxu0 0
    %3298 = vmatpush1.bf16.msra.mxu0 %v2319
    %3299 = vmatprep.subr.bf16.mxu0 0
    %3300 = vmatpush1.bf16.msra.mxu0 %v2320
    %3301 = vmatprep.subr.bf16.mxu0 0
    %3302 = vmatpush1.bf16.msra.mxu0 %v2321
    %3303 = vmatprep.subr.bf16.mxu0 0
    %3304 = vmatpush1.bf16.msra.mxu0 %v2322
    %3305 = vmatprep.subr.bf16.mxu0 0
    %3306 = vmatpush1.bf16.msra.mxu0 %v2323
    %3307 = vmatprep.subr.bf16.mxu0 0
    %3308 = vmatpush1.bf16.msra.mxu0 %v2324
    %3309 = vmatprep.subr.bf16.mxu0 0
    %3310 = vmatpush1.bf16.msra.mxu0 %v2325
    %3311 = vmatprep.subr.bf16.mxu0 0
    %3312 = vmatpush1.bf16.msra.mxu0 %v2326
    %3313 = vmatprep.subr.bf16.mxu0 0
    %3314 = vmatpush1.bf16.msra.mxu0 %v2327
    %3315 = vmatprep.subr.bf16.mxu0 0
    %3316 = vmatpush1.bf16.msra.mxu0 %v2328
    %3317 = vmatprep.subr.bf16.mxu0 0
    %3318 = vmatpush1.bf16.msra.mxu0 %v2329
    %3319 = vmatprep.subr.bf16.mxu0 0
    %3320 = vmatpush1.bf16.msra.mxu0 %v2330
    %3321 = vmatprep.subr.bf16.mxu0 0
    %3322 = vmatpush1.bf16.msra.mxu0 %v2331
    %3323 = vmatprep.subr.bf16.mxu0 0
    %3324 = vmatpush1.bf16.msra.mxu0 %v2332
    %3325 = vmatprep.mubr.bf16.mxu0 %v869
    %3326 = vmatmul.mubr.bf16.gmra.mrb[0].mxu0 %v868
    %v3327 = vpop.f32.mrb[0].mxu0
    %v3328 = vadd.f32 %v3288, %v3327
    %v3329 = vpop.f32.mrb[0].mxu0
    %v3330 = vpop.f32.mrb[0].mxu0
    %v3331 = vpop.f32.mrb[0].mxu0
    %3332 = vdwg.mxu0
    %3333 = vmatprep.subr.bf16.mxu0 0
    %3334 = vmatpush1.bf16.msra.mxu0 %v2333
    %3335 = vmatprep.subr.bf16.mxu0 0
    %3336 = vmatpush1.bf16.msra.mxu0 %v2334
    %3337 = vmatprep.subr.bf16.mxu0 0
    %3338 = vmatpush1.bf16.msra.mxu0 %v2335
    %3339 = vmatprep.subr.bf16.mxu0 0
    %3340 = vmatpush1.bf16.msra.mxu0 %v2336
    %3341 = vmatprep.subr.bf16.mxu0 0
    %3342 = vmatpush1.bf16.msra.mxu0 %v2337
    %3343 = vmatprep.subr.bf16.mxu0 0
    %3344 = vmatpush1.bf16.msra.mxu0 %v2338
    %3345 = vmatprep.subr.bf16.mxu0 0
    %3346 = vmatpush1.bf16.msra.mxu0 %v2339
    %3347 = vmatprep.subr.bf16.mxu0 0
    %3348 = vmatpush1.bf16.msra.mxu0 %v2340
    %3349 = vmatprep.subr.bf16.mxu0 0
    %3350 = vmatpush1.bf16.msra.mxu0 %v2341
    %3351 = vmatprep.subr.bf16.mxu0 0
    %3352 = vmatpush1.bf16.msra.mxu0 %v2342
    %3353 = vmatprep.subr.bf16.mxu0 0
    %3354 = vmatpush1.bf16.msra.mxu0 %v2343
    %3355 = vmatprep.subr.bf16.mxu0 0
    %3356 = vmatpush1.bf16.msra.mxu0 %v2344
    %3357 = vmatprep.subr.bf16.mxu0 0
    %3358 = vmatpush1.bf16.msra.mxu0 %v2345
    %3359 = vmatprep.subr.bf16.mxu0 0
    %3360 = vmatpush1.bf16.msra.mxu0 %v2346
    %3361 = vmatprep.subr.bf16.mxu0 0
    %3362 = vmatpush1.bf16.msra.mxu0 %v2347
    %3363 = vmatprep.subr.bf16.mxu0 0
    %3364 = vmatpush1.bf16.msra.mxu0 %v2348
    %3365 = vmatprep.mubr.bf16.mxu0 %v871
    %3366 = vmatmul.mubr.bf16.gmra.mrb[0].mxu0 %v870
    %v3367 = vpop.f32.mrb[0].mxu0
    %v3368 = vadd.f32 %v3328, %v3367
    %v3369 = vpop.f32.mrb[0].mxu0
    %v3370 = vpop.f32.mrb[0].mxu0
    %v3371 = vpop.f32.mrb[0].mxu0
    %3372 = vdwg.mxu0
    %3373 = vmatprep.subr.bf16.mxu0 0
    %3374 = vmatpush1.bf16.msra.mxu0 %v2349
    %3375 = vmatprep.subr.bf16.mxu0 0
    %3376 = vmatpush1.bf16.msra.mxu0 %v2350
    %3377 = vmatprep.subr.bf16.mxu0 0
    %3378 = vmatpush1.bf16.msra.mxu0 %v2351
    %3379 = vmatprep.subr.bf16.mxu0 0
    %3380 = vmatpush1.bf16.msra.mxu0 %v2352
    %3381 = vmatprep.subr.bf16.mxu0 0
    %3382 = vmatpush1.bf16.msra.mxu0 %v2353
    %3383 = vmatprep.subr.bf16.mxu0 0
    %3384 = vmatpush1.bf16.msra.mxu0 %v2354
    %3385 = vmatprep.subr.bf16.mxu0 0
    %3386 = vmatpush1.bf16.msra.mxu0 %v2355
    %3387 = vmatprep.subr.bf16.mxu0 0
    %3388 = vmatpush1.bf16.msra.mxu0 %v2356
    %3389 = vmatprep.subr.bf16.mxu0 0
    %3390 = vmatpush1.bf16.msra.mxu0 0
    %3391 = vmatprep.subr.bf16.mxu0 0
    %3392 = vmatpush1.bf16.msra.mxu0 0
    %3393 = vmatprep.subr.bf16.mxu0 0
    %3394 = vmatpush1.bf16.msra.mxu0 0
    %3395 = vmatprep.subr.bf16.mxu0 0
    %3396 = vmatpush1.bf16.msra.mxu0 0
    %3397 = vmatprep.subr.bf16.mxu0 0
    %3398 = vmatpush1.bf16.msra.mxu0 0
    %3399 = vmatprep.subr.bf16.mxu0 0
    %3400 = vmatpush1.bf16.msra.mxu0 0
    %3401 = vmatprep.subr.bf16.mxu0 0
    %3402 = vmatpush1.bf16.msra.mxu0 0
    %3403 = vmatprep.subr.bf16.mxu0 0
    %3404 = vmatpush1.bf16.msra.mxu0 0
    %3405 = vmatprep.mubr.bf16.mxu0 0
    %3406 = vmatmul.mubr.bf16.gmra.mrb[0].mxu0 %v872
    %v3407 = vpop.f32.mrb[0].mxu0
    %v3408 = vadd.f32 %v3368, %v3407
    %v3409 = vpop.f32.mrb[0].mxu0
    %v3410 = vpop.f32.mrb[0].mxu0
    %v3411 = vpop.f32.mrb[0].mxu0
    %3412 = vdwg.mxu0
    %v3413 = vrot.slane %v3408, 4
    %v3414 = vadd.f32 %v3408, %v3413
    %v3415 = vrot.slane %v3414, 2
    %v3416 = vadd.f32 %v3414, %v3415
    %v3417 = vrot.slane %v3416, 1
    %v3418 = vadd.f32 %v3416, %v3417
    %v3419 = vrcp.pop 8.0
    %v3420 = vmul.f32 %v3418, %v3419
    %v3421 = vsub.f32 %v3408, %v3420
    %v3422 = vmul.f32 %v3421, %v3421
    %v3423 = vrot.slane %v3422, 4
    %v3424 = vadd.f32 %v3422, %v3423
    %v3425 = vrot.slane %v3424, 2
    %v3426 = vadd.f32 %v3424, %v3425
    %v3427 = vrot.slane %v3426, 1
    %v3428 = vadd.f32 %v3426, %v3427
    %v3429 = vmul.f32 %v3428, %v3419
    %v3430 = vadd.f32 %v3429, 1e-05
    %v3431 = vrsqrt.pop %v3430
    %v3432 = vmul.f32 %v3421, %v3431
    %v3433 = vlaneseq
    %v3434 = vshrl.u32 %v3433, 7
    %v3435 = vsub.s32 1, %v3434
    %v3436 = vrot.slane %v835, %v3435
    %v3437 = vmul.f32 %v3432, %v3436
    %v3438 = vlaneseq
    %v3439 = vshrl.u32 %v3438, 7
    %v3440 = vsub.s32 2, %v3439
    %v3441 = vrot.slane %v835, %v3440
    %v3442 = vadd.f32 %v3437, %v3441
    %v3443 = vmax.f32 %v3442, 0.0
    %v3444 = vld [vmem:[#allocation2] sm:$0xf]
    %v3445 = vld [vmem:[#allocation2 + $0x4] sm:$0xf]
    %v3446 = vld [vmem:[#allocation2 + $0x8] sm:$0xf]
    %v3447 = vld [vmem:[#allocation2 + $0xc] sm:$0xf]
    %v3448 = vld [vmem:[#allocation2 + $0x10] sm:$0xf]
    %v3449 = vld [vmem:[#allocation2 + $0x14] sm:$0xf]
    %v3450 = vld [vmem:[#allocation2 + $0x18] sm:$0xf]
    %v3451 = vld [vmem:[#allocation2 + $0x1c] sm:$0xf]
    %v3452 = vld [vmem:[#allocation2 + $0x20] sm:$0xf]
    %v3453 = vld [vmem:[#allocation2 + $0x24] sm:$0xf]
    %v3454 = vld [vmem:[#allocation2 + $0x28] sm:$0xf]
    %v3455 = vld [vmem:[#allocation2 + $0x2c] sm:$0xf]
    %v3456 = vld [vmem:[#allocation2 + $0x30] sm:$0xf]
    %v3457 = vld [vmem:[#allocation2 + $0x34] sm:$0xf]
    %v3458 = vld [vmem:[#allocation2 + $0x38] sm:$0xf]
    %v3459 = vld [vmem:[#allocation2 + $0x3c] sm:$0xf]
    %v3460 = vld [vmem:[#allocation4] sm:$0x7]
    %v3461 = vpack.c.bf16 %v3443, %v3443
    %v3462 = vlaneseq
    %v3463 = vshrl.u32 %v3462, 7
    %v3464 = vsub.s32 0, %v3463
    %v3465 = vrot.slane %v3460, %v3464
    %v3482 = vunpack.c.l.b16 %v3444
    %v3483 = vunpack.c.l.b16 %v3445
    %v3484 = vunpack.c.l.b16 %v3446
    %v3485 = vunpack.c.l.b16 %v3447
    %v3486 = vunpack.c.l.b16 %v3448
    %v3487 = vunpack.c.l.b16 %v3449
    %v3488 = vunpack.c.l.b16 %v3450
    %v3489 = vunpack.c.l.b16 %v3451
    %v3490 = vunpack.c.l.b16 %v3452
    %v3491 = vunpack.c.l.b16 %v3453
    %v3492 = vunpack.c.l.b16 %v3454
    %v3493 = vunpack.c.l.b16 %v3455
    %v3494 = vunpack.c.l.b16 %v3456
    %v3495 = vunpack.c.l.b16 %v3457
    %v3496 = vunpack.c.l.b16 %v3458
    %v3497 = vunpack.c.l.b16 %v3459
    %v3498 = vpack.c.b16 %v3483, %v3482
    %v3499 = vpack.c.b16 %v3485, %v3484
    %v3500 = vpack.c.b16 %v3487, %v3486
    %v3501 = vpack.c.b16 %v3489, %v3488
    %v3502 = vpack.c.b16 %v3491, %v3490
    %v3503 = vpack.c.b16 %v3493, %v3492
    %v3504 = vpack.c.b16 %v3495, %v3494
    %v3505 = vpack.c.b16 %v3497, %v3496
    %3514 = vmatprep.subr.bf16.mxu0 0
    %3515 = vmatpush1.bf16.msra.mxu0 %v3498
    %3516 = vmatprep.subr.bf16.mxu0 0
    %3517 = vmatpush1.bf16.msra.mxu0 %v3499
    %3518 = vmatprep.subr.bf16.mxu0 0
    %3519 = vmatpush1.bf16.msra.mxu0 %v3500
    %3520 = vmatprep.subr.bf16.mxu0 0
    %3521 = vmatpush1.bf16.msra.mxu0 %v3501
    %3522 = vmatprep.subr.bf16.mxu0 0
    %3523 = vmatpush1.bf16.msra.mxu0 %v3502
    %3524 = vmatprep.subr.bf16.mxu0 0
    %3525 = vmatpush1.bf16.msra.mxu0 %v3503
    %3526 = vmatprep.subr.bf16.mxu0 0
    %3527 = vmatpush1.bf16.msra.mxu0 %v3504
    %3528 = vmatprep.subr.bf16.mxu0 0
    %3529 = vmatpush1.bf16.msra.mxu0 %v3505
    %3530 = vmatprep.subr.bf16.mxu0 0
    %3531 = vmatpush1.bf16.msra.mxu0 0
    %3532 = vmatprep.subr.bf16.mxu0 0
    %3533 = vmatpush1.bf16.msra.mxu0 0
    %3534 = vmatprep.subr.bf16.mxu0 0
    %3535 = vmatpush1.bf16.msra.mxu0 0
    %3536 = vmatprep.subr.bf16.mxu0 0
    %3537 = vmatpush1.bf16.msra.mxu0 0
    %3538 = vmatprep.subr.bf16.mxu0 0
    %3539 = vmatpush1.bf16.msra.mxu0 0
    %3540 = vmatprep.subr.bf16.mxu0 0
    %3541 = vmatpush1.bf16.msra.mxu0 0
    %3542 = vmatprep.subr.bf16.mxu0 0
    %3543 = vmatpush1.bf16.msra.mxu0 0
    %3544 = vmatprep.subr.bf16.mxu0 0
    %3545 = vmatpush1.bf16.msra.mxu0 0
    %3546 = vmatprep.mubr.bf16.mxu0 0
    %3547 = vmatmul.mubr.bf16.gmra.mrb[0].mxu0 %v3461
    %v3548 = vpop.f32.mrb[0].mxu0
    %v3549 = vadd.f32 %v3465, %v3548
    %v3550 = vpop.f32.mrb[0].mxu0
    %v3551 = vpop.f32.mrb[0].mxu0
    %v3552 = vpop.f32.mrb[0].mxu0
    %3553 = vdwg.mxu0
    %v3554 = vrot.slane %v3549, 4
    %v3555 = vadd.f32 %v3549, %v3554
    %v3556 = vrot.slane %v3555, 2
    %v3557 = vadd.f32 %v3555, %v3556
    %v3558 = vrot.slane %v3557, 1
    %v3559 = vadd.f32 %v3557, %v3558
    %v3560 = vmul.f32 %v3559, %v3419
    %v3561 = vsub.f32 %v3549, %v3560
    %v3562 = vmul.f32 %v3561, %v3561
    %v3563 = vrot.slane %v3562, 4
    %v3564 = vadd.f32 %v3562, %v3563
    %v3565 = vrot.slane %v3564, 2
    %v3566 = vadd.f32 %v3564, %v3565
    %v3567 = vrot.slane %v3566, 1
    %v3568 = vadd.f32 %v3566, %v3567
    %v3569 = vmul.f32 %v3568, %v3419
    %v3570 = vadd.f32 %v3569, 1e-05
    %v3571 = vrsqrt.pop %v3570
    %v3572 = vmul.f32 %v3561, %v3571
    %v3573 = vlaneseq
    %v3574 = vshrl.u32 %v3573, 7
    %v3575 = vsub.s32 1, %v3574
    %v3576 = vrot.slane %v3460, %v3575
    %v3577 = vmul.f32 %v3572, %v3576
    %v3578 = vlaneseq
    %v3579 = vshrl.u32 %v3578, 7
    %v3580 = vsub.s32 2, %v3579
    %v3581 = vrot.slane %v3460, %v3580
    %v3582 = vadd.f32 %v3577, %v3581
    %v3583 = vmax.f32 %v3582, 0.0
    %v3584 = vld [vmem:[%s5] sm:$0xff]
    %v3585 = vld [vmem:[%s5 + $0x8] sm:$0xff]
    %v3586 = vld [vmem:[%s5 + $0x10] sm:$0xff]
    %v3587 = vld [vmem:[%s5 + $0x18] sm:$0xff]
    %v3588 = vld [vmem:[%s5 + $0x20] sm:$0xff]
    %v3589 = vld [vmem:[%s5 + $0x28] sm:$0xff]
    %v3590 = vld [vmem:[%s5 + $0x30] sm:$0xff]
    %v3591 = vld [vmem:[%s5 + $0x38] sm:$0xff]
    %v3592 = vld [vmem:[%s5 + $0x40] sm:$0xff]
    %v3593 = vld [vmem:[%s5 + $0x48] sm:$0xff]
    %v3594 = vld [vmem:[%s5 + $0x50] sm:$0xff]
    %v3595 = vld [vmem:[%s5 + $0x58] sm:$0xff]
    %v3596 = vld [vmem:[%s5 + $0x60] sm:$0xff]
    %v3597 = vld [vmem:[%s5 + $0x68] sm:$0xff]
    %v3598 = vld [vmem:[%s5 + $0x70] sm:$0xff]
    %v3599 = vld [vmem:[%s5 + $0x78] sm:$0xff]
    %v3600 = vld [vmem:[%s6] sm:$0x77]
    %v3601 = vpack.c.bf16 %v3583, %v3583
    %v3603 = vlaneseq
    %v3604 = vshrl.u32 %v3603, 7
    %v3605 = vsub.s32 0, %v3604
    %v3606 = vrot.slane %v3600, %v3605
    %v3607 = vlaneseq
    %v3608 = vshrl.u32 %v3607, 7
    %v3609 = vsub.s32 4, %v3608
    %v3610 = vrot.slane %v3600, %v3609
    %v3613 = vlaneseq
    %v3614 = vshrl.u32 %v3613, 7
    %v3615 = vsub.s32 0, %v3614
    %v3616 = vrot.slane %v3606, %v3615
    %v3617 = vlaneseq
    %v3618 = vshrl.u32 %v3617, 7
    %v3619 = vsub.s32 0, %v3618
    %v3620 = vrot.slane %v3610, %v3619
    %v3637 = vunpack.c.l.b16 %v3584
    %v3638 = vunpack.c.h.b16 %v3584
    %v3639 = vunpack.c.l.b16 %v3585
    %v3640 = vunpack.c.h.b16 %v3585
    %v3641 = vunpack.c.l.b16 %v3586
    %v3642 = vunpack.c.h.b16 %v3586
    %v3643 = vunpack.c.l.b16 %v3587
    %v3644 = vunpack.c.h.b16 %v3587
    %v3645 = vunpack.c.l.b16 %v3588
    %v3646 = vunpack.c.h.b16 %v3588
    %v3647 = vunpack.c.l.b16 %v3589
    %v3648 = vunpack.c.h.b16 %v3589
    %v3649 = vunpack.c.l.b16 %v3590
    %v3650 = vunpack.c.h.b16 %v3590
    %v3651 = vunpack.c.l.b16 %v3591
    %v3652 = vunpack.c.h.b16 %v3591
    %v3653 = vunpack.c.l.b16 %v3592
    %v3654 = vunpack.c.h.b16 %v3592
    %v3655 = vunpack.c.l.b16 %v3593
    %v3656 = vunpack.c.h.b16 %v3593
    %v3657 = vunpack.c.l.b16 %v3594
    %v3658 = vunpack.c.h.b16 %v3594
    %v3659 = vunpack.c.l.b16 %v3595
    %v3660 = vunpack.c.h.b16 %v3595
    %v3661 = vunpack.c.l.b16 %v3596
    %v3662 = vunpack.c.h.b16 %v3596
    %v3663 = vunpack.c.l.b16 %v3597
    %v3664 = vunpack.c.h.b16 %v3597
    %v3665 = vunpack.c.l.b16 %v3598
    %v3666 = vunpack.c.h.b16 %v3598
    %v3667 = vunpack.c.l.b16 %v3599
    %v3668 = vunpack.c.h.b16 %v3599
    %v3669 = vpack.c.b16 %v3639, %v3637
    %v3670 = vpack.c.b16 %v3640, %v3638
    %v3671 = vpack.c.b16 %v3643, %v3641
    %v3672 = vpack.c.b16 %v3644, %v3642
    %v3673 = vpack.c.b16 %v3647, %v3645
    %v3674 = vpack.c.b16 %v3648, %v3646
    %v3675 = vpack.c.b16 %v3651, %v3649
    %v3676 = vpack.c.b16 %v3652, %v3650
    %v3677 = vpack.c.b16 %v3655, %v3653
    %v3678 = vpack.c.b16 %v3656, %v3654
    %v3679 = vpack.c.b16 %v3659, %v3657
    %v3680 = vpack.c.b16 %v3660, %v3658
    %v3681 = vpack.c.b16 %v3663, %v3661
    %v3682 = vpack.c.b16 %v3664, %v3662
    %v3683 = vpack.c.b16 %v3667, %v3665
    %v3684 = vpack.c.b16 %v3668, %v3666
    %3701 = vmatprep.subr.bf16.mxu0 %v3670
    %3702 = vmatpush1.bf16.msra.mxu0 %v3669
    %3703 = vmatprep.subr.bf16.mxu0 %v3672
    %3704 = vmatpush1.bf16.msra.mxu0 %v3671
    %3705 = vmatprep.subr.bf16.mxu0 %v3674
    %3706 = vmatpush1.bf16.msra.mxu0 %v3673
    %3707 = vmatprep.subr.bf16.mxu0 %v3676
    %3708 = vmatpush1.bf16.msra.mxu0 %v3675
    %3709 = vmatprep.subr.bf16.mxu0 %v3678
    %3710 = vmatpush1.bf16.msra.mxu0 %v3677
    %3711 = vmatprep.subr.bf16.mxu0 %v3680
    %3712 = vmatpush1.bf16.msra.mxu0 %v3679
    %3713 = vmatprep.subr.bf16.mxu0 %v3682
    %3714 = vmatpush1.bf16.msra.mxu0 %v3681
    %3715 = vmatprep.subr.bf16.mxu0 %v3684
    %3716 = vmatpush1.bf16.msra.mxu0 %v3683
    %3717 = vmatprep.subr.bf16.mxu0 0
    %3718 = vmatpush1.bf16.msra.mxu0 0
    %3719 = vmatprep.subr.bf16.mxu0 0
    %3720 = vmatpush1.bf16.msra.mxu0 0
    %3721 = vmatprep.subr.bf16.mxu0 0
    %3722 = vmatpush1.bf16.msra.mxu0 0
    %3723 = vmatprep.subr.bf16.mxu0 0
    %3724 = vmatpush1.bf16.msra.mxu0 0
    %3725 = vmatprep.subr.bf16.mxu0 0
    %3726 = vmatpush1.bf16.msra.mxu0 0
    %3727 = vmatprep.subr.bf16.mxu0 0
    %3728 = vmatpush1.bf16.msra.mxu0 0
    %3729 = vmatprep.subr.bf16.mxu0 0
    %3730 = vmatpush1.bf16.msra.mxu0 0
    %3731 = vmatprep.subr.bf16.mxu0 0
    %3732 = vmatpush1.bf16.msra.mxu0 0
    %3733 = vmatprep.mubr.bf16.mxu0 0
    %3734 = vmatmul.mubr.bf16.gmra.mrb[0].mxu0 %v3601
    %v3735 = vpop.f32.mrb[0].mxu0
    %v3736 = vadd.f32 %v3616, %v3735
    %v3737 = vpop.f32.mrb[0].mxu0
    %v3738 = vadd.f32 %v3620, %v3737
    %v3739 = vpop.f32.mrb[0].mxu0
    %v3740 = vpop.f32.mrb[0].mxu0
    %3741 = vdwg.mxu0
    %v3742 = vrot.slane %v3736, 4
    %v3743 = vadd.f32 %v3736, %v3742
    %v3744 = vrot.slane %v3743, 2
    %v3745 = vadd.f32 %v3743, %v3744
    %v3746 = vrot.slane %v3745, 1
    %v3747 = vadd.f32 %v3745, %v3746
    %v3748 = vrot.slane %v3738, 4
    %v3749 = vadd.f32 %v3738, %v3748
    %v3750 = vrot.slane %v3749, 2
    %v3751 = vadd.f32 %v3749, %v3750
    %v3752 = vrot.slane %v3751, 1
    %v3753 = vadd.f32 %v3751, %v3752
    %v3754 = vmul.f32 %v3747, %v3419
    %v3755 = vmul.f32 %v3753, %v3419
    %v3756 = vsub.f32 %v3736, %v3754
    %v3757 = vsub.f32 %v3738, %v3755
    %v3758 = vmul.f32 %v3756, %v3756
    %v3759 = vmul.f32 %v3757, %v3757
    %v3760 = vrot.slane %v3758, 4
    %v3761 = vadd.f32 %v3758, %v3760
    %v3762 = vrot.slane %v3761, 2
    %v3763 = vadd.f32 %v3761, %v3762
    %v3764 = vrot.slane %v3763, 1
    %v3765 = vadd.f32 %v3763, %v3764
    %v3766 = vrot.slane %v3759, 4
    %v3767 = vadd.f32 %v3759, %v3766
    %v3768 = vrot.slane %v3767, 2
    %v3769 = vadd.f32 %v3767, %v3768
    %v3770 = vrot.slane %v3769, 1
    %v3771 = vadd.f32 %v3769, %v3770
    %v3772 = vmul.f32 %v3765, %v3419
    %v3773 = vmul.f32 %v3771, %v3419
    %v3774 = vadd.f32 %v3772, 1e-05
    %v3775 = vadd.f32 %v3773, 1e-05
    %v3776 = vrsqrt.pop %v3774
    %v3777 = vrsqrt.pop %v3775
    %v3778 = vmul.f32 %v3756, %v3776
    %v3779 = vmul.f32 %v3757, %v3777
    %v3780 = vlaneseq
    %v3781 = vshrl.u32 %v3780, 7
    %v3782 = vsub.s32 1, %v3781
    %v3783 = vrot.slane %v3600, %v3782
    %v3784 = vlaneseq
    %v3785 = vshrl.u32 %v3784, 7
    %v3786 = vsub.s32 5, %v3785
    %v3787 = vrot.slane %v3600, %v3786
    %v3790 = vlaneseq
    %v3791 = vshrl.u32 %v3790, 7
    %v3792 = vsub.s32 1, %v3791
    %v3793 = vrot.slane %v3783, %v3792
    %v3794 = vlaneseq
    %v3795 = vshrl.u32 %v3794, 7
    %v3796 = vsub.s32 1, %v3795
    %v3797 = vrot.slane %v3787, %v3796
    %v3798 = vmul.f32 %v3778, %v3793
    %v3799 = vmul.f32 %v3779, %v3797
    %v3800 = vlaneseq
    %v3801 = vshrl.u32 %v3800, 7
    %v3802 = vsub.s32 2, %v3801
    %v3803 = vrot.slane %v3600, %v3802
    %v3804 = vlaneseq
    %v3805 = vshrl.u32 %v3804, 7
    %v3806 = vsub.s32 6, %v3805
    %v3807 = vrot.slane %v3600, %v3806
    %v3810 = vlaneseq
    %v3811 = vshrl.u32 %v3810, 7
    %v3812 = vsub.s32 2, %v3811
    %v3813 = vrot.slane %v3803, %v3812
    %v3814 = vlaneseq
    %v3815 = vshrl.u32 %v3814, 7
    %v3816 = vsub.s32 2, %v3815
    %v3817 = vrot.slane %v3807, %v3816
    %v3818 = vadd.f32 %v3798, %v3813
    %v3819 = vadd.f32 %v3799, %v3817
    %v3820 = vmax.f32 %v3818, 0.0
    %v3821 = vmax.f32 %v3819, 0.0
    %v3822 = vld [vmem:[%s7] sm:$0xff]
    %v3823 = vld [vmem:[%s7 + $0x8] sm:$0xff]
    %v3824 = vld [vmem:[%s7 + $0x10] sm:$0xff]
    %v3825 = vld [vmem:[%s7 + $0x18] sm:$0xff]
    %v3826 = vld [vmem:[%s7 + $0x20] sm:$0xff]
    %v3827 = vld [vmem:[%s7 + $0x28] sm:$0xff]
    %v3828 = vld [vmem:[%s7 + $0x30] sm:$0xff]
    %v3829 = vld [vmem:[%s7 + $0x38] sm:$0xff]
    %v3830 = vld [vmem:[%s7 + $0x40] sm:$0xff]
    %v3831 = vld [vmem:[%s7 + $0x48] sm:$0xff]
    %v3832 = vld [vmem:[%s7 + $0x50] sm:$0xff]
    %v3833 = vld [vmem:[%s7 + $0x58] sm:$0xff]
    %v3834 = vld [vmem:[%s7 + $0x60] sm:$0xff]
    %v3835 = vld [vmem:[%s7 + $0x68] sm:$0xff]
    %v3836 = vld [vmem:[%s7 + $0x70] sm:$0xff]
    %v3837 = vld [vmem:[%s7 + $0x78] sm:$0xff]
    %v3838 = vld [vmem:[%s7 + $0x80] sm:$0xff]
    %v3839 = vld [vmem:[%s7 + $0x88] sm:$0xff]
    %v3840 = vld [vmem:[%s7 + $0x90] sm:$0xff]
    %v3841 = vld [vmem:[%s7 + $0x98] sm:$0xff]
    %v3842 = vld [vmem:[%s7 + $0xa0] sm:$0xff]
    %v3843 = vld [vmem:[%s7 + $0xa8] sm:$0xff]
    %v3844 = vld [vmem:[%s7 + $0xb0] sm:$0xff]
    %v3845 = vld [vmem:[%s7 + $0xb8] sm:$0xff]
    %v3846 = vld [vmem:[%s7 + $0xc0] sm:$0xff]
    %v3847 = vld [vmem:[%s7 + $0xc8] sm:$0xff]
    %v3848 = vld [vmem:[%s7 + $0xd0] sm:$0xff]
    %v3849 = vld [vmem:[%s7 + $0xd8] sm:$0xff]
    %v3850 = vld [vmem:[%s7 + $0xe0] sm:$0xff]
    %v3851 = vld [vmem:[%s7 + $0xe8] sm:$0xff]
    %v3852 = vld [vmem:[%s7 + $0xf0] sm:$0xff]
    %v3853 = vld [vmem:[%s7 + $0xf8] sm:$0xff]
    %v3854 = vld [vmem:[%s7 + $0x100] sm:$0xff]
    %v3855 = vld [vmem:[%s7 + $0x108] sm:$0xff]
    %v3856 = vld [vmem:[%s7 + $0x110] sm:$0xff]
    %v3857 = vld [vmem:[%s7 + $0x118] sm:$0xff]
    %v3858 = vld [vmem:[%s7 + $0x120] sm:$0xff]
    %v3859 = vld [vmem:[%s7 + $0x128] sm:$0xff]
    %v3860 = vld [vmem:[%s7 + $0x130] sm:$0xff]
    %v3861 = vld [vmem:[%s7 + $0x138] sm:$0xff]
    %v3862 = vld [vmem:[%s7 + $0x140] sm:$0xff]
    %v3863 = vld [vmem:[%s7 + $0x148] sm:$0xff]
    %v3864 = vld [vmem:[%s7 + $0x150] sm:$0xff]
    %v3865 = vld [vmem:[%s7 + $0x158] sm:$0xff]
    %v3866 = vld [vmem:[%s7 + $0x160] sm:$0xff]
    %v3867 = vld [vmem:[%s7 + $0x168] sm:$0xff]
    %v3868 = vld [vmem:[%s7 + $0x170] sm:$0xff]
    %v3869 = vld [vmem:[%s7 + $0x178] sm:$0xff]
    %v3870 = vld [vmem:[%s7 + $0x180] sm:$0xff]
    %v3871 = vld [vmem:[%s7 + $0x188] sm:$0xff]
    %v3872 = vld [vmem:[%s7 + $0x190] sm:$0xff]
    %v3873 = vld [vmem:[%s7 + $0x198] sm:$0xff]
    %v3874 = vld [vmem:[%s7 + $0x1a0] sm:$0xff]
    %v3875 = vld [vmem:[%s7 + $0x1a8] sm:$0xff]
    %v3876 = vld [vmem:[%s7 + $0x1b0] sm:$0xff]
    %v3877 = vld [vmem:[%s7 + $0x1b8] sm:$0xff]
    %v3878 = vld [vmem:[%s7 + $0x1c0] sm:$0xff]
    %v3879 = vld [vmem:[%s7 + $0x1c8] sm:$0xff]
    %v3880 = vld [vmem:[%s7 + $0x1d0] sm:$0xff]
    %v3881 = vld [vmem:[%s7 + $0x1d8] sm:$0xff]
    %v3882 = vld [vmem:[%s7 + $0x1e0] sm:$0xff]
    %v3883 = vld [vmem:[%s7 + $0x1e8] sm:$0xff]
    %v3884 = vld [vmem:[%s7 + $0x1f0] sm:$0xff]
    %v3885 = vld [vmem:[%s7 + $0x1f8] sm:$0xff]
    %v3886 = vld [vmem:[#allocation6] sm:$0x77]
    %v3887 = vld [vmem:[#allocation6 + $0x8] sm:$0x77]
    %v3888 = vpack.c.bf16 %v3820, %v3820
    %v3889 = vpack.c.bf16 %v3821, %v3821
    %v3892 = vlaneseq
    %v3893 = vshrl.u32 %v3892, 7
    %v3894 = vsub.s32 0, %v3893
    %v3895 = vrot.slane %v3886, %v3894
    %v3896 = vlaneseq
    %v3897 = vshrl.u32 %v3896, 7
    %v3898 = vsub.s32 4, %v3897
    %v3899 = vrot.slane %v3886, %v3898
    %v3900 = vlaneseq
    %v3901 = vshrl.u32 %v3900, 7
    %v3902 = vsub.s32 0, %v3901
    %v3903 = vrot.slane %v3887, %v3902
    %v3904 = vlaneseq
    %v3905 = vshrl.u32 %v3904, 7
    %v3906 = vsub.s32 4, %v3905
    %v3907 = vrot.slane %v3887, %v3906
    %v3912 = vlaneseq
    %v3913 = vshrl.u32 %v3912, 7
    %v3914 = vsub.s32 0, %v3913
    %v3915 = vrot.slane %v3895, %v3914
    %v3916 = vlaneseq
    %v3917 = vshrl.u32 %v3916, 7
    %v3918 = vsub.s32 0, %v3917
    %v3919 = vrot.slane %v3899, %v3918
    %v3920 = vlaneseq
    %v3921 = vshrl.u32 %v3920, 7
    %v3922 = vsub.s32 0, %v3921
    %v3923 = vrot.slane %v3903, %v3922
    %v3924 = vlaneseq
    %v3925 = vshrl.u32 %v3924, 7
    %v3926 = vsub.s32 0, %v3925
    %v3927 = vrot.slane %v3907, %v3926
    %v3992 = vunpack.c.l.b16 %v3822
    %v3993 = vunpack.c.h.b16 %v3822
    %v3994 = vunpack.c.l.b16 %v3823
    %v3995 = vunpack.c.h.b16 %v3823
    %v3996 = vunpack.c.l.b16 %v3824
    %v3997 = vunpack.c.h.b16 %v3824
    %v3998 = vunpack.c.l.b16 %v3825
    %v3999 = vunpack.c.h.b16 %v3825
    %v4000 = vunpack.c.l.b16 %v3826
    %v4001 = vunpack.c.h.b16 %v3826
    %v4002 = vunpack.c.l.b16 %v3827
    %v4003 = vunpack.c.h.b16 %v3827
    %v4004 = vunpack.c.l.b16 %v3828
    %v4005 = vunpack.c.h.b16 %v3828
    %v4006 = vunpack.c.l.b16 %v3829
    %v4007 = vunpack.c.h.b16 %v3829
    %v4008 = vunpack.c.l.b16 %v3830
    %v4009 = vunpack.c.h.b16 %v3830
    %v4010 = vunpack.c.l.b16 %v3831
    %v4011 = vunpack.c.h.b16 %v3831
    %v4012 = vunpack.c.l.b16 %v3832
    %v4013 = vunpack.c.h.b16 %v3832
    %v4014 = vunpack.c.l.b16 %v3833
    %v4015 = vunpack.c.h.b16 %v3833
    %v4016 = vunpack.c.l.b16 %v3834
    %v4017 = vunpack.c.h.b16 %v3834
    %v4018 = vunpack.c.l.b16 %v3835
    %v4019 = vunpack.c.h.b16 %v3835
    %v4020 = vunpack.c.l.b16 %v3836
    %v4021 = vunpack.c.h.b16 %v3836
    %v4022 = vunpack.c.l.b16 %v3837
    %v4023 = vunpack.c.h.b16 %v3837
    %v4024 = vunpack.c.l.b16 %v3838
    %v4025 = vunpack.c.h.b16 %v3838
    %v4026 = vunpack.c.l.b16 %v3839
    %v4027 = vunpack.c.h.b16 %v3839
    %v4028 = vunpack.c.l.b16 %v3840
    %v4029 = vunpack.c.h.b16 %v3840
    %v4030 = vunpack.c.l.b16 %v3841
    %v4031 = vunpack.c.h.b16 %v3841
    %v4032 = vunpack.c.l.b16 %v3842
    %v4033 = vunpack.c.h.b16 %v3842
    %v4034 = vunpack.c.l.b16 %v3843
    %v4035 = vunpack.c.h.b16 %v3843
    %v4036 = vunpack.c.l.b16 %v3844
    %v4037 = vunpack.c.h.b16 %v3844
    %v4038 = vunpack.c.l.b16 %v3845
    %v4039 = vunpack.c.h.b16 %v3845
    %v4040 = vunpack.c.l.b16 %v3846
    %v4041 = vunpack.c.h.b16 %v3846
    %v4042 = vunpack.c.l.b16 %v3847
    %v4043 = vunpack.c.h.b16 %v3847
    %v4044 = vunpack.c.l.b16 %v3848
    %v4045 = vunpack.c.h.b16 %v3848
    %v4046 = vunpack.c.l.b16 %v3849
    %v4047 = vunpack.c.h.b16 %v3849
    %v4048 = vunpack.c.l.b16 %v3850
    %v4049 = vunpack.c.h.b16 %v3850
    %v4050 = vunpack.c.l.b16 %v3851
    %v4051 = vunpack.c.h.b16 %v3851
    %v4052 = vunpack.c.l.b16 %v3852
    %v4053 = vunpack.c.h.b16 %v3852
    %v4054 = vunpack.c.l.b16 %v3853
    %v4055 = vunpack.c.h.b16 %v3853
    %v4056 = vunpack.c.l.b16 %v3854
    %v4057 = vunpack.c.h.b16 %v3854
    %v4058 = vunpack.c.l.b16 %v3855
    %v4059 = vunpack.c.h.b16 %v3855
    %v4060 = vunpack.c.l.b16 %v3856
    %v4061 = vunpack.c.h.b16 %v3856
    %v4062 = vunpack.c.l.b16 %v3857
    %v4063 = vunpack.c.h.b16 %v3857
    %v4064 = vunpack.c.l.b16 %v3858
    %v4065 = vunpack.c.h.b16 %v3858
    %v4066 = vunpack.c.l.b16 %v3859
    %v4067 = vunpack.c.h.b16 %v3859
    %v4068 = vunpack.c.l.b16 %v3860
    %v4069 = vunpack.c.h.b16 %v3860
    %v4070 = vunpack.c.l.b16 %v3861
    %v4071 = vunpack.c.h.b16 %v3861
    %v4072 = vunpack.c.l.b16 %v3862
    %v4073 = vunpack.c.h.b16 %v3862
    %v4074 = vunpack.c.l.b16 %v3863
    %v4075 = vunpack.c.h.b16 %v3863
    %v4076 = vunpack.c.l.b16 %v3864
    %v4077 = vunpack.c.h.b16 %v3864
    %v4078 = vunpack.c.l.b16 %v3865
    %v4079 = vunpack.c.h.b16 %v3865
    %v4080 = vunpack.c.l.b16 %v3866
    %v4081 = vunpack.c.h.b16 %v3866
    %v4082 = vunpack.c.l.b16 %v3867
    %v4083 = vunpack.c.h.b16 %v3867
    %v4084 = vunpack.c.l.b16 %v3868
    %v4085 = vunpack.c.h.b16 %v3868
    %v4086 = vunpack.c.l.b16 %v3869
    %v4087 = vunpack.c.h.b16 %v3869
    %v4088 = vunpack.c.l.b16 %v3870
    %v4089 = vunpack.c.h.b16 %v3870
    %v4090 = vunpack.c.l.b16 %v3871
    %v4091 = vunpack.c.h.b16 %v3871
    %v4092 = vunpack.c.l.b16 %v3872
    %v4093 = vunpack.c.h.b16 %v3872
    %v4094 = vunpack.c.l.b16 %v3873
    %v4095 = vunpack.c.h.b16 %v3873
    %v4096 = vunpack.c.l.b16 %v3874
    %v4097 = vunpack.c.h.b16 %v3874
    %v4098 = vunpack.c.l.b16 %v3875
    %v4099 = vunpack.c.h.b16 %v3875
    %v4100 = vunpack.c.l.b16 %v3876
    %v4101 = vunpack.c.h.b16 %v3876
    %v4102 = vunpack.c.l.b16 %v3877
    %v4103 = vunpack.c.h.b16 %v3877
    %v4104 = vunpack.c.l.b16 %v3878
    %v4105 = vunpack.c.h.b16 %v3878
    %v4106 = vunpack.c.l.b16 %v3879
    %v4107 = vunpack.c.h.b16 %v3879
    %v4108 = vunpack.c.l.b16 %v3880
    %v4109 = vunpack.c.h.b16 %v3880
    %v4110 = vunpack.c.l.b16 %v3881
    %v4111 = vunpack.c.h.b16 %v3881
    %v4112 = vunpack.c.l.b16 %v3882
    %v4113 = vunpack.c.h.b16 %v3882
    %v4114 = vunpack.c.l.b16 %v3883
    %v4115 = vunpack.c.h.b16 %v3883
    %v4116 = vunpack.c.l.b16 %v3884
    %v4117 = vunpack.c.h.b16 %v3884
    %v4118 = vunpack.c.l.b16 %v3885
    %v4119 = vunpack.c.h.b16 %v3885
    %v4120 = vpack.c.b16 %v3996, %v3992
    %v4121 = vpack.c.b16 %v3997, %v3993
    %v4122 = vpack.c.b16 %v3998, %v3994
    %v4123 = vpack.c.b16 %v3999, %v3995
    %v4124 = vpack.c.b16 %v4004, %v4000
    %v4125 = vpack.c.b16 %v4005, %v4001
    %v4126 = vpack.c.b16 %v4006, %v4002
    %v4127 = vpack.c.b16 %v4007, %v4003
    %v4128 = vpack.c.b16 %v4012, %v4008
    %v4129 = vpack.c.b16 %v4013, %v4009
    %v4130 = vpack.c.b16 %v4014, %v4010
    %v4131 = vpack.c.b16 %v4015, %v4011
    %v4132 = vpack.c.b16 %v4020, %v4016
    %v4133 = vpack.c.b16 %v4021, %v4017
    %v4134 = vpack.c.b16 %v4022, %v4018
    %v4135 = vpack.c.b16 %v4023, %v4019
    %v4136 = vpack.c.b16 %v4028, %v4024
    %v4137 = vpack.c.b16 %v4029, %v4025
    %v4138 = vpack.c.b16 %v4030, %v4026
    %v4139 = vpack.c.b16 %v4031, %v4027
    %v4140 = vpack.c.b16 %v4036, %v4032
    %v4141 = vpack.c.b16 %v4037, %v4033
    %v4142 = vpack.c.b16 %v4038, %v4034
    %v4143 = vpack.c.b16 %v4039, %v4035
    %v4144 = vpack.c.b16 %v4044, %v4040
    %v4145 = vpack.c.b16 %v4045, %v4041
    %v4146 = vpack.c.b16 %v4046, %v4042
    %v4147 = vpack.c.b16 %v4047, %v4043
    %v4148 = vpack.c.b16 %v4052, %v4048
    %v4149 = vpack.c.b16 %v4053, %v4049
    %v4150 = vpack.c.b16 %v4054, %v4050
    %v4151 = vpack.c.b16 %v4055, %v4051
    %v4152 = vpack.c.b16 %v4060, %v4056
    %v4153 = vpack.c.b16 %v4061, %v4057
    %v4154 = vpack.c.b16 %v4062, %v4058
    %v4155 = vpack.c.b16 %v4063, %v4059
    %v4156 = vpack.c.b16 %v4068, %v4064
    %v4157 = vpack.c.b16 %v4069, %v4065
    %v4158 = vpack.c.b16 %v4070, %v4066
    %v4159 = vpack.c.b16 %v4071, %v4067
    %v4160 = vpack.c.b16 %v4076, %v4072
    %v4161 = vpack.c.b16 %v4077, %v4073
    %v4162 = vpack.c.b16 %v4078, %v4074
    %v4163 = vpack.c.b16 %v4079, %v4075
    %v4164 = vpack.c.b16 %v4084, %v4080
    %v4165 = vpack.c.b16 %v4085, %v4081
    %v4166 = vpack.c.b16 %v4086, %v4082
    %v4167 = vpack.c.b16 %v4087, %v4083
    %v4168 = vpack.c.b16 %v4092, %v4088
    %v4169 = vpack.c.b16 %v4093, %v4089
    %v4170 = vpack.c.b16 %v4094, %v4090
    %v4171 = vpack.c.b16 %v4095, %v4091
    %v4172 = vpack.c.b16 %v4100, %v4096
    %v4173 = vpack.c.b16 %v4101, %v4097
    %v4174 = vpack.c.b16 %v4102, %v4098
    %v4175 = vpack.c.b16 %v4103, %v4099
    %v4176 = vpack.c.b16 %v4108, %v4104
    %v4177 = vpack.c.b16 %v4109, %v4105
    %v4178 = vpack.c.b16 %v4110, %v4106
    %v4179 = vpack.c.b16 %v4111, %v4107
    %v4180 = vpack.c.b16 %v4116, %v4112
    %v4181 = vpack.c.b16 %v4117, %v4113
    %v4182 = vpack.c.b16 %v4118, %v4114
    %v4183 = vpack.c.b16 %v4119, %v4115
    %4248 = vmatprep.subr.bf16.mxu0 %v4121
    %4249 = vmatpush1.bf16.msra.mxu0 %v4120
    %4250 = vmatprep.subr.bf16.mxu0 %v4125
    %4251 = vmatpush1.bf16.msra.mxu0 %v4124
    %4252 = vmatprep.subr.bf16.mxu0 %v4129
    %4253 = vmatpush1.bf16.msra.mxu0 %v4128
    %4254 = vmatprep.subr.bf16.mxu0 %v4133
    %4255 = vmatpush1.bf16.msra.mxu0 %v4132
    %4256 = vmatprep.subr.bf16.mxu0 %v4137
    %4257 = vmatpush1.bf16.msra.mxu0 %v4136
    %4258 = vmatprep.subr.bf16.mxu0 %v4141
    %4259 = vmatpush1.bf16.msra.mxu0 %v4140
    %4260 = vmatprep.subr.bf16.mxu0 %v4145
    %4261 = vmatpush1.bf16.msra.mxu0 %v4144
    %4262 = vmatprep.subr.bf16.mxu0 %v4149
    %4263 = vmatpush1.bf16.msra.mxu0 %v4148
    %4264 = vmatprep.subr.bf16.mxu0 %v4153
    %4265 = vmatpush1.bf16.msra.mxu0 %v4152
    %4266 = vmatprep.subr.bf16.mxu0 %v4157
    %4267 = vmatpush1.bf16.msra.mxu0 %v4156
    %4268 = vmatprep.subr.bf16.mxu0 %v4161
    %4269 = vmatpush1.bf16.msra.mxu0 %v4160
    %4270 = vmatprep.subr.bf16.mxu0 %v4165
    %4271 = vmatpush1.bf16.msra.mxu0 %v4164
    %4272 = vmatprep.subr.bf16.mxu0 %v4169
    %4273 = vmatpush1.bf16.msra.mxu0 %v4168
    %4274 = vmatprep.subr.bf16.mxu0 %v4173
    %4275 = vmatpush1.bf16.msra.mxu0 %v4172
    %4276 = vmatprep.subr.bf16.mxu0 %v4177
    %4277 = vmatpush1.bf16.msra.mxu0 %v4176
    %4278 = vmatprep.subr.bf16.mxu0 %v4181
    %4279 = vmatpush1.bf16.msra.mxu0 %v4180
    %4280 = vmatprep.mubr.bf16.mxu0 %v3889
    %4281 = vmatmul.mubr.bf16.gmra.mrb[0].mxu0 %v3888
    %v4282 = vpop.f32.mrb[0].mxu0
    %v4283 = vadd.f32 %v3915, %v4282
    %v4284 = vpop.f32.mrb[0].mxu0
    %v4285 = vadd.f32 %v3919, %v4284
    %v4286 = vpop.f32.mrb[0].mxu0
    %v4287 = vpop.f32.mrb[0].mxu0
    %4288 = vdwg.mxu0
    %4289 = vmatprep.subr.bf16.mxu0 %v4123
    %4290 = vmatpush1.bf16.msra.mxu0 %v4122
    %4291 = vmatprep.subr.bf16.mxu0 %v4127
    %4292 = vmatpush1.bf16.msra.mxu0 %v4126
    %4293 = vmatprep.subr.bf16.mxu0 %v4131
    %4294 = vmatpush1.bf16.msra.mxu0 %v4130
    %4295 = vmatprep.subr.bf16.mxu0 %v4135
    %4296 = vmatpush1.bf16.msra.mxu0 %v4134
    %4297 = vmatprep.subr.bf16.mxu0 %v4139
    %4298 = vmatpush1.bf16.msra.mxu0 %v4138
    %4299 = vmatprep.subr.bf16.mxu0 %v4143
    %4300 = vmatpush1.bf16.msra.mxu0 %v4142
    %4301 = vmatprep.subr.bf16.mxu0 %v4147
    %4302 = vmatpush1.bf16.msra.mxu0 %v4146
    %4303 = vmatprep.subr.bf16.mxu0 %v4151
    %4304 = vmatpush1.bf16.msra.mxu0 %v4150
    %4305 = vmatprep.subr.bf16.mxu0 %v4155
    %4306 = vmatpush1.bf16.msra.mxu0 %v4154
    %4307 = vmatprep.subr.bf16.mxu0 %v4159
    %4308 = vmatpush1.bf16.msra.mxu0 %v4158
    %4309 = vmatprep.subr.bf16.mxu0 %v4163
    %4310 = vmatpush1.bf16.msra.mxu0 %v4162
    %4311 = vmatprep.subr.bf16.mxu0 %v4167
    %4312 = vmatpush1.bf16.msra.mxu0 %v4166
    %4313 = vmatprep.subr.bf16.mxu0 %v4171
    %4314 = vmatpush1.bf16.msra.mxu0 %v4170
    %4315 = vmatprep.subr.bf16.mxu0 %v4175
    %4316 = vmatpush1.bf16.msra.mxu0 %v4174
    %4317 = vmatprep.subr.bf16.mxu0 %v4179
    %4318 = vmatpush1.bf16.msra.mxu0 %v4178
    %4319 = vmatprep.subr.bf16.mxu0 %v4183
    %4320 = vmatpush1.bf16.msra.mxu0 %v4182
    %4321 = vmatprep.mubr.bf16.mxu0 %v3889
    %4322 = vmatmul.mubr.bf16.gmra.mrb[0].mxu0 %v3888
    %v4323 = vpop.f32.mrb[0].mxu0
    %v4324 = vadd.f32 %v3923, %v4323
    %v4325 = vpop.f32.mrb[0].mxu0
    %v4326 = vadd.f32 %v3927, %v4325
    %v4327 = vpop.f32.mrb[0].mxu0
    %v4328 = vpop.f32.mrb[0].mxu0
    %4329 = vdwg.mxu0
    %v4330 = vrot.slane %v4283, 4
    %v4331 = vadd.f32 %v4283, %v4330
    %v4332 = vrot.slane %v4331, 2
    %v4333 = vadd.f32 %v4331, %v4332
    %v4334 = vrot.slane %v4333, 1
    %v4335 = vadd.f32 %v4333, %v4334
    %v4336 = vrot.slane %v4285, 4
    %v4337 = vadd.f32 %v4285, %v4336
    %v4338 = vrot.slane %v4337, 2
    %v4339 = vadd.f32 %v4337, %v4338
    %v4340 = vrot.slane %v4339, 1
    %v4341 = vadd.f32 %v4339, %v4340
    %v4342 = vrot.slane %v4324, 4
    %v4343 = vadd.f32 %v4324, %v4342
    %v4344 = vrot.slane %v4343, 2
    %v4345 = vadd.f32 %v4343, %v4344
    %v4346 = vrot.slane %v4345, 1
    %v4347 = vadd.f32 %v4345, %v4346
    %v4348 = vrot.slane %v4326, 4
    %v4349 = vadd.f32 %v4326, %v4348
    %v4350 = vrot.slane %v4349, 2
    %v4351 = vadd.f32 %v4349, %v4350
    %v4352 = vrot.slane %v4351, 1
    %v4353 = vadd.f32 %v4351, %v4352
    %v4354 = vmul.f32 %v4335, %v3419
    %v4355 = vmul.f32 %v4341, %v3419
    %v4356 = vmul.f32 %v4347, %v3419
    %v4357 = vmul.f32 %v4353, %v3419
    %v4358 = vsub.f32 %v4283, %v4354
    %v4359 = vsub.f32 %v4285, %v4355
    %v4360 = vsub.f32 %v4324, %v4356
    %v4361 = vsub.f32 %v4326, %v4357
    %v4362 = vmul.f32 %v4358, %v4358
    %v4363 = vmul.f32 %v4359, %v4359
    %v4364 = vmul.f32 %v4360, %v4360
    %v4365 = vmul.f32 %v4361, %v4361
    %v4366 = vrot.slane %v4362, 4
    %v4367 = vadd.f32 %v4362, %v4366
    %v4368 = vrot.slane %v4367, 2
    %v4369 = vadd.f32 %v4367, %v4368
    %v4370 = vrot.slane %v4369, 1
    %v4371 = vadd.f32 %v4369, %v4370
    %v4372 = vrot.slane %v4363, 4
    %v4373 = vadd.f32 %v4363, %v4372
    %v4374 = vrot.slane %v4373, 2
    %v4375 = vadd.f32 %v4373, %v4374
    %v4376 = vrot.slane %v4375, 1
    %v4377 = vadd.f32 %v4375, %v4376
    %v4378 = vrot.slane %v4364, 4
    %v4379 = vadd.f32 %v4364, %v4378
    %v4380 = vrot.slane %v4379, 2
    %v4381 = vadd.f32 %v4379, %v4380
    %v4382 = vrot.slane %v4381, 1
    %v4383 = vadd.f32 %v4381, %v4382
    %v4384 = vrot.slane %v4365, 4
    %v4385 = vadd.f32 %v4365, %v4384
    %v4386 = vrot.slane %v4385, 2
    %v4387 = vadd.f32 %v4385, %v4386
    %v4388 = vrot.slane %v4387, 1
    %v4389 = vadd.f32 %v4387, %v4388
    %v4390 = vmul.f32 %v4371, %v3419
    %v4391 = vmul.f32 %v4377, %v3419
    %v4392 = vmul.f32 %v4383, %v3419
    %v4393 = vmul.f32 %v4389, %v3419
    %v4394 = vadd.f32 %v4390, 1e-05
    %v4395 = vadd.f32 %v4391, 1e-05
    %v4396 = vadd.f32 %v4392, 1e-05
    %v4397 = vadd.f32 %v4393, 1e-05
    %v4398 = vrsqrt.pop %v4394
    %v4399 = vrsqrt.pop %v4395
    %v4400 = vrsqrt.pop %v4396
    %v4401 = vrsqrt.pop %v4397
    %v4402 = vmul.f32 %v4358, %v4398
    %v4403 = vmul.f32 %v4359, %v4399
    %v4404 = vmul.f32 %v4360, %v4400
    %v4405 = vmul.f32 %v4361, %v4401
    %v4406 = vlaneseq
    %v4407 = vshrl.u32 %v4406, 7
    %v4408 = vsub.s32 1, %v4407
    %v4409 = vrot.slane %v3886, %v4408
    %v4410 = vlaneseq
    %v4411 = vshrl.u32 %v4410, 7
    %v4412 = vsub.s32 5, %v4411
    %v4413 = vrot.slane %v3886, %v4412
    %v4414 = vlaneseq
    %v4415 = vshrl.u32 %v4414, 7
    %v4416 = vsub.s32 1, %v4415
    %v4417 = vrot.slane %v3887, %v4416
    %v4418 = vlaneseq
    %v4419 = vshrl.u32 %v4418, 7
    %v4420 = vsub.s32 5, %v4419
    %v4421 = vrot.slane %v3887, %v4420
    %v4426 = vlaneseq
    %v4427 = vshrl.u32 %v4426, 7
    %v4428 = vsub.s32 1, %v4427
    %v4429 = vrot.slane %v4409, %v4428
    %v4430 = vlaneseq
    %v4431 = vshrl.u32 %v4430, 7
    %v4432 = vsub.s32 1, %v4431
    %v4433 = vrot.slane %v4413, %v4432
    %v4434 = vlaneseq
    %v4435 = vshrl.u32 %v4434, 7
    %v4436 = vsub.s32 1, %v4435
    %v4437 = vrot.slane %v4417, %v4436
    %v4438 = vlaneseq
    %v4439 = vshrl.u32 %v4438, 7
    %v4440 = vsub.s32 1, %v4439
    %v4441 = vrot.slane %v4421, %v4440
    %v4442 = vmul.f32 %v4402, %v4429
    %v4443 = vmul.f32 %v4403, %v4433
    %v4444 = vmul.f32 %v4404, %v4437
    %v4445 = vmul.f32 %v4405, %v4441
    %v4446 = vlaneseq
    %v4447 = vshrl.u32 %v4446, 7
    %v4448 = vsub.s32 2, %v4447
    %v4449 = vrot.slane %v3886, %v4448
    %v4450 = vlaneseq
    %v4451 = vshrl.u32 %v4450, 7
    %v4452 = vsub.s32 6, %v4451
    %v4453 = vrot.slane %v3886, %v4452
    %v4454 = vlaneseq
    %v4455 = vshrl.u32 %v4454, 7
    %v4456 = vsub.s32 2, %v4455
    %v4457 = vrot.slane %v3887, %v4456
    %v4458 = vlaneseq
    %v4459 = vshrl.u32 %v4458, 7
    %v4460 = vsub.s32 6, %v4459
    %v4461 = vrot.slane %v3887, %v4460
    %v4466 = vlaneseq
    %v4467 = vshrl.u32 %v4466, 7
    %v4468 = vsub.s32 2, %v4467
    %v4469 = vrot.slane %v4449, %v4468
    %v4470 = vlaneseq
    %v4471 = vshrl.u32 %v4470, 7
    %v4472 = vsub.s32 2, %v4471
    %v4473 = vrot.slane %v4453, %v4472
    %v4474 = vlaneseq
    %v4475 = vshrl.u32 %v4474, 7
    %v4476 = vsub.s32 2, %v4475
    %v4477 = vrot.slane %v4457, %v4476
    %v4478 = vlaneseq
    %v4479 = vshrl.u32 %v4478, 7
    %v4480 = vsub.s32 2, %v4479
    %v4481 = vrot.slane %v4461, %v4480
    %v4482 = vadd.f32 %v4442, %v4469
    %v4483 = vadd.f32 %v4443, %v4473
    %v4484 = vadd.f32 %v4444, %v4477
    %v4485 = vadd.f32 %v4445, %v4481
    %v4486 = vmax.f32 %v4482, 0.0
    %v4487 = vmax.f32 %v4483, 0.0
    %v4488 = vmax.f32 %v4484, 0.0
    %v4489 = vmax.f32 %v4485, 0.0
    %v4490 = vld [vmem:[#allocation7] sm:$0xff]
    %v4491 = vld [vmem:[#allocation7 + $0x8] sm:$0xff]
    %v4492 = vld [vmem:[#allocation7 + $0x10] sm:$0xff]
    %v4493 = vld [vmem:[#allocation7 + $0x18] sm:$0xff]
    %v4494 = vld [vmem:[#allocation7 + $0x20] sm:$0xff]
    %v4495 = vld [vmem:[#allocation7 + $0x28] sm:$0xff]
    %v4496 = vld [vmem:[#allocation7 + $0x30] sm:$0xff]
    %v4497 = vld [vmem:[#allocation7 + $0x38] sm:$0xff]
    %v4498 = vld [vmem:[#allocation7 + $0x40] sm:$0xff]
    %v4499 = vld [vmem:[#allocation7 + $0x48] sm:$0xff]
    %v4500 = vld [vmem:[#allocation7 + $0x50] sm:$0xff]
    %v4501 = vld [vmem:[#allocation7 + $0x58] sm:$0xff]
    %v4502 = vld [vmem:[#allocation7 + $0x60] sm:$0xff]
    %v4503 = vld [vmem:[#allocation7 + $0x68] sm:$0xff]
    %v4504 = vld [vmem:[#allocation7 + $0x70] sm:$0xff]
    %v4505 = vld [vmem:[#allocation7 + $0x78] sm:$0xff]
    %v4506 = vld [vmem:[#allocation7 + $0x80] sm:$0xff]
    %v4507 = vld [vmem:[#allocation7 + $0x88] sm:$0xff]
    %v4508 = vld [vmem:[#allocation7 + $0x90] sm:$0xff]
    %v4509 = vld [vmem:[#allocation7 + $0x98] sm:$0xff]
    %v4510 = vld [vmem:[#allocation7 + $0xa0] sm:$0xff]
    %v4511 = vld [vmem:[#allocation7 + $0xa8] sm:$0xff]
    %v4512 = vld [vmem:[#allocation7 + $0xb0] sm:$0xff]
    %v4513 = vld [vmem:[#allocation7 + $0xb8] sm:$0xff]
    %v4514 = vld [vmem:[#allocation7 + $0xc0] sm:$0xff]
    %v4515 = vld [vmem:[#allocation7 + $0xc8] sm:$0xff]
    %v4516 = vld [vmem:[#allocation7 + $0xd0] sm:$0xff]
    %v4517 = vld [vmem:[#allocation7 + $0xd8] sm:$0xff]
    %v4518 = vld [vmem:[#allocation7 + $0xe0] sm:$0xff]
    %v4519 = vld [vmem:[#allocation7 + $0xe8] sm:$0xff]
    %v4520 = vld [vmem:[#allocation7 + $0xf0] sm:$0xff]
    %v4521 = vld [vmem:[#allocation7 + $0xf8] sm:$0xff]
    %v4522 = vld [vmem:[#allocation7 + $0x100] sm:$0xff]
    %v4523 = vld [vmem:[#allocation7 + $0x108] sm:$0xff]
    %v4524 = vld [vmem:[#allocation7 + $0x110] sm:$0xff]
    %v4525 = vld [vmem:[#allocation7 + $0x118] sm:$0xff]
    %v4526 = vld [vmem:[#allocation7 + $0x120] sm:$0xff]
    %v4527 = vld [vmem:[#allocation7 + $0x128] sm:$0xff]
    %v4528 = vld [vmem:[#allocation7 + $0x130] sm:$0xff]
    %v4529 = vld [vmem:[#allocation7 + $0x138] sm:$0xff]
    %v4530 = vld [vmem:[#allocation7 + $0x140] sm:$0xff]
    %v4531 = vld [vmem:[#allocation7 + $0x148] sm:$0xff]
    %v4532 = vld [vmem:[#allocation7 + $0x150] sm:$0xff]
    %v4533 = vld [vmem:[#allocation7 + $0x158] sm:$0xff]
    %v4534 = vld [vmem:[#allocation7 + $0x160] sm:$0xff]
    %v4535 = vld [vmem:[#allocation7 + $0x168] sm:$0xff]
    %v4536 = vld [vmem:[#allocation7 + $0x170] sm:$0xff]
    %v4537 = vld [vmem:[#allocation7 + $0x178] sm:$0xff]
    %v4538 = vld [vmem:[#allocation7 + $0x180] sm:$0xff]
    %v4539 = vld [vmem:[#allocation7 + $0x188] sm:$0xff]
    %v4540 = vld [vmem:[#allocation7 + $0x190] sm:$0xff]
    %v4541 = vld [vmem:[#allocation7 + $0x198] sm:$0xff]
    %v4542 = vld [vmem:[#allocation7 + $0x1a0] sm:$0xff]
    %v4543 = vld [vmem:[#allocation7 + $0x1a8] sm:$0xff]
    %v4544 = vld [vmem:[#allocation7 + $0x1b0] sm:$0xff]
    %v4545 = vld [vmem:[#allocation7 + $0x1b8] sm:$0xff]
    %v4546 = vld [vmem:[#allocation7 + $0x1c0] sm:$0xff]
    %v4547 = vld [vmem:[#allocation7 + $0x1c8] sm:$0xff]
    %v4548 = vld [vmem:[#allocation7 + $0x1d0] sm:$0xff]
    %v4549 = vld [vmem:[#allocation7 + $0x1d8] sm:$0xff]
    %v4550 = vld [vmem:[#allocation7 + $0x1e0] sm:$0xff]
    %v4551 = vld [vmem:[#allocation7 + $0x1e8] sm:$0xff]
    %v4552 = vld [vmem:[#allocation7 + $0x1f0] sm:$0xff]
    %v4553 = vld [vmem:[#allocation7 + $0x1f8] sm:$0xff]
    %v4554 = vld [vmem:[#allocation7 + $0x200] sm:$0xff]
    %v4555 = vld [vmem:[#allocation7 + $0x208] sm:$0xff]
    %v4556 = vld [vmem:[#allocation7 + $0x210] sm:$0xff]
    %v4557 = vld [vmem:[#allocation7 + $0x218] sm:$0xff]
    %v4558 = vld [vmem:[#allocation7 + $0x220] sm:$0xff]
    %v4559 = vld [vmem:[#allocation7 + $0x228] sm:$0xff]
    %v4560 = vld [vmem:[#allocation7 + $0x230] sm:$0xff]
    %v4561 = vld [vmem:[#allocation7 + $0x238] sm:$0xff]
    %v4562 = vld [vmem:[#allocation7 + $0x240] sm:$0xff]
    %v4563 = vld [vmem:[#allocation7 + $0x248] sm:$0xff]
    %v4564 = vld [vmem:[#allocation7 + $0x250] sm:$0xff]
    %v4565 = vld [vmem:[#allocation7 + $0x258] sm:$0xff]
    %v4566 = vld [vmem:[#allocation7 + $0x260] sm:$0xff]
    %v4567 = vld [vmem:[#allocation7 + $0x268] sm:$0xff]
    %v4568 = vld [vmem:[#allocation7 + $0x270] sm:$0xff]
    %v4569 = vld [vmem:[#allocation7 + $0x278] sm:$0xff]
    %v4570 = vld [vmem:[#allocation7 + $0x280] sm:$0xff]
    %v4571 = vld [vmem:[#allocation7 + $0x288] sm:$0xff]
    %v4572 = vld [vmem:[#allocation7 + $0x290] sm:$0xff]
    %v4573 = vld [vmem:[#allocation7 + $0x298] sm:$0xff]
    %v4574 = vld [vmem:[#allocation7 + $0x2a0] sm:$0xff]
    %v4575 = vld [vmem:[#allocation7 + $0x2a8] sm:$0xff]
    %v4576 = vld [vmem:[#allocation7 + $0x2b0] sm:$0xff]
    %v4577 = vld [vmem:[#allocation7 + $0x2b8] sm:$0xff]
    %v4578 = vld [vmem:[#allocation7 + $0x2c0] sm:$0xff]
    %v4579 = vld [vmem:[#allocation7 + $0x2c8] sm:$0xff]
    %v4580 = vld [vmem:[#allocation7 + $0x2d0] sm:$0xff]
    %v4581 = vld [vmem:[#allocation7 + $0x2d8] sm:$0xff]
    %v4582 = vld [vmem:[#allocation7 + $0x2e0] sm:$0xff]
    %v4583 = vld [vmem:[#allocation7 + $0x2e8] sm:$0xff]
    %v4584 = vld [vmem:[#allocation7 + $0x2f0] sm:$0xff]
    %v4585 = vld [vmem:[#allocation7 + $0x2f8] sm:$0xff]
    %v4586 = vld [vmem:[#allocation7 + $0x300] sm:$0xff]
    %v4587 = vld [vmem:[#allocation7 + $0x308] sm:$0xff]
    %v4588 = vld [vmem:[#allocation7 + $0x310] sm:$0xff]
    %v4589 = vld [vmem:[#allocation7 + $0x318] sm:$0xff]
    %v4590 = vld [vmem:[#allocation7 + $0x320] sm:$0xff]
    %v4591 = vld [vmem:[#allocation7 + $0x328] sm:$0xff]
    %v4592 = vld [vmem:[#allocation7 + $0x330] sm:$0xff]
    %v4593 = vld [vmem:[#allocation7 + $0x338] sm:$0xff]
    %v4594 = vld [vmem:[#allocation7 + $0x340] sm:$0xff]
    %v4595 = vld [vmem:[#allocation7 + $0x348] sm:$0xff]
    %v4596 = vld [vmem:[#allocation7 + $0x350] sm:$0xff]
    %v4597 = vld [vmem:[#allocation7 + $0x358] sm:$0xff]
    %v4598 = vld [vmem:[#allocation7 + $0x360] sm:$0xff]
    %v4599 = vld [vmem:[#allocation7 + $0x368] sm:$0xff]
    %v4600 = vld [vmem:[#allocation7 + $0x370] sm:$0xff]
    %v4601 = vld [vmem:[#allocation7 + $0x378] sm:$0xff]
    %v4602 = vld [vmem:[#allocation7 + $0x380] sm:$0xff]
    %v4603 = vld [vmem:[#allocation7 + $0x388] sm:$0xff]
    %v4604 = vld [vmem:[#allocation7 + $0x390] sm:$0xff]
    %v4605 = vld [vmem:[#allocation7 + $0x398] sm:$0xff]
    %v4606 = vld [vmem:[#allocation7 + $0x3a0] sm:$0xff]
    %v4607 = vld [vmem:[#allocation7 + $0x3a8] sm:$0xff]
    %v4608 = vld [vmem:[#allocation7 + $0x3b0] sm:$0xff]
    %v4609 = vld [vmem:[#allocation7 + $0x3b8] sm:$0xff]
    %v4610 = vld [vmem:[#allocation7 + $0x3c0] sm:$0xff]
    %v4611 = vld [vmem:[#allocation7 + $0x3c8] sm:$0xff]
    %v4612 = vld [vmem:[#allocation7 + $0x3d0] sm:$0xff]
    %v4613 = vld [vmem:[#allocation7 + $0x3d8] sm:$0xff]
    %v4614 = vld [vmem:[#allocation7 + $0x3e0] sm:$0xff]
    %v4615 = vld [vmem:[#allocation7 + $0x3e8] sm:$0xff]
    %v4616 = vld [vmem:[#allocation7 + $0x3f0] sm:$0xff]
    %v4617 = vld [vmem:[#allocation7 + $0x3f8] sm:$0xff]
    %v4618 = vld [vmem:[#allocation7 + $0x400] sm:$0xff]
    %v4619 = vld [vmem:[#allocation7 + $0x408] sm:$0xff]
    %v4620 = vld [vmem:[#allocation7 + $0x410] sm:$0xff]
    %v4621 = vld [vmem:[#allocation7 + $0x418] sm:$0xff]
    %v4622 = vld [vmem:[#allocation7 + $0x420] sm:$0xff]
    %v4623 = vld [vmem:[#allocation7 + $0x428] sm:$0xff]
    %v4624 = vld [vmem:[#allocation7 + $0x430] sm:$0xff]
    %v4625 = vld [vmem:[#allocation7 + $0x438] sm:$0xff]
    %v4626 = vld [vmem:[#allocation7 + $0x440] sm:$0xff]
    %v4627 = vld [vmem:[#allocation7 + $0x448] sm:$0xff]
    %v4628 = vld [vmem:[#allocation7 + $0x450] sm:$0xff]
    %v4629 = vld [vmem:[#allocation7 + $0x458] sm:$0xff]
    %v4630 = vld [vmem:[#allocation7 + $0x460] sm:$0xff]
    %v4631 = vld [vmem:[#allocation7 + $0x468] sm:$0xff]
    %v4632 = vld [vmem:[#allocation7 + $0x470] sm:$0xff]
    %v4633 = vld [vmem:[#allocation7 + $0x478] sm:$0xff]
    %v4634 = vld [vmem:[#allocation7 + $0x480] sm:$0xff]
    %v4635 = vld [vmem:[#allocation7 + $0x488] sm:$0xff]
    %v4636 = vld [vmem:[#allocation7 + $0x490] sm:$0xff]
    %v4637 = vld [vmem:[#allocation7 + $0x498] sm:$0xff]
    %v4638 = vld [vmem:[#allocation7 + $0x4a0] sm:$0xff]
    %v4639 = vld [vmem:[#allocation7 + $0x4a8] sm:$0xff]
    %v4640 = vld [vmem:[#allocation7 + $0x4b0] sm:$0xff]
    %v4641 = vld [vmem:[#allocation7 + $0x4b8] sm:$0xff]
    %v4642 = vld [vmem:[#allocation7 + $0x4c0] sm:$0xff]
    %v4643 = vld [vmem:[#allocation7 + $0x4c8] sm:$0xff]
    %v4644 = vld [vmem:[#allocation7 + $0x4d0] sm:$0xff]
    %v4645 = vld [vmem:[#allocation7 + $0x4d8] sm:$0xff]
    %v4646 = vld [vmem:[#allocation7 + $0x4e0] sm:$0xff]
    %v4647 = vld [vmem:[#allocation7 + $0x4e8] sm:$0xff]
    %v4648 = vld [vmem:[#allocation7 + $0x4f0] sm:$0xff]
    %v4649 = vld [vmem:[#allocation7 + $0x4f8] sm:$0xff]
    %v4650 = vld [vmem:[#allocation7 + $0x500] sm:$0xff]
    %v4651 = vld [vmem:[#allocation7 + $0x508] sm:$0xff]
    %v4652 = vld [vmem:[#allocation7 + $0x510] sm:$0xff]
    %v4653 = vld [vmem:[#allocation7 + $0x518] sm:$0xff]
    %v4654 = vld [vmem:[#allocation7 + $0x520] sm:$0xff]
    %v4655 = vld [vmem:[#allocation7 + $0x528] sm:$0xff]
    %v4656 = vld [vmem:[#allocation7 + $0x530] sm:$0xff]
    %v4657 = vld [vmem:[#allocation7 + $0x538] sm:$0xff]
    %v4658 = vld [vmem:[#allocation7 + $0x540] sm:$0xff]
    %v4659 = vld [vmem:[#allocation7 + $0x548] sm:$0xff]
    %v4660 = vld [vmem:[#allocation7 + $0x550] sm:$0xff]
    %v4661 = vld [vmem:[#allocation7 + $0x558] sm:$0xff]
    %v4662 = vld [vmem:[#allocation7 + $0x560] sm:$0xff]
    %v4663 = vld [vmem:[#allocation7 + $0x568] sm:$0xff]
    %v4664 = vld [vmem:[#allocation7 + $0x570] sm:$0xff]
    %v4665 = vld [vmem:[#allocation7 + $0x578] sm:$0xff]
    %v4666 = vld [vmem:[#allocation7 + $0x580] sm:$0xff]
    %v4667 = vld [vmem:[#allocation7 + $0x588] sm:$0xff]
    %v4668 = vld [vmem:[#allocation7 + $0x590] sm:$0xff]
    %v4669 = vld [vmem:[#allocation7 + $0x598] sm:$0xff]
    %v4670 = vld [vmem:[#allocation7 + $0x5a0] sm:$0xff]
    %v4671 = vld [vmem:[#allocation7 + $0x5a8] sm:$0xff]
    %v4672 = vld [vmem:[#allocation7 + $0x5b0] sm:$0xff]
    %v4673 = vld [vmem:[#allocation7 + $0x5b8] sm:$0xff]
    %v4674 = vld [vmem:[#allocation7 + $0x5c0] sm:$0xff]
    %v4675 = vld [vmem:[#allocation7 + $0x5c8] sm:$0xff]
    %v4676 = vld [vmem:[#allocation7 + $0x5d0] sm:$0xff]
    %v4677 = vld [vmem:[#allocation7 + $0x5d8] sm:$0xff]
    %v4678 = vld [vmem:[#allocation7 + $0x5e0] sm:$0xff]
    %v4679 = vld [vmem:[#allocation7 + $0x5e8] sm:$0xff]
    %v4680 = vld [vmem:[#allocation7 + $0x5f0] sm:$0xff]
    %v4681 = vld [vmem:[#allocation7 + $0x5f8] sm:$0xff]
    %v4682 = vld [vmem:[#allocation7 + $0x600] sm:$0xff]
    %v4683 = vld [vmem:[#allocation7 + $0x608] sm:$0xff]
    %v4684 = vld [vmem:[#allocation7 + $0x610] sm:$0xff]
    %v4685 = vld [vmem:[#allocation7 + $0x618] sm:$0xff]
    %v4686 = vld [vmem:[#allocation7 + $0x620] sm:$0xff]
    %v4687 = vld [vmem:[#allocation7 + $0x628] sm:$0xff]
    %v4688 = vld [vmem:[#allocation7 + $0x630] sm:$0xff]
    %v4689 = vld [vmem:[#allocation7 + $0x638] sm:$0xff]
    %v4690 = vld [vmem:[#allocation7 + $0x640] sm:$0xff]
    %v4691 = vld [vmem:[#allocation7 + $0x648] sm:$0xff]
    %v4692 = vld [vmem:[#allocation7 + $0x650] sm:$0xff]
    %v4693 = vld [vmem:[#allocation7 + $0x658] sm:$0xff]
    %v4694 = vld [vmem:[#allocation7 + $0x660] sm:$0xff]
    %v4695 = vld [vmem:[#allocation7 + $0x668] sm:$0xff]
    %v4696 = vld [vmem:[#allocation7 + $0x670] sm:$0xff]
    %v4697 = vld [vmem:[#allocation7 + $0x678] sm:$0xff]
    %v4698 = vld [vmem:[#allocation7 + $0x680] sm:$0xff]
    %v4699 = vld [vmem:[#allocation7 + $0x688] sm:$0xff]
    %v4700 = vld [vmem:[#allocation7 + $0x690] sm:$0xff]
    %v4701 = vld [vmem:[#allocation7 + $0x698] sm:$0xff]
    %v4702 = vld [vmem:[#allocation7 + $0x6a0] sm:$0xff]
    %v4703 = vld [vmem:[#allocation7 + $0x6a8] sm:$0xff]
    %v4704 = vld [vmem:[#allocation7 + $0x6b0] sm:$0xff]
    %v4705 = vld [vmem:[#allocation7 + $0x6b8] sm:$0xff]
    %v4706 = vld [vmem:[#allocation7 + $0x6c0] sm:$0xff]
    %v4707 = vld [vmem:[#allocation7 + $0x6c8] sm:$0xff]
    %v4708 = vld [vmem:[#allocation7 + $0x6d0] sm:$0xff]
    %v4709 = vld [vmem:[#allocation7 + $0x6d8] sm:$0xff]
    %v4710 = vld [vmem:[#allocation7 + $0x6e0] sm:$0xff]
    %v4711 = vld [vmem:[#allocation7 + $0x6e8] sm:$0xff]
    %v4712 = vld [vmem:[#allocation7 + $0x6f0] sm:$0xff]
    %v4713 = vld [vmem:[#allocation7 + $0x6f8] sm:$0xff]
    %v4714 = vld [vmem:[#allocation7 + $0x700] sm:$0xff]
    %v4715 = vld [vmem:[#allocation7 + $0x708] sm:$0xff]
    %v4716 = vld [vmem:[#allocation7 + $0x710] sm:$0xff]
    %v4717 = vld [vmem:[#allocation7 + $0x718] sm:$0xff]
    %v4718 = vld [vmem:[#allocation7 + $0x720] sm:$0xff]
    %v4719 = vld [vmem:[#allocation7 + $0x728] sm:$0xff]
    %v4720 = vld [vmem:[#allocation7 + $0x730] sm:$0xff]
    %v4721 = vld [vmem:[#allocation7 + $0x738] sm:$0xff]
    %v4722 = vld [vmem:[#allocation7 + $0x740] sm:$0xff]
    %v4723 = vld [vmem:[#allocation7 + $0x748] sm:$0xff]
    %v4724 = vld [vmem:[#allocation7 + $0x750] sm:$0xff]
    %v4725 = vld [vmem:[#allocation7 + $0x758] sm:$0xff]
    %v4726 = vld [vmem:[#allocation7 + $0x760] sm:$0xff]
    %v4727 = vld [vmem:[#allocation7 + $0x768] sm:$0xff]
    %v4728 = vld [vmem:[#allocation7 + $0x770] sm:$0xff]
    %v4729 = vld [vmem:[#allocation7 + $0x778] sm:$0xff]
    %v4730 = vld [vmem:[#allocation7 + $0x780] sm:$0xff]
    %v4731 = vld [vmem:[#allocation7 + $0x788] sm:$0xff]
    %v4732 = vld [vmem:[#allocation7 + $0x790] sm:$0xff]
    %v4733 = vld [vmem:[#allocation7 + $0x798] sm:$0xff]
    %v4734 = vld [vmem:[#allocation7 + $0x7a0] sm:$0xff]
    %v4735 = vld [vmem:[#allocation7 + $0x7a8] sm:$0xff]
    %v4736 = vld [vmem:[#allocation7 + $0x7b0] sm:$0xff]
    %v4737 = vld [vmem:[#allocation7 + $0x7b8] sm:$0xff]
    %v4738 = vld [vmem:[#allocation7 + $0x7c0] sm:$0xff]
    %v4739 = vld [vmem:[#allocation7 + $0x7c8] sm:$0xff]
    %v4740 = vld [vmem:[#allocation7 + $0x7d0] sm:$0xff]
    %v4741 = vld [vmem:[#allocation7 + $0x7d8] sm:$0xff]
    %v4742 = vld [vmem:[#allocation7 + $0x7e0] sm:$0xff]
    %v4743 = vld [vmem:[#allocation7 + $0x7e8] sm:$0xff]
    %v4744 = vld [vmem:[#allocation7 + $0x7f0] sm:$0xff]
    %v4745 = vld [vmem:[#allocation7 + $0x7f8] sm:$0xff]
    %v4746 = vld [vmem:[%s10] sm:$0x77]
    %v4747 = vld [vmem:[%s10 + $0x8] sm:$0x77]
    %v4748 = vld [vmem:[%s10 + $0x10] sm:$0x77]
    %v4749 = vld [vmem:[%s10 + $0x18] sm:$0x77]
    %v4750 = vpack.c.bf16 %v4486, %v4486
    %v4751 = vpack.c.bf16 %v4487, %v4487
    %v4752 = vpack.c.bf16 %v4488, %v4488
    %v4753 = vpack.c.bf16 %v4489, %v4489
    %v4758 = vlaneseq
    %v4759 = vshrl.u32 %v4758, 7
    %v4760 = vsub.s32 0, %v4759
    %v4761 = vrot.slane %v4746, %v4760
    %v4762 = vlaneseq
    %v4763 = vshrl.u32 %v4762, 7
    %v4764 = vsub.s32 4, %v4763
    %v4765 = vrot.slane %v4746, %v4764
    %v4766 = vlaneseq
    %v4767 = vshrl.u32 %v4766, 7
    %v4768 = vsub.s32 0, %v4767
    %v4769 = vrot.slane %v4747, %v4768
    %v4770 = vlaneseq
    %v4771 = vshrl.u32 %v4770, 7
    %v4772 = vsub.s32 4, %v4771
    %v4773 = vrot.slane %v4747, %v4772
    %v4774 = vlaneseq
    %v4775 = vshrl.u32 %v4774, 7
    %v4776 = vsub.s32 0, %v4775
    %v4777 = vrot.slane %v4748, %v4776
    %v4778 = vlaneseq
    %v4779 = vshrl.u32 %v4778, 7
    %v4780 = vsub.s32 4, %v4779
    %v4781 = vrot.slane %v4748, %v4780
    %v4782 = vlaneseq
    %v4783 = vshrl.u32 %v4782, 7
    %v4784 = vsub.s32 0, %v4783
    %v4785 = vrot.slane %v4749, %v4784
    %v4786 = vlaneseq
    %v4787 = vshrl.u32 %v4786, 7
    %v4788 = vsub.s32 4, %v4787
    %v4789 = vrot.slane %v4749, %v4788
    %v4798 = vlaneseq
    %v4799 = vshrl.u32 %v4798, 7
    %v4800 = vsub.s32 0, %v4799
    %v4801 = vrot.slane %v4761, %v4800
    %v4802 = vlaneseq
    %v4803 = vshrl.u32 %v4802, 7
    %v4804 = vsub.s32 0, %v4803
    %v4805 = vrot.slane %v4765, %v4804
    %v4806 = vlaneseq
    %v4807 = vshrl.u32 %v4806, 7
    %v4808 = vsub.s32 0, %v4807
    %v4809 = vrot.slane %v4769, %v4808
    %v4810 = vlaneseq
    %v4811 = vshrl.u32 %v4810, 7
    %v4812 = vsub.s32 0, %v4811
    %v4813 = vrot.slane %v4773, %v4812
    %v4814 = vlaneseq
    %v4815 = vshrl.u32 %v4814, 7
    %v4816 = vsub.s32 0, %v4815
    %v4817 = vrot.slane %v4777, %v4816
    %v4818 = vlaneseq
    %v4819 = vshrl.u32 %v4818, 7
    %v4820 = vsub.s32 0, %v4819
    %v4821 = vrot.slane %v4781, %v4820
    %v4822 = vlaneseq
    %v4823 = vshrl.u32 %v4822, 7
    %v4824 = vsub.s32 0, %v4823
    %v4825 = vrot.slane %v4785, %v4824
    %v4826 = vlaneseq
    %v4827 = vshrl.u32 %v4826, 7
    %v4828 = vsub.s32 0, %v4827
    %v4829 = vrot.slane %v4789, %v4828
    %v5086 = vunpack.c.l.b16 %v4490
    %v5087 = vunpack.c.h.b16 %v4490
    %v5088 = vunpack.c.l.b16 %v4491
    %v5089 = vunpack.c.h.b16 %v4491
    %v5090 = vunpack.c.l.b16 %v4492
    %v5091 = vunpack.c.h.b16 %v4492
    %v5092 = vunpack.c.l.b16 %v4493
    %v5093 = vunpack.c.h.b16 %v4493
    %v5094 = vunpack.c.l.b16 %v4494
    %v5095 = vunpack.c.h.b16 %v4494
    %v5096 = vunpack.c.l.b16 %v4495
    %v5097 = vunpack.c.h.b16 %v4495
    %v5098 = vunpack.c.l.b16 %v4496
    %v5099 = vunpack.c.h.b16 %v4496
    %v5100 = vunpack.c.l.b16 %v4497
    %v5101 = vunpack.c.h.b16 %v4497
    %v5102 = vunpack.c.l.b16 %v4498
    %v5103 = vunpack.c.h.b16 %v4498
    %v5104 = vunpack.c.l.b16 %v4499
    %v5105 = vunpack.c.h.b16 %v4499
    %v5106 = vunpack.c.l.b16 %v4500
    %v5107 = vunpack.c.h.b16 %v4500
    %v5108 = vunpack.c.l.b16 %v4501
    %v5109 = vunpack.c.h.b16 %v4501
    %v5110 = vunpack.c.l.b16 %v4502
    %v5111 = vunpack.c.h.b16 %v4502
    %v5112 = vunpack.c.l.b16 %v4503
    %v5113 = vunpack.c.h.b16 %v4503
    %v5114 = vunpack.c.l.b16 %v4504
    %v5115 = vunpack.c.h.b16 %v4504
    %v5116 = vunpack.c.l.b16 %v4505
    %v5117 = vunpack.c.h.b16 %v4505
    %v5118 = vunpack.c.l.b16 %v4506
    %v5119 = vunpack.c.h.b16 %v4506
    %v5120 = vunpack.c.l.b16 %v4507
    %v5121 = vunpack.c.h.b16 %v4507
    %v5122 = vunpack.c.l.b16 %v4508
    %v5123 = vunpack.c.h.b16 %v4508
    %v5124 = vunpack.c.l.b16 %v4509
    %v5125 = vunpack.c.h.b16 %v4509
    %v5126 = vunpack.c.l.b16 %v4510
    %v5127 = vunpack.c.h.b16 %v4510
    %v5128 = vunpack.c.l.b16 %v4511
    %v5129 = vunpack.c.h.b16 %v4511
    %v5130 = vunpack.c.l.b16 %v4512
    %v5131 = vunpack.c.h.b16 %v4512
    %v5132 = vunpack.c.l.b16 %v4513
    %v5133 = vunpack.c.h.b16 %v4513
    %v5134 = vunpack.c.l.b16 %v4514
    %v5135 = vunpack.c.h.b16 %v4514
    %v5136 = vunpack.c.l.b16 %v4515
    %v5137 = vunpack.c.h.b16 %v4515
    %v5138 = vunpack.c.l.b16 %v4516
    %v5139 = vunpack.c.h.b16 %v4516
    %v5140 = vunpack.c.l.b16 %v4517
    %v5141 = vunpack.c.h.b16 %v4517
    %v5142 = vunpack.c.l.b16 %v4518
    %v5143 = vunpack.c.h.b16 %v4518
    %v5144 = vunpack.c.l.b16 %v4519
    %v5145 = vunpack.c.h.b16 %v4519
    %v5146 = vunpack.c.l.b16 %v4520
    %v5147 = vunpack.c.h.b16 %v4520
    %v5148 = vunpack.c.l.b16 %v4521
    %v5149 = vunpack.c.h.b16 %v4521
    %v5150 = vunpack.c.l.b16 %v4522
    %v5151 = vunpack.c.h.b16 %v4522
    %v5152 = vunpack.c.l.b16 %v4523
    %v5153 = vunpack.c.h.b16 %v4523
    %v5154 = vunpack.c.l.b16 %v4524
    %v5155 = vunpack.c.h.b16 %v4524
    %v5156 = vunpack.c.l.b16 %v4525
    %v5157 = vunpack.c.h.b16 %v4525
    %v5158 = vunpack.c.l.b16 %v4526
    %v5159 = vunpack.c.h.b16 %v4526
    %v5160 = vunpack.c.l.b16 %v4527
    %v5161 = vunpack.c.h.b16 %v4527
    %v5162 = vunpack.c.l.b16 %v4528
    %v5163 = vunpack.c.h.b16 %v4528
    %v5164 = vunpack.c.l.b16 %v4529
    %v5165 = vunpack.c.h.b16 %v4529
    %v5166 = vunpack.c.l.b16 %v4530
    %v5167 = vunpack.c.h.b16 %v4530
    %v5168 = vunpack.c.l.b16 %v4531
    %v5169 = vunpack.c.h.b16 %v4531
    %v5170 = vunpack.c.l.b16 %v4532
    %v5171 = vunpack.c.h.b16 %v4532
    %v5172 = vunpack.c.l.b16 %v4533
    %v5173 = vunpack.c.h.b16 %v4533
    %v5174 = vunpack.c.l.b16 %v4534
    %v5175 = vunpack.c.h.b16 %v4534
    %v5176 = vunpack.c.l.b16 %v4535
    %v5177 = vunpack.c.h.b16 %v4535
    %v5178 = vunpack.c.l.b16 %v4536
    %v5179 = vunpack.c.h.b16 %v4536
    %v5180 = vunpack.c.l.b16 %v4537
    %v5181 = vunpack.c.h.b16 %v4537
    %v5182 = vunpack.c.l.b16 %v4538
    %v5183 = vunpack.c.h.b16 %v4538
    %v5184 = vunpack.c.l.b16 %v4539
    %v5185 = vunpack.c.h.b16 %v4539
    %v5186 = vunpack.c.l.b16 %v4540
    %v5187 = vunpack.c.h.b16 %v4540
    %v5188 = vunpack.c.l.b16 %v4541
    %v5189 = vunpack.c.h.b16 %v4541
    %v5190 = vunpack.c.l.b16 %v4542
    %v5191 = vunpack.c.h.b16 %v4542
    %v5192 = vunpack.c.l.b16 %v4543
    %v5193 = vunpack.c.h.b16 %v4543
    %v5194 = vunpack.c.l.b16 %v4544
    %v5195 = vunpack.c.h.b16 %v4544
    %v5196 = vunpack.c.l.b16 %v4545
    %v5197 = vunpack.c.h.b16 %v4545
    %v5198 = vunpack.c.l.b16 %v4546
    %v5199 = vunpack.c.h.b16 %v4546
    %v5200 = vunpack.c.l.b16 %v4547
    %v5201 = vunpack.c.h.b16 %v4547
    %v5202 = vunpack.c.l.b16 %v4548
    %v5203 = vunpack.c.h.b16 %v4548
    %v5204 = vunpack.c.l.b16 %v4549
    %v5205 = vunpack.c.h.b16 %v4549
    %v5206 = vunpack.c.l.b16 %v4550
    %v5207 = vunpack.c.h.b16 %v4550
    %v5208 = vunpack.c.l.b16 %v4551
    %v5209 = vunpack.c.h.b16 %v4551
    %v5210 = vunpack.c.l.b16 %v4552
    %v5211 = vunpack.c.h.b16 %v4552
    %v5212 = vunpack.c.l.b16 %v4553
    %v5213 = vunpack.c.h.b16 %v4553
    %v5214 = vunpack.c.l.b16 %v4554
    %v5215 = vunpack.c.h.b16 %v4554
    %v5216 = vunpack.c.l.b16 %v4555
    %v5217 = vunpack.c.h.b16 %v4555
    %v5218 = vunpack.c.l.b16 %v4556
    %v5219 = vunpack.c.h.b16 %v4556
    %v5220 = vunpack.c.l.b16 %v4557
    %v5221 = vunpack.c.h.b16 %v4557
    %v5222 = vunpack.c.l.b16 %v4558
    %v5223 = vunpack.c.h.b16 %v4558
    %v5224 = vunpack.c.l.b16 %v4559
    %v5225 = vunpack.c.h.b16 %v4559
    %v5226 = vunpack.c.l.b16 %v4560
    %v5227 = vunpack.c.h.b16 %v4560
    %v5228 = vunpack.c.l.b16 %v4561
    %v5229 = vunpack.c.h.b16 %v4561
    %v5230 = vunpack.c.l.b16 %v4562
    %v5231 = vunpack.c.h.b16 %v4562
    %v5232 = vunpack.c.l.b16 %v4563
    %v5233 = vunpack.c.h.b16 %v4563
    %v5234 = vunpack.c.l.b16 %v4564
    %v5235 = vunpack.c.h.b16 %v4564
    %v5236 = vunpack.c.l.b16 %v4565
    %v5237 = vunpack.c.h.b16 %v4565
    %v5238 = vunpack.c.l.b16 %v4566
    %v5239 = vunpack.c.h.b16 %v4566
    %v5240 = vunpack.c.l.b16 %v4567
    %v5241 = vunpack.c.h.b16 %v4567
    %v5242 = vunpack.c.l.b16 %v4568
    %v5243 = vunpack.c.h.b16 %v4568
    %v5244 = vunpack.c.l.b16 %v4569
    %v5245 = vunpack.c.h.b16 %v4569
    %v5246 = vunpack.c.l.b16 %v4570
    %v5247 = vunpack.c.h.b16 %v4570
    %v5248 = vunpack.c.l.b16 %v4571
    %v5249 = vunpack.c.h.b16 %v4571
    %v5250 = vunpack.c.l.b16 %v4572
    %v5251 = vunpack.c.h.b16 %v4572
    %v5252 = vunpack.c.l.b16 %v4573
    %v5253 = vunpack.c.h.b16 %v4573
    %v5254 = vunpack.c.l.b16 %v4574
    %v5255 = vunpack.c.h.b16 %v4574
    %v5256 = vunpack.c.l.b16 %v4575
    %v5257 = vunpack.c.h.b16 %v4575
    %v5258 = vunpack.c.l.b16 %v4576
    %v5259 = vunpack.c.h.b16 %v4576
    %v5260 = vunpack.c.l.b16 %v4577
    %v5261 = vunpack.c.h.b16 %v4577
    %v5262 = vunpack.c.l.b16 %v4578
    %v5263 = vunpack.c.h.b16 %v4578
    %v5264 = vunpack.c.l.b16 %v4579
    %v5265 = vunpack.c.h.b16 %v4579
    %v5266 = vunpack.c.l.b16 %v4580
    %v5267 = vunpack.c.h.b16 %v4580
    %v5268 = vunpack.c.l.b16 %v4581
    %v5269 = vunpack.c.h.b16 %v4581
    %v5270 = vunpack.c.l.b16 %v4582
    %v5271 = vunpack.c.h.b16 %v4582
    %v5272 = vunpack.c.l.b16 %v4583
    %v5273 = vunpack.c.h.b16 %v4583
    %v5274 = vunpack.c.l.b16 %v4584
    %v5275 = vunpack.c.h.b16 %v4584
    %v5276 = vunpack.c.l.b16 %v4585
    %v5277 = vunpack.c.h.b16 %v4585
    %v5278 = vunpack.c.l.b16 %v4586
    %v5279 = vunpack.c.h.b16 %v4586
    %v5280 = vunpack.c.l.b16 %v4587
    %v5281 = vunpack.c.h.b16 %v4587
    %v5282 = vunpack.c.l.b16 %v4588
    %v5283 = vunpack.c.h.b16 %v4588
    %v5284 = vunpack.c.l.b16 %v4589
    %v5285 = vunpack.c.h.b16 %v4589
    %v5286 = vunpack.c.l.b16 %v4590
    %v5287 = vunpack.c.h.b16 %v4590
    %v5288 = vunpack.c.l.b16 %v4591
    %v5289 = vunpack.c.h.b16 %v4591
    %v5290 = vunpack.c.l.b16 %v4592
    %v5291 = vunpack.c.h.b16 %v4592
    %v5292 = vunpack.c.l.b16 %v4593
    %v5293 = vunpack.c.h.b16 %v4593
    %v5294 = vunpack.c.l.b16 %v4594
    %v5295 = vunpack.c.h.b16 %v4594
    %v5296 = vunpack.c.l.b16 %v4595
    %v5297 = vunpack.c.h.b16 %v4595
    %v5298 = vunpack.c.l.b16 %v4596
    %v5299 = vunpack.c.h.b16 %v4596
    %v5300 = vunpack.c.l.b16 %v4597
    %v5301 = vunpack.c.h.b16 %v4597
    %v5302 = vunpack.c.l.b16 %v4598
    %v5303 = vunpack.c.h.b16 %v4598
    %v5304 = vunpack.c.l.b16 %v4599
    %v5305 = vunpack.c.h.b16 %v4599
    %v5306 = vunpack.c.l.b16 %v4600
    %v5307 = vunpack.c.h.b16 %v4600
    %v5308 = vunpack.c.l.b16 %v4601
    %v5309 = vunpack.c.h.b16 %v4601
    %v5310 = vunpack.c.l.b16 %v4602
    %v5311 = vunpack.c.h.b16 %v4602
    %v5312 = vunpack.c.l.b16 %v4603
    %v5313 = vunpack.c.h.b16 %v4603
    %v5314 = vunpack.c.l.b16 %v4604
    %v5315 = vunpack.c.h.b16 %v4604
    %v5316 = vunpack.c.l.b16 %v4605
    %v5317 = vunpack.c.h.b16 %v4605
    %v5318 = vunpack.c.l.b16 %v4606
    %v5319 = vunpack.c.h.b16 %v4606
    %v5320 = vunpack.c.l.b16 %v4607
    %v5321 = vunpack.c.h.b16 %v4607
    %v5322 = vunpack.c.l.b16 %v4608
    %v5323 = vunpack.c.h.b16 %v4608
    %v5324 = vunpack.c.l.b16 %v4609
    %v5325 = vunpack.c.h.b16 %v4609
    %v5326 = vunpack.c.l.b16 %v4610
    %v5327 = vunpack.c.h.b16 %v4610
    %v5328 = vunpack.c.l.b16 %v4611
    %v5329 = vunpack.c.h.b16 %v4611
    %v5330 = vunpack.c.l.b16 %v4612
    %v5331 = vunpack.c.h.b16 %v4612
    %v5332 = vunpack.c.l.b16 %v4613
    %v5333 = vunpack.c.h.b16 %v4613
    %v5334 = vunpack.c.l.b16 %v4614
    %v5335 = vunpack.c.h.b16 %v4614
    %v5336 = vunpack.c.l.b16 %v4615
    %v5337 = vunpack.c.h.b16 %v4615
    %v5338 = vunpack.c.l.b16 %v4616
    %v5339 = vunpack.c.h.b16 %v4616
    %v5340 = vunpack.c.l.b16 %v4617
    %v5341 = vunpack.c.h.b16 %v4617
    %v5342 = vunpack.c.l.b16 %v4618
    %v5343 = vunpack.c.h.b16 %v4618
    %v5344 = vunpack.c.l.b16 %v4619
    %v5345 = vunpack.c.h.b16 %v4619
    %v5346 = vunpack.c.l.b16 %v4620
    %v5347 = vunpack.c.h.b16 %v4620
    %v5348 = vunpack.c.l.b16 %v4621
    %v5349 = vunpack.c.h.b16 %v4621
    %v5350 = vunpack.c.l.b16 %v4622
    %v5351 = vunpack.c.h.b16 %v4622
    %v5352 = vunpack.c.l.b16 %v4623
    %v5353 = vunpack.c.h.b16 %v4623
    %v5354 = vunpack.c.l.b16 %v4624
    %v5355 = vunpack.c.h.b16 %v4624
    %v5356 = vunpack.c.l.b16 %v4625
    %v5357 = vunpack.c.h.b16 %v4625
    %v5358 = vunpack.c.l.b16 %v4626
    %v5359 = vunpack.c.h.b16 %v4626
    %v5360 = vunpack.c.l.b16 %v4627
    %v5361 = vunpack.c.h.b16 %v4627
    %v5362 = vunpack.c.l.b16 %v4628
    %v5363 = vunpack.c.h.b16 %v4628
    %v5364 = vunpack.c.l.b16 %v4629
    %v5365 = vunpack.c.h.b16 %v4629
    %v5366 = vunpack.c.l.b16 %v4630
    %v5367 = vunpack.c.h.b16 %v4630
    %v5368 = vunpack.c.l.b16 %v4631
    %v5369 = vunpack.c.h.b16 %v4631
    %v5370 = vunpack.c.l.b16 %v4632
    %v5371 = vunpack.c.h.b16 %v4632
    %v5372 = vunpack.c.l.b16 %v4633
    %v5373 = vunpack.c.h.b16 %v4633
    %v5374 = vunpack.c.l.b16 %v4634
    %v5375 = vunpack.c.h.b16 %v4634
    %v5376 = vunpack.c.l.b16 %v4635
    %v5377 = vunpack.c.h.b16 %v4635
    %v5378 = vunpack.c.l.b16 %v4636
    %v5379 = vunpack.c.h.b16 %v4636
    %v5380 = vunpack.c.l.b16 %v4637
    %v5381 = vunpack.c.h.b16 %v4637
    %v5382 = vunpack.c.l.b16 %v4638
    %v5383 = vunpack.c.h.b16 %v4638
    %v5384 = vunpack.c.l.b16 %v4639
    %v5385 = vunpack.c.h.b16 %v4639
    %v5386 = vunpack.c.l.b16 %v4640
    %v5387 = vunpack.c.h.b16 %v4640
    %v5388 = vunpack.c.l.b16 %v4641
    %v5389 = vunpack.c.h.b16 %v4641
    %v5390 = vunpack.c.l.b16 %v4642
    %v5391 = vunpack.c.h.b16 %v4642
    %v5392 = vunpack.c.l.b16 %v4643
    %v5393 = vunpack.c.h.b16 %v4643
    %v5394 = vunpack.c.l.b16 %v4644
    %v5395 = vunpack.c.h.b16 %v4644
    %v5396 = vunpack.c.l.b16 %v4645
    %v5397 = vunpack.c.h.b16 %v4645
    %v5398 = vunpack.c.l.b16 %v4646
    %v5399 = vunpack.c.h.b16 %v4646
    %v5400 = vunpack.c.l.b16 %v4647
    %v5401 = vunpack.c.h.b16 %v4647
    %v5402 = vunpack.c.l.b16 %v4648
    %v5403 = vunpack.c.h.b16 %v4648
    %v5404 = vunpack.c.l.b16 %v4649
    %v5405 = vunpack.c.h.b16 %v4649
    %v5406 = vunpack.c.l.b16 %v4650
    %v5407 = vunpack.c.h.b16 %v4650
    %v5408 = vunpack.c.l.b16 %v4651
    %v5409 = vunpack.c.h.b16 %v4651
    %v5410 = vunpack.c.l.b16 %v4652
    %v5411 = vunpack.c.h.b16 %v4652
    %v5412 = vunpack.c.l.b16 %v4653
    %v5413 = vunpack.c.h.b16 %v4653
    %v5414 = vunpack.c.l.b16 %v4654
    %v5415 = vunpack.c.h.b16 %v4654
    %v5416 = vunpack.c.l.b16 %v4655
    %v5417 = vunpack.c.h.b16 %v4655
    %v5418 = vunpack.c.l.b16 %v4656
    %v5419 = vunpack.c.h.b16 %v4656
    %v5420 = vunpack.c.l.b16 %v4657
    %v5421 = vunpack.c.h.b16 %v4657
    %v5422 = vunpack.c.l.b16 %v4658
    %v5423 = vunpack.c.h.b16 %v4658
    %v5424 = vunpack.c.l.b16 %v4659
    %v5425 = vunpack.c.h.b16 %v4659
    %v5426 = vunpack.c.l.b16 %v4660
    %v5427 = vunpack.c.h.b16 %v4660
    %v5428 = vunpack.c.l.b16 %v4661
    %v5429 = vunpack.c.h.b16 %v4661
    %v5430 = vunpack.c.l.b16 %v4662
    %v5431 = vunpack.c.h.b16 %v4662
    %v5432 = vunpack.c.l.b16 %v4663
    %v5433 = vunpack.c.h.b16 %v4663
    %v5434 = vunpack.c.l.b16 %v4664
    %v5435 = vunpack.c.h.b16 %v4664
    %v5436 = vunpack.c.l.b16 %v4665
    %v5437 = vunpack.c.h.b16 %v4665
    %v5438 = vunpack.c.l.b16 %v4666
    %v5439 = vunpack.c.h.b16 %v4666
    %v5440 = vunpack.c.l.b16 %v4667
    %v5441 = vunpack.c.h.b16 %v4667
    %v5442 = vunpack.c.l.b16 %v4668
    %v5443 = vunpack.c.h.b16 %v4668
    %v5444 = vunpack.c.l.b16 %v4669
    %v5445 = vunpack.c.h.b16 %v4669
    %v5446 = vunpack.c.l.b16 %v4670
    %v5447 = vunpack.c.h.b16 %v4670
    %v5448 = vunpack.c.l.b16 %v4671
    %v5449 = vunpack.c.h.b16 %v4671
    %v5450 = vunpack.c.l.b16 %v4672
    %v5451 = vunpack.c.h.b16 %v4672
    %v5452 = vunpack.c.l.b16 %v4673
    %v5453 = vunpack.c.h.b16 %v4673
    %v5454 = vunpack.c.l.b16 %v4674
    %v5455 = vunpack.c.h.b16 %v4674
    %v5456 = vunpack.c.l.b16 %v4675
    %v5457 = vunpack.c.h.b16 %v4675
    %v5458 = vunpack.c.l.b16 %v4676
    %v5459 = vunpack.c.h.b16 %v4676
    %v5460 = vunpack.c.l.b16 %v4677
    %v5461 = vunpack.c.h.b16 %v4677
    %v5462 = vunpack.c.l.b16 %v4678
    %v5463 = vunpack.c.h.b16 %v4678
    %v5464 = vunpack.c.l.b16 %v4679
    %v5465 = vunpack.c.h.b16 %v4679
    %v5466 = vunpack.c.l.b16 %v4680
    %v5467 = vunpack.c.h.b16 %v4680
    %v5468 = vunpack.c.l.b16 %v4681
    %v5469 = vunpack.c.h.b16 %v4681
    %v5470 = vunpack.c.l.b16 %v4682
    %v5471 = vunpack.c.h.b16 %v4682
    %v5472 = vunpack.c.l.b16 %v4683
    %v5473 = vunpack.c.h.b16 %v4683
    %v5474 = vunpack.c.l.b16 %v4684
    %v5475 = vunpack.c.h.b16 %v4684
    %v5476 = vunpack.c.l.b16 %v4685
    %v5477 = vunpack.c.h.b16 %v4685
    %v5478 = vunpack.c.l.b16 %v4686
    %v5479 = vunpack.c.h.b16 %v4686
    %v5480 = vunpack.c.l.b16 %v4687
    %v5481 = vunpack.c.h.b16 %v4687
    %v5482 = vunpack.c.l.b16 %v4688
    %v5483 = vunpack.c.h.b16 %v4688
    %v5484 = vunpack.c.l.b16 %v4689
    %v5485 = vunpack.c.h.b16 %v4689
    %v5486 = vunpack.c.l.b16 %v4690
    %v5487 = vunpack.c.h.b16 %v4690
    %v5488 = vunpack.c.l.b16 %v4691
    %v5489 = vunpack.c.h.b16 %v4691
    %v5490 = vunpack.c.l.b16 %v4692
    %v5491 = vunpack.c.h.b16 %v4692
    %v5492 = vunpack.c.l.b16 %v4693
    %v5493 = vunpack.c.h.b16 %v4693
    %v5494 = vunpack.c.l.b16 %v4694
    %v5495 = vunpack.c.h.b16 %v4694
    %v5496 = vunpack.c.l.b16 %v4695
    %v5497 = vunpack.c.h.b16 %v4695
    %v5498 = vunpack.c.l.b16 %v4696
    %v5499 = vunpack.c.h.b16 %v4696
    %v5500 = vunpack.c.l.b16 %v4697
    %v5501 = vunpack.c.h.b16 %v4697
    %v5502 = vunpack.c.l.b16 %v4698
    %v5503 = vunpack.c.h.b16 %v4698
    %v5504 = vunpack.c.l.b16 %v4699
    %v5505 = vunpack.c.h.b16 %v4699
    %v5506 = vunpack.c.l.b16 %v4700
    %v5507 = vunpack.c.h.b16 %v4700
    %v5508 = vunpack.c.l.b16 %v4701
    %v5509 = vunpack.c.h.b16 %v4701
    %v5510 = vunpack.c.l.b16 %v4702
    %v5511 = vunpack.c.h.b16 %v4702
    %v5512 = vunpack.c.l.b16 %v4703
    %v5513 = vunpack.c.h.b16 %v4703
    %v5514 = vunpack.c.l.b16 %v4704
    %v5515 = vunpack.c.h.b16 %v4704
    %v5516 = vunpack.c.l.b16 %v4705
    %v5517 = vunpack.c.h.b16 %v4705
    %v5518 = vunpack.c.l.b16 %v4706
    %v5519 = vunpack.c.h.b16 %v4706
    %v5520 = vunpack.c.l.b16 %v4707
    %v5521 = vunpack.c.h.b16 %v4707
    %v5522 = vunpack.c.l.b16 %v4708
    %v5523 = vunpack.c.h.b16 %v4708
    %v5524 = vunpack.c.l.b16 %v4709
    %v5525 = vunpack.c.h.b16 %v4709
    %v5526 = vunpack.c.l.b16 %v4710
    %v5527 = vunpack.c.h.b16 %v4710
    %v5528 = vunpack.c.l.b16 %v4711
    %v5529 = vunpack.c.h.b16 %v4711
    %v5530 = vunpack.c.l.b16 %v4712
    %v5531 = vunpack.c.h.b16 %v4712
    %v5532 = vunpack.c.l.b16 %v4713
    %v5533 = vunpack.c.h.b16 %v4713
    %v5534 = vunpack.c.l.b16 %v4714
    %v5535 = vunpack.c.h.b16 %v4714
    %v5536 = vunpack.c.l.b16 %v4715
    %v5537 = vunpack.c.h.b16 %v4715
    %v5538 = vunpack.c.l.b16 %v4716
    %v5539 = vunpack.c.h.b16 %v4716
    %v5540 = vunpack.c.l.b16 %v4717
    %v5541 = vunpack.c.h.b16 %v4717
    %v5542 = vunpack.c.l.b16 %v4718
    %v5543 = vunpack.c.h.b16 %v4718
    %v5544 = vunpack.c.l.b16 %v4719
    %v5545 = vunpack.c.h.b16 %v4719
    %v5546 = vunpack.c.l.b16 %v4720
    %v5547 = vunpack.c.h.b16 %v4720
    %v5548 = vunpack.c.l.b16 %v4721
    %v5549 = vunpack.c.h.b16 %v4721
    %v5550 = vunpack.c.l.b16 %v4722
    %v5551 = vunpack.c.h.b16 %v4722
    %v5552 = vunpack.c.l.b16 %v4723
    %v5553 = vunpack.c.h.b16 %v4723
    %v5554 = vunpack.c.l.b16 %v4724
    %v5555 = vunpack.c.h.b16 %v4724
    %v5556 = vunpack.c.l.b16 %v4725
    %v5557 = vunpack.c.h.b16 %v4725
    %v5558 = vunpack.c.l.b16 %v4726
    %v5559 = vunpack.c.h.b16 %v4726
    %v5560 = vunpack.c.l.b16 %v4727
    %v5561 = vunpack.c.h.b16 %v4727
    %v5562 = vunpack.c.l.b16 %v4728
    %v5563 = vunpack.c.h.b16 %v4728
    %v5564 = vunpack.c.l.b16 %v4729
    %v5565 = vunpack.c.h.b16 %v4729
    %v5566 = vunpack.c.l.b16 %v4730
    %v5567 = vunpack.c.h.b16 %v4730
    %v5568 = vunpack.c.l.b16 %v4731
    %v5569 = vunpack.c.h.b16 %v4731
    %v5570 = vunpack.c.l.b16 %v4732
    %v5571 = vunpack.c.h.b16 %v4732
    %v5572 = vunpack.c.l.b16 %v4733
    %v5573 = vunpack.c.h.b16 %v4733
    %v5574 = vunpack.c.l.b16 %v4734
    %v5575 = vunpack.c.h.b16 %v4734
    %v5576 = vunpack.c.l.b16 %v4735
    %v5577 = vunpack.c.h.b16 %v4735
    %v5578 = vunpack.c.l.b16 %v4736
    %v5579 = vunpack.c.h.b16 %v4736
    %v5580 = vunpack.c.l.b16 %v4737
    %v5581 = vunpack.c.h.b16 %v4737
    %v5582 = vunpack.c.l.b16 %v4738
    %v5583 = vunpack.c.h.b16 %v4738
    %v5584 = vunpack.c.l.b16 %v4739
    %v5585 = vunpack.c.h.b16 %v4739
    %v5586 = vunpack.c.l.b16 %v4740
    %v5587 = vunpack.c.h.b16 %v4740
    %v5588 = vunpack.c.l.b16 %v4741
    %v5589 = vunpack.c.h.b16 %v4741
    %v5590 = vunpack.c.l.b16 %v4742
    %v5591 = vunpack.c.h.b16 %v4742
    %v5592 = vunpack.c.l.b16 %v4743
    %v5593 = vunpack.c.h.b16 %v4743
    %v5594 = vunpack.c.l.b16 %v4744
    %v5595 = vunpack.c.h.b16 %v4744
    %v5596 = vunpack.c.l.b16 %v4745
    %v5597 = vunpack.c.h.b16 %v4745
    %v5598 = vpack.c.b16 %v5094, %v5086
    %v5599 = vpack.c.b16 %v5095, %v5087
    %v5600 = vpack.c.b16 %v5096, %v5088
    %v5601 = vpack.c.b16 %v5097, %v5089
    %v5602 = vpack.c.b16 %v5098, %v5090
    %v5603 = vpack.c.b16 %v5099, %v5091
    %v5604 = vpack.c.b16 %v5100, %v5092
    %v5605 = vpack.c.b16 %v5101, %v5093
    %v5606 = vpack.c.b16 %v5110, %v5102
    %v5607 = vpack.c.b16 %v5111, %v5103
    %v5608 = vpack.c.b16 %v5112, %v5104
    %v5609 = vpack.c.b16 %v5113, %v5105
    %v5610 = vpack.c.b16 %v5114, %v5106
    %v5611 = vpack.c.b16 %v5115, %v5107
    %v5612 = vpack.c.b16 %v5116, %v5108
    %v5613 = vpack.c.b16 %v5117, %v5109
    %v5614 = vpack.c.b16 %v5126, %v5118
    %v5615 = vpack.c.b16 %v5127, %v5119
    %v5616 = vpack.c.b16 %v5128, %v5120
    %v5617 = vpack.c.b16 %v5129, %v5121
    %v5618 = vpack.c.b16 %v5130, %v5122
    %v5619 = vpack.c.b16 %v5131, %v5123
    %v5620 = vpack.c.b16 %v5132, %v5124
    %v5621 = vpack.c.b16 %v5133, %v5125
    %v5622 = vpack.c.b16 %v5142, %v5134
    %v5623 = vpack.c.b16 %v5143, %v5135
    %v5624 = vpack.c.b16 %v5144, %v5136
    %v5625 = vpack.c.b16 %v5145, %v5137
    %v5626 = vpack.c.b16 %v5146, %v5138
    %v5627 = vpack.c.b16 %v5147, %v5139
    %v5628 = vpack.c.b16 %v5148, %v5140
    %v5629 = vpack.c.b16 %v5149, %v5141
    %v5630 = vpack.c.b16 %v5158, %v5150
    %v5631 = vpack.c.b16 %v5159, %v5151
    %v5632 = vpack.c.b16 %v5160, %v5152
    %v5633 = vpack.c.b16 %v5161, %v5153
    %v5634 = vpack.c.b16 %v5162, %v5154
    %v5635 = vpack.c.b16 %v5163, %v5155
    %v5636 = vpack.c.b16 %v5164, %v5156
    %v5637 = vpack.c.b16 %v5165, %v5157
    %v5638 = vpack.c.b16 %v5174, %v5166
    %v5639 = vpack.c.b16 %v5175, %v5167
    %v5640 = vpack.c.b16 %v5176, %v5168
    %v5641 = vpack.c.b16 %v5177, %v5169
    %v5642 = vpack.c.b16 %v5178, %v5170
    %v5643 = vpack.c.b16 %v5179, %v5171
    %v5644 = vpack.c.b16 %v5180, %v5172
    %v5645 = vpack.c.b16 %v5181, %v5173
    %v5646 = vpack.c.b16 %v5190, %v5182
    %v5647 = vpack.c.b16 %v5191, %v5183
    %v5648 = vpack.c.b16 %v5192, %v5184
    %v5649 = vpack.c.b16 %v5193, %v5185
    %v5650 = vpack.c.b16 %v5194, %v5186
    %v5651 = vpack.c.b16 %v5195, %v5187
    %v5652 = vpack.c.b16 %v5196, %v5188
    %v5653 = vpack.c.b16 %v5197, %v5189
    %v5654 = vpack.c.b16 %v5206, %v5198
    %v5655 = vpack.c.b16 %v5207, %v5199
    %v5656 = vpack.c.b16 %v5208, %v5200
    %v5657 = vpack.c.b16 %v5209, %v5201
    %v5658 = vpack.c.b16 %v5210, %v5202
    %v5659 = vpack.c.b16 %v5211, %v5203
    %v5660 = vpack.c.b16 %v5212, %v5204
    %v5661 = vpack.c.b16 %v5213, %v5205
    %v5662 = vpack.c.b16 %v5222, %v5214
    %v5663 = vpack.c.b16 %v5223, %v5215
    %v5664 = vpack.c.b16 %v5224, %v5216
    %v5665 = vpack.c.b16 %v5225, %v5217
    %v5666 = vpack.c.b16 %v5226, %v5218
    %v5667 = vpack.c.b16 %v5227, %v5219
    %v5668 = vpack.c.b16 %v5228, %v5220
    %v5669 = vpack.c.b16 %v5229, %v5221
    %v5670 = vpack.c.b16 %v5238, %v5230
    %v5671 = vpack.c.b16 %v5239, %v5231
    %v5672 = vpack.c.b16 %v5240, %v5232
    %v5673 = vpack.c.b16 %v5241, %v5233
    %v5674 = vpack.c.b16 %v5242, %v5234
    %v5675 = vpack.c.b16 %v5243, %v5235
    %v5676 = vpack.c.b16 %v5244, %v5236
    %v5677 = vpack.c.b16 %v5245, %v5237
    %v5678 = vpack.c.b16 %v5254, %v5246
    %v5679 = vpack.c.b16 %v5255, %v5247
    %v5680 = vpack.c.b16 %v5256, %v5248
    %v5681 = vpack.c.b16 %v5257, %v5249
    %v5682 = vpack.c.b16 %v5258, %v5250
    %v5683 = vpack.c.b16 %v5259, %v5251
    %v5684 = vpack.c.b16 %v5260, %v5252
    %v5685 = vpack.c.b16 %v5261, %v5253
    %v5686 = vpack.c.b16 %v5270, %v5262
    %v5687 = vpack.c.b16 %v5271, %v5263
    %v5688 = vpack.c.b16 %v5272, %v5264
    %v5689 = vpack.c.b16 %v5273, %v5265
    %v5690 = vpack.c.b16 %v5274, %v5266
    %v5691 = vpack.c.b16 %v5275, %v5267
    %v5692 = vpack.c.b16 %v5276, %v5268
    %v5693 = vpack.c.b16 %v5277, %v5269
    %v5694 = vpack.c.b16 %v5286, %v5278
    %v5695 = vpack.c.b16 %v5287, %v5279
    %v5696 = vpack.c.b16 %v5288, %v5280
    %v5697 = vpack.c.b16 %v5289, %v5281
    %v5698 = vpack.c.b16 %v5290, %v5282
    %v5699 = vpack.c.b16 %v5291, %v5283
    %v5700 = vpack.c.b16 %v5292, %v5284
    %v5701 = vpack.c.b16 %v5293, %v5285
    %v5702 = vpack.c.b16 %v5302, %v5294
    %v5703 = vpack.c.b16 %v5303, %v5295
    %v5704 = vpack.c.b16 %v5304, %v5296
    %v5705 = vpack.c.b16 %v5305, %v5297
    %v5706 = vpack.c.b16 %v5306, %v5298
    %v5707 = vpack.c.b16 %v5307, %v5299
    %v5708 = vpack.c.b16 %v5308, %v5300
    %v5709 = vpack.c.b16 %v5309, %v5301
    %v5710 = vpack.c.b16 %v5318, %v5310
    %v5711 = vpack.c.b16 %v5319, %v5311
    %v5712 = vpack.c.b16 %v5320, %v5312
    %v5713 = vpack.c.b16 %v5321, %v5313
    %v5714 = vpack.c.b16 %v5322, %v5314
    %v5715 = vpack.c.b16 %v5323, %v5315
    %v5716 = vpack.c.b16 %v5324, %v5316
    %v5717 = vpack.c.b16 %v5325, %v5317
    %v5718 = vpack.c.b16 %v5334, %v5326
    %v5719 = vpack.c.b16 %v5335, %v5327
    %v5720 = vpack.c.b16 %v5336, %v5328
    %v5721 = vpack.c.b16 %v5337, %v5329
    %v5722 = vpack.c.b16 %v5338, %v5330
    %v5723 = vpack.c.b16 %v5339, %v5331
    %v5724 = vpack.c.b16 %v5340, %v5332
    %v5725 = vpack.c.b16 %v5341, %v5333
    %v5726 = vpack.c.b16 %v5350, %v5342
    %v5727 = vpack.c.b16 %v5351, %v5343
    %v5728 = vpack.c.b16 %v5352, %v5344
    %v5729 = vpack.c.b16 %v5353, %v5345
    %v5730 = vpack.c.b16 %v5354, %v5346
    %v5731 = vpack.c.b16 %v5355, %v5347
    %v5732 = vpack.c.b16 %v5356, %v5348
    %v5733 = vpack.c.b16 %v5357, %v5349
    %v5734 = vpack.c.b16 %v5366, %v5358
    %v5735 = vpack.c.b16 %v5367, %v5359
    %v5736 = vpack.c.b16 %v5368, %v5360
    %v5737 = vpack.c.b16 %v5369, %v5361
    %v5738 = vpack.c.b16 %v5370, %v5362
    %v5739 = vpack.c.b16 %v5371, %v5363
    %v5740 = vpack.c.b16 %v5372, %v5364
    %v5741 = vpack.c.b16 %v5373, %v5365
    %v5742 = vpack.c.b16 %v5382, %v5374
    %v5743 = vpack.c.b16 %v5383, %v5375
    %v5744 = vpack.c.b16 %v5384, %v5376
    %v5745 = vpack.c.b16 %v5385, %v5377
    %v5746 = vpack.c.b16 %v5386, %v5378
    %v5747 = vpack.c.b16 %v5387, %v5379
    %v5748 = vpack.c.b16 %v5388, %v5380
    %v5749 = vpack.c.b16 %v5389, %v5381
    %v5750 = vpack.c.b16 %v5398, %v5390
    %v5751 = vpack.c.b16 %v5399, %v5391
    %v5752 = vpack.c.b16 %v5400, %v5392
    %v5753 = vpack.c.b16 %v5401, %v5393
    %v5754 = vpack.c.b16 %v5402, %v5394
    %v5755 = vpack.c.b16 %v5403, %v5395
    %v5756 = vpack.c.b16 %v5404, %v5396
    %v5757 = vpack.c.b16 %v5405, %v5397
    %v5758 = vpack.c.b16 %v5414, %v5406
    %v5759 = vpack.c.b16 %v5415, %v5407
    %v5760 = vpack.c.b16 %v5416, %v5408
    %v5761 = vpack.c.b16 %v5417, %v5409
    %v5762 = vpack.c.b16 %v5418, %v5410
    %v5763 = vpack.c.b16 %v5419, %v5411
    %v5764 = vpack.c.b16 %v5420, %v5412
    %v5765 = vpack.c.b16 %v5421, %v5413
    %v5766 = vpack.c.b16 %v5430, %v5422
    %v5767 = vpack.c.b16 %v5431, %v5423
    %v5768 = vpack.c.b16 %v5432, %v5424
    %v5769 = vpack.c.b16 %v5433, %v5425
    %v5770 = vpack.c.b16 %v5434, %v5426
    %v5771 = vpack.c.b16 %v5435, %v5427
    %v5772 = vpack.c.b16 %v5436, %v5428
    %v5773 = vpack.c.b16 %v5437, %v5429
    %v5774 = vpack.c.b16 %v5446, %v5438
    %v5775 = vpack.c.b16 %v5447, %v5439
    %v5776 = vpack.c.b16 %v5448, %v5440
    %v5777 = vpack.c.b16 %v5449, %v5441
    %v5778 = vpack.c.b16 %v5450, %v5442
    %v5779 = vpack.c.b16 %v5451, %v5443
    %v5780 = vpack.c.b16 %v5452, %v5444
    %v5781 = vpack.c.b16 %v5453, %v5445
    %v5782 = vpack.c.b16 %v5462, %v5454
    %v5783 = vpack.c.b16 %v5463, %v5455
    %v5784 = vpack.c.b16 %v5464, %v5456
    %v5785 = vpack.c.b16 %v5465, %v5457
    %v5786 = vpack.c.b16 %v5466, %v5458
    %v5787 = vpack.c.b16 %v5467, %v5459
    %v5788 = vpack.c.b16 %v5468, %v5460
    %v5789 = vpack.c.b16 %v5469, %v5461
    %v5790 = vpack.c.b16 %v5478, %v5470
    %v5791 = vpack.c.b16 %v5479, %v5471
    %v5792 = vpack.c.b16 %v5480, %v5472
    %v5793 = vpack.c.b16 %v5481, %v5473
    %v5794 = vpack.c.b16 %v5482, %v5474
    %v5795 = vpack.c.b16 %v5483, %v5475
    %v5796 = vpack.c.b16 %v5484, %v5476
    %v5797 = vpack.c.b16 %v5485, %v5477
    %v5798 = vpack.c.b16 %v5494, %v5486
    %v5799 = vpack.c.b16 %v5495, %v5487
    %v5800 = vpack.c.b16 %v5496, %v5488
    %v5801 = vpack.c.b16 %v5497, %v5489
    %v5802 = vpack.c.b16 %v5498, %v5490
    %v5803 = vpack.c.b16 %v5499, %v5491
    %v5804 = vpack.c.b16 %v5500, %v5492
    %v5805 = vpack.c.b16 %v5501, %v5493
    %v5806 = vpack.c.b16 %v5510, %v5502
    %v5807 = vpack.c.b16 %v5511, %v5503
    %v5808 = vpack.c.b16 %v5512, %v5504
    %v5809 = vpack.c.b16 %v5513, %v5505
    %v5810 = vpack.c.b16 %v5514, %v5506
    %v5811 = vpack.c.b16 %v5515, %v5507
    %v5812 = vpack.c.b16 %v5516, %v5508
    %v5813 = vpack.c.b16 %v5517, %v5509
    %v5814 = vpack.c.b16 %v5526, %v5518
    %v5815 = vpack.c.b16 %v5527, %v5519
    %v5816 = vpack.c.b16 %v5528, %v5520
    %v5817 = vpack.c.b16 %v5529, %v5521
    %v5818 = vpack.c.b16 %v5530, %v5522
    %v5819 = vpack.c.b16 %v5531, %v5523
    %v5820 = vpack.c.b16 %v5532, %v5524
    %v5821 = vpack.c.b16 %v5533, %v5525
    %v5822 = vpack.c.b16 %v5542, %v5534
    %v5823 = vpack.c.b16 %v5543, %v5535
    %v5824 = vpack.c.b16 %v5544, %v5536
    %v5825 = vpack.c.b16 %v5545, %v5537
    %v5826 = vpack.c.b16 %v5546, %v5538
    %v5827 = vpack.c.b16 %v5547, %v5539
    %v5828 = vpack.c.b16 %v5548, %v5540
    %v5829 = vpack.c.b16 %v5549, %v5541
    %v5830 = vpack.c.b16 %v5558, %v5550
    %v5831 = vpack.c.b16 %v5559, %v5551
    %v5832 = vpack.c.b16 %v5560, %v5552
    %v5833 = vpack.c.b16 %v5561, %v5553
    %v5834 = vpack.c.b16 %v5562, %v5554
    %v5835 = vpack.c.b16 %v5563, %v5555
    %v5836 = vpack.c.b16 %v5564, %v5556
    %v5837 = vpack.c.b16 %v5565, %v5557
    %v5838 = vpack.c.b16 %v5574, %v5566
    %v5839 = vpack.c.b16 %v5575, %v5567
    %v5840 = vpack.c.b16 %v5576, %v5568
    %v5841 = vpack.c.b16 %v5577, %v5569
    %v5842 = vpack.c.b16 %v5578, %v5570
    %v5843 = vpack.c.b16 %v5579, %v5571
    %v5844 = vpack.c.b16 %v5580, %v5572
    %v5845 = vpack.c.b16 %v5581, %v5573
    %v5846 = vpack.c.b16 %v5590, %v5582
    %v5847 = vpack.c.b16 %v5591, %v5583
    %v5848 = vpack.c.b16 %v5592, %v5584
    %v5849 = vpack.c.b16 %v5593, %v5585
    %v5850 = vpack.c.b16 %v5594, %v5586
    %v5851 = vpack.c.b16 %v5595, %v5587
    %v5852 = vpack.c.b16 %v5596, %v5588
    %v5853 = vpack.c.b16 %v5597, %v5589
    %6110 = vmatprep.subr.bf16.mxu0 %v5599
    %6111 = vmatpush1.bf16.msra.mxu0 %v5598
    %6112 = vmatprep.subr.bf16.mxu0 %v5607
    %6113 = vmatpush1.bf16.msra.mxu0 %v5606
    %6114 = vmatprep.subr.bf16.mxu0 %v5615
    %6115 = vmatpush1.bf16.msra.mxu0 %v5614
    %6116 = vmatprep.subr.bf16.mxu0 %v5623
    %6117 = vmatpush1.bf16.msra.mxu0 %v5622
    %6118 = vmatprep.subr.bf16.mxu0 %v5631
    %6119 = vmatpush1.bf16.msra.mxu0 %v5630
    %6120 = vmatprep.subr.bf16.mxu0 %v5639
    %6121 = vmatpush1.bf16.msra.mxu0 %v5638
    %6122 = vmatprep.subr.bf16.mxu0 %v5647
    %6123 = vmatpush1.bf16.msra.mxu0 %v5646
    %6124 = vmatprep.subr.bf16.mxu0 %v5655
    %6125 = vmatpush1.bf16.msra.mxu0 %v5654
    %6126 = vmatprep.subr.bf16.mxu0 %v5663
    %6127 = vmatpush1.bf16.msra.mxu0 %v5662
    %6128 = vmatprep.subr.bf16.mxu0 %v5671
    %6129 = vmatpush1.bf16.msra.mxu0 %v5670
    %6130 = vmatprep.subr.bf16.mxu0 %v5679
    %6131 = vmatpush1.bf16.msra.mxu0 %v5678
    %6132 = vmatprep.subr.bf16.mxu0 %v5687
    %6133 = vmatpush1.bf16.msra.mxu0 %v5686
    %6134 = vmatprep.subr.bf16.mxu0 %v5695
    %6135 = vmatpush1.bf16.msra.mxu0 %v5694
    %6136 = vmatprep.subr.bf16.mxu0 %v5703
    %6137 = vmatpush1.bf16.msra.mxu0 %v5702
    %6138 = vmatprep.subr.bf16.mxu0 %v5711
    %6139 = vmatpush1.bf16.msra.mxu0 %v5710
    %6140 = vmatprep.subr.bf16.mxu0 %v5719
    %6141 = vmatpush1.bf16.msra.mxu0 %v5718
    %6142 = vmatprep.mubr.bf16.mxu0 %v4751
    %6143 = vmatmul.mubr.bf16.gmra.mrb[0].mxu0 %v4750
    %v6144 = vpop.f32.mrb[0].mxu0
    %v6145 = vadd.f32 %v4801, %v6144
    %v6146 = vpop.f32.mrb[0].mxu0
    %v6147 = vadd.f32 %v4805, %v6146
    %v6148 = vpop.f32.mrb[0].mxu0
    %v6149 = vpop.f32.mrb[0].mxu0
    %6150 = vdwg.mxu0
    %6151 = vmatprep.subr.bf16.mxu0 %v5727
    %6152 = vmatpush1.bf16.msra.mxu0 %v5726
    %6153 = vmatprep.subr.bf16.mxu0 %v5735
    %6154 = vmatpush1.bf16.msra.mxu0 %v5734
    %6155 = vmatprep.subr.bf16.mxu0 %v5743
    %6156 = vmatpush1.bf16.msra.mxu0 %v5742
    %6157 = vmatprep.subr.bf16.mxu0 %v5751
    %6158 = vmatpush1.bf16.msra.mxu0 %v5750
    %6159 = vmatprep.subr.bf16.mxu0 %v5759
    %6160 = vmatpush1.bf16.msra.mxu0 %v5758
    %6161 = vmatprep.subr.bf16.mxu0 %v5767
    %6162 = vmatpush1.bf16.msra.mxu0 %v5766
    %6163 = vmatprep.subr.bf16.mxu0 %v5775
    %6164 = vmatpush1.bf16.msra.mxu0 %v5774
    %6165 = vmatprep.subr.bf16.mxu0 %v5783
    %6166 = vmatpush1.bf16.msra.mxu0 %v5782
    %6167 = vmatprep.subr.bf16.mxu0 %v5791
    %6168 = vmatpush1.bf16.msra.mxu0 %v5790
    %6169 = vmatprep.subr.bf16.mxu0 %v5799
    %6170 = vmatpush1.bf16.msra.mxu0 %v5798
    %6171 = vmatprep.subr.bf16.mxu0 %v5807
    %6172 = vmatpush1.bf16.msra.mxu0 %v5806
    %6173 = vmatprep.subr.bf16.mxu0 %v5815
    %6174 = vmatpush1.bf16.msra.mxu0 %v5814
    %6175 = vmatprep.subr.bf16.mxu0 %v5823
    %6176 = vmatpush1.bf16.msra.mxu0 %v5822
    %6177 = vmatprep.subr.bf16.mxu0 %v5831
    %6178 = vmatpush1.bf16.msra.mxu0 %v5830
    %6179 = vmatprep.subr.bf16.mxu0 %v5839
    %6180 = vmatpush1.bf16.msra.mxu0 %v5838
    %6181 = vmatprep.subr.bf16.mxu0 %v5847
    %6182 = vmatpush1.bf16.msra.mxu0 %v5846
    %6183 = vmatprep.mubr.bf16.mxu0 %v4753
    %6184 = vmatmul.mubr.bf16.gmra.mrb[0].mxu0 %v4752
    %v6185 = vpop.f32.mrb[0].mxu0
    %v6186 = vadd.f32 %v6145, %v6185
    %v6187 = vpop.f32.mrb[0].mxu0
    %v6188 = vadd.f32 %v6147, %v6187
    %v6189 = vpop.f32.mrb[0].mxu0
    %v6190 = vpop.f32.mrb[0].mxu0
    %6191 = vdwg.mxu0
    %6192 = vmatprep.subr.bf16.mxu0 %v5601
    %6193 = vmatpush1.bf16.msra.mxu0 %v5600
    %6194 = vmatprep.subr.bf16.mxu0 %v5609
    %6195 = vmatpush1.bf16.msra.mxu0 %v5608
    %6196 = vmatprep.subr.bf16.mxu0 %v5617
    %6197 = vmatpush1.bf16.msra.mxu0 %v5616
    %6198 = vmatprep.subr.bf16.mxu0 %v5625
    %6199 = vmatpush1.bf16.msra.mxu0 %v5624
    %6200 = vmatprep.subr.bf16.mxu0 %v5633
    %6201 = vmatpush1.bf16.msra.mxu0 %v5632
    %6202 = vmatprep.subr.bf16.mxu0 %v5641
    %6203 = vmatpush1.bf16.msra.mxu0 %v5640
    %6204 = vmatprep.subr.bf16.mxu0 %v5649
    %6205 = vmatpush1.bf16.msra.mxu0 %v5648
    %6206 = vmatprep.subr.bf16.mxu0 %v5657
    %6207 = vmatpush1.bf16.msra.mxu0 %v5656
    %6208 = vmatprep.subr.bf16.mxu0 %v5665
    %6209 = vmatpush1.bf16.msra.mxu0 %v5664
    %6210 = vmatprep.subr.bf16.mxu0 %v5673
    %6211 = vmatpush1.bf16.msra.mxu0 %v5672
    %6212 = vmatprep.subr.bf16.mxu0 %v5681
    %6213 = vmatpush1.bf16.msra.mxu0 %v5680
    %6214 = vmatprep.subr.bf16.mxu0 %v5689
    %6215 = vmatpush1.bf16.msra.mxu0 %v5688
    %6216 = vmatprep.subr.bf16.mxu0 %v5697
    %6217 = vmatpush1.bf16.msra.mxu0 %v5696
    %6218 = vmatprep.subr.bf16.mxu0 %v5705
    %6219 = vmatpush1.bf16.msra.mxu0 %v5704
    %6220 = vmatprep.subr.bf16.mxu0 %v5713
    %6221 = vmatpush1.bf16.msra.mxu0 %v5712
    %6222 = vmatprep.subr.bf16.mxu0 %v5721
    %6223 = vmatpush1.bf16.msra.mxu0 %v5720
    %6224 = vmatprep.mubr.bf16.mxu0 %v4751
    %6225 = vmatmul.mubr.bf16.gmra.mrb[0].mxu0 %v4750
    %v6226 = vpop.f32.mrb[0].mxu0
    %v6227 = vadd.f32 %v4809, %v6226
    %v6228 = vpop.f32.mrb[0].mxu0
    %v6229 = vadd.f32 %v4813, %v6228
    %v6230 = vpop.f32.mrb[0].mxu0
    %v6231 = vpop.f32.mrb[0].mxu0
    %6232 = vdwg.mxu0
    %6233 = vmatprep.subr.bf16.mxu0 %v5729
    %6234 = vmatpush1.bf16.msra.mxu0 %v5728
    %6235 = vmatprep.subr.bf16.mxu0 %v5737
    %6236 = vmatpush1.bf16.msra.mxu0 %v5736
    %6237 = vmatprep.subr.bf16.mxu0 %v5745
    %6238 = vmatpush1.bf16.msra.mxu0 %v5744
    %6239 = vmatprep.subr.bf16.mxu0 %v5753
    %6240 = vmatpush1.bf16.msra.mxu0 %v5752
    %6241 = vmatprep.subr.bf16.mxu0 %v5761
    %6242 = vmatpush1.bf16.msra.mxu0 %v5760
    %6243 = vmatprep.subr.bf16.mxu0 %v5769
    %6244 = vmatpush1.bf16.msra.mxu0 %v5768
    %6245 = vmatprep.subr.bf16.mxu0 %v5777
    %6246 = vmatpush1.bf16.msra.mxu0 %v5776
    %6247 = vmatprep.subr.bf16.mxu0 %v5785
    %6248 = vmatpush1.bf16.msra.mxu0 %v5784
    %6249 = vmatprep.subr.bf16.mxu0 %v5793
    %6250 = vmatpush1.bf16.msra.mxu0 %v5792
    %6251 = vmatprep.subr.bf16.mxu0 %v5801
    %6252 = vmatpush1.bf16.msra.mxu0 %v5800
    %6253 = vmatprep.subr.bf16.mxu0 %v5809
    %6254 = vmatpush1.bf16.msra.mxu0 %v5808
    %6255 = vmatprep.subr.bf16.mxu0 %v5817
    %6256 = vmatpush1.bf16.msra.mxu0 %v5816
    %6257 = vmatprep.subr.bf16.mxu0 %v5825
    %6258 = vmatpush1.bf16.msra.mxu0 %v5824
    %6259 = vmatprep.subr.bf16.mxu0 %v5833
    %6260 = vmatpush1.bf16.msra.mxu0 %v5832
    %6261 = vmatprep.subr.bf16.mxu0 %v5841
    %6262 = vmatpush1.bf16.msra.mxu0 %v5840
    %6263 = vmatprep.subr.bf16.mxu0 %v5849
    %6264 = vmatpush1.bf16.msra.mxu0 %v5848
    %6265 = vmatprep.mubr.bf16.mxu0 %v4753
    %6266 = vmatmul.mubr.bf16.gmra.mrb[0].mxu0 %v4752
    %v6267 = vpop.f32.mrb[0].mxu0
    %v6268 = vadd.f32 %v6227, %v6267
    %v6269 = vpop.f32.mrb[0].mxu0
    %v6270 = vadd.f32 %v6229, %v6269
    %v6271 = vpop.f32.mrb[0].mxu0
    %v6272 = vpop.f32.mrb[0].mxu0
    %6273 = vdwg.mxu0
    %6274 = vmatprep.subr.bf16.mxu0 %v5603
    %6275 = vmatpush1.bf16.msra.mxu0 %v5602
    %6276 = vmatprep.subr.bf16.mxu0 %v5611
    %6277 = vmatpush1.bf16.msra.mxu0 %v5610
    %6278 = vmatprep.subr.bf16.mxu0 %v5619
    %6279 = vmatpush1.bf16.msra.mxu0 %v5618
    %6280 = vmatprep.subr.bf16.mxu0 %v5627
    %6281 = vmatpush1.bf16.msra.mxu0 %v5626
    %6282 = vmatprep.subr.bf16.mxu0 %v5635
    %6283 = vmatpush1.bf16.msra.mxu0 %v5634
    %6284 = vmatprep.subr.bf16.mxu0 %v5643
    %6285 = vmatpush1.bf16.msra.mxu0 %v5642
    %6286 = vmatprep.subr.bf16.mxu0 %v5651
    %6287 = vmatpush1.bf16.msra.mxu0 %v5650
    %6288 = vmatprep.subr.bf16.mxu0 %v5659
    %6289 = vmatpush1.bf16.msra.mxu0 %v5658
    %6290 = vmatprep.subr.bf16.mxu0 %v5667
    %6291 = vmatpush1.bf16.msra.mxu0 %v5666
    %6292 = vmatprep.subr.bf16.mxu0 %v5675
    %6293 = vmatpush1.bf16.msra.mxu0 %v5674
    %6294 = vmatprep.subr.bf16.mxu0 %v5683
    %6295 = vmatpush1.bf16.msra.mxu0 %v5682
    %6296 = vmatprep.subr.bf16.mxu0 %v5691
    %6297 = vmatpush1.bf16.msra.mxu0 %v5690
    %6298 = vmatprep.subr.bf16.mxu0 %v5699
    %6299 = vmatpush1.bf16.msra.mxu0 %v5698
    %6300 = vmatprep.subr.bf16.mxu0 %v5707
    %6301 = vmatpush1.bf16.msra.mxu0 %v5706
    %6302 = vmatprep.subr.bf16.mxu0 %v5715
    %6303 = vmatpush1.bf16.msra.mxu0 %v5714
    %6304 = vmatprep.subr.bf16.mxu0 %v5723
    %6305 = vmatpush1.bf16.msra.mxu0 %v5722
    %6306 = vmatprep.mubr.bf16.mxu0 %v4751
    %6307 = vmatmul.mubr.bf16.gmra.mrb[0].mxu0 %v4750
    %v6308 = vpop.f32.mrb[0].mxu0
    %v6309 = vadd.f32 %v4817, %v6308
    %v6310 = vpop.f32.mrb[0].mxu0
    %v6311 = vadd.f32 %v4821, %v6310
    %v6312 = vpop.f32.mrb[0].mxu0
    %v6313 = vpop.f32.mrb[0].mxu0
    %6314 = vdwg.mxu0
    %6315 = vmatprep.subr.bf16.mxu0 %v5731
    %6316 = vmatpush1.bf16.msra.mxu0 %v5730
    %6317 = vmatprep.subr.bf16.mxu0 %v5739
    %6318 = vmatpush1.bf16.msra.mxu0 %v5738
    %6319 = vmatprep.subr.bf16.mxu0 %v5747
    %6320 = vmatpush1.bf16.msra.mxu0 %v5746
    %6321 = vmatprep.subr.bf16.mxu0 %v5755
    %6322 = vmatpush1.bf16.msra.mxu0 %v5754
    %6323 = vmatprep.subr.bf16.mxu0 %v5763
    %6324 = vmatpush1.bf16.msra.mxu0 %v5762
    %6325 = vmatprep.subr.bf16.mxu0 %v5771
    %6326 = vmatpush1.bf16.msra.mxu0 %v5770
    %6327 = vmatprep.subr.bf16.mxu0 %v5779
    %6328 = vmatpush1.bf16.msra.mxu0 %v5778
    %6329 = vmatprep.subr.bf16.mxu0 %v5787
    %6330 = vmatpush1.bf16.msra.mxu0 %v5786
    %6331 = vmatprep.subr.bf16.mxu0 %v5795
    %6332 = vmatpush1.bf16.msra.mxu0 %v5794
    %6333 = vmatprep.subr.bf16.mxu0 %v5803
    %6334 = vmatpush1.bf16.msra.mxu0 %v5802
    %6335 = vmatprep.subr.bf16.mxu0 %v5811
    %6336 = vmatpush1.bf16.msra.mxu0 %v5810
    %6337 = vmatprep.subr.bf16.mxu0 %v5819
    %6338 = vmatpush1.bf16.msra.mxu0 %v5818
    %6339 = vmatprep.subr.bf16.mxu0 %v5827
    %6340 = vmatpush1.bf16.msra.mxu0 %v5826
    %6341 = vmatprep.subr.bf16.mxu0 %v5835
    %6342 = vmatpush1.bf16.msra.mxu0 %v5834
    %6343 = vmatprep.subr.bf16.mxu0 %v5843
    %6344 = vmatpush1.bf16.msra.mxu0 %v5842
    %6345 = vmatprep.subr.bf16.mxu0 %v5851
    %6346 = vmatpush1.bf16.msra.mxu0 %v5850
    %6347 = vmatprep.mubr.bf16.mxu0 %v4753
    %6348 = vmatmul.mubr.bf16.gmra.mrb[0].mxu0 %v4752
    %v6349 = vpop.f32.mrb[0].mxu0
    %v6350 = vadd.f32 %v6309, %v6349
    %v6351 = vpop.f32.mrb[0].mxu0
    %v6352 = vadd.f32 %v6311, %v6351
    %v6353 = vpop.f32.mrb[0].mxu0
    %v6354 = vpop.f32.mrb[0].mxu0
    %6355 = vdwg.mxu0
    %6356 = vmatprep.subr.bf16.mxu0 %v5605
    %6357 = vmatpush1.bf16.msra.mxu0 %v5604
    %6358 = vmatprep.subr.bf16.mxu0 %v5613
    %6359 = vmatpush1.bf16.msra.mxu0 %v5612
    %6360 = vmatprep.subr.bf16.mxu0 %v5621
    %6361 = vmatpush1.bf16.msra.mxu0 %v5620
    %6362 = vmatprep.subr.bf16.mxu0 %v5629
    %6363 = vmatpush1.bf16.msra.mxu0 %v5628
    %6364 = vmatprep.subr.bf16.mxu0 %v5637
    %6365 = vmatpush1.bf16.msra.mxu0 %v5636
    %6366 = vmatprep.subr.bf16.mxu0 %v5645
    %6367 = vmatpush1.bf16.msra.mxu0 %v5644
    %6368 = vmatprep.subr.bf16.mxu0 %v5653
    %6369 = vmatpush1.bf16.msra.mxu0 %v5652
    %6370 = vmatprep.subr.bf16.mxu0 %v5661
    %6371 = vmatpush1.bf16.msra.mxu0 %v5660
    %6372 = vmatprep.subr.bf16.mxu0 %v5669
    %6373 = vmatpush1.bf16.msra.mxu0 %v5668
    %6374 = vmatprep.subr.bf16.mxu0 %v5677
    %6375 = vmatpush1.bf16.msra.mxu0 %v5676
    %6376 = vmatprep.subr.bf16.mxu0 %v5685
    %6377 = vmatpush1.bf16.msra.mxu0 %v5684
    %6378 = vmatprep.subr.bf16.mxu0 %v5693
    %6379 = vmatpush1.bf16.msra.mxu0 %v5692
    %6380 = vmatprep.subr.bf16.mxu0 %v5701
    %6381 = vmatpush1.bf16.msra.mxu0 %v5700
    %6382 = vmatprep.subr.bf16.mxu0 %v5709
    %6383 = vmatpush1.bf16.msra.mxu0 %v5708
    %6384 = vmatprep.subr.bf16.mxu0 %v5717
    %6385 = vmatpush1.bf16.msra.mxu0 %v5716
    %6386 = vmatprep.subr.bf16.mxu0 %v5725
    %6387 = vmatpush1.bf16.msra.mxu0 %v5724
    %6388 = vmatprep.mubr.bf16.mxu0 %v4751
    %6389 = vmatmul.mubr.bf16.gmra.mrb[0].mxu0 %v4750
    %v6390 = vpop.f32.mrb[0].mxu0
    %v6391 = vadd.f32 %v4825, %v6390
    %v6392 = vpop.f32.mrb[0].mxu0
    %v6393 = vadd.f32 %v4829, %v6392
    %v6394 = vpop.f32.mrb[0].mxu0
    %v6395 = vpop.f32.mrb[0].mxu0
    %6396 = vdwg.mxu0
    %6397 = vmatprep.subr.bf16.mxu0 %v5733
    %6398 = vmatpush1.bf16.msra.mxu0 %v5732
    %6399 = vmatprep.subr.bf16.mxu0 %v5741
    %6400 = vmatpush1.bf16.msra.mxu0 %v5740
    %6401 = vmatprep.subr.bf16.mxu0 %v5749
    %6402 = vmatpush1.bf16.msra.mxu0 %v5748
    %6403 = vmatprep.subr.bf16.mxu0 %v5757
    %6404 = vmatpush1.bf16.msra.mxu0 %v5756
    %6405 = vmatprep.subr.bf16.mxu0 %v5765
    %6406 = vmatpush1.bf16.msra.mxu0 %v5764
    %6407 = vmatprep.subr.bf16.mxu0 %v5773
    %6408 = vmatpush1.bf16.msra.mxu0 %v5772
    %6409 = vmatprep.subr.bf16.mxu0 %v5781
    %6410 = vmatpush1.bf16.msra.mxu0 %v5780
    %6411 = vmatprep.subr.bf16.mxu0 %v5789
    %6412 = vmatpush1.bf16.msra.mxu0 %v5788
    %6413 = vmatprep.subr.bf16.mxu0 %v5797
    %6414 = vmatpush1.bf16.msra.mxu0 %v5796
    %6415 = vmatprep.subr.bf16.mxu0 %v5805
    %6416 = vmatpush1.bf16.msra.mxu0 %v5804
    %6417 = vmatprep.subr.bf16.mxu0 %v5813
    %6418 = vmatpush1.bf16.msra.mxu0 %v5812
    %6419 = vmatprep.subr.bf16.mxu0 %v5821
    %6420 = vmatpush1.bf16.msra.mxu0 %v5820
    %6421 = vmatprep.subr.bf16.mxu0 %v5829
    %6422 = vmatpush1.bf16.msra.mxu0 %v5828
    %6423 = vmatprep.subr.bf16.mxu0 %v5837
    %6424 = vmatpush1.bf16.msra.mxu0 %v5836
    %6425 = vmatprep.subr.bf16.mxu0 %v5845
    %6426 = vmatpush1.bf16.msra.mxu0 %v5844
    %6427 = vmatprep.subr.bf16.mxu0 %v5853
    %6428 = vmatpush1.bf16.msra.mxu0 %v5852
    %6429 = vmatprep.mubr.bf16.mxu0 %v4753
    %6430 = vmatmul.mubr.bf16.gmra.mrb[0].mxu0 %v4752
    %v6431 = vpop.f32.mrb[0].mxu0
    %v6432 = vadd.f32 %v6391, %v6431
    %v6433 = vpop.f32.mrb[0].mxu0
    %v6434 = vadd.f32 %v6393, %v6433
    %v6435 = vpop.f32.mrb[0].mxu0
    %v6436 = vpop.f32.mrb[0].mxu0
    %6437 = vdwg.mxu0
    %v6438 = vrot.slane %v6186, 4
    %v6439 = vadd.f32 %v6186, %v6438
    %v6440 = vrot.slane %v6439, 2
    %v6441 = vadd.f32 %v6439, %v6440
    %v6442 = vrot.slane %v6441, 1
    %v6443 = vadd.f32 %v6441, %v6442
    %v6444 = vrot.slane %v6188, 4
    %v6445 = vadd.f32 %v6188, %v6444
    %v6446 = vrot.slane %v6445, 2
    %v6447 = vadd.f32 %v6445, %v6446
    %v6448 = vrot.slane %v6447, 1
    %v6449 = vadd.f32 %v6447, %v6448
    %v6450 = vrot.slane %v6268, 4
    %v6451 = vadd.f32 %v6268, %v6450
    %v6452 = vrot.slane %v6451, 2
    %v6453 = vadd.f32 %v6451, %v6452
    %v6454 = vrot.slane %v6453, 1
    %v6455 = vadd.f32 %v6453, %v6454
    %v6456 = vrot.slane %v6270, 4
    %v6457 = vadd.f32 %v6270, %v6456
    %v6458 = vrot.slane %v6457, 2
    %v6459 = vadd.f32 %v6457, %v6458
    %v6460 = vrot.slane %v6459, 1
    %v6461 = vadd.f32 %v6459, %v6460
    %v6462 = vrot.slane %v6350, 4
    %v6463 = vadd.f32 %v6350, %v6462
    %v6464 = vrot.slane %v6463, 2
    %v6465 = vadd.f32 %v6463, %v6464
    %v6466 = vrot.slane %v6465, 1
    %v6467 = vadd.f32 %v6465, %v6466
    %v6468 = vrot.slane %v6352, 4
    %v6469 = vadd.f32 %v6352, %v6468
    %v6470 = vrot.slane %v6469, 2
    %v6471 = vadd.f32 %v6469, %v6470
    %v6472 = vrot.slane %v6471, 1
    %v6473 = vadd.f32 %v6471, %v6472
    %v6474 = vrot.slane %v6432, 4
    %v6475 = vadd.f32 %v6432, %v6474
    %v6476 = vrot.slane %v6475, 2
    %v6477 = vadd.f32 %v6475, %v6476
    %v6478 = vrot.slane %v6477, 1
    %v6479 = vadd.f32 %v6477, %v6478
    %v6480 = vrot.slane %v6434, 4
    %v6481 = vadd.f32 %v6434, %v6480
    %v6482 = vrot.slane %v6481, 2
    %v6483 = vadd.f32 %v6481, %v6482
    %v6484 = vrot.slane %v6483, 1
    %v6485 = vadd.f32 %v6483, %v6484
    %v6486 = vmul.f32 %v6443, %v3419
    %v6487 = vmul.f32 %v6449, %v3419
    %v6488 = vmul.f32 %v6455, %v3419
    %v6489 = vmul.f32 %v6461, %v3419
    %v6490 = vmul.f32 %v6467, %v3419
    %v6491 = vmul.f32 %v6473, %v3419
    %v6492 = vmul.f32 %v6479, %v3419
    %v6493 = vmul.f32 %v6485, %v3419
    %v6494 = vsub.f32 %v6186, %v6486
    %v6495 = vsub.f32 %v6188, %v6487
    %v6496 = vsub.f32 %v6268, %v6488
    %v6497 = vsub.f32 %v6270, %v6489
    %v6498 = vsub.f32 %v6350, %v6490
    %v6499 = vsub.f32 %v6352, %v6491
    %v6500 = vsub.f32 %v6432, %v6492
    %v6501 = vsub.f32 %v6434, %v6493
    %v6502 = vmul.f32 %v6494, %v6494
    %v6503 = vmul.f32 %v6495, %v6495
    %v6504 = vmul.f32 %v6496, %v6496
    %v6505 = vmul.f32 %v6497, %v6497
    %v6506 = vmul.f32 %v6498, %v6498
    %v6507 = vmul.f32 %v6499, %v6499
    %v6508 = vmul.f32 %v6500, %v6500
    %v6509 = vmul.f32 %v6501, %v6501
    %v6510 = vrot.slane %v6502, 4
    %v6511 = vadd.f32 %v6502, %v6510
    %v6512 = vrot.slane %v6511, 2
    %v6513 = vadd.f32 %v6511, %v6512
    %v6514 = vrot.slane %v6513, 1
    %v6515 = vadd.f32 %v6513, %v6514
    %v6516 = vrot.slane %v6503, 4
    %v6517 = vadd.f32 %v6503, %v6516
    %v6518 = vrot.slane %v6517, 2
    %v6519 = vadd.f32 %v6517, %v6518
    %v6520 = vrot.slane %v6519, 1
    %v6521 = vadd.f32 %v6519, %v6520
    %v6522 = vrot.slane %v6504, 4
    %v6523 = vadd.f32 %v6504, %v6522
    %v6524 = vrot.slane %v6523, 2
    %v6525 = vadd.f32 %v6523, %v6524
    %v6526 = vrot.slane %v6525, 1
    %v6527 = vadd.f32 %v6525, %v6526
    %v6528 = vrot.slane %v6505, 4
    %v6529 = vadd.f32 %v6505, %v6528
    %v6530 = vrot.slane %v6529, 2
    %v6531 = vadd.f32 %v6529, %v6530
    %v6532 = vrot.slane %v6531, 1
    %v6533 = vadd.f32 %v6531, %v6532
    %v6534 = vrot.slane %v6506, 4
    %v6535 = vadd.f32 %v6506, %v6534
    %v6536 = vrot.slane %v6535, 2
    %v6537 = vadd.f32 %v6535, %v6536
    %v6538 = vrot.slane %v6537, 1
    %v6539 = vadd.f32 %v6537, %v6538
    %v6540 = vrot.slane %v6507, 4
    %v6541 = vadd.f32 %v6507, %v6540
    %v6542 = vrot.slane %v6541, 2
    %v6543 = vadd.f32 %v6541, %v6542
    %v6544 = vrot.slane %v6543, 1
    %v6545 = vadd.f32 %v6543, %v6544
    %v6546 = vrot.slane %v6508, 4
    %v6547 = vadd.f32 %v6508, %v6546
    %v6548 = vrot.slane %v6547, 2
    %v6549 = vadd.f32 %v6547, %v6548
    %v6550 = vrot.slane %v6549, 1
    %v6551 = vadd.f32 %v6549, %v6550
    %v6552 = vrot.slane %v6509, 4
    %v6553 = vadd.f32 %v6509, %v6552
    %v6554 = vrot.slane %v6553, 2
    %v6555 = vadd.f32 %v6553, %v6554
    %v6556 = vrot.slane %v6555, 1
    %v6557 = vadd.f32 %v6555, %v6556
    %v6558 = vmul.f32 %v6515, %v3419
    %v6559 = vmul.f32 %v6521, %v3419
    %v6560 = vmul.f32 %v6527, %v3419
    %v6561 = vmul.f32 %v6533, %v3419
    %v6562 = vmul.f32 %v6539, %v3419
    %v6563 = vmul.f32 %v6545, %v3419
    %v6564 = vmul.f32 %v6551, %v3419
    %v6565 = vmul.f32 %v6557, %v3419
    %v6566 = vadd.f32 %v6558, 1e-05
    %v6567 = vadd.f32 %v6559, 1e-05
    %v6568 = vadd.f32 %v6560, 1e-05
    %v6569 = vadd.f32 %v6561, 1e-05
    %v6570 = vadd.f32 %v6562, 1e-05
    %v6571 = vadd.f32 %v6563, 1e-05
    %v6572 = vadd.f32 %v6564, 1e-05
    %v6573 = vadd.f32 %v6565, 1e-05
    %v6574 = vrsqrt.pop %v6566
    %v6575 = vrsqrt.pop %v6567
    %v6576 = vrsqrt.pop %v6568
    %v6577 = vrsqrt.pop %v6569
    %v6578 = vrsqrt.pop %v6570
    %v6579 = vrsqrt.pop %v6571
    %v6580 = vrsqrt.pop %v6572
    %v6581 = vrsqrt.pop %v6573
    %v6582 = vmul.f32 %v6494, %v6574
    %v6583 = vmul.f32 %v6495, %v6575
    %v6584 = vmul.f32 %v6496, %v6576
    %v6585 = vmul.f32 %v6497, %v6577
    %v6586 = vmul.f32 %v6498, %v6578
    %v6587 = vmul.f32 %v6499, %v6579
    %v6588 = vmul.f32 %v6500, %v6580
    %v6589 = vmul.f32 %v6501, %v6581
    %v6590 = vlaneseq
    %v6591 = vshrl.u32 %v6590, 7
    %v6592 = vsub.s32 1, %v6591
    %v6593 = vrot.slane %v4746, %v6592
    %v6594 = vlaneseq
    %v6595 = vshrl.u32 %v6594, 7
    %v6596 = vsub.s32 5, %v6595
    %v6597 = vrot.slane %v4746, %v6596
    %v6598 = vlaneseq
    %v6599 = vshrl.u32 %v6598, 7
    %v6600 = vsub.s32 1, %v6599
    %v6601 = vrot.slane %v4747, %v6600
    %v6602 = vlaneseq
    %v6603 = vshrl.u32 %v6602, 7
    %v6604 = vsub.s32 5, %v6603
    %v6605 = vrot.slane %v4747, %v6604
    %v6606 = vlaneseq
    %v6607 = vshrl.u32 %v6606, 7
    %v6608 = vsub.s32 1, %v6607
    %v6609 = vrot.slane %v4748, %v6608
    %v6610 = vlaneseq
    %v6611 = vshrl.u32 %v6610, 7
    %v6612 = vsub.s32 5, %v6611
    %v6613 = vrot.slane %v4748, %v6612
    %v6614 = vlaneseq
    %v6615 = vshrl.u32 %v6614, 7
    %v6616 = vsub.s32 1, %v6615
    %v6617 = vrot.slane %v4749, %v6616
    %v6618 = vlaneseq
    %v6619 = vshrl.u32 %v6618, 7
    %v6620 = vsub.s32 5, %v6619
    %v6621 = vrot.slane %v4749, %v6620
    %v6630 = vlaneseq
    %v6631 = vshrl.u32 %v6630, 7
    %v6632 = vsub.s32 1, %v6631
    %v6633 = vrot.slane %v6593, %v6632
    %v6634 = vlaneseq
    %v6635 = vshrl.u32 %v6634, 7
    %v6636 = vsub.s32 1, %v6635
    %v6637 = vrot.slane %v6597, %v6636
    %v6638 = vlaneseq
    %v6639 = vshrl.u32 %v6638, 7
    %v6640 = vsub.s32 1, %v6639
    %v6641 = vrot.slane %v6601, %v6640
    %v6642 = vlaneseq
    %v6643 = vshrl.u32 %v6642, 7
    %v6644 = vsub.s32 1, %v6643
    %v6645 = vrot.slane %v6605, %v6644
    %v6646 = vlaneseq
    %v6647 = vshrl.u32 %v6646, 7
    %v6648 = vsub.s32 1, %v6647
    %v6649 = vrot.slane %v6609, %v6648
    %v6650 = vlaneseq
    %v6651 = vshrl.u32 %v6650, 7
    %v6652 = vsub.s32 1, %v6651
    %v6653 = vrot.slane %v6613, %v6652
    %v6654 = vlaneseq
    %v6655 = vshrl.u32 %v6654, 7
    %v6656 = vsub.s32 1, %v6655
    %v6657 = vrot.slane %v6617, %v6656
    %v6658 = vlaneseq
    %v6659 = vshrl.u32 %v6658, 7
    %v6660 = vsub.s32 1, %v6659
    %v6661 = vrot.slane %v6621, %v6660
    %v6662 = vmul.f32 %v6582, %v6633
    %v6663 = vmul.f32 %v6583, %v6637
    %v6664 = vmul.f32 %v6584, %v6641
    %v6665 = vmul.f32 %v6585, %v6645
    %v6666 = vmul.f32 %v6586, %v6649
    %v6667 = vmul.f32 %v6587, %v6653
    %v6668 = vmul.f32 %v6588, %v6657
    %v6669 = vmul.f32 %v6589, %v6661
    %v6670 = vlaneseq
    %v6671 = vshrl.u32 %v6670, 7
    %v6672 = vsub.s32 2, %v6671
    %v6673 = vrot.slane %v4746, %v6672
    %v6674 = vlaneseq
    %v6675 = vshrl.u32 %v6674, 7
    %v6676 = vsub.s32 6, %v6675
    %v6677 = vrot.slane %v4746, %v6676
    %v6678 = vlaneseq
    %v6679 = vshrl.u32 %v6678, 7
    %v6680 = vsub.s32 2, %v6679
    %v6681 = vrot.slane %v4747, %v6680
    %v6682 = vlaneseq
    %v6683 = vshrl.u32 %v6682, 7
    %v6684 = vsub.s32 6, %v6683
    %v6685 = vrot.slane %v4747, %v6684
    %v6686 = vlaneseq
    %v6687 = vshrl.u32 %v6686, 7
    %v6688 = vsub.s32 2, %v6687
    %v6689 = vrot.slane %v4748, %v6688
    %v6690 = vlaneseq
    %v6691 = vshrl.u32 %v6690, 7
    %v6692 = vsub.s32 6, %v6691
    %v6693 = vrot.slane %v4748, %v6692
    %v6694 = vlaneseq
    %v6695 = vshrl.u32 %v6694, 7
    %v6696 = vsub.s32 2, %v6695
    %v6697 = vrot.slane %v4749, %v6696
    %v6698 = vlaneseq
    %v6699 = vshrl.u32 %v6698, 7
    %v6700 = vsub.s32 6, %v6699
    %v6701 = vrot.slane %v4749, %v6700
    %v6710 = vlaneseq
    %v6711 = vshrl.u32 %v6710, 7
    %v6712 = vsub.s32 2, %v6711
    %v6713 = vrot.slane %v6673, %v6712
    %v6714 = vlaneseq
    %v6715 = vshrl.u32 %v6714, 7
    %v6716 = vsub.s32 2, %v6715
    %v6717 = vrot.slane %v6677, %v6716
    %v6718 = vlaneseq
    %v6719 = vshrl.u32 %v6718, 7
    %v6720 = vsub.s32 2, %v6719
    %v6721 = vrot.slane %v6681, %v6720
    %v6722 = vlaneseq
    %v6723 = vshrl.u32 %v6722, 7
    %v6724 = vsub.s32 2, %v6723
    %v6725 = vrot.slane %v6685, %v6724
    %v6726 = vlaneseq
    %v6727 = vshrl.u32 %v6726, 7
    %v6728 = vsub.s32 2, %v6727
    %v6729 = vrot.slane %v6689, %v6728
    %v6730 = vlaneseq
    %v6731 = vshrl.u32 %v6730, 7
    %v6732 = vsub.s32 2, %v6731
    %v6733 = vrot.slane %v6693, %v6732
    %v6734 = vlaneseq
    %v6735 = vshrl.u32 %v6734, 7
    %v6736 = vsub.s32 2, %v6735
    %v6737 = vrot.slane %v6697, %v6736
    %v6738 = vlaneseq
    %v6739 = vshrl.u32 %v6738, 7
    %v6740 = vsub.s32 2, %v6739
    %v6741 = vrot.slane %v6701, %v6740
    %v6742 = vadd.f32 %v6662, %v6713
    %v6743 = vadd.f32 %v6663, %v6717
    %v6744 = vadd.f32 %v6664, %v6721
    %v6745 = vadd.f32 %v6665, %v6725
    %v6746 = vadd.f32 %v6666, %v6729
    %v6747 = vadd.f32 %v6667, %v6733
    %v6748 = vadd.f32 %v6668, %v6737
    %v6749 = vadd.f32 %v6669, %v6741
    %v6750 = vmax.f32 %v6742, 0.0
    %v6751 = vmax.f32 %v6743, 0.0
    %v6752 = vmax.f32 %v6744, 0.0
    %v6753 = vmax.f32 %v6745, 0.0
    %v6754 = vmax.f32 %v6746, 0.0
    %v6755 = vmax.f32 %v6747, 0.0
    %v6756 = vmax.f32 %v6748, 0.0
    %v6757 = vmax.f32 %v6749, 0.0
    %v6758 = vld [vmem:[#allocation9] sm:$0xff]
    %v6759 = vld [vmem:[#allocation9 + $0x8] sm:$0xff]
    %v6760 = vld [vmem:[#allocation9 + $0x10] sm:$0xff]
    %v6761 = vld [vmem:[#allocation9 + $0x18] sm:$0xff]
    %v6762 = vld [vmem:[#allocation9 + $0x20] sm:$0xff]
    %v6763 = vld [vmem:[#allocation9 + $0x28] sm:$0xff]
    %v6764 = vld [vmem:[#allocation9 + $0x30] sm:$0xff]
    %v6765 = vld [vmem:[#allocation9 + $0x38] sm:$0xff]
    %v6766 = vld [vmem:[#allocation9 + $0x40] sm:$0xff]
    %v6767 = vld [vmem:[#allocation9 + $0x48] sm:$0xff]
    %v6768 = vld [vmem:[#allocation9 + $0x50] sm:$0xff]
    %v6769 = vld [vmem:[#allocation9 + $0x58] sm:$0xff]
    %v6770 = vld [vmem:[#allocation9 + $0x60] sm:$0xff]
    %v6771 = vld [vmem:[#allocation9 + $0x68] sm:$0xff]
    %v6772 = vld [vmem:[#allocation9 + $0x70] sm:$0xff]
    %v6773 = vld [vmem:[#allocation9 + $0x78] sm:$0xff]
    %v6774 = vld [vmem:[#allocation9 + $0x80] sm:$0xff]
    %v6775 = vld [vmem:[#allocation9 + $0x88] sm:$0xff]
    %v6776 = vld [vmem:[#allocation9 + $0x90] sm:$0xff]
    %v6777 = vld [vmem:[#allocation9 + $0x98] sm:$0xff]
    %v6778 = vld [vmem:[#allocation9 + $0xa0] sm:$0xff]
    %v6779 = vld [vmem:[#allocation9 + $0xa8] sm:$0xff]
    %v6780 = vld [vmem:[#allocation9 + $0xb0] sm:$0xff]
    %v6781 = vld [vmem:[#allocation9 + $0xb8] sm:$0xff]
    %v6782 = vld [vmem:[#allocation9 + $0xc0] sm:$0xff]
    %v6783 = vld [vmem:[#allocation9 + $0xc8] sm:$0xff]
    %v6784 = vld [vmem:[#allocation9 + $0xd0] sm:$0xff]
    %v6785 = vld [vmem:[#allocation9 + $0xd8] sm:$0xff]
    %v6786 = vld [vmem:[#allocation9 + $0xe0] sm:$0xff]
    %v6787 = vld [vmem:[#allocation9 + $0xe8] sm:$0xff]
    %v6788 = vld [vmem:[#allocation9 + $0xf0] sm:$0xff]
    %v6789 = vld [vmem:[#allocation9 + $0xf8] sm:$0xff]
    %v6790 = vld [vmem:[#allocation9 + $0x100] sm:$0xff]
    %v6791 = vld [vmem:[#allocation9 + $0x108] sm:$0xff]
    %v6792 = vld [vmem:[#allocation9 + $0x110] sm:$0xff]
    %v6793 = vld [vmem:[#allocation9 + $0x118] sm:$0xff]
    %v6794 = vld [vmem:[#allocation9 + $0x120] sm:$0xff]
    %v6795 = vld [vmem:[#allocation9 + $0x128] sm:$0xff]
    %v6796 = vld [vmem:[#allocation9 + $0x130] sm:$0xff]
    %v6797 = vld [vmem:[#allocation9 + $0x138] sm:$0xff]
    %v6798 = vld [vmem:[#allocation9 + $0x140] sm:$0xff]
    %v6799 = vld [vmem:[#allocation9 + $0x148] sm:$0xff]
    %v6800 = vld [vmem:[#allocation9 + $0x150] sm:$0xff]
    %v6801 = vld [vmem:[#allocation9 + $0x158] sm:$0xff]
    %v6802 = vld [vmem:[#allocation9 + $0x160] sm:$0xff]
    %v6803 = vld [vmem:[#allocation9 + $0x168] sm:$0xff]
    %v6804 = vld [vmem:[#allocation9 + $0x170] sm:$0xff]
    %v6805 = vld [vmem:[#allocation9 + $0x178] sm:$0xff]
    %v6806 = vld [vmem:[#allocation9 + $0x180] sm:$0xff]
    %v6807 = vld [vmem:[#allocation9 + $0x188] sm:$0xff]
    %v6808 = vld [vmem:[#allocation9 + $0x190] sm:$0xff]
    %v6809 = vld [vmem:[#allocation9 + $0x198] sm:$0xff]
    %v6810 = vld [vmem:[#allocation9 + $0x1a0] sm:$0xff]
    %v6811 = vld [vmem:[#allocation9 + $0x1a8] sm:$0xff]
    %v6812 = vld [vmem:[#allocation9 + $0x1b0] sm:$0xff]
    %v6813 = vld [vmem:[#allocation9 + $0x1b8] sm:$0xff]
    %v6814 = vld [vmem:[#allocation9 + $0x1c0] sm:$0xff]
    %v6815 = vld [vmem:[#allocation9 + $0x1c8] sm:$0xff]
    %v6816 = vld [vmem:[#allocation9 + $0x1d0] sm:$0xff]
    %v6817 = vld [vmem:[#allocation9 + $0x1d8] sm:$0xff]
    %v6818 = vld [vmem:[#allocation9 + $0x1e0] sm:$0xff]
    %v6819 = vld [vmem:[#allocation9 + $0x1e8] sm:$0xff]
    %v6820 = vld [vmem:[#allocation9 + $0x1f0] sm:$0xff]
    %v6821 = vld [vmem:[#allocation9 + $0x1f8] sm:$0xff]
    %v6822 = vld [vmem:[#allocation9 + $0x200] sm:$0xff]
    %v6823 = vld [vmem:[#allocation9 + $0x208] sm:$0xff]
    %v6824 = vld [vmem:[#allocation9 + $0x210] sm:$0xff]
    %v6825 = vld [vmem:[#allocation9 + $0x218] sm:$0xff]
    %v6826 = vld [vmem:[#allocation9 + $0x220] sm:$0xff]
    %v6827 = vld [vmem:[#allocation9 + $0x228] sm:$0xff]
    %v6828 = vld [vmem:[#allocation9 + $0x230] sm:$0xff]
    %v6829 = vld [vmem:[#allocation9 + $0x238] sm:$0xff]
    %v6830 = vld [vmem:[#allocation9 + $0x240] sm:$0xff]
    %v6831 = vld [vmem:[#allocation9 + $0x248] sm:$0xff]
    %v6832 = vld [vmem:[#allocation9 + $0x250] sm:$0xff]
    %v6833 = vld [vmem:[#allocation9 + $0x258] sm:$0xff]
    %v6834 = vld [vmem:[#allocation9 + $0x260] sm:$0xff]
    %v6835 = vld [vmem:[#allocation9 + $0x268] sm:$0xff]
    %v6836 = vld [vmem:[#allocation9 + $0x270] sm:$0xff]
    %v6837 = vld [vmem:[#allocation9 + $0x278] sm:$0xff]
    %v6838 = vld [vmem:[#allocation9 + $0x280] sm:$0xff]
    %v6839 = vld [vmem:[#allocation9 + $0x288] sm:$0xff]
    %v6840 = vld [vmem:[#allocation9 + $0x290] sm:$0xff]
    %v6841 = vld [vmem:[#allocation9 + $0x298] sm:$0xff]
    %v6842 = vld [vmem:[#allocation9 + $0x2a0] sm:$0xff]
    %v6843 = vld [vmem:[#allocation9 + $0x2a8] sm:$0xff]
    %v6844 = vld [vmem:[#allocation9 + $0x2b0] sm:$0xff]
    %v6845 = vld [vmem:[#allocation9 + $0x2b8] sm:$0xff]
    %v6846 = vld [vmem:[#allocation9 + $0x2c0] sm:$0xff]
    %v6847 = vld [vmem:[#allocation9 + $0x2c8] sm:$0xff]
    %v6848 = vld [vmem:[#allocation9 + $0x2d0] sm:$0xff]
    %v6849 = vld [vmem:[#allocation9 + $0x2d8] sm:$0xff]
    %v6850 = vld [vmem:[#allocation9 + $0x2e0] sm:$0xff]
    %v6851 = vld [vmem:[#allocation9 + $0x2e8] sm:$0xff]
    %v6852 = vld [vmem:[#allocation9 + $0x2f0] sm:$0xff]
    %v6853 = vld [vmem:[#allocation9 + $0x2f8] sm:$0xff]
    %v6854 = vld [vmem:[#allocation9 + $0x300] sm:$0xff]
    %v6855 = vld [vmem:[#allocation9 + $0x308] sm:$0xff]
    %v6856 = vld [vmem:[#allocation9 + $0x310] sm:$0xff]
    %v6857 = vld [vmem:[#allocation9 + $0x318] sm:$0xff]
    %v6858 = vld [vmem:[#allocation9 + $0x320] sm:$0xff]
    %v6859 = vld [vmem:[#allocation9 + $0x328] sm:$0xff]
    %v6860 = vld [vmem:[#allocation9 + $0x330] sm:$0xff]
    %v6861 = vld [vmem:[#allocation9 + $0x338] sm:$0xff]
    %v6862 = vld [vmem:[#allocation9 + $0x340] sm:$0xff]
    %v6863 = vld [vmem:[#allocation9 + $0x348] sm:$0xff]
    %v6864 = vld [vmem:[#allocation9 + $0x350] sm:$0xff]
    %v6865 = vld [vmem:[#allocation9 + $0x358] sm:$0xff]
    %v6866 = vld [vmem:[#allocation9 + $0x360] sm:$0xff]
    %v6867 = vld [vmem:[#allocation9 + $0x368] sm:$0xff]
    %v6868 = vld [vmem:[#allocation9 + $0x370] sm:$0xff]
    %v6869 = vld [vmem:[#allocation9 + $0x378] sm:$0xff]
    %v6870 = vld [vmem:[#allocation9 + $0x380] sm:$0xff]
    %v6871 = vld [vmem:[#allocation9 + $0x388] sm:$0xff]
    %v6872 = vld [vmem:[#allocation9 + $0x390] sm:$0xff]
    %v6873 = vld [vmem:[#allocation9 + $0x398] sm:$0xff]
    %v6874 = vld [vmem:[#allocation9 + $0x3a0] sm:$0xff]
    %v6875 = vld [vmem:[#allocation9 + $0x3a8] sm:$0xff]
    %v6876 = vld [vmem:[#allocation9 + $0x3b0] sm:$0xff]
    %v6877 = vld [vmem:[#allocation9 + $0x3b8] sm:$0xff]
    %v6878 = vld [vmem:[#allocation9 + $0x3c0] sm:$0xff]
    %v6879 = vld [vmem:[#allocation9 + $0x3c8] sm:$0xff]
    %v6880 = vld [vmem:[#allocation9 + $0x3d0] sm:$0xff]
    %v6881 = vld [vmem:[#allocation9 + $0x3d8] sm:$0xff]
    %v6882 = vld [vmem:[#allocation9 + $0x3e0] sm:$0xff]
    %v6883 = vld [vmem:[#allocation9 + $0x3e8] sm:$0xff]
    %v6884 = vld [vmem:[#allocation9 + $0x3f0] sm:$0xff]
    %v6885 = vld [vmem:[#allocation9 + $0x3f8] sm:$0xff]
    %v6886 = vld [vmem:[#allocation9 + $0x400] sm:$0xff]
    %v6887 = vld [vmem:[#allocation9 + $0x408] sm:$0xff]
    %v6888 = vld [vmem:[#allocation9 + $0x410] sm:$0xff]
    %v6889 = vld [vmem:[#allocation9 + $0x418] sm:$0xff]
    %v6890 = vld [vmem:[#allocation9 + $0x420] sm:$0xff]
    %v6891 = vld [vmem:[#allocation9 + $0x428] sm:$0xff]
    %v6892 = vld [vmem:[#allocation9 + $0x430] sm:$0xff]
    %v6893 = vld [vmem:[#allocation9 + $0x438] sm:$0xff]
    %v6894 = vld [vmem:[#allocation9 + $0x440] sm:$0xff]
    %v6895 = vld [vmem:[#allocation9 + $0x448] sm:$0xff]
    %v6896 = vld [vmem:[#allocation9 + $0x450] sm:$0xff]
    %v6897 = vld [vmem:[#allocation9 + $0x458] sm:$0xff]
    %v6898 = vld [vmem:[#allocation9 + $0x460] sm:$0xff]
    %v6899 = vld [vmem:[#allocation9 + $0x468] sm:$0xff]
    %v6900 = vld [vmem:[#allocation9 + $0x470] sm:$0xff]
    %v6901 = vld [vmem:[#allocation9 + $0x478] sm:$0xff]
    %v6902 = vld [vmem:[#allocation9 + $0x480] sm:$0xff]
    %v6903 = vld [vmem:[#allocation9 + $0x488] sm:$0xff]
    %v6904 = vld [vmem:[#allocation9 + $0x490] sm:$0xff]
    %v6905 = vld [vmem:[#allocation9 + $0x498] sm:$0xff]
    %v6906 = vld [vmem:[#allocation9 + $0x4a0] sm:$0xff]
    %v6907 = vld [vmem:[#allocation9 + $0x4a8] sm:$0xff]
    %v6908 = vld [vmem:[#allocation9 + $0x4b0] sm:$0xff]
    %v6909 = vld [vmem:[#allocation9 + $0x4b8] sm:$0xff]
    %v6910 = vld [vmem:[#allocation9 + $0x4c0] sm:$0xff]
    %v6911 = vld [vmem:[#allocation9 + $0x4c8] sm:$0xff]
    %v6912 = vld [vmem:[#allocation9 + $0x4d0] sm:$0xff]
    %v6913 = vld [vmem:[#allocation9 + $0x4d8] sm:$0xff]
    %v6914 = vld [vmem:[#allocation9 + $0x4e0] sm:$0xff]
    %v6915 = vld [vmem:[#allocation9 + $0x4e8] sm:$0xff]
    %v6916 = vld [vmem:[#allocation9 + $0x4f0] sm:$0xff]
    %v6917 = vld [vmem:[#allocation9 + $0x4f8] sm:$0xff]
    %v6918 = vld [vmem:[#allocation9 + $0x500] sm:$0xff]
    %v6919 = vld [vmem:[#allocation9 + $0x508] sm:$0xff]
    %v6920 = vld [vmem:[#allocation9 + $0x510] sm:$0xff]
    %v6921 = vld [vmem:[#allocation9 + $0x518] sm:$0xff]
    %v6922 = vld [vmem:[#allocation9 + $0x520] sm:$0xff]
    %v6923 = vld [vmem:[#allocation9 + $0x528] sm:$0xff]
    %v6924 = vld [vmem:[#allocation9 + $0x530] sm:$0xff]
    %v6925 = vld [vmem:[#allocation9 + $0x538] sm:$0xff]
    %v6926 = vld [vmem:[#allocation9 + $0x540] sm:$0xff]
    %v6927 = vld [vmem:[#allocation9 + $0x548] sm:$0xff]
    %v6928 = vld [vmem:[#allocation9 + $0x550] sm:$0xff]
    %v6929 = vld [vmem:[#allocation9 + $0x558] sm:$0xff]
    %v6930 = vld [vmem:[#allocation9 + $0x560] sm:$0xff]
    %v6931 = vld [vmem:[#allocation9 + $0x568] sm:$0xff]
    %v6932 = vld [vmem:[#allocation9 + $0x570] sm:$0xff]
    %v6933 = vld [vmem:[#allocation9 + $0x578] sm:$0xff]
    %v6934 = vld [vmem:[#allocation9 + $0x580] sm:$0xff]
    %v6935 = vld [vmem:[#allocation9 + $0x588] sm:$0xff]
    %v6936 = vld [vmem:[#allocation9 + $0x590] sm:$0xff]
    %v6937 = vld [vmem:[#allocation9 + $0x598] sm:$0xff]
    %v6938 = vld [vmem:[#allocation9 + $0x5a0] sm:$0xff]
    %v6939 = vld [vmem:[#allocation9 + $0x5a8] sm:$0xff]
    %v6940 = vld [vmem:[#allocation9 + $0x5b0] sm:$0xff]
    %v6941 = vld [vmem:[#allocation9 + $0x5b8] sm:$0xff]
    %v6942 = vld [vmem:[#allocation9 + $0x5c0] sm:$0xff]
    %v6943 = vld [vmem:[#allocation9 + $0x5c8] sm:$0xff]
    %v6944 = vld [vmem:[#allocation9 + $0x5d0] sm:$0xff]
    %v6945 = vld [vmem:[#allocation9 + $0x5d8] sm:$0xff]
    %v6946 = vld [vmem:[#allocation9 + $0x5e0] sm:$0xff]
    %v6947 = vld [vmem:[#allocation9 + $0x5e8] sm:$0xff]
    %v6948 = vld [vmem:[#allocation9 + $0x5f0] sm:$0xff]
    %v6949 = vld [vmem:[#allocation9 + $0x5f8] sm:$0xff]
    %v6950 = vld [vmem:[#allocation9 + $0x600] sm:$0xff]
    %v6951 = vld [vmem:[#allocation9 + $0x608] sm:$0xff]
    %v6952 = vld [vmem:[#allocation9 + $0x610] sm:$0xff]
    %v6953 = vld [vmem:[#allocation9 + $0x618] sm:$0xff]
    %v6954 = vld [vmem:[#allocation9 + $0x620] sm:$0xff]
    %v6955 = vld [vmem:[#allocation9 + $0x628] sm:$0xff]
    %v6956 = vld [vmem:[#allocation9 + $0x630] sm:$0xff]
    %v6957 = vld [vmem:[#allocation9 + $0x638] sm:$0xff]
    %v6958 = vld [vmem:[#allocation9 + $0x640] sm:$0xff]
    %v6959 = vld [vmem:[#allocation9 + $0x648] sm:$0xff]
    %v6960 = vld [vmem:[#allocation9 + $0x650] sm:$0xff]
    %v6961 = vld [vmem:[#allocation9 + $0x658] sm:$0xff]
    %v6962 = vld [vmem:[#allocation9 + $0x660] sm:$0xff]
    %v6963 = vld [vmem:[#allocation9 + $0x668] sm:$0xff]
    %v6964 = vld [vmem:[#allocation9 + $0x670] sm:$0xff]
    %v6965 = vld [vmem:[#allocation9 + $0x678] sm:$0xff]
    %v6966 = vld [vmem:[#allocation9 + $0x680] sm:$0xff]
    %v6967 = vld [vmem:[#allocation9 + $0x688] sm:$0xff]
    %v6968 = vld [vmem:[#allocation9 + $0x690] sm:$0xff]
    %v6969 = vld [vmem:[#allocation9 + $0x698] sm:$0xff]
    %v6970 = vld [vmem:[#allocation9 + $0x6a0] sm:$0xff]
    %v6971 = vld [vmem:[#allocation9 + $0x6a8] sm:$0xff]
    %v6972 = vld [vmem:[#allocation9 + $0x6b0] sm:$0xff]
    %v6973 = vld [vmem:[#allocation9 + $0x6b8] sm:$0xff]
    %v6974 = vld [vmem:[#allocation9 + $0x6c0] sm:$0xff]
    %v6975 = vld [vmem:[#allocation9 + $0x6c8] sm:$0xff]
    %v6976 = vld [vmem:[#allocation9 + $0x6d0] sm:$0xff]
    %v6977 = vld [vmem:[#allocation9 + $0x6d8] sm:$0xff]
    %v6978 = vld [vmem:[#allocation9 + $0x6e0] sm:$0xff]
    %v6979 = vld [vmem:[#allocation9 + $0x6e8] sm:$0xff]
    %v6980 = vld [vmem:[#allocation9 + $0x6f0] sm:$0xff]
    %v6981 = vld [vmem:[#allocation9 + $0x6f8] sm:$0xff]
    %v6982 = vld [vmem:[#allocation9 + $0x700] sm:$0xff]
    %v6983 = vld [vmem:[#allocation9 + $0x708] sm:$0xff]
    %v6984 = vld [vmem:[#allocation9 + $0x710] sm:$0xff]
    %v6985 = vld [vmem:[#allocation9 + $0x718] sm:$0xff]
    %v6986 = vld [vmem:[#allocation9 + $0x720] sm:$0xff]
    %v6987 = vld [vmem:[#allocation9 + $0x728] sm:$0xff]
    %v6988 = vld [vmem:[#allocation9 + $0x730] sm:$0xff]
    %v6989 = vld [vmem:[#allocation9 + $0x738] sm:$0xff]
    %v6990 = vld [vmem:[#allocation9 + $0x740] sm:$0xff]
    %v6991 = vld [vmem:[#allocation9 + $0x748] sm:$0xff]
    %v6992 = vld [vmem:[#allocation9 + $0x750] sm:$0xff]
    %v6993 = vld [vmem:[#allocation9 + $0x758] sm:$0xff]
    %v6994 = vld [vmem:[#allocation9 + $0x760] sm:$0xff]
    %v6995 = vld [vmem:[#allocation9 + $0x768] sm:$0xff]
    %v6996 = vld [vmem:[#allocation9 + $0x770] sm:$0xff]
    %v6997 = vld [vmem:[#allocation9 + $0x778] sm:$0xff]
    %v6998 = vld [vmem:[#allocation9 + $0x780] sm:$0xff]
    %v6999 = vld [vmem:[#allocation9 + $0x788] sm:$0xff]
    %v7000 = vld [vmem:[#allocation9 + $0x790] sm:$0xff]
    %v7001 = vld [vmem:[#allocation9 + $0x798] sm:$0xff]
    %v7002 = vld [vmem:[#allocation9 + $0x7a0] sm:$0xff]
    %v7003 = vld [vmem:[#allocation9 + $0x7a8] sm:$0xff]
    %v7004 = vld [vmem:[#allocation9 + $0x7b0] sm:$0xff]
    %v7005 = vld [vmem:[#allocation9 + $0x7b8] sm:$0xff]
    %v7006 = vld [vmem:[#allocation9 + $0x7c0] sm:$0xff]
    %v7007 = vld [vmem:[#allocation9 + $0x7c8] sm:$0xff]
    %v7008 = vld [vmem:[#allocation9 + $0x7d0] sm:$0xff]
    %v7009 = vld [vmem:[#allocation9 + $0x7d8] sm:$0xff]
    %v7010 = vld [vmem:[#allocation9 + $0x7e0] sm:$0xff]
    %v7011 = vld [vmem:[#allocation9 + $0x7e8] sm:$0xff]
    %v7012 = vld [vmem:[#allocation9 + $0x7f0] sm:$0xff]
    %v7013 = vld [vmem:[#allocation9 + $0x7f8] sm:$0xff]
    %v7014 = vld [vmem:[#allocation10] sm:$0x77]
    %v7015 = vld [vmem:[#allocation10 + $0x8] sm:$0x77]
    %v7016 = vpack.c.bf16 %v6750, %v6750
    %v7017 = vpack.c.bf16 %v6751, %v6751
    %v7018 = vpack.c.bf16 %v6752, %v6752
    %v7019 = vpack.c.bf16 %v6753, %v6753
    %v7020 = vpack.c.bf16 %v6754, %v6754
    %v7021 = vpack.c.bf16 %v6755, %v6755
    %v7022 = vpack.c.bf16 %v6756, %v6756
    %v7023 = vpack.c.bf16 %v6757, %v6757
    %v7026 = vlaneseq
    %v7027 = vshrl.u32 %v7026, 7
    %v7028 = vsub.s32 0, %v7027
    %v7029 = vrot.slane %v7014, %v7028
    %v7030 = vlaneseq
    %v7031 = vshrl.u32 %v7030, 7
    %v7032 = vsub.s32 4, %v7031
    %v7033 = vrot.slane %v7014, %v7032
    %v7034 = vlaneseq
    %v7035 = vshrl.u32 %v7034, 7
    %v7036 = vsub.s32 0, %v7035
    %v7037 = vrot.slane %v7015, %v7036
    %v7038 = vlaneseq
    %v7039 = vshrl.u32 %v7038, 7
    %v7040 = vsub.s32 4, %v7039
    %v7041 = vrot.slane %v7015, %v7040
    %v7046 = vlaneseq
    %v7047 = vshrl.u32 %v7046, 7
    %v7048 = vsub.s32 0, %v7047
    %v7049 = vrot.slane %v7029, %v7048
    %v7050 = vlaneseq
    %v7051 = vshrl.u32 %v7050, 7
    %v7052 = vsub.s32 0, %v7051
    %v7053 = vrot.slane %v7033, %v7052
    %v7054 = vlaneseq
    %v7055 = vshrl.u32 %v7054, 7
    %v7056 = vsub.s32 0, %v7055
    %v7057 = vrot.slane %v7037, %v7056
    %v7058 = vlaneseq
    %v7059 = vshrl.u32 %v7058, 7
    %v7060 = vsub.s32 0, %v7059
    %v7061 = vrot.slane %v7041, %v7060
    %v7318 = vunpack.c.l.b16 %v6758
    %v7319 = vunpack.c.h.b16 %v6758
    %v7320 = vunpack.c.l.b16 %v6759
    %v7321 = vunpack.c.h.b16 %v6759
    %v7322 = vunpack.c.l.b16 %v6760
    %v7323 = vunpack.c.h.b16 %v6760
    %v7324 = vunpack.c.l.b16 %v6761
    %v7325 = vunpack.c.h.b16 %v6761
    %v7326 = vunpack.c.l.b16 %v6762
    %v7327 = vunpack.c.h.b16 %v6762
    %v7328 = vunpack.c.l.b16 %v6763
    %v7329 = vunpack.c.h.b16 %v6763
    %v7330 = vunpack.c.l.b16 %v6764
    %v7331 = vunpack.c.h.b16 %v6764
    %v7332 = vunpack.c.l.b16 %v6765
    %v7333 = vunpack.c.h.b16 %v6765
    %v7334 = vunpack.c.l.b16 %v6766
    %v7335 = vunpack.c.h.b16 %v6766
    %v7336 = vunpack.c.l.b16 %v6767
    %v7337 = vunpack.c.h.b16 %v6767
    %v7338 = vunpack.c.l.b16 %v6768
    %v7339 = vunpack.c.h.b16 %v6768
    %v7340 = vunpack.c.l.b16 %v6769
    %v7341 = vunpack.c.h.b16 %v6769
    %v7342 = vunpack.c.l.b16 %v6770
    %v7343 = vunpack.c.h.b16 %v6770
    %v7344 = vunpack.c.l.b16 %v6771
    %v7345 = vunpack.c.h.b16 %v6771
    %v7346 = vunpack.c.l.b16 %v6772
    %v7347 = vunpack.c.h.b16 %v6772
    %v7348 = vunpack.c.l.b16 %v6773
    %v7349 = vunpack.c.h.b16 %v6773
    %v7350 = vunpack.c.l.b16 %v6774
    %v7351 = vunpack.c.h.b16 %v6774
    %v7352 = vunpack.c.l.b16 %v6775
    %v7353 = vunpack.c.h.b16 %v6775
    %v7354 = vunpack.c.l.b16 %v6776
    %v7355 = vunpack.c.h.b16 %v6776
    %v7356 = vunpack.c.l.b16 %v6777
    %v7357 = vunpack.c.h.b16 %v6777
    %v7358 = vunpack.c.l.b16 %v6778
    %v7359 = vunpack.c.h.b16 %v6778
    %v7360 = vunpack.c.l.b16 %v6779
    %v7361 = vunpack.c.h.b16 %v6779
    %v7362 = vunpack.c.l.b16 %v6780
    %v7363 = vunpack.c.h.b16 %v6780
    %v7364 = vunpack.c.l.b16 %v6781
    %v7365 = vunpack.c.h.b16 %v6781
    %v7366 = vunpack.c.l.b16 %v6782
    %v7367 = vunpack.c.h.b16 %v6782
    %v7368 = vunpack.c.l.b16 %v6783
    %v7369 = vunpack.c.h.b16 %v6783
    %v7370 = vunpack.c.l.b16 %v6784
    %v7371 = vunpack.c.h.b16 %v6784
    %v7372 = vunpack.c.l.b16 %v6785
    %v7373 = vunpack.c.h.b16 %v6785
    %v7374 = vunpack.c.l.b16 %v6786
    %v7375 = vunpack.c.h.b16 %v6786
    %v7376 = vunpack.c.l.b16 %v6787
    %v7377 = vunpack.c.h.b16 %v6787
    %v7378 = vunpack.c.l.b16 %v6788
    %v7379 = vunpack.c.h.b16 %v6788
    %v7380 = vunpack.c.l.b16 %v6789
    %v7381 = vunpack.c.h.b16 %v6789
    %v7382 = vunpack.c.l.b16 %v6790
    %v7383 = vunpack.c.h.b16 %v6790
    %v7384 = vunpack.c.l.b16 %v6791
    %v7385 = vunpack.c.h.b16 %v6791
    %v7386 = vunpack.c.l.b16 %v6792
    %v7387 = vunpack.c.h.b16 %v6792
    %v7388 = vunpack.c.l.b16 %v6793
    %v7389 = vunpack.c.h.b16 %v6793
    %v7390 = vunpack.c.l.b16 %v6794
    %v7391 = vunpack.c.h.b16 %v6794
    %v7392 = vunpack.c.l.b16 %v6795
    %v7393 = vunpack.c.h.b16 %v6795
    %v7394 = vunpack.c.l.b16 %v6796
    %v7395 = vunpack.c.h.b16 %v6796
    %v7396 = vunpack.c.l.b16 %v6797
    %v7397 = vunpack.c.h.b16 %v6797
    %v7398 = vunpack.c.l.b16 %v6798
    %v7399 = vunpack.c.h.b16 %v6798
    %v7400 = vunpack.c.l.b16 %v6799
    %v7401 = vunpack.c.h.b16 %v6799
    %v7402 = vunpack.c.l.b16 %v6800
    %v7403 = vunpack.c.h.b16 %v6800
    %v7404 = vunpack.c.l.b16 %v6801
    %v7405 = vunpack.c.h.b16 %v6801
    %v7406 = vunpack.c.l.b16 %v6802
    %v7407 = vunpack.c.h.b16 %v6802
    %v7408 = vunpack.c.l.b16 %v6803
    %v7409 = vunpack.c.h.b16 %v6803
    %v7410 = vunpack.c.l.b16 %v6804
    %v7411 = vunpack.c.h.b16 %v6804
    %v7412 = vunpack.c.l.b16 %v6805
    %v7413 = vunpack.c.h.b16 %v6805
    %v7414 = vunpack.c.l.b16 %v6806
    %v7415 = vunpack.c.h.b16 %v6806
    %v7416 = vunpack.c.l.b16 %v6807
    %v7417 = vunpack.c.h.b16 %v6807
    %v7418 = vunpack.c.l.b16 %v6808
    %v7419 = vunpack.c.h.b16 %v6808
    %v7420 = vunpack.c.l.b16 %v6809
    %v7421 = vunpack.c.h.b16 %v6809
    %v7422 = vunpack.c.l.b16 %v6810
    %v7423 = vunpack.c.h.b16 %v6810
    %v7424 = vunpack.c.l.b16 %v6811
    %v7425 = vunpack.c.h.b16 %v6811
    %v7426 = vunpack.c.l.b16 %v6812
    %v7427 = vunpack.c.h.b16 %v6812
    %v7428 = vunpack.c.l.b16 %v6813
    %v7429 = vunpack.c.h.b16 %v6813
    %v7430 = vunpack.c.l.b16 %v6814
    %v7431 = vunpack.c.h.b16 %v6814
    %v7432 = vunpack.c.l.b16 %v6815
    %v7433 = vunpack.c.h.b16 %v6815
    %v7434 = vunpack.c.l.b16 %v6816
    %v7435 = vunpack.c.h.b16 %v6816
    %v7436 = vunpack.c.l.b16 %v6817
    %v7437 = vunpack.c.h.b16 %v6817
    %v7438 = vunpack.c.l.b16 %v6818
    %v7439 = vunpack.c.h.b16 %v6818
    %v7440 = vunpack.c.l.b16 %v6819
    %v7441 = vunpack.c.h.b16 %v6819
    %v7442 = vunpack.c.l.b16 %v6820
    %v7443 = vunpack.c.h.b16 %v6820
    %v7444 = vunpack.c.l.b16 %v6821
    %v7445 = vunpack.c.h.b16 %v6821
    %v7446 = vunpack.c.l.b16 %v6822
    %v7447 = vunpack.c.h.b16 %v6822
    %v7448 = vunpack.c.l.b16 %v6823
    %v7449 = vunpack.c.h.b16 %v6823
    %v7450 = vunpack.c.l.b16 %v6824
    %v7451 = vunpack.c.h.b16 %v6824
    %v7452 = vunpack.c.l.b16 %v6825
    %v7453 = vunpack.c.h.b16 %v6825
    %v7454 = vunpack.c.l.b16 %v6826
    %v7455 = vunpack.c.h.b16 %v6826
    %v7456 = vunpack.c.l.b16 %v6827
    %v7457 = vunpack.c.h.b16 %v6827
    %v7458 = vunpack.c.l.b16 %v6828
    %v7459 = vunpack.c.h.b16 %v6828
    %v7460 = vunpack.c.l.b16 %v6829
    %v7461 = vunpack.c.h.b16 %v6829
    %v7462 = vunpack.c.l.b16 %v6830
    %v7463 = vunpack.c.h.b16 %v6830
    %v7464 = vunpack.c.l.b16 %v6831
    %v7465 = vunpack.c.h.b16 %v6831
    %v7466 = vunpack.c.l.b16 %v6832
    %v7467 = vunpack.c.h.b16 %v6832
    %v7468 = vunpack.c.l.b16 %v6833
    %v7469 = vunpack.c.h.b16 %v6833
    %v7470 = vunpack.c.l.b16 %v6834
    %v7471 = vunpack.c.h.b16 %v6834
    %v7472 = vunpack.c.l.b16 %v6835
    %v7473 = vunpack.c.h.b16 %v6835
    %v7474 = vunpack.c.l.b16 %v6836
    %v7475 = vunpack.c.h.b16 %v6836
    %v7476 = vunpack.c.l.b16 %v6837
    %v7477 = vunpack.c.h.b16 %v6837
    %v7478 = vunpack.c.l.b16 %v6838
    %v7479 = vunpack.c.h.b16 %v6838
    %v7480 = vunpack.c.l.b16 %v6839
    %v7481 = vunpack.c.h.b16 %v6839
    %v7482 = vunpack.c.l.b16 %v6840
    %v7483 = vunpack.c.h.b16 %v6840
    %v7484 = vunpack.c.l.b16 %v6841
    %v7485 = vunpack.c.h.b16 %v6841
    %v7486 = vunpack.c.l.b16 %v6842
    %v7487 = vunpack.c.h.b16 %v6842
    %v7488 = vunpack.c.l.b16 %v6843
    %v7489 = vunpack.c.h.b16 %v6843
    %v7490 = vunpack.c.l.b16 %v6844
    %v7491 = vunpack.c.h.b16 %v6844
    %v7492 = vunpack.c.l.b16 %v6845
    %v7493 = vunpack.c.h.b16 %v6845
    %v7494 = vunpack.c.l.b16 %v6846
    %v7495 = vunpack.c.h.b16 %v6846
    %v7496 = vunpack.c.l.b16 %v6847
    %v7497 = vunpack.c.h.b16 %v6847
    %v7498 = vunpack.c.l.b16 %v6848
    %v7499 = vunpack.c.h.b16 %v6848
    %v7500 = vunpack.c.l.b16 %v6849
    %v7501 = vunpack.c.h.b16 %v6849
    %v7502 = vunpack.c.l.b16 %v6850
    %v7503 = vunpack.c.h.b16 %v6850
    %v7504 = vunpack.c.l.b16 %v6851
    %v7505 = vunpack.c.h.b16 %v6851
    %v7506 = vunpack.c.l.b16 %v6852
    %v7507 = vunpack.c.h.b16 %v6852
    %v7508 = vunpack.c.l.b16 %v6853
    %v7509 = vunpack.c.h.b16 %v6853
    %v7510 = vunpack.c.l.b16 %v6854
    %v7511 = vunpack.c.h.b16 %v6854
    %v7512 = vunpack.c.l.b16 %v6855
    %v7513 = vunpack.c.h.b16 %v6855
    %v7514 = vunpack.c.l.b16 %v6856
    %v7515 = vunpack.c.h.b16 %v6856
    %v7516 = vunpack.c.l.b16 %v6857
    %v7517 = vunpack.c.h.b16 %v6857
    %v7518 = vunpack.c.l.b16 %v6858
    %v7519 = vunpack.c.h.b16 %v6858
    %v7520 = vunpack.c.l.b16 %v6859
    %v7521 = vunpack.c.h.b16 %v6859
    %v7522 = vunpack.c.l.b16 %v6860
    %v7523 = vunpack.c.h.b16 %v6860
    %v7524 = vunpack.c.l.b16 %v6861
    %v7525 = vunpack.c.h.b16 %v6861
    %v7526 = vunpack.c.l.b16 %v6862
    %v7527 = vunpack.c.h.b16 %v6862
    %v7528 = vunpack.c.l.b16 %v6863
    %v7529 = vunpack.c.h.b16 %v6863
    %v7530 = vunpack.c.l.b16 %v6864
    %v7531 = vunpack.c.h.b16 %v6864
    %v7532 = vunpack.c.l.b16 %v6865
    %v7533 = vunpack.c.h.b16 %v6865
    %v7534 = vunpack.c.l.b16 %v6866
    %v7535 = vunpack.c.h.b16 %v6866
    %v7536 = vunpack.c.l.b16 %v6867
    %v7537 = vunpack.c.h.b16 %v6867
    %v7538 = vunpack.c.l.b16 %v6868
    %v7539 = vunpack.c.h.b16 %v6868
    %v7540 = vunpack.c.l.b16 %v6869
    %v7541 = vunpack.c.h.b16 %v6869
    %v7542 = vunpack.c.l.b16 %v6870
    %v7543 = vunpack.c.h.b16 %v6870
    %v7544 = vunpack.c.l.b16 %v6871
    %v7545 = vunpack.c.h.b16 %v6871
    %v7546 = vunpack.c.l.b16 %v6872
    %v7547 = vunpack.c.h.b16 %v6872
    %v7548 = vunpack.c.l.b16 %v6873
    %v7549 = vunpack.c.h.b16 %v6873
    %v7550 = vunpack.c.l.b16 %v6874
    %v7551 = vunpack.c.h.b16 %v6874
    %v7552 = vunpack.c.l.b16 %v6875
    %v7553 = vunpack.c.h.b16 %v6875
    %v7554 = vunpack.c.l.b16 %v6876
    %v7555 = vunpack.c.h.b16 %v6876
    %v7556 = vunpack.c.l.b16 %v6877
    %v7557 = vunpack.c.h.b16 %v6877
    %v7558 = vunpack.c.l.b16 %v6878
    %v7559 = vunpack.c.h.b16 %v6878
    %v7560 = vunpack.c.l.b16 %v6879
    %v7561 = vunpack.c.h.b16 %v6879
    %v7562 = vunpack.c.l.b16 %v6880
    %v7563 = vunpack.c.h.b16 %v6880
    %v7564 = vunpack.c.l.b16 %v6881
    %v7565 = vunpack.c.h.b16 %v6881
    %v7566 = vunpack.c.l.b16 %v6882
    %v7567 = vunpack.c.h.b16 %v6882
    %v7568 = vunpack.c.l.b16 %v6883
    %v7569 = vunpack.c.h.b16 %v6883
    %v7570 = vunpack.c.l.b16 %v6884
    %v7571 = vunpack.c.h.b16 %v6884
    %v7572 = vunpack.c.l.b16 %v6885
    %v7573 = vunpack.c.h.b16 %v6885
    %v7574 = vunpack.c.l.b16 %v6886
    %v7575 = vunpack.c.h.b16 %v6886
    %v7576 = vunpack.c.l.b16 %v6887
    %v7577 = vunpack.c.h.b16 %v6887
    %v7578 = vunpack.c.l.b16 %v6888
    %v7579 = vunpack.c.h.b16 %v6888
    %v7580 = vunpack.c.l.b16 %v6889
    %v7581 = vunpack.c.h.b16 %v6889
    %v7582 = vunpack.c.l.b16 %v6890
    %v7583 = vunpack.c.h.b16 %v6890
    %v7584 = vunpack.c.l.b16 %v6891
    %v7585 = vunpack.c.h.b16 %v6891
    %v7586 = vunpack.c.l.b16 %v6892
    %v7587 = vunpack.c.h.b16 %v6892
    %v7588 = vunpack.c.l.b16 %v6893
    %v7589 = vunpack.c.h.b16 %v6893
    %v7590 = vunpack.c.l.b16 %v6894
    %v7591 = vunpack.c.h.b16 %v6894
    %v7592 = vunpack.c.l.b16 %v6895
    %v7593 = vunpack.c.h.b16 %v6895
    %v7594 = vunpack.c.l.b16 %v6896
    %v7595 = vunpack.c.h.b16 %v6896
    %v7596 = vunpack.c.l.b16 %v6897
    %v7597 = vunpack.c.h.b16 %v6897
    %v7598 = vunpack.c.l.b16 %v6898
    %v7599 = vunpack.c.h.b16 %v6898
    %v7600 = vunpack.c.l.b16 %v6899
    %v7601 = vunpack.c.h.b16 %v6899
    %v7602 = vunpack.c.l.b16 %v6900
    %v7603 = vunpack.c.h.b16 %v6900
    %v7604 = vunpack.c.l.b16 %v6901
    %v7605 = vunpack.c.h.b16 %v6901
    %v7606 = vunpack.c.l.b16 %v6902
    %v7607 = vunpack.c.h.b16 %v6902
    %v7608 = vunpack.c.l.b16 %v6903
    %v7609 = vunpack.c.h.b16 %v6903
    %v7610 = vunpack.c.l.b16 %v6904
    %v7611 = vunpack.c.h.b16 %v6904
    %v7612 = vunpack.c.l.b16 %v6905
    %v7613 = vunpack.c.h.b16 %v6905
    %v7614 = vunpack.c.l.b16 %v6906
    %v7615 = vunpack.c.h.b16 %v6906
    %v7616 = vunpack.c.l.b16 %v6907
    %v7617 = vunpack.c.h.b16 %v6907
    %v7618 = vunpack.c.l.b16 %v6908
    %v7619 = vunpack.c.h.b16 %v6908
    %v7620 = vunpack.c.l.b16 %v6909
    %v7621 = vunpack.c.h.b16 %v6909
    %v7622 = vunpack.c.l.b16 %v6910
    %v7623 = vunpack.c.h.b16 %v6910
    %v7624 = vunpack.c.l.b16 %v6911
    %v7625 = vunpack.c.h.b16 %v6911
    %v7626 = vunpack.c.l.b16 %v6912
    %v7627 = vunpack.c.h.b16 %v6912
    %v7628 = vunpack.c.l.b16 %v6913
    %v7629 = vunpack.c.h.b16 %v6913
    %v7630 = vunpack.c.l.b16 %v6914
    %v7631 = vunpack.c.h.b16 %v6914
    %v7632 = vunpack.c.l.b16 %v6915
    %v7633 = vunpack.c.h.b16 %v6915
    %v7634 = vunpack.c.l.b16 %v6916
    %v7635 = vunpack.c.h.b16 %v6916
    %v7636 = vunpack.c.l.b16 %v6917
    %v7637 = vunpack.c.h.b16 %v6917
    %v7638 = vunpack.c.l.b16 %v6918
    %v7639 = vunpack.c.h.b16 %v6918
    %v7640 = vunpack.c.l.b16 %v6919
    %v7641 = vunpack.c.h.b16 %v6919
    %v7642 = vunpack.c.l.b16 %v6920
    %v7643 = vunpack.c.h.b16 %v6920
    %v7644 = vunpack.c.l.b16 %v6921
    %v7645 = vunpack.c.h.b16 %v6921
    %v7646 = vunpack.c.l.b16 %v6922
    %v7647 = vunpack.c.h.b16 %v6922
    %v7648 = vunpack.c.l.b16 %v6923
    %v7649 = vunpack.c.h.b16 %v6923
    %v7650 = vunpack.c.l.b16 %v6924
    %v7651 = vunpack.c.h.b16 %v6924
    %v7652 = vunpack.c.l.b16 %v6925
    %v7653 = vunpack.c.h.b16 %v6925
    %v7654 = vunpack.c.l.b16 %v6926
    %v7655 = vunpack.c.h.b16 %v6926
    %v7656 = vunpack.c.l.b16 %v6927
    %v7657 = vunpack.c.h.b16 %v6927
    %v7658 = vunpack.c.l.b16 %v6928
    %v7659 = vunpack.c.h.b16 %v6928
    %v7660 = vunpack.c.l.b16 %v6929
    %v7661 = vunpack.c.h.b16 %v6929
    %v7662 = vunpack.c.l.b16 %v6930
    %v7663 = vunpack.c.h.b16 %v6930
    %v7664 = vunpack.c.l.b16 %v6931
    %v7665 = vunpack.c.h.b16 %v6931
    %v7666 = vunpack.c.l.b16 %v6932
    %v7667 = vunpack.c.h.b16 %v6932
    %v7668 = vunpack.c.l.b16 %v6933
    %v7669 = vunpack.c.h.b16 %v6933
    %v7670 = vunpack.c.l.b16 %v6934
    %v7671 = vunpack.c.h.b16 %v6934
    %v7672 = vunpack.c.l.b16 %v6935
    %v7673 = vunpack.c.h.b16 %v6935
    %v7674 = vunpack.c.l.b16 %v6936
    %v7675 = vunpack.c.h.b16 %v6936
    %v7676 = vunpack.c.l.b16 %v6937
    %v7677 = vunpack.c.h.b16 %v6937
    %v7678 = vunpack.c.l.b16 %v6938
    %v7679 = vunpack.c.h.b16 %v6938
    %v7680 = vunpack.c.l.b16 %v6939
    %v7681 = vunpack.c.h.b16 %v6939
    %v7682 = vunpack.c.l.b16 %v6940
    %v7683 = vunpack.c.h.b16 %v6940
    %v7684 = vunpack.c.l.b16 %v6941
    %v7685 = vunpack.c.h.b16 %v6941
    %v7686 = vunpack.c.l.b16 %v6942
    %v7687 = vunpack.c.h.b16 %v6942
    %v7688 = vunpack.c.l.b16 %v6943
    %v7689 = vunpack.c.h.b16 %v6943
    %v7690 = vunpack.c.l.b16 %v6944
    %v7691 = vunpack.c.h.b16 %v6944
    %v7692 = vunpack.c.l.b16 %v6945
    %v7693 = vunpack.c.h.b16 %v6945
    %v7694 = vunpack.c.l.b16 %v6946
    %v7695 = vunpack.c.h.b16 %v6946
    %v7696 = vunpack.c.l.b16 %v6947
    %v7697 = vunpack.c.h.b16 %v6947
    %v7698 = vunpack.c.l.b16 %v6948
    %v7699 = vunpack.c.h.b16 %v6948
    %v7700 = vunpack.c.l.b16 %v6949
    %v7701 = vunpack.c.h.b16 %v6949
    %v7702 = vunpack.c.l.b16 %v6950
    %v7703 = vunpack.c.h.b16 %v6950
    %v7704 = vunpack.c.l.b16 %v6951
    %v7705 = vunpack.c.h.b16 %v6951
    %v7706 = vunpack.c.l.b16 %v6952
    %v7707 = vunpack.c.h.b16 %v6952
    %v7708 = vunpack.c.l.b16 %v6953
    %v7709 = vunpack.c.h.b16 %v6953
    %v7710 = vunpack.c.l.b16 %v6954
    %v7711 = vunpack.c.h.b16 %v6954
    %v7712 = vunpack.c.l.b16 %v6955
    %v7713 = vunpack.c.h.b16 %v6955
    %v7714 = vunpack.c.l.b16 %v6956
    %v7715 = vunpack.c.h.b16 %v6956
    %v7716 = vunpack.c.l.b16 %v6957
    %v7717 = vunpack.c.h.b16 %v6957
    %v7718 = vunpack.c.l.b16 %v6958
    %v7719 = vunpack.c.h.b16 %v6958
    %v7720 = vunpack.c.l.b16 %v6959
    %v7721 = vunpack.c.h.b16 %v6959
    %v7722 = vunpack.c.l.b16 %v6960
    %v7723 = vunpack.c.h.b16 %v6960
    %v7724 = vunpack.c.l.b16 %v6961
    %v7725 = vunpack.c.h.b16 %v6961
    %v7726 = vunpack.c.l.b16 %v6962
    %v7727 = vunpack.c.h.b16 %v6962
    %v7728 = vunpack.c.l.b16 %v6963
    %v7729 = vunpack.c.h.b16 %v6963
    %v7730 = vunpack.c.l.b16 %v6964
    %v7731 = vunpack.c.h.b16 %v6964
    %v7732 = vunpack.c.l.b16 %v6965
    %v7733 = vunpack.c.h.b16 %v6965
    %v7734 = vunpack.c.l.b16 %v6966
    %v7735 = vunpack.c.h.b16 %v6966
    %v7736 = vunpack.c.l.b16 %v6967
    %v7737 = vunpack.c.h.b16 %v6967
    %v7738 = vunpack.c.l.b16 %v6968
    %v7739 = vunpack.c.h.b16 %v6968
    %v7740 = vunpack.c.l.b16 %v6969
    %v7741 = vunpack.c.h.b16 %v6969
    %v7742 = vunpack.c.l.b16 %v6970
    %v7743 = vunpack.c.h.b16 %v6970
    %v7744 = vunpack.c.l.b16 %v6971
    %v7745 = vunpack.c.h.b16 %v6971
    %v7746 = vunpack.c.l.b16 %v6972
    %v7747 = vunpack.c.h.b16 %v6972
    %v7748 = vunpack.c.l.b16 %v6973
    %v7749 = vunpack.c.h.b16 %v6973
    %v7750 = vunpack.c.l.b16 %v6974
    %v7751 = vunpack.c.h.b16 %v6974
    %v7752 = vunpack.c.l.b16 %v6975
    %v7753 = vunpack.c.h.b16 %v6975
    %v7754 = vunpack.c.l.b16 %v6976
    %v7755 = vunpack.c.h.b16 %v6976
    %v7756 = vunpack.c.l.b16 %v6977
    %v7757 = vunpack.c.h.b16 %v6977
    %v7758 = vunpack.c.l.b16 %v6978
    %v7759 = vunpack.c.h.b16 %v6978
    %v7760 = vunpack.c.l.b16 %v6979
    %v7761 = vunpack.c.h.b16 %v6979
    %v7762 = vunpack.c.l.b16 %v6980
    %v7763 = vunpack.c.h.b16 %v6980
    %v7764 = vunpack.c.l.b16 %v6981
    %v7765 = vunpack.c.h.b16 %v6981
    %v7766 = vunpack.c.l.b16 %v6982
    %v7767 = vunpack.c.h.b16 %v6982
    %v7768 = vunpack.c.l.b16 %v6983
    %v7769 = vunpack.c.h.b16 %v6983
    %v7770 = vunpack.c.l.b16 %v6984
    %v7771 = vunpack.c.h.b16 %v6984
    %v7772 = vunpack.c.l.b16 %v6985
    %v7773 = vunpack.c.h.b16 %v6985
    %v7774 = vunpack.c.l.b16 %v6986
    %v7775 = vunpack.c.h.b16 %v6986
    %v7776 = vunpack.c.l.b16 %v6987
    %v7777 = vunpack.c.h.b16 %v6987
    %v7778 = vunpack.c.l.b16 %v6988
    %v7779 = vunpack.c.h.b16 %v6988
    %v7780 = vunpack.c.l.b16 %v6989
    %v7781 = vunpack.c.h.b16 %v6989
    %v7782 = vunpack.c.l.b16 %v6990
    %v7783 = vunpack.c.h.b16 %v6990
    %v7784 = vunpack.c.l.b16 %v6991
    %v7785 = vunpack.c.h.b16 %v6991
    %v7786 = vunpack.c.l.b16 %v6992
    %v7787 = vunpack.c.h.b16 %v6992
    %v7788 = vunpack.c.l.b16 %v6993
    %v7789 = vunpack.c.h.b16 %v6993
    %v7790 = vunpack.c.l.b16 %v6994
    %v7791 = vunpack.c.h.b16 %v6994
    %v7792 = vunpack.c.l.b16 %v6995
    %v7793 = vunpack.c.h.b16 %v6995
    %v7794 = vunpack.c.l.b16 %v6996
    %v7795 = vunpack.c.h.b16 %v6996
    %v7796 = vunpack.c.l.b16 %v6997
    %v7797 = vunpack.c.h.b16 %v6997
    %v7798 = vunpack.c.l.b16 %v6998
    %v7799 = vunpack.c.h.b16 %v6998
    %v7800 = vunpack.c.l.b16 %v6999
    %v7801 = vunpack.c.h.b16 %v6999
    %v7802 = vunpack.c.l.b16 %v7000
    %v7803 = vunpack.c.h.b16 %v7000
    %v7804 = vunpack.c.l.b16 %v7001
    %v7805 = vunpack.c.h.b16 %v7001
    %v7806 = vunpack.c.l.b16 %v7002
    %v7807 = vunpack.c.h.b16 %v7002
    %v7808 = vunpack.c.l.b16 %v7003
    %v7809 = vunpack.c.h.b16 %v7003
    %v7810 = vunpack.c.l.b16 %v7004
    %v7811 = vunpack.c.h.b16 %v7004
    %v7812 = vunpack.c.l.b16 %v7005
    %v7813 = vunpack.c.h.b16 %v7005
    %v7814 = vunpack.c.l.b16 %v7006
    %v7815 = vunpack.c.h.b16 %v7006
    %v7816 = vunpack.c.l.b16 %v7007
    %v7817 = vunpack.c.h.b16 %v7007
    %v7818 = vunpack.c.l.b16 %v7008
    %v7819 = vunpack.c.h.b16 %v7008
    %v7820 = vunpack.c.l.b16 %v7009
    %v7821 = vunpack.c.h.b16 %v7009
    %v7822 = vunpack.c.l.b16 %v7010
    %v7823 = vunpack.c.h.b16 %v7010
    %v7824 = vunpack.c.l.b16 %v7011
    %v7825 = vunpack.c.h.b16 %v7011
    %v7826 = vunpack.c.l.b16 %v7012
    %v7827 = vunpack.c.h.b16 %v7012
    %v7828 = vunpack.c.l.b16 %v7013
    %v7829 = vunpack.c.h.b16 %v7013
    %v7830 = vpack.c.b16 %v7322, %v7318
    %v7831 = vpack.c.b16 %v7323, %v7319
    %v7832 = vpack.c.b16 %v7324, %v7320
    %v7833 = vpack.c.b16 %v7325, %v7321
    %v7834 = vpack.c.b16 %v7330, %v7326
    %v7835 = vpack.c.b16 %v7331, %v7327
    %v7836 = vpack.c.b16 %v7332, %v7328
    %v7837 = vpack.c.b16 %v7333, %v7329
    %v7838 = vpack.c.b16 %v7338, %v7334
    %v7839 = vpack.c.b16 %v7339, %v7335
    %v7840 = vpack.c.b16 %v7340, %v7336
    %v7841 = vpack.c.b16 %v7341, %v7337
    %v7842 = vpack.c.b16 %v7346, %v7342
    %v7843 = vpack.c.b16 %v7347, %v7343
    %v7844 = vpack.c.b16 %v7348, %v7344
    %v7845 = vpack.c.b16 %v7349, %v7345
    %v7846 = vpack.c.b16 %v7354, %v7350
    %v7847 = vpack.c.b16 %v7355, %v7351
    %v7848 = vpack.c.b16 %v7356, %v7352
    %v7849 = vpack.c.b16 %v7357, %v7353
    %v7850 = vpack.c.b16 %v7362, %v7358
    %v7851 = vpack.c.b16 %v7363, %v7359
    %v7852 = vpack.c.b16 %v7364, %v7360
    %v7853 = vpack.c.b16 %v7365, %v7361
    %v7854 = vpack.c.b16 %v7370, %v7366
    %v7855 = vpack.c.b16 %v7371, %v7367
    %v7856 = vpack.c.b16 %v7372, %v7368
    %v7857 = vpack.c.b16 %v7373, %v7369
    %v7858 = vpack.c.b16 %v7378, %v7374
    %v7859 = vpack.c.b16 %v7379, %v7375
    %v7860 = vpack.c.b16 %v7380, %v7376
    %v7861 = vpack.c.b16 %v7381, %v7377
    %v7862 = vpack.c.b16 %v7386, %v7382
    %v7863 = vpack.c.b16 %v7387, %v7383
    %v7864 = vpack.c.b16 %v7388, %v7384
    %v7865 = vpack.c.b16 %v7389, %v7385
    %v7866 = vpack.c.b16 %v7394, %v7390
    %v7867 = vpack.c.b16 %v7395, %v7391
    %v7868 = vpack.c.b16 %v7396, %v7392
    %v7869 = vpack.c.b16 %v7397, %v7393
    %v7870 = vpack.c.b16 %v7402, %v7398
    %v7871 = vpack.c.b16 %v7403, %v7399
    %v7872 = vpack.c.b16 %v7404, %v7400
    %v7873 = vpack.c.b16 %v7405, %v7401
    %v7874 = vpack.c.b16 %v7410, %v7406
    %v7875 = vpack.c.b16 %v7411, %v7407
    %v7876 = vpack.c.b16 %v7412, %v7408
    %v7877 = vpack.c.b16 %v7413, %v7409
    %v7878 = vpack.c.b16 %v7418, %v7414
    %v7879 = vpack.c.b16 %v7419, %v7415
    %v7880 = vpack.c.b16 %v7420, %v7416
    %v7881 = vpack.c.b16 %v7421, %v7417
    %v7882 = vpack.c.b16 %v7426, %v7422
    %v7883 = vpack.c.b16 %v7427, %v7423
    %v7884 = vpack.c.b16 %v7428, %v7424
    %v7885 = vpack.c.b16 %v7429, %v7425
    %v7886 = vpack.c.b16 %v7434, %v7430
    %v7887 = vpack.c.b16 %v7435, %v7431
    %v7888 = vpack.c.b16 %v7436, %v7432
    %v7889 = vpack.c.b16 %v7437, %v7433
    %v7890 = vpack.c.b16 %v7442, %v7438
    %v7891 = vpack.c.b16 %v7443, %v7439
    %v7892 = vpack.c.b16 %v7444, %v7440
    %v7893 = vpack.c.b16 %v7445, %v7441
    %v7894 = vpack.c.b16 %v7450, %v7446
    %v7895 = vpack.c.b16 %v7451, %v7447
    %v7896 = vpack.c.b16 %v7452, %v7448
    %v7897 = vpack.c.b16 %v7453, %v7449
    %v7898 = vpack.c.b16 %v7458, %v7454
    %v7899 = vpack.c.b16 %v7459, %v7455
    %v7900 = vpack.c.b16 %v7460, %v7456
    %v7901 = vpack.c.b16 %v7461, %v7457
    %v7902 = vpack.c.b16 %v7466, %v7462
    %v7903 = vpack.c.b16 %v7467, %v7463
    %v7904 = vpack.c.b16 %v7468, %v7464
    %v7905 = vpack.c.b16 %v7469, %v7465
    %v7906 = vpack.c.b16 %v7474, %v7470
    %v7907 = vpack.c.b16 %v7475, %v7471
    %v7908 = vpack.c.b16 %v7476, %v7472
    %v7909 = vpack.c.b16 %v7477, %v7473
    %v7910 = vpack.c.b16 %v7482, %v7478
    %v7911 = vpack.c.b16 %v7483, %v7479
    %v7912 = vpack.c.b16 %v7484, %v7480
    %v7913 = vpack.c.b16 %v7485, %v7481
    %v7914 = vpack.c.b16 %v7490, %v7486
    %v7915 = vpack.c.b16 %v7491, %v7487
    %v7916 = vpack.c.b16 %v7492, %v7488
    %v7917 = vpack.c.b16 %v7493, %v7489
    %v7918 = vpack.c.b16 %v7498, %v7494
    %v7919 = vpack.c.b16 %v7499, %v7495
    %v7920 = vpack.c.b16 %v7500, %v7496
    %v7921 = vpack.c.b16 %v7501, %v7497
    %v7922 = vpack.c.b16 %v7506, %v7502
    %v7923 = vpack.c.b16 %v7507, %v7503
    %v7924 = vpack.c.b16 %v7508, %v7504
    %v7925 = vpack.c.b16 %v7509, %v7505
    %v7926 = vpack.c.b16 %v7514, %v7510
    %v7927 = vpack.c.b16 %v7515, %v7511
    %v7928 = vpack.c.b16 %v7516, %v7512
    %v7929 = vpack.c.b16 %v7517, %v7513
    %v7930 = vpack.c.b16 %v7522, %v7518
    %v7931 = vpack.c.b16 %v7523, %v7519
    %v7932 = vpack.c.b16 %v7524, %v7520
    %v7933 = vpack.c.b16 %v7525, %v7521
    %v7934 = vpack.c.b16 %v7530, %v7526
    %v7935 = vpack.c.b16 %v7531, %v7527
    %v7936 = vpack.c.b16 %v7532, %v7528
    %v7937 = vpack.c.b16 %v7533, %v7529
    %v7938 = vpack.c.b16 %v7538, %v7534
    %v7939 = vpack.c.b16 %v7539, %v7535
    %v7940 = vpack.c.b16 %v7540, %v7536
    %v7941 = vpack.c.b16 %v7541, %v7537
    %v7942 = vpack.c.b16 %v7546, %v7542
    %v7943 = vpack.c.b16 %v7547, %v7543
    %v7944 = vpack.c.b16 %v7548, %v7544
    %v7945 = vpack.c.b16 %v7549, %v7545
    %v7946 = vpack.c.b16 %v7554, %v7550
    %v7947 = vpack.c.b16 %v7555, %v7551
    %v7948 = vpack.c.b16 %v7556, %v7552
    %v7949 = vpack.c.b16 %v7557, %v7553
    %v7950 = vpack.c.b16 %v7562, %v7558
    %v7951 = vpack.c.b16 %v7563, %v7559
    %v7952 = vpack.c.b16 %v7564, %v7560
    %v7953 = vpack.c.b16 %v7565, %v7561
    %v7954 = vpack.c.b16 %v7570, %v7566
    %v7955 = vpack.c.b16 %v7571, %v7567
    %v7956 = vpack.c.b16 %v7572, %v7568
    %v7957 = vpack.c.b16 %v7573, %v7569
    %v7958 = vpack.c.b16 %v7578, %v7574
    %v7959 = vpack.c.b16 %v7579, %v7575
    %v7960 = vpack.c.b16 %v7580, %v7576
    %v7961 = vpack.c.b16 %v7581, %v7577
    %v7962 = vpack.c.b16 %v7586, %v7582
    %v7963 = vpack.c.b16 %v7587, %v7583
    %v7964 = vpack.c.b16 %v7588, %v7584
    %v7965 = vpack.c.b16 %v7589, %v7585
    %v7966 = vpack.c.b16 %v7594, %v7590
    %v7967 = vpack.c.b16 %v7595, %v7591
    %v7968 = vpack.c.b16 %v7596, %v7592
    %v7969 = vpack.c.b16 %v7597, %v7593
    %v7970 = vpack.c.b16 %v7602, %v7598
    %v7971 = vpack.c.b16 %v7603, %v7599
    %v7972 = vpack.c.b16 %v7604, %v7600
    %v7973 = vpack.c.b16 %v7605, %v7601
    %v7974 = vpack.c.b16 %v7610, %v7606
    %v7975 = vpack.c.b16 %v7611, %v7607
    %v7976 = vpack.c.b16 %v7612, %v7608
    %v7977 = vpack.c.b16 %v7613, %v7609
    %v7978 = vpack.c.b16 %v7618, %v7614
    %v7979 = vpack.c.b16 %v7619, %v7615
    %v7980 = vpack.c.b16 %v7620, %v7616
    %v7981 = vpack.c.b16 %v7621, %v7617
    %v7982 = vpack.c.b16 %v7626, %v7622
    %v7983 = vpack.c.b16 %v7627, %v7623
    %v7984 = vpack.c.b16 %v7628, %v7624
    %v7985 = vpack.c.b16 %v7629, %v7625
    %v7986 = vpack.c.b16 %v7634, %v7630
    %v7987 = vpack.c.b16 %v7635, %v7631
    %v7988 = vpack.c.b16 %v7636, %v7632
    %v7989 = vpack.c.b16 %v7637, %v7633
    %v7990 = vpack.c.b16 %v7642, %v7638
    %v7991 = vpack.c.b16 %v7643, %v7639
    %v7992 = vpack.c.b16 %v7644, %v7640
    %v7993 = vpack.c.b16 %v7645, %v7641
    %v7994 = vpack.c.b16 %v7650, %v7646
    %v7995 = vpack.c.b16 %v7651, %v7647
    %v7996 = vpack.c.b16 %v7652, %v7648
    %v7997 = vpack.c.b16 %v7653, %v7649
    %v7998 = vpack.c.b16 %v7658, %v7654
    %v7999 = vpack.c.b16 %v7659, %v7655
    %v8000 = vpack.c.b16 %v7660, %v7656
    %v8001 = vpack.c.b16 %v7661, %v7657
    %v8002 = vpack.c.b16 %v7666, %v7662
    %v8003 = vpack.c.b16 %v7667, %v7663
    %v8004 = vpack.c.b16 %v7668, %v7664
    %v8005 = vpack.c.b16 %v7669, %v7665
    %v8006 = vpack.c.b16 %v7674, %v7670
    %v8007 = vpack.c.b16 %v7675, %v7671
    %v8008 = vpack.c.b16 %v7676, %v7672
    %v8009 = vpack.c.b16 %v7677, %v7673
    %v8010 = vpack.c.b16 %v7682, %v7678
    %v8011 = vpack.c.b16 %v7683, %v7679
    %v8012 = vpack.c.b16 %v7684, %v7680
    %v8013 = vpack.c.b16 %v7685, %v7681
    %v8014 = vpack.c.b16 %v7690, %v7686
    %v8015 = vpack.c.b16 %v7691, %v7687
    %v8016 = vpack.c.b16 %v7692, %v7688
    %v8017 = vpack.c.b16 %v7693, %v7689
    %v8018 = vpack.c.b16 %v7698, %v7694
    %v8019 = vpack.c.b16 %v7699, %v7695
    %v8020 = vpack.c.b16 %v7700, %v7696
    %v8021 = vpack.c.b16 %v7701, %v7697
    %v8022 = vpack.c.b16 %v7706, %v7702
    %v8023 = vpack.c.b16 %v7707, %v7703
    %v8024 = vpack.c.b16 %v7708, %v7704
    %v8025 = vpack.c.b16 %v7709, %v7705
    %v8026 = vpack.c.b16 %v7714, %v7710
    %v8027 = vpack.c.b16 %v7715, %v7711
    %v8028 = vpack.c.b16 %v7716, %v7712
    %v8029 = vpack.c.b16 %v7717, %v7713
    %v8030 = vpack.c.b16 %v7722, %v7718
    %v8031 = vpack.c.b16 %v7723, %v7719
    %v8032 = vpack.c.b16 %v7724, %v7720
    %v8033 = vpack.c.b16 %v7725, %v7721
    %v8034 = vpack.c.b16 %v7730, %v7726
    %v8035 = vpack.c.b16 %v7731, %v7727
    %v8036 = vpack.c.b16 %v7732, %v7728
    %v8037 = vpack.c.b16 %v7733, %v7729
    %v8038 = vpack.c.b16 %v7738, %v7734
    %v8039 = vpack.c.b16 %v7739, %v7735
    %v8040 = vpack.c.b16 %v7740, %v7736
    %v8041 = vpack.c.b16 %v7741, %v7737
    %v8042 = vpack.c.b16 %v7746, %v7742
    %v8043 = vpack.c.b16 %v7747, %v7743
    %v8044 = vpack.c.b16 %v7748, %v7744
    %v8045 = vpack.c.b16 %v7749, %v7745
    %v8046 = vpack.c.b16 %v7754, %v7750
    %v8047 = vpack.c.b16 %v7755, %v7751
    %v8048 = vpack.c.b16 %v7756, %v7752
    %v8049 = vpack.c.b16 %v7757, %v7753
    %v8050 = vpack.c.b16 %v7762, %v7758
    %v8051 = vpack.c.b16 %v7763, %v7759
    %v8052 = vpack.c.b16 %v7764, %v7760
    %v8053 = vpack.c.b16 %v7765, %v7761
    %v8054 = vpack.c.b16 %v7770, %v7766
    %v8055 = vpack.c.b16 %v7771, %v7767
    %v8056 = vpack.c.b16 %v7772, %v7768
    %v8057 = vpack.c.b16 %v7773, %v7769
    %v8058 = vpack.c.b16 %v7778, %v7774
    %v8059 = vpack.c.b16 %v7779, %v7775
    %v8060 = vpack.c.b16 %v7780, %v7776
    %v8061 = vpack.c.b16 %v7781, %v7777
    %v8062 = vpack.c.b16 %v7786, %v7782
    %v8063 = vpack.c.b16 %v7787, %v7783
    %v8064 = vpack.c.b16 %v7788, %v7784
    %v8065 = vpack.c.b16 %v7789, %v7785
    %v8066 = vpack.c.b16 %v7794, %v7790
    %v8067 = vpack.c.b16 %v7795, %v7791
    %v8068 = vpack.c.b16 %v7796, %v7792
    %v8069 = vpack.c.b16 %v7797, %v7793
    %v8070 = vpack.c.b16 %v7802, %v7798
    %v8071 = vpack.c.b16 %v7803, %v7799
    %v8072 = vpack.c.b16 %v7804, %v7800
    %v8073 = vpack.c.b16 %v7805, %v7801
    %v8074 = vpack.c.b16 %v7810, %v7806
    %v8075 = vpack.c.b16 %v7811, %v7807
    %v8076 = vpack.c.b16 %v7812, %v7808
    %v8077 = vpack.c.b16 %v7813, %v7809
    %v8078 = vpack.c.b16 %v7818, %v7814
    %v8079 = vpack.c.b16 %v7819, %v7815
    %v8080 = vpack.c.b16 %v7820, %v7816
    %v8081 = vpack.c.b16 %v7821, %v7817
    %v8082 = vpack.c.b16 %v7826, %v7822
    %v8083 = vpack.c.b16 %v7827, %v7823
    %v8084 = vpack.c.b16 %v7828, %v7824
    %v8085 = vpack.c.b16 %v7829, %v7825
    %8342 = vmatprep.subr.bf16.mxu0 %v7831
    %8343 = vmatpush1.bf16.msra.mxu0 %v7830
    %8344 = vmatprep.subr.bf16.mxu0 %v7835
    %8345 = vmatpush1.bf16.msra.mxu0 %v7834
    %8346 = vmatprep.subr.bf16.mxu0 %v7839
    %8347 = vmatpush1.bf16.msra.mxu0 %v7838
    %8348 = vmatprep.subr.bf16.mxu0 %v7843
    %8349 = vmatpush1.bf16.msra.mxu0 %v7842
    %8350 = vmatprep.subr.bf16.mxu0 %v7847
    %8351 = vmatpush1.bf16.msra.mxu0 %v7846
    %8352 = vmatprep.subr.bf16.mxu0 %v7851
    %8353 = vmatpush1.bf16.msra.mxu0 %v7850
    %8354 = vmatprep.subr.bf16.mxu0 %v7855
    %8355 = vmatpush1.bf16.msra.mxu0 %v7854
    %8356 = vmatprep.subr.bf16.mxu0 %v7859
    %8357 = vmatpush1.bf16.msra.mxu0 %v7858
    %8358 = vmatprep.subr.bf16.mxu0 %v7863
    %8359 = vmatpush1.bf16.msra.mxu0 %v7862
    %8360 = vmatprep.subr.bf16.mxu0 %v7867
    %8361 = vmatpush1.bf16.msra.mxu0 %v7866
    %8362 = vmatprep.subr.bf16.mxu0 %v7871
    %8363 = vmatpush1.bf16.msra.mxu0 %v7870
    %8364 = vmatprep.subr.bf16.mxu0 %v7875
    %8365 = vmatpush1.bf16.msra.mxu0 %v7874
    %8366 = vmatprep.subr.bf16.mxu0 %v7879
    %8367 = vmatpush1.bf16.msra.mxu0 %v7878
    %8368 = vmatprep.subr.bf16.mxu0 %v7883
    %8369 = vmatpush1.bf16.msra.mxu0 %v7882
    %8370 = vmatprep.subr.bf16.mxu0 %v7887
    %8371 = vmatpush1.bf16.msra.mxu0 %v7886
    %8372 = vmatprep.subr.bf16.mxu0 %v7891
    %8373 = vmatpush1.bf16.msra.mxu0 %v7890
    %8374 = vmatprep.mubr.bf16.mxu0 %v7017
    %8375 = vmatmul.mubr.bf16.gmra.mrb[0].mxu0 %v7016
    %v8376 = vpop.f32.mrb[0].mxu0
    %v8377 = vadd.f32 %v7049, %v8376
    %v8378 = vpop.f32.mrb[0].mxu0
    %v8379 = vadd.f32 %v7053, %v8378
    %v8380 = vpop.f32.mrb[0].mxu0
    %v8381 = vpop.f32.mrb[0].mxu0
    %8382 = vdwg.mxu0
    %8383 = vmatprep.subr.bf16.mxu0 %v7895
    %8384 = vmatpush1.bf16.msra.mxu0 %v7894
    %8385 = vmatprep.subr.bf16.mxu0 %v7899
    %8386 = vmatpush1.bf16.msra.mxu0 %v7898
    %8387 = vmatprep.subr.bf16.mxu0 %v7903
    %8388 = vmatpush1.bf16.msra.mxu0 %v7902
    %8389 = vmatprep.subr.bf16.mxu0 %v7907
    %8390 = vmatpush1.bf16.msra.mxu0 %v7906
    %8391 = vmatprep.subr.bf16.mxu0 %v7911
    %8392 = vmatpush1.bf16.msra.mxu0 %v7910
    %8393 = vmatprep.subr.bf16.mxu0 %v7915
    %8394 = vmatpush1.bf16.msra.mxu0 %v7914
    %8395 = vmatprep.subr.bf16.mxu0 %v7919
    %8396 = vmatpush1.bf16.msra.mxu0 %v7918
    %8397 = vmatprep.subr.bf16.mxu0 %v7923
    %8398 = vmatpush1.bf16.msra.mxu0 %v7922
    %8399 = vmatprep.subr.bf16.mxu0 %v7927
    %8400 = vmatpush1.bf16.msra.mxu0 %v7926
    %8401 = vmatprep.subr.bf16.mxu0 %v7931
    %8402 = vmatpush1.bf16.msra.mxu0 %v7930
    %8403 = vmatprep.subr.bf16.mxu0 %v7935
    %8404 = vmatpush1.bf16.msra.mxu0 %v7934
    %8405 = vmatprep.subr.bf16.mxu0 %v7939
    %8406 = vmatpush1.bf16.msra.mxu0 %v7938
    %8407 = vmatprep.subr.bf16.mxu0 %v7943
    %8408 = vmatpush1.bf16.msra.mxu0 %v7942
    %8409 = vmatprep.subr.bf16.mxu0 %v7947
    %8410 = vmatpush1.bf16.msra.mxu0 %v7946
    %8411 = vmatprep.subr.bf16.mxu0 %v7951
    %8412 = vmatpush1.bf16.msra.mxu0 %v7950
    %8413 = vmatprep.subr.bf16.mxu0 %v7955
    %8414 = vmatpush1.bf16.msra.mxu0 %v7954
    %8415 = vmatprep.mubr.bf16.mxu0 %v7019
    %8416 = vmatmul.mubr.bf16.gmra.mrb[0].mxu0 %v7018
    %v8417 = vpop.f32.mrb[0].mxu0
    %v8418 = vadd.f32 %v8377, %v8417
    %v8419 = vpop.f32.mrb[0].mxu0
    %v8420 = vadd.f32 %v8379, %v8419
    %v8421 = vpop.f32.mrb[0].mxu0
    %v8422 = vpop.f32.mrb[0].mxu0
    %8423 = vdwg.mxu0
    %8424 = vmatprep.subr.bf16.mxu0 %v7959
    %8425 = vmatpush1.bf16.msra.mxu0 %v7958
    %8426 = vmatprep.subr.bf16.mxu0 %v7963
    %8427 = vmatpush1.bf16.msra.mxu0 %v7962
    %8428 = vmatprep.subr.bf16.mxu0 %v7967
    %8429 = vmatpush1.bf16.msra.mxu0 %v7966
    %8430 = vmatprep.subr.bf16.mxu0 %v7971
    %8431 = vmatpush1.bf16.msra.mxu0 %v7970
    %8432 = vmatprep.subr.bf16.mxu0 %v7975
    %8433 = vmatpush1.bf16.msra.mxu0 %v7974
    %8434 = vmatprep.subr.bf16.mxu0 %v7979
    %8435 = vmatpush1.bf16.msra.mxu0 %v7978
    %8436 = vmatprep.subr.bf16.mxu0 %v7983
    %8437 = vmatpush1.bf16.msra.mxu0 %v7982
    %8438 = vmatprep.subr.bf16.mxu0 %v7987
    %8439 = vmatpush1.bf16.msra.mxu0 %v7986
    %8440 = vmatprep.subr.bf16.mxu0 %v7991
    %8441 = vmatpush1.bf16.msra.mxu0 %v7990
    %8442 = vmatprep.subr.bf16.mxu0 %v7995
    %8443 = vmatpush1.bf16.msra.mxu0 %v7994
    %8444 = vmatprep.subr.bf16.mxu0 %v7999
    %8445 = vmatpush1.bf16.msra.mxu0 %v7998
    %8446 = vmatprep.subr.bf16.mxu0 %v8003
    %8447 = vmatpush1.bf16.msra.mxu0 %v8002
    %8448 = vmatprep.subr.bf16.mxu0 %v8007
    %8449 = vmatpush1.bf16.msra.mxu0 %v8006
    %8450 = vmatprep.subr.bf16.mxu0 %v8011
    %8451 = vmatpush1.bf16.msra.mxu0 %v8010
    %8452 = vmatprep.subr.bf16.mxu0 %v8015
    %8453 = vmatpush1.bf16.msra.mxu0 %v8014
    %8454 = vmatprep.subr.bf16.mxu0 %v8019
    %8455 = vmatpush1.bf16.msra.mxu0 %v8018
    %8456 = vmatprep.mubr.bf16.mxu0 %v7021
    %8457 = vmatmul.mubr.bf16.gmra.mrb[0].mxu0 %v7020
    %v8458 = vpop.f32.mrb[0].mxu0
    %v8459 = vadd.f32 %v8418, %v8458
    %v8460 = vpop.f32.mrb[0].mxu0
    %v8461 = vadd.f32 %v8420, %v8460
    %v8462 = vpop.f32.mrb[0].mxu0
    %v8463 = vpop.f32.mrb[0].mxu0
    %8464 = vdwg.mxu0
    %8465 = vmatprep.subr.bf16.mxu0 %v8023
    %8466 = vmatpush1.bf16.msra.mxu0 %v8022
    %8467 = vmatprep.subr.bf16.mxu0 %v8027
    %8468 = vmatpush1.bf16.msra.mxu0 %v8026
    %8469 = vmatprep.subr.bf16.mxu0 %v8031
    %8470 = vmatpush1.bf16.msra.mxu0 %v8030
    %8471 = vmatprep.subr.bf16.mxu0 %v8035
    %8472 = vmatpush1.bf16.msra.mxu0 %v8034
    %8473 = vmatprep.subr.bf16.mxu0 %v8039
    %8474 = vmatpush1.bf16.msra.mxu0 %v8038
    %8475 = vmatprep.subr.bf16.mxu0 %v8043
    %8476 = vmatpush1.bf16.msra.mxu0 %v8042
    %8477 = vmatprep.subr.bf16.mxu0 %v8047
    %8478 = vmatpush1.bf16.msra.mxu0 %v8046
    %8479 = vmatprep.subr.bf16.mxu0 %v8051
    %8480 = vmatpush1.bf16.msra.mxu0 %v8050
    %8481 = vmatprep.subr.bf16.mxu0 %v8055
    %8482 = vmatpush1.bf16.msra.mxu0 %v8054
    %8483 = vmatprep.subr.bf16.mxu0 %v8059
    %8484 = vmatpush1.bf16.msra.mxu0 %v8058
    %8485 = vmatprep.subr.bf16.mxu0 %v8063
    %8486 = vmatpush1.bf16.msra.mxu0 %v8062
    %8487 = vmatprep.subr.bf16.mxu0 %v8067
    %8488 = vmatpush1.bf16.msra.mxu0 %v8066
    %8489 = vmatprep.subr.bf16.mxu0 %v8071
    %8490 = vmatpush1.bf16.msra.mxu0 %v8070
    %8491 = vmatprep.subr.bf16.mxu0 %v8075
    %8492 = vmatpush1.bf16.msra.mxu0 %v8074
    %8493 = vmatprep.subr.bf16.mxu0 %v8079
    %8494 = vmatpush1.bf16.msra.mxu0 %v8078
    %8495 = vmatprep.subr.bf16.mxu0 %v8083
    %8496 = vmatpush1.bf16.msra.mxu0 %v8082
    %8497 = vmatprep.mubr.bf16.mxu0 %v7023
    %8498 = vmatmul.mubr.bf16.gmra.mrb[0].mxu0 %v7022
    %v8499 = vpop.f32.mrb[0].mxu0
    %v8500 = vadd.f32 %v8459, %v8499
    %v8501 = vpop.f32.mrb[0].mxu0
    %v8502 = vadd.f32 %v8461, %v8501
    %v8503 = vpop.f32.mrb[0].mxu0
    %v8504 = vpop.f32.mrb[0].mxu0
    %8505 = vdwg.mxu0
    %8506 = vmatprep.subr.bf16.mxu0 %v7833
    %8507 = vmatpush1.bf16.msra.mxu0 %v7832
    %8508 = vmatprep.subr.bf16.mxu0 %v7837
    %8509 = vmatpush1.bf16.msra.mxu0 %v7836
    %8510 = vmatprep.subr.bf16.mxu0 %v7841
    %8511 = vmatpush1.bf16.msra.mxu0 %v7840
    %8512 = vmatprep.subr.bf16.mxu0 %v7845
    %8513 = vmatpush1.bf16.msra.mxu0 %v7844
    %8514 = vmatprep.subr.bf16.mxu0 %v7849
    %8515 = vmatpush1.bf16.msra.mxu0 %v7848
    %8516 = vmatprep.subr.bf16.mxu0 %v7853
    %8517 = vmatpush1.bf16.msra.mxu0 %v7852
    %8518 = vmatprep.subr.bf16.mxu0 %v7857
    %8519 = vmatpush1.bf16.msra.mxu0 %v7856
    %8520 = vmatprep.subr.bf16.mxu0 %v7861
    %8521 = vmatpush1.bf16.msra.mxu0 %v7860
    %8522 = vmatprep.subr.bf16.mxu0 %v7865
    %8523 = vmatpush1.bf16.msra.mxu0 %v7864
    %8524 = vmatprep.subr.bf16.mxu0 %v7869
    %8525 = vmatpush1.bf16.msra.mxu0 %v7868
    %8526 = vmatprep.subr.bf16.mxu0 %v7873
    %8527 = vmatpush1.bf16.msra.mxu0 %v7872
    %8528 = vmatprep.subr.bf16.mxu0 %v7877
    %8529 = vmatpush1.bf16.msra.mxu0 %v7876
    %8530 = vmatprep.subr.bf16.mxu0 %v7881
    %8531 = vmatpush1.bf16.msra.mxu0 %v7880
    %8532 = vmatprep.subr.bf16.mxu0 %v7885
    %8533 = vmatpush1.bf16.msra.mxu0 %v7884
    %8534 = vmatprep.subr.bf16.mxu0 %v7889
    %8535 = vmatpush1.bf16.msra.mxu0 %v7888
    %8536 = vmatprep.subr.bf16.mxu0 %v7893
    %8537 = vmatpush1.bf16.msra.mxu0 %v7892
    %8538 = vmatprep.mubr.bf16.mxu0 %v7017
    %8539 = vmatmul.mubr.bf16.gmra.mrb[0].mxu0 %v7016
    %v8540 = vpop.f32.mrb[0].mxu0
    %v8541 = vadd.f32 %v7057, %v8540
    %v8542 = vpop.f32.mrb[0].mxu0
    %v8543 = vadd.f32 %v7061, %v8542
    %v8544 = vpop.f32.mrb[0].mxu0
    %v8545 = vpop.f32.mrb[0].mxu0
    %8546 = vdwg.mxu0
    %8547 = vmatprep.subr.bf16.mxu0 %v7897
    %8548 = vmatpush1.bf16.msra.mxu0 %v7896
    %8549 = vmatprep.subr.bf16.mxu0 %v7901
    %8550 = vmatpush1.bf16.msra.mxu0 %v7900
    %8551 = vmatprep.subr.bf16.mxu0 %v7905
    %8552 = vmatpush1.bf16.msra.mxu0 %v7904
    %8553 = vmatprep.subr.bf16.mxu0 %v7909
    %8554 = vmatpush1.bf16.msra.mxu0 %v7908
    %8555 = vmatprep.subr.bf16.mxu0 %v7913
    %8556 = vmatpush1.bf16.msra.mxu0 %v7912
    %8557 = vmatprep.subr.bf16.mxu0 %v7917
    %8558 = vmatpush1.bf16.msra.mxu0 %v7916
    %8559 = vmatprep.subr.bf16.mxu0 %v7921
    %8560 = vmatpush1.bf16.msra.mxu0 %v7920
    %8561 = vmatprep.subr.bf16.mxu0 %v7925
    %8562 = vmatpush1.bf16.msra.mxu0 %v7924
    %8563 = vmatprep.subr.bf16.mxu0 %v7929
    %8564 = vmatpush1.bf16.msra.mxu0 %v7928
    %8565 = vmatprep.subr.bf16.mxu0 %v7933
    %8566 = vmatpush1.bf16.msra.mxu0 %v7932
    %8567 = vmatprep.subr.bf16.mxu0 %v7937
    %8568 = vmatpush1.bf16.msra.mxu0 %v7936
    %8569 = vmatprep.subr.bf16.mxu0 %v7941
    %8570 = vmatpush1.bf16.msra.mxu0 %v7940
    %8571 = vmatprep.subr.bf16.mxu0 %v7945
    %8572 = vmatpush1.bf16.msra.mxu0 %v7944
    %8573 = vmatprep.subr.bf16.mxu0 %v7949
    %8574 = vmatpush1.bf16.msra.mxu0 %v7948
    %8575 = vmatprep.subr.bf16.mxu0 %v7953
    %8576 = vmatpush1.bf16.msra.mxu0 %v7952
    %8577 = vmatprep.subr.bf16.mxu0 %v7957
    %8578 = vmatpush1.bf16.msra.mxu0 %v7956
    %8579 = vmatprep.mubr.bf16.mxu0 %v7019
    %8580 = vmatmul.mubr.bf16.gmra.mrb[0].mxu0 %v7018
    %v8581 = vpop.f32.mrb[0].mxu0
    %v8582 = vadd.f32 %v8541, %v8581
    %v8583 = vpop.f32.mrb[0].mxu0
    %v8584 = vadd.f32 %v8543, %v8583
    %v8585 = vpop.f32.mrb[0].mxu0
    %v8586 = vpop.f32.mrb[0].mxu0
    %8587 = vdwg.mxu0
    %8588 = vmatprep.subr.bf16.mxu0 %v7961
    %8589 = vmatpush1.bf16.msra.mxu0 %v7960
    %8590 = vmatprep.subr.bf16.mxu0 %v7965
    %8591 = vmatpush1.bf16.msra.mxu0 %v7964
    %8592 = vmatprep.subr.bf16.mxu0 %v7969
    %8593 = vmatpush1.bf16.msra.mxu0 %v7968
    %8594 = vmatprep.subr.bf16.mxu0 %v7973
    %8595 = vmatpush1.bf16.msra.mxu0 %v7972
    %8596 = vmatprep.subr.bf16.mxu0 %v7977
    %8597 = vmatpush1.bf16.msra.mxu0 %v7976
    %8598 = vmatprep.subr.bf16.mxu0 %v7981
    %8599 = vmatpush1.bf16.msra.mxu0 %v7980
    %8600 = vmatprep.subr.bf16.mxu0 %v7985
    %8601 = vmatpush1.bf16.msra.mxu0 %v7984
    %8602 = vmatprep.subr.bf16.mxu0 %v7989
    %8603 = vmatpush1.bf16.msra.mxu0 %v7988
    %8604 = vmatprep.subr.bf16.mxu0 %v7993
    %8605 = vmatpush1.bf16.msra.mxu0 %v7992
    %8606 = vmatprep.subr.bf16.mxu0 %v7997
    %8607 = vmatpush1.bf16.msra.mxu0 %v7996
    %8608 = vmatprep.subr.bf16.mxu0 %v8001
    %8609 = vmatpush1.bf16.msra.mxu0 %v8000
    %8610 = vmatprep.subr.bf16.mxu0 %v8005
    %8611 = vmatpush1.bf16.msra.mxu0 %v8004
    %8612 = vmatprep.subr.bf16.mxu0 %v8009
    %8613 = vmatpush1.bf16.msra.mxu0 %v8008
    %8614 = vmatprep.subr.bf16.mxu0 %v8013
    %8615 = vmatpush1.bf16.msra.mxu0 %v8012
    %8616 = vmatprep.subr.bf16.mxu0 %v8017
    %8617 = vmatpush1.bf16.msra.mxu0 %v8016
    %8618 = vmatprep.subr.bf16.mxu0 %v8021
    %8619 = vmatpush1.bf16.msra.mxu0 %v8020
    %8620 = vmatprep.mubr.bf16.mxu0 %v7021
    %8621 = vmatmul.mubr.bf16.gmra.mrb[0].mxu0 %v7020
    %v8622 = vpop.f32.mrb[0].mxu0
    %v8623 = vadd.f32 %v8582, %v8622
    %v8624 = vpop.f32.mrb[0].mxu0
    %v8625 = vadd.f32 %v8584, %v8624
    %v8626 = vpop.f32.mrb[0].mxu0
    %v8627 = vpop.f32.mrb[0].mxu0
    %8628 = vdwg.mxu0
    %8629 = vmatprep.subr.bf16.mxu0 %v8025
    %8630 = vmatpush1.bf16.msra.mxu0 %v8024
    %8631 = vmatprep.subr.bf16.mxu0 %v8029
    %8632 = vmatpush1.bf16.msra.mxu0 %v8028
    %8633 = vmatprep.subr.bf16.mxu0 %v8033
    %8634 = vmatpush1.bf16.msra.mxu0 %v8032
    %8635 = vmatprep.subr.bf16.mxu0 %v8037
    %8636 = vmatpush1.bf16.msra.mxu0 %v8036
    %8637 = vmatprep.subr.bf16.mxu0 %v8041
    %8638 = vmatpush1.bf16.msra.mxu0 %v8040
    %8639 = vmatprep.subr.bf16.mxu0 %v8045
    %8640 = vmatpush1.bf16.msra.mxu0 %v8044
    %8641 = vmatprep.subr.bf16.mxu0 %v8049
    %8642 = vmatpush1.bf16.msra.mxu0 %v8048
    %8643 = vmatprep.subr.bf16.mxu0 %v8053
    %8644 = vmatpush1.bf16.msra.mxu0 %v8052
    %8645 = vmatprep.subr.bf16.mxu0 %v8057
    %8646 = vmatpush1.bf16.msra.mxu0 %v8056
    %8647 = vmatprep.subr.bf16.mxu0 %v8061
    %8648 = vmatpush1.bf16.msra.mxu0 %v8060
    %8649 = vmatprep.subr.bf16.mxu0 %v8065
    %8650 = vmatpush1.bf16.msra.mxu0 %v8064
    %8651 = vmatprep.subr.bf16.mxu0 %v8069
    %8652 = vmatpush1.bf16.msra.mxu0 %v8068
    %8653 = vmatprep.subr.bf16.mxu0 %v8073
    %8654 = vmatpush1.bf16.msra.mxu0 %v8072
    %8655 = vmatprep.subr.bf16.mxu0 %v8077
    %8656 = vmatpush1.bf16.msra.mxu0 %v8076
    %8657 = vmatprep.subr.bf16.mxu0 %v8081
    %8658 = vmatpush1.bf16.msra.mxu0 %v8080
    %8659 = vmatprep.subr.bf16.mxu0 %v8085
    %8660 = vmatpush1.bf16.msra.mxu0 %v8084
    %8661 = vmatprep.mubr.bf16.mxu0 %v7023
    %8662 = vmatmul.mubr.bf16.gmra.mrb[0].mxu0 %v7022
    %v8663 = vpop.f32.mrb[0].mxu0
    %v8664 = vadd.f32 %v8623, %v8663
    %v8665 = vpop.f32.mrb[0].mxu0
    %v8666 = vadd.f32 %v8625, %v8665
    %v8667 = vpop.f32.mrb[0].mxu0
    %v8668 = vpop.f32.mrb[0].mxu0
    %8669 = vdwg.mxu0
    %v8670 = vrot.slane %v8500, 4
    %v8671 = vadd.f32 %v8500, %v8670
    %v8672 = vrot.slane %v8671, 2
    %v8673 = vadd.f32 %v8671, %v8672
    %v8674 = vrot.slane %v8673, 1
    %v8675 = vadd.f32 %v8673, %v8674
    %v8676 = vrot.slane %v8502, 4
    %v8677 = vadd.f32 %v8502, %v8676
    %v8678 = vrot.slane %v8677, 2
    %v8679 = vadd.f32 %v8677, %v8678
    %v8680 = vrot.slane %v8679, 1
    %v8681 = vadd.f32 %v8679, %v8680
    %v8682 = vrot.slane %v8664, 4
    %v8683 = vadd.f32 %v8664, %v8682
    %v8684 = vrot.slane %v8683, 2
    %v8685 = vadd.f32 %v8683, %v8684
    %v8686 = vrot.slane %v8685, 1
    %v8687 = vadd.f32 %v8685, %v8686
    %v8688 = vrot.slane %v8666, 4
    %v8689 = vadd.f32 %v8666, %v8688
    %v8690 = vrot.slane %v8689, 2
    %v8691 = vadd.f32 %v8689, %v8690
    %v8692 = vrot.slane %v8691, 1
    %v8693 = vadd.f32 %v8691, %v8692
    %v8694 = vmul.f32 %v8675, %v3419
    %v8695 = vmul.f32 %v8681, %v3419
    %v8696 = vmul.f32 %v8687, %v3419
    %v8697 = vmul.f32 %v8693, %v3419
    %v8698 = vsub.f32 %v8500, %v8694
    %v8699 = vsub.f32 %v8502, %v8695
    %v8700 = vsub.f32 %v8664, %v8696
    %v8701 = vsub.f32 %v8666, %v8697
    %v8702 = vmul.f32 %v8698, %v8698
    %v8703 = vmul.f32 %v8699, %v8699
    %v8704 = vmul.f32 %v8700, %v8700
    %v8705 = vmul.f32 %v8701, %v8701
    %v8706 = vrot.slane %v8702, 4
    %v8707 = vadd.f32 %v8702, %v8706
    %v8708 = vrot.slane %v8707, 2
    %v8709 = vadd.f32 %v8707, %v8708
    %v8710 = vrot.slane %v8709, 1
    %v8711 = vadd.f32 %v8709, %v8710
    %v8712 = vrot.slane %v8703, 4
    %v8713 = vadd.f32 %v8703, %v8712
    %v8714 = vrot.slane %v8713, 2
    %v8715 = vadd.f32 %v8713, %v8714
    %v8716 = vrot.slane %v8715, 1
    %v8717 = vadd.f32 %v8715, %v8716
    %v8718 = vrot.slane %v8704, 4
    %v8719 = vadd.f32 %v8704, %v8718
    %v8720 = vrot.slane %v8719, 2
    %v8721 = vadd.f32 %v8719, %v8720
    %v8722 = vrot.slane %v8721, 1
    %v8723 = vadd.f32 %v8721, %v8722
    %v8724 = vrot.slane %v8705, 4
    %v8725 = vadd.f32 %v8705, %v8724
    %v8726 = vrot.slane %v8725, 2
    %v8727 = vadd.f32 %v8725, %v8726
    %v8728 = vrot.slane %v8727, 1
    %v8729 = vadd.f32 %v8727, %v8728
    %v8730 = vmul.f32 %v8711, %v3419
    %v8731 = vmul.f32 %v8717, %v3419
    %v8732 = vmul.f32 %v8723, %v3419
    %v8733 = vmul.f32 %v8729, %v3419
    %v8734 = vadd.f32 %v8730, 1e-05
    %v8735 = vadd.f32 %v8731, 1e-05
    %v8736 = vadd.f32 %v8732, 1e-05
    %v8737 = vadd.f32 %v8733, 1e-05
    %v8738 = vrsqrt.pop %v8734
    %v8739 = vrsqrt.pop %v8735
    %v8740 = vrsqrt.pop %v8736
    %v8741 = vrsqrt.pop %v8737
    %v8742 = vmul.f32 %v8698, %v8738
    %v8743 = vmul.f32 %v8699, %v8739
    %v8744 = vmul.f32 %v8700, %v8740
    %v8745 = vmul.f32 %v8701, %v8741
    %v8746 = vlaneseq
    %v8747 = vshrl.u32 %v8746, 7
    %v8748 = vsub.s32 1, %v8747
    %v8749 = vrot.slane %v7014, %v8748
    %v8750 = vlaneseq
    %v8751 = vshrl.u32 %v8750, 7
    %v8752 = vsub.s32 5, %v8751
    %v8753 = vrot.slane %v7014, %v8752
    %v8754 = vlaneseq
    %v8755 = vshrl.u32 %v8754, 7
    %v8756 = vsub.s32 1, %v8755
    %v8757 = vrot.slane %v7015, %v8756
    %v8758 = vlaneseq
    %v8759 = vshrl.u32 %v8758, 7
    %v8760 = vsub.s32 5, %v8759
    %v8761 = vrot.slane %v7015, %v8760
    %v8766 = vlaneseq
    %v8767 = vshrl.u32 %v8766, 7
    %v8768 = vsub.s32 1, %v8767
    %v8769 = vrot.slane %v8749, %v8768
    %v8770 = vlaneseq
    %v8771 = vshrl.u32 %v8770, 7
    %v8772 = vsub.s32 1, %v8771
    %v8773 = vrot.slane %v8753, %v8772
    %v8774 = vlaneseq
    %v8775 = vshrl.u32 %v8774, 7
    %v8776 = vsub.s32 1, %v8775
    %v8777 = vrot.slane %v8757, %v8776
    %v8778 = vlaneseq
    %v8779 = vshrl.u32 %v8778, 7
    %v8780 = vsub.s32 1, %v8779
    %v8781 = vrot.slane %v8761, %v8780
    %v8782 = vmul.f32 %v8742, %v8769
    %v8783 = vmul.f32 %v8743, %v8773
    %v8784 = vmul.f32 %v8744, %v8777
    %v8785 = vmul.f32 %v8745, %v8781
    %v8786 = vlaneseq
    %v8787 = vshrl.u32 %v8786, 7
    %v8788 = vsub.s32 2, %v8787
    %v8789 = vrot.slane %v7014, %v8788
    %v8790 = vlaneseq
    %v8791 = vshrl.u32 %v8790, 7
    %v8792 = vsub.s32 6, %v8791
    %v8793 = vrot.slane %v7014, %v8792
    %v8794 = vlaneseq
    %v8795 = vshrl.u32 %v8794, 7
    %v8796 = vsub.s32 2, %v8795
    %v8797 = vrot.slane %v7015, %v8796
    %v8798 = vlaneseq
    %v8799 = vshrl.u32 %v8798, 7
    %v8800 = vsub.s32 6, %v8799
    %v8801 = vrot.slane %v7015, %v8800
    %v8806 = vlaneseq
    %v8807 = vshrl.u32 %v8806, 7
    %v8808 = vsub.s32 2, %v8807
    %v8809 = vrot.slane %v8789, %v8808
    %v8810 = vlaneseq
    %v8811 = vshrl.u32 %v8810, 7
    %v8812 = vsub.s32 2, %v8811
    %v8813 = vrot.slane %v8793, %v8812
    %v8814 = vlaneseq
    %v8815 = vshrl.u32 %v8814, 7
    %v8816 = vsub.s32 2, %v8815
    %v8817 = vrot.slane %v8797, %v8816
    %v8818 = vlaneseq
    %v8819 = vshrl.u32 %v8818, 7
    %v8820 = vsub.s32 2, %v8819
    %v8821 = vrot.slane %v8801, %v8820
    %v8822 = vadd.f32 %v8782, %v8809
    %v8823 = vadd.f32 %v8783, %v8813
    %v8824 = vadd.f32 %v8784, %v8817
    %v8825 = vadd.f32 %v8785, %v8821
    %v8826 = vmax.f32 %v8822, 0.0
    %v8827 = vmax.f32 %v8823, 0.0
    %v8828 = vmax.f32 %v8824, 0.0
    %v8829 = vmax.f32 %v8825, 0.0
    %v8830 = vld [vmem:[%s13] sm:$0xff]
    %v8831 = vld [vmem:[%s13 + $0x8] sm:$0xff]
    %v8832 = vld [vmem:[%s13 + $0x10] sm:$0xff]
    %v8833 = vld [vmem:[%s13 + $0x18] sm:$0xff]
    %v8834 = vld [vmem:[%s13 + $0x20] sm:$0xff]
    %v8835 = vld [vmem:[%s13 + $0x28] sm:$0xff]
    %v8836 = vld [vmem:[%s13 + $0x30] sm:$0xff]
    %v8837 = vld [vmem:[%s13 + $0x38] sm:$0xff]
    %v8838 = vld [vmem:[%s13 + $0x40] sm:$0xff]
    %v8839 = vld [vmem:[%s13 + $0x48] sm:$0xff]
    %v8840 = vld [vmem:[%s13 + $0x50] sm:$0xff]
    %v8841 = vld [vmem:[%s13 + $0x58] sm:$0xff]
    %v8842 = vld [vmem:[%s13 + $0x60] sm:$0xff]
    %v8843 = vld [vmem:[%s13 + $0x68] sm:$0xff]
    %v8844 = vld [vmem:[%s13 + $0x70] sm:$0xff]
    %v8845 = vld [vmem:[%s13 + $0x78] sm:$0xff]
    %v8846 = vld [vmem:[%s13 + $0x80] sm:$0xff]
    %v8847 = vld [vmem:[%s13 + $0x88] sm:$0xff]
    %v8848 = vld [vmem:[%s13 + $0x90] sm:$0xff]
    %v8849 = vld [vmem:[%s13 + $0x98] sm:$0xff]
    %v8850 = vld [vmem:[%s13 + $0xa0] sm:$0xff]
    %v8851 = vld [vmem:[%s13 + $0xa8] sm:$0xff]
    %v8852 = vld [vmem:[%s13 + $0xb0] sm:$0xff]
    %v8853 = vld [vmem:[%s13 + $0xb8] sm:$0xff]
    %v8854 = vld [vmem:[%s13 + $0xc0] sm:$0xff]
    %v8855 = vld [vmem:[%s13 + $0xc8] sm:$0xff]
    %v8856 = vld [vmem:[%s13 + $0xd0] sm:$0xff]
    %v8857 = vld [vmem:[%s13 + $0xd8] sm:$0xff]
    %v8858 = vld [vmem:[%s13 + $0xe0] sm:$0xff]
    %v8859 = vld [vmem:[%s13 + $0xe8] sm:$0xff]
    %v8860 = vld [vmem:[%s13 + $0xf0] sm:$0xff]
    %v8861 = vld [vmem:[%s13 + $0xf8] sm:$0xff]
    %v8862 = vld [vmem:[%s13 + $0x100] sm:$0xff]
    %v8863 = vld [vmem:[%s13 + $0x108] sm:$0xff]
    %v8864 = vld [vmem:[%s13 + $0x110] sm:$0xff]
    %v8865 = vld [vmem:[%s13 + $0x118] sm:$0xff]
    %v8866 = vld [vmem:[%s13 + $0x120] sm:$0xff]
    %v8867 = vld [vmem:[%s13 + $0x128] sm:$0xff]
    %v8868 = vld [vmem:[%s13 + $0x130] sm:$0xff]
    %v8869 = vld [vmem:[%s13 + $0x138] sm:$0xff]
    %v8870 = vld [vmem:[%s13 + $0x140] sm:$0xff]
    %v8871 = vld [vmem:[%s13 + $0x148] sm:$0xff]
    %v8872 = vld [vmem:[%s13 + $0x150] sm:$0xff]
    %v8873 = vld [vmem:[%s13 + $0x158] sm:$0xff]
    %v8874 = vld [vmem:[%s13 + $0x160] sm:$0xff]
    %v8875 = vld [vmem:[%s13 + $0x168] sm:$0xff]
    %v8876 = vld [vmem:[%s13 + $0x170] sm:$0xff]
    %v8877 = vld [vmem:[%s13 + $0x178] sm:$0xff]
    %v8878 = vld [vmem:[%s13 + $0x180] sm:$0xff]
    %v8879 = vld [vmem:[%s13 + $0x188] sm:$0xff]
    %v8880 = vld [vmem:[%s13 + $0x190] sm:$0xff]
    %v8881 = vld [vmem:[%s13 + $0x198] sm:$0xff]
    %v8882 = vld [vmem:[%s13 + $0x1a0] sm:$0xff]
    %v8883 = vld [vmem:[%s13 + $0x1a8] sm:$0xff]
    %v8884 = vld [vmem:[%s13 + $0x1b0] sm:$0xff]
    %v8885 = vld [vmem:[%s13 + $0x1b8] sm:$0xff]
    %v8886 = vld [vmem:[%s13 + $0x1c0] sm:$0xff]
    %v8887 = vld [vmem:[%s13 + $0x1c8] sm:$0xff]
    %v8888 = vld [vmem:[%s13 + $0x1d0] sm:$0xff]
    %v8889 = vld [vmem:[%s13 + $0x1d8] sm:$0xff]
    %v8890 = vld [vmem:[%s13 + $0x1e0] sm:$0xff]
    %v8891 = vld [vmem:[%s13 + $0x1e8] sm:$0xff]
    %v8892 = vld [vmem:[%s13 + $0x1f0] sm:$0xff]
    %v8893 = vld [vmem:[%s13 + $0x1f8] sm:$0xff]
    %v8894 = vld [vmem:[#allocation12] sm:$0x77]
    %v8895 = vpack.c.bf16 %v8826, %v8826
    %v8896 = vpack.c.bf16 %v8827, %v8827
    %v8897 = vpack.c.bf16 %v8828, %v8828
    %v8898 = vpack.c.bf16 %v8829, %v8829
    %v8900 = vlaneseq
    %v8901 = vshrl.u32 %v8900, 7
    %v8902 = vsub.s32 0, %v8901
    %v8903 = vrot.slane %v8894, %v8902
    %v8904 = vlaneseq
    %v8905 = vshrl.u32 %v8904, 7
    %v8906 = vsub.s32 4, %v8905
    %v8907 = vrot.slane %v8894, %v8906
    %v8910 = vlaneseq
    %v8911 = vshrl.u32 %v8910, 7
    %v8912 = vsub.s32 0, %v8911
    %v8913 = vrot.slane %v8903, %v8912
    %v8914 = vlaneseq
    %v8915 = vshrl.u32 %v8914, 7
    %v8916 = vsub.s32 0, %v8915
    %v8917 = vrot.slane %v8907, %v8916
    %v8982 = vunpack.c.l.b16 %v8830
    %v8983 = vunpack.c.h.b16 %v8830
    %v8984 = vunpack.c.l.b16 %v8831
    %v8985 = vunpack.c.h.b16 %v8831
    %v8986 = vunpack.c.l.b16 %v8832
    %v8987 = vunpack.c.h.b16 %v8832
    %v8988 = vunpack.c.l.b16 %v8833
    %v8989 = vunpack.c.h.b16 %v8833
    %v8990 = vunpack.c.l.b16 %v8834
    %v8991 = vunpack.c.h.b16 %v8834
    %v8992 = vunpack.c.l.b16 %v8835
    %v8993 = vunpack.c.h.b16 %v8835
    %v8994 = vunpack.c.l.b16 %v8836
    %v8995 = vunpack.c.h.b16 %v8836
    %v8996 = vunpack.c.l.b16 %v8837
    %v8997 = vunpack.c.h.b16 %v8837
    %v8998 = vunpack.c.l.b16 %v8838
    %v8999 = vunpack.c.h.b16 %v8838
    %v9000 = vunpack.c.l.b16 %v8839
    %v9001 = vunpack.c.h.b16 %v8839
    %v9002 = vunpack.c.l.b16 %v8840
    %v9003 = vunpack.c.h.b16 %v8840
    %v9004 = vunpack.c.l.b16 %v8841
    %v9005 = vunpack.c.h.b16 %v8841
    %v9006 = vunpack.c.l.b16 %v8842
    %v9007 = vunpack.c.h.b16 %v8842
    %v9008 = vunpack.c.l.b16 %v8843
    %v9009 = vunpack.c.h.b16 %v8843
    %v9010 = vunpack.c.l.b16 %v8844
    %v9011 = vunpack.c.h.b16 %v8844
    %v9012 = vunpack.c.l.b16 %v8845
    %v9013 = vunpack.c.h.b16 %v8845
    %v9014 = vunpack.c.l.b16 %v8846
    %v9015 = vunpack.c.h.b16 %v8846
    %v9016 = vunpack.c.l.b16 %v8847
    %v9017 = vunpack.c.h.b16 %v8847
    %v9018 = vunpack.c.l.b16 %v8848
    %v9019 = vunpack.c.h.b16 %v8848
    %v9020 = vunpack.c.l.b16 %v8849
    %v9021 = vunpack.c.h.b16 %v8849
    %v9022 = vunpack.c.l.b16 %v8850
    %v9023 = vunpack.c.h.b16 %v8850
    %v9024 = vunpack.c.l.b16 %v8851
    %v9025 = vunpack.c.h.b16 %v8851
    %v9026 = vunpack.c.l.b16 %v8852
    %v9027 = vunpack.c.h.b16 %v8852
    %v9028 = vunpack.c.l.b16 %v8853
    %v9029 = vunpack.c.h.b16 %v8853
    %v9030 = vunpack.c.l.b16 %v8854
    %v9031 = vunpack.c.h.b16 %v8854
    %v9032 = vunpack.c.l.b16 %v8855
    %v9033 = vunpack.c.h.b16 %v8855
    %v9034 = vunpack.c.l.b16 %v8856
    %v9035 = vunpack.c.h.b16 %v8856
    %v9036 = vunpack.c.l.b16 %v8857
    %v9037 = vunpack.c.h.b16 %v8857
    %v9038 = vunpack.c.l.b16 %v8858
    %v9039 = vunpack.c.h.b16 %v8858
    %v9040 = vunpack.c.l.b16 %v8859
    %v9041 = vunpack.c.h.b16 %v8859
    %v9042 = vunpack.c.l.b16 %v8860
    %v9043 = vunpack.c.h.b16 %v8860
    %v9044 = vunpack.c.l.b16 %v8861
    %v9045 = vunpack.c.h.b16 %v8861
    %v9046 = vunpack.c.l.b16 %v8862
    %v9047 = vunpack.c.h.b16 %v8862
    %v9048 = vunpack.c.l.b16 %v8863
    %v9049 = vunpack.c.h.b16 %v8863
    %v9050 = vunpack.c.l.b16 %v8864
    %v9051 = vunpack.c.h.b16 %v8864
    %v9052 = vunpack.c.l.b16 %v8865
    %v9053 = vunpack.c.h.b16 %v8865
    %v9054 = vunpack.c.l.b16 %v8866
    %v9055 = vunpack.c.h.b16 %v8866
    %v9056 = vunpack.c.l.b16 %v8867
    %v9057 = vunpack.c.h.b16 %v8867
    %v9058 = vunpack.c.l.b16 %v8868
    %v9059 = vunpack.c.h.b16 %v8868
    %v9060 = vunpack.c.l.b16 %v8869
    %v9061 = vunpack.c.h.b16 %v8869
    %v9062 = vunpack.c.l.b16 %v8870
    %v9063 = vunpack.c.h.b16 %v8870
    %v9064 = vunpack.c.l.b16 %v8871
    %v9065 = vunpack.c.h.b16 %v8871
    %v9066 = vunpack.c.l.b16 %v8872
    %v9067 = vunpack.c.h.b16 %v8872
    %v9068 = vunpack.c.l.b16 %v8873
    %v9069 = vunpack.c.h.b16 %v8873
    %v9070 = vunpack.c.l.b16 %v8874
    %v9071 = vunpack.c.h.b16 %v8874
    %v9072 = vunpack.c.l.b16 %v8875
    %v9073 = vunpack.c.h.b16 %v8875
    %v9074 = vunpack.c.l.b16 %v8876
    %v9075 = vunpack.c.h.b16 %v8876
    %v9076 = vunpack.c.l.b16 %v8877
    %v9077 = vunpack.c.h.b16 %v8877
    %v9078 = vunpack.c.l.b16 %v8878
    %v9079 = vunpack.c.h.b16 %v8878
    %v9080 = vunpack.c.l.b16 %v8879
    %v9081 = vunpack.c.h.b16 %v8879
    %v9082 = vunpack.c.l.b16 %v8880
    %v9083 = vunpack.c.h.b16 %v8880
    %v9084 = vunpack.c.l.b16 %v8881
    %v9085 = vunpack.c.h.b16 %v8881
    %v9086 = vunpack.c.l.b16 %v8882
    %v9087 = vunpack.c.h.b16 %v8882
    %v9088 = vunpack.c.l.b16 %v8883
    %v9089 = vunpack.c.h.b16 %v8883
    %v9090 = vunpack.c.l.b16 %v8884
    %v9091 = vunpack.c.h.b16 %v8884
    %v9092 = vunpack.c.l.b16 %v8885
    %v9093 = vunpack.c.h.b16 %v8885
    %v9094 = vunpack.c.l.b16 %v8886
    %v9095 = vunpack.c.h.b16 %v8886
    %v9096 = vunpack.c.l.b16 %v8887
    %v9097 = vunpack.c.h.b16 %v8887
    %v9098 = vunpack.c.l.b16 %v8888
    %v9099 = vunpack.c.h.b16 %v8888
    %v9100 = vunpack.c.l.b16 %v8889
    %v9101 = vunpack.c.h.b16 %v8889
    %v9102 = vunpack.c.l.b16 %v8890
    %v9103 = vunpack.c.h.b16 %v8890
    %v9104 = vunpack.c.l.b16 %v8891
    %v9105 = vunpack.c.h.b16 %v8891
    %v9106 = vunpack.c.l.b16 %v8892
    %v9107 = vunpack.c.h.b16 %v8892
    %v9108 = vunpack.c.l.b16 %v8893
    %v9109 = vunpack.c.h.b16 %v8893
    %v9110 = vpack.c.b16 %v8984, %v8982
    %v9111 = vpack.c.b16 %v8985, %v8983
    %v9112 = vpack.c.b16 %v8988, %v8986
    %v9113 = vpack.c.b16 %v8989, %v8987
    %v9114 = vpack.c.b16 %v8992, %v8990
    %v9115 = vpack.c.b16 %v8993, %v8991
    %v9116 = vpack.c.b16 %v8996, %v8994
    %v9117 = vpack.c.b16 %v8997, %v8995
    %v9118 = vpack.c.b16 %v9000, %v8998
    %v9119 = vpack.c.b16 %v9001, %v8999
    %v9120 = vpack.c.b16 %v9004, %v9002
    %v9121 = vpack.c.b16 %v9005, %v9003
    %v9122 = vpack.c.b16 %v9008, %v9006
    %v9123 = vpack.c.b16 %v9009, %v9007
    %v9124 = vpack.c.b16 %v9012, %v9010
    %v9125 = vpack.c.b16 %v9013, %v9011
    %v9126 = vpack.c.b16 %v9016, %v9014
    %v9127 = vpack.c.b16 %v9017, %v9015
    %v9128 = vpack.c.b16 %v9020, %v9018
    %v9129 = vpack.c.b16 %v9021, %v9019
    %v9130 = vpack.c.b16 %v9024, %v9022
    %v9131 = vpack.c.b16 %v9025, %v9023
    %v9132 = vpack.c.b16 %v9028, %v9026
    %v9133 = vpack.c.b16 %v9029, %v9027
    %v9134 = vpack.c.b16 %v9032, %v9030
    %v9135 = vpack.c.b16 %v9033, %v9031
    %v9136 = vpack.c.b16 %v9036, %v9034
    %v9137 = vpack.c.b16 %v9037, %v9035
    %v9138 = vpack.c.b16 %v9040, %v9038
    %v9139 = vpack.c.b16 %v9041, %v9039
    %v9140 = vpack.c.b16 %v9044, %v9042
    %v9141 = vpack.c.b16 %v9045, %v9043
    %v9142 = vpack.c.b16 %v9048, %v9046
    %v9143 = vpack.c.b16 %v9049, %v9047
    %v9144 = vpack.c.b16 %v9052, %v9050
    %v9145 = vpack.c.b16 %v9053, %v9051
    %v9146 = vpack.c.b16 %v9056, %v9054
    %v9147 = vpack.c.b16 %v9057, %v9055
    %v9148 = vpack.c.b16 %v9060, %v9058
    %v9149 = vpack.c.b16 %v9061, %v9059
    %v9150 = vpack.c.b16 %v9064, %v9062
    %v9151 = vpack.c.b16 %v9065, %v9063
    %v9152 = vpack.c.b16 %v9068, %v9066
    %v9153 = vpack.c.b16 %v9069, %v9067
    %v9154 = vpack.c.b16 %v9072, %v9070
    %v9155 = vpack.c.b16 %v9073, %v9071
    %v9156 = vpack.c.b16 %v9076, %v9074
    %v9157 = vpack.c.b16 %v9077, %v9075
    %v9158 = vpack.c.b16 %v9080, %v9078
    %v9159 = vpack.c.b16 %v9081, %v9079
    %v9160 = vpack.c.b16 %v9084, %v9082
    %v9161 = vpack.c.b16 %v9085, %v9083
    %v9162 = vpack.c.b16 %v9088, %v9086
    %v9163 = vpack.c.b16 %v9089, %v9087
    %v9164 = vpack.c.b16 %v9092, %v9090
    %v9165 = vpack.c.b16 %v9093, %v9091
    %v9166 = vpack.c.b16 %v9096, %v9094
    %v9167 = vpack.c.b16 %v9097, %v9095
    %v9168 = vpack.c.b16 %v9100, %v9098
    %v9169 = vpack.c.b16 %v9101, %v9099
    %v9170 = vpack.c.b16 %v9104, %v9102
    %v9171 = vpack.c.b16 %v9105, %v9103
    %v9172 = vpack.c.b16 %v9108, %v9106
    %v9173 = vpack.c.b16 %v9109, %v9107
    %9238 = vmatprep.subr.bf16.mxu0 %v9111
    %9239 = vmatpush1.bf16.msra.mxu0 %v9110
    %9240 = vmatprep.subr.bf16.mxu0 %v9113
    %9241 = vmatpush1.bf16.msra.mxu0 %v9112
    %9242 = vmatprep.subr.bf16.mxu0 %v9115
    %9243 = vmatpush1.bf16.msra.mxu0 %v9114
    %9244 = vmatprep.subr.bf16.mxu0 %v9117
    %9245 = vmatpush1.bf16.msra.mxu0 %v9116
    %9246 = vmatprep.subr.bf16.mxu0 %v9119
    %9247 = vmatpush1.bf16.msra.mxu0 %v9118
    %9248 = vmatprep.subr.bf16.mxu0 %v9121
    %9249 = vmatpush1.bf16.msra.mxu0 %v9120
    %9250 = vmatprep.subr.bf16.mxu0 %v9123
    %9251 = vmatpush1.bf16.msra.mxu0 %v9122
    %9252 = vmatprep.subr.bf16.mxu0 %v9125
    %9253 = vmatpush1.bf16.msra.mxu0 %v9124
    %9254 = vmatprep.subr.bf16.mxu0 %v9127
    %9255 = vmatpush1.bf16.msra.mxu0 %v9126
    %9256 = vmatprep.subr.bf16.mxu0 %v9129
    %9257 = vmatpush1.bf16.msra.mxu0 %v9128
    %9258 = vmatprep.subr.bf16.mxu0 %v9131
    %9259 = vmatpush1.bf16.msra.mxu0 %v9130
    %9260 = vmatprep.subr.bf16.mxu0 %v9133
    %9261 = vmatpush1.bf16.msra.mxu0 %v9132
    %9262 = vmatprep.subr.bf16.mxu0 %v9135
    %9263 = vmatpush1.bf16.msra.mxu0 %v9134
    %9264 = vmatprep.subr.bf16.mxu0 %v9137
    %9265 = vmatpush1.bf16.msra.mxu0 %v9136
    %9266 = vmatprep.subr.bf16.mxu0 %v9139
    %9267 = vmatpush1.bf16.msra.mxu0 %v9138
    %9268 = vmatprep.subr.bf16.mxu0 %v9141
    %9269 = vmatpush1.bf16.msra.mxu0 %v9140
    %9270 = vmatprep.mubr.bf16.mxu0 %v8896
    %9271 = vmatmul.mubr.bf16.gmra.mrb[0].mxu0 %v8895
    %v9272 = vpop.f32.mrb[0].mxu0
    %v9273 = vadd.f32 %v8913, %v9272
    %v9274 = vpop.f32.mrb[0].mxu0
    %v9275 = vadd.f32 %v8917, %v9274
    %v9276 = vpop.f32.mrb[0].mxu0
    %v9277 = vpop.f32.mrb[0].mxu0
    %9278 = vdwg.mxu0
    %9279 = vmatprep.subr.bf16.mxu0 %v9143
    %9280 = vmatpush1.bf16.msra.mxu0 %v9142
    %9281 = vmatprep.subr.bf16.mxu0 %v9145
    %9282 = vmatpush1.bf16.msra.mxu0 %v9144
    %9283 = vmatprep.subr.bf16.mxu0 %v9147
    %9284 = vmatpush1.bf16.msra.mxu0 %v9146
    %9285 = vmatprep.subr.bf16.mxu0 %v9149
    %9286 = vmatpush1.bf16.msra.mxu0 %v9148
    %9287 = vmatprep.subr.bf16.mxu0 %v9151
    %9288 = vmatpush1.bf16.msra.mxu0 %v9150
    %9289 = vmatprep.subr.bf16.mxu0 %v9153
    %9290 = vmatpush1.bf16.msra.mxu0 %v9152
    %9291 = vmatprep.subr.bf16.mxu0 %v9155
    %9292 = vmatpush1.bf16.msra.mxu0 %v9154
    %9293 = vmatprep.subr.bf16.mxu0 %v9157
    %9294 = vmatpush1.bf16.msra.mxu0 %v9156
    %9295 = vmatprep.subr.bf16.mxu0 %v9159
    %9296 = vmatpush1.bf16.msra.mxu0 %v9158
    %9297 = vmatprep.subr.bf16.mxu0 %v9161
    %9298 = vmatpush1.bf16.msra.mxu0 %v9160
    %9299 = vmatprep.subr.bf16.mxu0 %v9163
    %9300 = vmatpush1.bf16.msra.mxu0 %v9162
    %9301 = vmatprep.subr.bf16.mxu0 %v9165
    %9302 = vmatpush1.bf16.msra.mxu0 %v9164
    %9303 = vmatprep.subr.bf16.mxu0 %v9167
    %9304 = vmatpush1.bf16.msra.mxu0 %v9166
    %9305 = vmatprep.subr.bf16.mxu0 %v9169
    %9306 = vmatpush1.bf16.msra.mxu0 %v9168
    %9307 = vmatprep.subr.bf16.mxu0 %v9171
    %9308 = vmatpush1.bf16.msra.mxu0 %v9170
    %9309 = vmatprep.subr.bf16.mxu0 %v9173
    %9310 = vmatpush1.bf16.msra.mxu0 %v9172
    %9311 = vmatprep.mubr.bf16.mxu0 %v8898
    %9312 = vmatmul.mubr.bf16.gmra.mrb[0].mxu0 %v8897
    %v9313 = vpop.f32.mrb[0].mxu0
    %v9314 = vadd.f32 %v9273, %v9313
    %v9315 = vpop.f32.mrb[0].mxu0
    %v9316 = vadd.f32 %v9275, %v9315
    %v9317 = vpop.f32.mrb[0].mxu0
    %v9318 = vpop.f32.mrb[0].mxu0
    %9319 = vdwg.mxu0
    %v9320 = vrot.slane %v9314, 4
    %v9321 = vadd.f32 %v9314, %v9320
    %v9322 = vrot.slane %v9321, 2
    %v9323 = vadd.f32 %v9321, %v9322
    %v9324 = vrot.slane %v9323, 1
    %v9325 = vadd.f32 %v9323, %v9324
    %v9326 = vrot.slane %v9316, 4
    %v9327 = vadd.f32 %v9316, %v9326
    %v9328 = vrot.slane %v9327, 2
    %v9329 = vadd.f32 %v9327, %v9328
    %v9330 = vrot.slane %v9329, 1
    %v9331 = vadd.f32 %v9329, %v9330
    %v9332 = vmul.f32 %v9325, %v3419
    %v9333 = vmul.f32 %v9331, %v3419
    %v9334 = vsub.f32 %v9314, %v9332
    %v9335 = vsub.f32 %v9316, %v9333
    %v9336 = vmul.f32 %v9334, %v9334
    %v9337 = vmul.f32 %v9335, %v9335
    %v9338 = vrot.slane %v9336, 4
    %v9339 = vadd.f32 %v9336, %v9338
    %v9340 = vrot.slane %v9339, 2
    %v9341 = vadd.f32 %v9339, %v9340
    %v9342 = vrot.slane %v9341, 1
    %v9343 = vadd.f32 %v9341, %v9342
    %v9344 = vrot.slane %v9337, 4
    %v9345 = vadd.f32 %v9337, %v9344
    %v9346 = vrot.slane %v9345, 2
    %v9347 = vadd.f32 %v9345, %v9346
    %v9348 = vrot.slane %v9347, 1
    %v9349 = vadd.f32 %v9347, %v9348
    %v9350 = vmul.f32 %v9343, %v3419
    %v9351 = vmul.f32 %v9349, %v3419
    %v9352 = vadd.f32 %v9350, 1e-05
    %v9353 = vadd.f32 %v9351, 1e-05
    %v9354 = vrsqrt.pop %v9352
    %v9355 = vrsqrt.pop %v9353
    %v9356 = vmul.f32 %v9334, %v9354
    %v9357 = vmul.f32 %v9335, %v9355
    %v9358 = vlaneseq
    %v9359 = vshrl.u32 %v9358, 7
    %v9360 = vsub.s32 1, %v9359
    %v9361 = vrot.slane %v8894, %v9360
    %v9362 = vlaneseq
    %v9363 = vshrl.u32 %v9362, 7
    %v9364 = vsub.s32 5, %v9363
    %v9365 = vrot.slane %v8894, %v9364
    %v9368 = vlaneseq
    %v9369 = vshrl.u32 %v9368, 7
    %v9370 = vsub.s32 1, %v9369
    %v9371 = vrot.slane %v9361, %v9370
    %v9372 = vlaneseq
    %v9373 = vshrl.u32 %v9372, 7
    %v9374 = vsub.s32 1, %v9373
    %v9375 = vrot.slane %v9365, %v9374
    %v9376 = vmul.f32 %v9356, %v9371
    %v9377 = vmul.f32 %v9357, %v9375
    %v9378 = vlaneseq
    %v9379 = vshrl.u32 %v9378, 7
    %v9380 = vsub.s32 2, %v9379
    %v9381 = vrot.slane %v8894, %v9380
    %v9382 = vlaneseq
    %v9383 = vshrl.u32 %v9382, 7
    %v9384 = vsub.s32 6, %v9383
    %v9385 = vrot.slane %v8894, %v9384
    %v9388 = vlaneseq
    %v9389 = vshrl.u32 %v9388, 7
    %v9390 = vsub.s32 2, %v9389
    %v9391 = vrot.slane %v9381, %v9390
    %v9392 = vlaneseq
    %v9393 = vshrl.u32 %v9392, 7
    %v9394 = vsub.s32 2, %v9393
    %v9395 = vrot.slane %v9385, %v9394
    %v9396 = vadd.f32 %v9376, %v9391
    %v9397 = vadd.f32 %v9377, %v9395
    %v9398 = vmax.f32 %v9396, 0.0
    %v9399 = vmax.f32 %v9397, 0.0
    %v9400 = vld [vmem:[#allocation13] sm:$0xf]
    %v9401 = vld [vmem:[#allocation13 + $0x4] sm:$0xf]
    %v9402 = vld [vmem:[#allocation13 + $0x8] sm:$0xf]
    %v9403 = vld [vmem:[#allocation13 + $0xc] sm:$0xf]
    %v9404 = vld [vmem:[#allocation13 + $0x10] sm:$0xf]
    %v9405 = vld [vmem:[#allocation13 + $0x14] sm:$0xf]
    %v9406 = vld [vmem:[#allocation13 + $0x18] sm:$0xf]
    %v9407 = vld [vmem:[#allocation13 + $0x1c] sm:$0xf]
    %v9408 = vld [vmem:[#allocation13 + $0x20] sm:$0xf]
    %v9409 = vld [vmem:[#allocation13 + $0x24] sm:$0xf]
    %v9410 = vld [vmem:[#allocation13 + $0x28] sm:$0xf]
    %v9411 = vld [vmem:[#allocation13 + $0x2c] sm:$0xf]
    %v9412 = vld [vmem:[#allocation13 + $0x30] sm:$0xf]
    %v9413 = vld [vmem:[#allocation13 + $0x34] sm:$0xf]
    %v9414 = vld [vmem:[#allocation13 + $0x38] sm:$0xf]
    %v9415 = vld [vmem:[#allocation13 + $0x3c] sm:$0xf]
    %v9416 = vld [vmem:[#allocation13 + $0x40] sm:$0xf]
    %v9417 = vld [vmem:[#allocation13 + $0x44] sm:$0xf]
    %v9418 = vld [vmem:[#allocation13 + $0x48] sm:$0xf]
    %v9419 = vld [vmem:[#allocation13 + $0x4c] sm:$0xf]
    %v9420 = vld [vmem:[#allocation13 + $0x50] sm:$0xf]
    %v9421 = vld [vmem:[#allocation13 + $0x54] sm:$0xf]
    %v9422 = vld [vmem:[#allocation13 + $0x58] sm:$0xf]
    %v9423 = vld [vmem:[#allocation13 + $0x5c] sm:$0xf]
    %v9424 = vld [vmem:[#allocation13 + $0x60] sm:$0xf]
    %v9425 = vld [vmem:[#allocation13 + $0x64] sm:$0xf]
    %v9426 = vld [vmem:[#allocation13 + $0x68] sm:$0xf]
    %v9427 = vld [vmem:[#allocation13 + $0x6c] sm:$0xf]
    %v9428 = vld [vmem:[#allocation13 + $0x70] sm:$0xf]
    %v9429 = vld [vmem:[#allocation13 + $0x74] sm:$0xf]
    %v9430 = vld [vmem:[#allocation13 + $0x78] sm:$0xf]
    %v9431 = vld [vmem:[#allocation13 + $0x7c] sm:$0xf]
    %v9432 = vld [vmem:[#allocation15] sm:$0x7]
    %v9433 = vpack.c.bf16 %v9398, %v9398
    %v9434 = vpack.c.bf16 %v9399, %v9399
    %v9435 = vlaneseq
    %v9436 = vshrl.u32 %v9435, 7
    %v9437 = vsub.s32 0, %v9436
    %v9438 = vrot.slane %v9432, %v9437
    %v9471 = vunpack.c.l.b16 %v9400
    %v9472 = vunpack.c.l.b16 %v9401
    %v9473 = vunpack.c.l.b16 %v9402
    %v9474 = vunpack.c.l.b16 %v9403
    %v9475 = vunpack.c.l.b16 %v9404
    %v9476 = vunpack.c.l.b16 %v9405
    %v9477 = vunpack.c.l.b16 %v9406
    %v9478 = vunpack.c.l.b16 %v9407
    %v9479 = vunpack.c.l.b16 %v9408
    %v9480 = vunpack.c.l.b16 %v9409
    %v9481 = vunpack.c.l.b16 %v9410
    %v9482 = vunpack.c.l.b16 %v9411
    %v9483 = vunpack.c.l.b16 %v9412
    %v9484 = vunpack.c.l.b16 %v9413
    %v9485 = vunpack.c.l.b16 %v9414
    %v9486 = vunpack.c.l.b16 %v9415
    %v9487 = vunpack.c.l.b16 %v9416
    %v9488 = vunpack.c.l.b16 %v9417
    %v9489 = vunpack.c.l.b16 %v9418
    %v9490 = vunpack.c.l.b16 %v9419
    %v9491 = vunpack.c.l.b16 %v9420
    %v9492 = vunpack.c.l.b16 %v9421
    %v9493 = vunpack.c.l.b16 %v9422
    %v9494 = vunpack.c.l.b16 %v9423
    %v9495 = vunpack.c.l.b16 %v9424
    %v9496 = vunpack.c.l.b16 %v9425
    %v9497 = vunpack.c.l.b16 %v9426
    %v9498 = vunpack.c.l.b16 %v9427
    %v9499 = vunpack.c.l.b16 %v9428
    %v9500 = vunpack.c.l.b16 %v9429
    %v9501 = vunpack.c.l.b16 %v9430
    %v9502 = vunpack.c.l.b16 %v9431
    %v9503 = vpack.c.b16 %v9472, %v9471
    %v9504 = vpack.c.b16 %v9474, %v9473
    %v9505 = vpack.c.b16 %v9476, %v9475
    %v9506 = vpack.c.b16 %v9478, %v9477
    %v9507 = vpack.c.b16 %v9480, %v9479
    %v9508 = vpack.c.b16 %v9482, %v9481
    %v9509 = vpack.c.b16 %v9484, %v9483
    %v9510 = vpack.c.b16 %v9486, %v9485
    %v9511 = vpack.c.b16 %v9488, %v9487
    %v9512 = vpack.c.b16 %v9490, %v9489
    %v9513 = vpack.c.b16 %v9492, %v9491
    %v9514 = vpack.c.b16 %v9494, %v9493
    %v9515 = vpack.c.b16 %v9496, %v9495
    %v9516 = vpack.c.b16 %v9498, %v9497
    %v9517 = vpack.c.b16 %v9500, %v9499
    %v9518 = vpack.c.b16 %v9502, %v9501
    %9535 = vmatprep.subr.bf16.mxu0 0
    %9536 = vmatpush1.bf16.msra.mxu0 %v9503
    %9537 = vmatprep.subr.bf16.mxu0 0
    %9538 = vmatpush1.bf16.msra.mxu0 %v9504
    %9539 = vmatprep.subr.bf16.mxu0 0
    %9540 = vmatpush1.bf16.msra.mxu0 %v9505
    %9541 = vmatprep.subr.bf16.mxu0 0
    %9542 = vmatpush1.bf16.msra.mxu0 %v9506
    %9543 = vmatprep.subr.bf16.mxu0 0
    %9544 = vmatpush1.bf16.msra.mxu0 %v9507
    %9545 = vmatprep.subr.bf16.mxu0 0
    %9546 = vmatpush1.bf16.msra.mxu0 %v9508
    %9547 = vmatprep.subr.bf16.mxu0 0
    %9548 = vmatpush1.bf16.msra.mxu0 %v9509
    %9549 = vmatprep.subr.bf16.mxu0 0
    %9550 = vmatpush1.bf16.msra.mxu0 %v9510
    %9551 = vmatprep.subr.bf16.mxu0 0
    %9552 = vmatpush1.bf16.msra.mxu0 %v9511
    %9553 = vmatprep.subr.bf16.mxu0 0
    %9554 = vmatpush1.bf16.msra.mxu0 %v9512
    %9555 = vmatprep.subr.bf16.mxu0 0
    %9556 = vmatpush1.bf16.msra.mxu0 %v9513
    %9557 = vmatprep.subr.bf16.mxu0 0
    %9558 = vmatpush1.bf16.msra.mxu0 %v9514
    %9559 = vmatprep.subr.bf16.mxu0 0
    %9560 = vmatpush1.bf16.msra.mxu0 %v9515
    %9561 = vmatprep.subr.bf16.mxu0 0
    %9562 = vmatpush1.bf16.msra.mxu0 %v9516
    %9563 = vmatprep.subr.bf16.mxu0 0
    %9564 = vmatpush1.bf16.msra.mxu0 %v9517
    %9565 = vmatprep.subr.bf16.mxu0 0
    %9566 = vmatpush1.bf16.msra.mxu0 %v9518
    %9567 = vmatprep.mubr.bf16.mxu0 %v9434
    %9568 = vmatmul.mubr.bf16.gmra.mrb[0].mxu0 %v9433
    %v9569 = vpop.f32.mrb[0].mxu0
    %v9570 = vadd.f32 %v9438, %v9569
    %v9571 = vpop.f32.mrb[0].mxu0
    %v9572 = vpop.f32.mrb[0].mxu0
    %v9573 = vpop.f32.mrb[0].mxu0
    %9574 = vdwg.mxu0
    %v9575 = vrot.slane %v9570, 4
    %v9576 = vadd.f32 %v9570, %v9575
    %v9577 = vrot.slane %v9576, 2
    %v9578 = vadd.f32 %v9576, %v9577
    %v9579 = vrot.slane %v9578, 1
    %v9580 = vadd.f32 %v9578, %v9579
    %v9581 = vmul.f32 %v9580, %v3419
    %v9582 = vsub.f32 %v9570, %v9581
    %v9583 = vmul.f32 %v9582, %v9582
    %v9584 = vrot.slane %v9583, 4
    %v9585 = vadd.f32 %v9583, %v9584
    %v9586 = vrot.slane %v9585, 2
    %v9587 = vadd.f32 %v9585, %v9586
    %v9588 = vrot.slane %v9587, 1
    %v9589 = vadd.f32 %v9587, %v9588
    %v9590 = vmul.f32 %v9589, %v3419
    %v9591 = vadd.f32 %v9590, 1e-05
    %v9592 = vrsqrt.pop %v9591
    %v9593 = vmul.f32 %v9582, %v9592
    %v9594 = vlaneseq
    %v9595 = vshrl.u32 %v9594, 7
    %v9596 = vsub.s32 1, %v9595
    %v9597 = vrot.slane %v9432, %v9596
    %v9598 = vmul.f32 %v9593, %v9597
    %v9599 = vlaneseq
    %v9600 = vshrl.u32 %v9599, 7
    %v9601 = vsub.s32 2, %v9600
    %v9602 = vrot.slane %v9432, %v9601
    %v9603 = vadd.f32 %v9598, %v9602
    %v9604 = vmax.f32 %v9603, 0.0
    %v9605 = vld [vmem:[#allocation16] sm:$0xf]
    %v9606 = vld [vmem:[#allocation16 + $0x4] sm:$0xf]
    %v9607 = vld [vmem:[#allocation16 + $0x8] sm:$0xf]
    %v9608 = vld [vmem:[#allocation16 + $0xc] sm:$0xf]
    %v9609 = vld [vmem:[#allocation16 + $0x10] sm:$0xf]
    %v9610 = vld [vmem:[#allocation16 + $0x14] sm:$0xf]
    %v9611 = vld [vmem:[#allocation16 + $0x18] sm:$0xf]
    %v9612 = vld [vmem:[#allocation16 + $0x1c] sm:$0xf]
    %v9613 = vld [vmem:[#allocation16 + $0x20] sm:$0xf]
    %v9614 = vld [vmem:[#allocation16 + $0x24] sm:$0xf]
    %v9615 = vld [vmem:[#allocation16 + $0x28] sm:$0xf]
    %v9616 = vld [vmem:[#allocation16 + $0x2c] sm:$0xf]
    %v9617 = vld [vmem:[#allocation16 + $0x30] sm:$0xf]
    %v9618 = vld [vmem:[#allocation16 + $0x34] sm:$0xf]
    %v9619 = vld [vmem:[#allocation16 + $0x38] sm:$0xf]
    %v9620 = vld [vmem:[#allocation16 + $0x3c] sm:$0xf]
    %v9621 = vld [vmem:[#allocation18] sm:$0x7]
    %v9622 = vpack.c.bf16 %v9604, %v9604
    %v9623 = vlaneseq
    %v9624 = vshrl.u32 %v9623, 7
    %v9625 = vsub.s32 0, %v9624
    %v9626 = vrot.slane %v9621, %v9625
    %v9643 = vunpack.c.l.b16 %v9605
    %v9644 = vunpack.c.l.b16 %v9606
    %v9645 = vunpack.c.l.b16 %v9607
    %v9646 = vunpack.c.l.b16 %v9608
    %v9647 = vunpack.c.l.b16 %v9609
    %v9648 = vunpack.c.l.b16 %v9610
    %v9649 = vunpack.c.l.b16 %v9611
    %v9650 = vunpack.c.l.b16 %v9612
    %v9651 = vunpack.c.l.b16 %v9613
    %v9652 = vunpack.c.l.b16 %v9614
    %v9653 = vunpack.c.l.b16 %v9615
    %v9654 = vunpack.c.l.b16 %v9616
    %v9655 = vunpack.c.l.b16 %v9617
    %v9656 = vunpack.c.l.b16 %v9618
    %v9657 = vunpack.c.l.b16 %v9619
    %v9658 = vunpack.c.l.b16 %v9620
    %v9659 = vpack.c.b16 %v9644, %v9643
    %v9660 = vpack.c.b16 %v9646, %v9645
    %v9661 = vpack.c.b16 %v9648, %v9647
    %v9662 = vpack.c.b16 %v9650, %v9649
    %v9663 = vpack.c.b16 %v9652, %v9651
    %v9664 = vpack.c.b16 %v9654, %v9653
    %v9665 = vpack.c.b16 %v9656, %v9655
    %v9666 = vpack.c.b16 %v9658, %v9657
    %9675 = vmatprep.subr.bf16.mxu0 0
    %9676 = vmatpush1.bf16.msra.mxu0 %v9659
    %9677 = vmatprep.subr.bf16.mxu0 0
    %9678 = vmatpush1.bf16.msra.mxu0 %v9660
    %9679 = vmatprep.subr.bf16.mxu0 0
    %9680 = vmatpush1.bf16.msra.mxu0 %v9661
    %9681 = vmatprep.subr.bf16.mxu0 0
    %9682 = vmatpush1.bf16.msra.mxu0 %v9662
    %9683 = vmatprep.subr.bf16.mxu0 0
    %9684 = vmatpush1.bf16.msra.mxu0 %v9663
    %9685 = vmatprep.subr.bf16.mxu0 0
    %9686 = vmatpush1.bf16.msra.mxu0 %v9664
    %9687 = vmatprep.subr.bf16.mxu0 0
    %9688 = vmatpush1.bf16.msra.mxu0 %v9665
    %9689 = vmatprep.subr.bf16.mxu0 0
    %9690 = vmatpush1.bf16.msra.mxu0 %v9666
    %9691 = vmatprep.subr.bf16.mxu0 0
    %9692 = vmatpush1.bf16.msra.mxu0 0
    %9693 = vmatprep.subr.bf16.mxu0 0
    %9694 = vmatpush1.bf16.msra.mxu0 0
    %9695 = vmatprep.subr.bf16.mxu0 0
    %9696 = vmatpush1.bf16.msra.mxu0 0
    %9697 = vmatprep.subr.bf16.mxu0 0
    %9698 = vmatpush1.bf16.msra.mxu0 0
    %9699 = vmatprep.subr.bf16.mxu0 0
    %9700 = vmatpush1.bf16.msra.mxu0 0
    %9701 = vmatprep.subr.bf16.mxu0 0
    %9702 = vmatpush1.bf16.msra.mxu0 0
    %9703 = vmatprep.subr.bf16.mxu0 0
    %9704 = vmatpush1.bf16.msra.mxu0 0
    %9705 = vmatprep.subr.bf16.mxu0 0
    %9706 = vmatpush1.bf16.msra.mxu0 0
    %9707 = vmatprep.mubr.bf16.mxu0 0
    %9708 = vmatmul.mubr.bf16.gmra.mrb[0].mxu0 %v9622
    %v9709 = vpop.f32.mrb[0].mxu0
    %v9710 = vadd.f32 %v9626, %v9709
    %v9711 = vpop.f32.mrb[0].mxu0
    %v9712 = vpop.f32.mrb[0].mxu0
    %v9713 = vpop.f32.mrb[0].mxu0
    %9714 = vdwg.mxu0
    %v9715 = vrot.slane %v9710, 4
    %v9716 = vadd.f32 %v9710, %v9715
    %v9717 = vrot.slane %v9716, 2
    %v9718 = vadd.f32 %v9716, %v9717
    %v9719 = vrot.slane %v9718, 1
    %v9720 = vadd.f32 %v9718, %v9719
    %v9721 = vmul.f32 %v9720, %v3419
    %v9722 = vsub.f32 %v9710, %v9721
    %v9723 = vmul.f32 %v9722, %v9722
    %v9724 = vrot.slane %v9723, 4
    %v9725 = vadd.f32 %v9723, %v9724
    %v9726 = vrot.slane %v9725, 2
    %v9727 = vadd.f32 %v9725, %v9726
    %v9728 = vrot.slane %v9727, 1
    %v9729 = vadd.f32 %v9727, %v9728
    %v9730 = vmul.f32 %v9729, %v3419
    %v9731 = vadd.f32 %v9730, 1e-05
    %v9732 = vrsqrt.pop %v9731
    %v9733 = vmul.f32 %v9722, %v9732
    %v9734 = vlaneseq
    %v9735 = vshrl.u32 %v9734, 7
    %v9736 = vsub.s32 1, %v9735
    %v9737 = vrot.slane %v9621, %v9736
    %v9738 = vmul.f32 %v9733, %v9737
    %v9739 = vlaneseq
    %v9740 = vshrl.u32 %v9739, 7
    %v9741 = vsub.s32 2, %v9740
    %v9742 = vrot.slane %v9621, %v9741
    %v9743 = vadd.f32 %v9738, %v9742
    %v9744 = vmax.f32 %v9743, 0.0
    %v9745 = vld [vmem:[%s19] sm:$0xff]
    %v9746 = vld [vmem:[%s19 + $0x8] sm:$0xff]
    %v9747 = vld [vmem:[%s19 + $0x10] sm:$0xff]
    %v9748 = vld [vmem:[%s19 + $0x18] sm:$0xff]
    %v9749 = vld [vmem:[%s19 + $0x20] sm:$0xff]
    %v9750 = vld [vmem:[%s19 + $0x28] sm:$0xff]
    %v9751 = vld [vmem:[%s19 + $0x30] sm:$0xff]
    %v9752 = vld [vmem:[%s19 + $0x38] sm:$0xff]
    %v9753 = vld [vmem:[%s19 + $0x40] sm:$0xff]
    %v9754 = vld [vmem:[%s19 + $0x48] sm:$0xf]
    %v9755 = vld [vmem:[%s19 + $0x4c] sm:$0xff]
    %v9756 = vld [vmem:[%s19 + $0x54] sm:$0xff]
    %v9757 = vld [vmem:[%s19 + $0x5c] sm:$0xff]
    %v9758 = vld [vmem:[%s19 + $0x64] sm:$0xff]
    %v9759 = vld [vmem:[%s19 + $0x6c] sm:$0xff]
    %v9760 = vld [vmem:[%s19 + $0x74] sm:$0xff]
    %v9761 = vld [vmem:[%s19 + $0x7c] sm:$0xff]
    %v9762 = vld [vmem:[%s19 + $0x84] sm:$0xff]
    %v9763 = vld [vmem:[%s19 + $0x8c] sm:$0xff]
    %v9764 = vld [vmem:[%s19 + $0x94] sm:$0xf]
    %v9765 = vld [vmem:[%s19 + $0x98] sm:$0xff]
    %v9766 = vld [vmem:[%s19 + $0xa0] sm:$0xff]
    %v9767 = vld [vmem:[%s19 + $0xa8] sm:$0xff]
    %v9768 = vld [vmem:[%s19 + $0xb0] sm:$0xff]
    %v9769 = vld [vmem:[%s19 + $0xb8] sm:$0xff]
    %v9770 = vld [vmem:[%s19 + $0xc0] sm:$0xff]
    %v9771 = vld [vmem:[%s19 + $0xc8] sm:$0xff]
    %v9772 = vld [vmem:[%s19 + $0xd0] sm:$0xff]
    %v9773 = vld [vmem:[%s19 + $0xd8] sm:$0xff]
    %v9774 = vld [vmem:[%s19 + $0xe0] sm:$0xf]
    %v9775 = vld [vmem:[%s19 + $0xe4] sm:$0xff]
    %v9776 = vld [vmem:[%s19 + $0xec] sm:$0xff]
    %v9777 = vld [vmem:[%s19 + $0xf4] sm:$0xff]
    %v9778 = vld [vmem:[%s19 + $0xfc] sm:$0xff]
    %v9779 = vld [vmem:[%s19 + $0x104] sm:$0xff]
    %v9780 = vld [vmem:[%s19 + $0x10c] sm:$0xff]
    %v9781 = vld [vmem:[%s19 + $0x114] sm:$0xff]
    %v9782 = vld [vmem:[%s19 + $0x11c] sm:$0xff]
    %v9783 = vld [vmem:[%s19 + $0x124] sm:$0xff]
    %v9784 = vld [vmem:[%s19 + $0x12c] sm:$0xf]
    %v9785 = vld [vmem:[%s19 + $0x130] sm:$0xff]
    %v9786 = vld [vmem:[%s19 + $0x138] sm:$0xff]
    %v9787 = vld [vmem:[%s19 + $0x140] sm:$0xff]
    %v9788 = vld [vmem:[%s19 + $0x148] sm:$0xff]
    %v9789 = vld [vmem:[%s19 + $0x150] sm:$0xff]
    %v9790 = vld [vmem:[%s19 + $0x158] sm:$0xff]
    %v9791 = vld [vmem:[%s19 + $0x160] sm:$0xff]
    %v9792 = vld [vmem:[%s19 + $0x168] sm:$0xff]
    %v9793 = vld [vmem:[%s19 + $0x170] sm:$0xff]
    %v9794 = vld [vmem:[%s19 + $0x178] sm:$0xf]
    %v9795 = vld [vmem:[%s19 + $0x17c] sm:$0xff]
    %v9796 = vld [vmem:[%s19 + $0x184] sm:$0xff]
    %v9797 = vld [vmem:[%s19 + $0x18c] sm:$0xff]
    %v9798 = vld [vmem:[%s19 + $0x194] sm:$0xff]
    %v9799 = vld [vmem:[%s19 + $0x19c] sm:$0xff]
    %v9800 = vld [vmem:[%s19 + $0x1a4] sm:$0xff]
    %v9801 = vld [vmem:[%s19 + $0x1ac] sm:$0xff]
    %v9802 = vld [vmem:[%s19 + $0x1b4] sm:$0xff]
    %v9803 = vld [vmem:[%s19 + $0x1bc] sm:$0xff]
    %v9804 = vld [vmem:[%s19 + $0x1c4] sm:$0xf]
    %v9805 = vld [vmem:[%s19 + $0x1c8] sm:$0xff]
    %v9806 = vld [vmem:[%s19 + $0x1d0] sm:$0xff]
    %v9807 = vld [vmem:[%s19 + $0x1d8] sm:$0xff]
    %v9808 = vld [vmem:[%s19 + $0x1e0] sm:$0xff]
    %v9809 = vld [vmem:[%s19 + $0x1e8] sm:$0xff]
    %v9810 = vld [vmem:[%s19 + $0x1f0] sm:$0xff]
    %v9811 = vld [vmem:[%s19 + $0x1f8] sm:$0xff]
    %v9812 = vld [vmem:[%s19 + $0x200] sm:$0xff]
    %v9813 = vld [vmem:[%s19 + $0x208] sm:$0xff]
    %v9814 = vld [vmem:[%s19 + $0x210] sm:$0xf]
    %v9815 = vld [vmem:[%s19 + $0x214] sm:$0xff]
    %v9816 = vld [vmem:[%s19 + $0x21c] sm:$0xff]
    %v9817 = vld [vmem:[%s19 + $0x224] sm:$0xff]
    %v9818 = vld [vmem:[%s19 + $0x22c] sm:$0xff]
    %v9819 = vld [vmem:[%s19 + $0x234] sm:$0xff]
    %v9820 = vld [vmem:[%s19 + $0x23c] sm:$0xff]
    %v9821 = vld [vmem:[%s19 + $0x244] sm:$0xff]
    %v9822 = vld [vmem:[%s19 + $0x24c] sm:$0xff]
    %v9823 = vld [vmem:[%s19 + $0x254] sm:$0xff]
    %v9824 = vld [vmem:[%s19 + $0x25c] sm:$0xf]
    %v9825 = vld [vmem:[%s19 + $0x260] sm:$0xff]
    %v9826 = vld [vmem:[%s19 + $0x268] sm:$0xff]
    %v9827 = vld [vmem:[%s19 + $0x270] sm:$0xff]
    %v9828 = vld [vmem:[%s19 + $0x278] sm:$0xff]
    %v9829 = vld [vmem:[%s19 + $0x280] sm:$0xff]
    %v9830 = vld [vmem:[%s19 + $0x288] sm:$0xff]
    %v9831 = vld [vmem:[%s19 + $0x290] sm:$0xff]
    %v9832 = vld [vmem:[%s19 + $0x298] sm:$0xff]
    %v9833 = vld [vmem:[%s19 + $0x2a0] sm:$0xff]
    %v9834 = vld [vmem:[%s19 + $0x2a8] sm:$0xf]
    %v9835 = vld [vmem:[%s19 + $0x2ac] sm:$0xff]
    %v9836 = vld [vmem:[%s19 + $0x2b4] sm:$0xff]
    %v9837 = vld [vmem:[%s19 + $0x2bc] sm:$0xff]
    %v9838 = vld [vmem:[%s19 + $0x2c4] sm:$0xff]
    %v9839 = vld [vmem:[%s19 + $0x2cc] sm:$0xff]
    %v9840 = vld [vmem:[%s19 + $0x2d4] sm:$0xff]
    %v9841 = vld [vmem:[%s19 + $0x2dc] sm:$0xff]
    %v9842 = vld [vmem:[%s19 + $0x2e4] sm:$0xff]
    %v9843 = vld [vmem:[%s19 + $0x2ec] sm:$0xff]
    %v9844 = vld [vmem:[%s19 + $0x2f4] sm:$0xf]
    %v9845 = vld [vmem:[%s19 + $0x2f8] sm:$0xff]
    %v9846 = vld [vmem:[%s19 + $0x300] sm:$0xff]
    %v9847 = vld [vmem:[%s19 + $0x308] sm:$0xff]
    %v9848 = vld [vmem:[%s19 + $0x310] sm:$0xff]
    %v9849 = vld [vmem:[%s19 + $0x318] sm:$0xff]
    %v9850 = vld [vmem:[%s19 + $0x320] sm:$0xff]
    %v9851 = vld [vmem:[%s19 + $0x328] sm:$0xff]
    %v9852 = vld [vmem:[%s19 + $0x330] sm:$0xff]
    %v9853 = vld [vmem:[%s19 + $0x338] sm:$0xff]
    %v9854 = vld [vmem:[%s19 + $0x340] sm:$0xf]
    %v9855 = vld [vmem:[%s19 + $0x344] sm:$0xff]
    %v9856 = vld [vmem:[%s19 + $0x34c] sm:$0xff]
    %v9857 = vld [vmem:[%s19 + $0x354] sm:$0xff]
    %v9858 = vld [vmem:[%s19 + $0x35c] sm:$0xff]
    %v9859 = vld [vmem:[%s19 + $0x364] sm:$0xff]
    %v9860 = vld [vmem:[%s19 + $0x36c] sm:$0xff]
    %v9861 = vld [vmem:[%s19 + $0x374] sm:$0xff]
    %v9862 = vld [vmem:[%s19 + $0x37c] sm:$0xff]
    %v9863 = vld [vmem:[%s19 + $0x384] sm:$0xff]
    %v9864 = vld [vmem:[%s19 + $0x38c] sm:$0xf]
    %v9865 = vld [vmem:[%s19 + $0x390] sm:$0xff]
    %v9866 = vld [vmem:[%s19 + $0x398] sm:$0xff]
    %v9867 = vld [vmem:[%s19 + $0x3a0] sm:$0xff]
    %v9868 = vld [vmem:[%s19 + $0x3a8] sm:$0xff]
    %v9869 = vld [vmem:[%s19 + $0x3b0] sm:$0xff]
    %v9870 = vld [vmem:[%s19 + $0x3b8] sm:$0xff]
    %v9871 = vld [vmem:[%s19 + $0x3c0] sm:$0xff]
    %v9872 = vld [vmem:[%s19 + $0x3c8] sm:$0xff]
    %v9873 = vld [vmem:[%s19 + $0x3d0] sm:$0xff]
    %v9874 = vld [vmem:[%s19 + $0x3d8] sm:$0xf]
    %v9875 = vld [vmem:[%s19 + $0x3dc] sm:$0xff]
    %v9876 = vld [vmem:[%s19 + $0x3e4] sm:$0xff]
    %v9877 = vld [vmem:[%s19 + $0x3ec] sm:$0xff]
    %v9878 = vld [vmem:[%s19 + $0x3f4] sm:$0xff]
    %v9879 = vld [vmem:[%s19 + $0x3fc] sm:$0xff]
    %v9880 = vld [vmem:[%s19 + $0x404] sm:$0xff]
    %v9881 = vld [vmem:[%s19 + $0x40c] sm:$0xff]
    %v9882 = vld [vmem:[%s19 + $0x414] sm:$0xff]
    %v9883 = vld [vmem:[%s19 + $0x41c] sm:$0xff]
    %v9884 = vld [vmem:[%s19 + $0x424] sm:$0xf]
    %v9885 = vld [vmem:[%s19 + $0x428] sm:$0xff]
    %v9886 = vld [vmem:[%s19 + $0x430] sm:$0xff]
    %v9887 = vld [vmem:[%s19 + $0x438] sm:$0xff]
    %v9888 = vld [vmem:[%s19 + $0x440] sm:$0xff]
    %v9889 = vld [vmem:[%s19 + $0x448] sm:$0xff]
    %v9890 = vld [vmem:[%s19 + $0x450] sm:$0xff]
    %v9891 = vld [vmem:[%s19 + $0x458] sm:$0xff]
    %v9892 = vld [vmem:[%s19 + $0x460] sm:$0xff]
    %v9893 = vld [vmem:[%s19 + $0x468] sm:$0xff]
    %v9894 = vld [vmem:[%s19 + $0x470] sm:$0xf]
    %v9895 = vld [vmem:[%s19 + $0x474] sm:$0xff]
    %v9896 = vld [vmem:[%s19 + $0x47c] sm:$0xff]
    %v9897 = vld [vmem:[%s19 + $0x484] sm:$0xff]
    %v9898 = vld [vmem:[%s19 + $0x48c] sm:$0xff]
    %v9899 = vld [vmem:[%s19 + $0x494] sm:$0xff]
    %v9900 = vld [vmem:[%s19 + $0x49c] sm:$0xff]
    %v9901 = vld [vmem:[%s19 + $0x4a4] sm:$0xff]
    %v9902 = vld [vmem:[%s19 + $0x4ac] sm:$0xff]
    %v9903 = vld [vmem:[%s19 + $0x4b4] sm:$0xff]
    %v9904 = vld [vmem:[%s19 + $0x4bc] sm:$0xf]
    %v9905 = vld [vmem:[%s20] sm:$0x77]
    %v9906 = vld [vmem:[%s20 + $0x8] sm:$0x77]
    %v9907 = vld [vmem:[%s20 + $0x10] sm:$0x77]
    %v9908 = vld [vmem:[%s20 + $0x18] sm:$0x77]
    %v9909 = vld [vmem:[%s20 + $0x20] sm:$0x77]
    %v9910 = vld [vmem:[%s20 + $0x28] sm:$0x77]
    %v9911 = vld [vmem:[%s20 + $0x30] sm:$0x77]
    %v9912 = vld [vmem:[%s20 + $0x38] sm:$0x77]
    %v9913 = vld [vmem:[%s20 + $0x40] sm:$0x77]
    %v9914 = vld [vmem:[%s20 + $0x48] sm:$0x7]
    %v9915 = vpack.c.bf16 %v9744, %v9744
    %v9926 = vlaneseq
    %v9927 = vshrl.u32 %v9926, 7
    %v9928 = vsub.s32 0, %v9927
    %v9929 = vrot.slane %v9905, %v9928
    %v9930 = vlaneseq
    %v9931 = vshrl.u32 %v9930, 7
    %v9932 = vsub.s32 4, %v9931
    %v9933 = vrot.slane %v9905, %v9932
    %v9934 = vlaneseq
    %v9935 = vshrl.u32 %v9934, 7
    %v9936 = vsub.s32 0, %v9935
    %v9937 = vrot.slane %v9906, %v9936
    %v9938 = vlaneseq
    %v9939 = vshrl.u32 %v9938, 7
    %v9940 = vsub.s32 4, %v9939
    %v9941 = vrot.slane %v9906, %v9940
    %v9942 = vlaneseq
    %v9943 = vshrl.u32 %v9942, 7
    %v9944 = vsub.s32 0, %v9943
    %v9945 = vrot.slane %v9907, %v9944
    %v9946 = vlaneseq
    %v9947 = vshrl.u32 %v9946, 7
    %v9948 = vsub.s32 4, %v9947
    %v9949 = vrot.slane %v9907, %v9948
    %v9950 = vlaneseq
    %v9951 = vshrl.u32 %v9950, 7
    %v9952 = vsub.s32 0, %v9951
    %v9953 = vrot.slane %v9908, %v9952
    %v9954 = vlaneseq
    %v9955 = vshrl.u32 %v9954, 7
    %v9956 = vsub.s32 4, %v9955
    %v9957 = vrot.slane %v9908, %v9956
    %v9958 = vlaneseq
    %v9959 = vshrl.u32 %v9958, 7
    %v9960 = vsub.s32 0, %v9959
    %v9961 = vrot.slane %v9909, %v9960
    %v9962 = vlaneseq
    %v9963 = vshrl.u32 %v9962, 7
    %v9964 = vsub.s32 4, %v9963
    %v9965 = vrot.slane %v9909, %v9964
    %v9966 = vlaneseq
    %v9967 = vshrl.u32 %v9966, 7
    %v9968 = vsub.s32 0, %v9967
    %v9969 = vrot.slane %v9910, %v9968
    %v9970 = vlaneseq
    %v9971 = vshrl.u32 %v9970, 7
    %v9972 = vsub.s32 4, %v9971
    %v9973 = vrot.slane %v9910, %v9972
    %v9974 = vlaneseq
    %v9975 = vshrl.u32 %v9974, 7
    %v9976 = vsub.s32 0, %v9975
    %v9977 = vrot.slane %v9911, %v9976
    %v9978 = vlaneseq
    %v9979 = vshrl.u32 %v9978, 7
    %v9980 = vsub.s32 4, %v9979
    %v9981 = vrot.slane %v9911, %v9980
    %v9982 = vlaneseq
    %v9983 = vshrl.u32 %v9982, 7
    %v9984 = vsub.s32 0, %v9983
    %v9985 = vrot.slane %v9912, %v9984
    %v9986 = vlaneseq
    %v9987 = vshrl.u32 %v9986, 7
    %v9988 = vsub.s32 4, %v9987
    %v9989 = vrot.slane %v9912, %v9988
    %v9990 = vlaneseq
    %v9991 = vshrl.u32 %v9990, 7
    %v9992 = vsub.s32 0, %v9991
    %v9993 = vrot.slane %v9913, %v9992
    %v9994 = vlaneseq
    %v9995 = vshrl.u32 %v9994, 7
    %v9996 = vsub.s32 4, %v9995
    %v9997 = vrot.slane %v9913, %v9996
    %v9998 = vlaneseq
    %v9999 = vshrl.u32 %v9998, 7
    %v10000 = vsub.s32 0, %v9999
    %v10001 = vrot.slane %v9914, %v10000
    %v10021 = vlaneseq
    %v10022 = vshrl.u32 %v10021, 7
    %v10023 = vsub.s32 0, %v10022
    %v10024 = vrot.slane %v9929, %v10023
    %v10025 = vlaneseq
    %v10026 = vshrl.u32 %v10025, 7
    %v10027 = vsub.s32 0, %v10026
    %v10028 = vrot.slane %v9933, %v10027
    %v10029 = vlaneseq
    %v10030 = vshrl.u32 %v10029, 7
    %v10031 = vsub.s32 0, %v10030
    %v10032 = vrot.slane %v9937, %v10031
    %v10033 = vlaneseq
    %v10034 = vshrl.u32 %v10033, 7
    %v10035 = vsub.s32 0, %v10034
    %v10036 = vrot.slane %v9941, %v10035
    %v10037 = vlaneseq
    %v10038 = vshrl.u32 %v10037, 7
    %v10039 = vsub.s32 0, %v10038
    %v10040 = vrot.slane %v9945, %v10039
    %v10041 = vlaneseq
    %v10042 = vshrl.u32 %v10041, 7
    %v10043 = vsub.s32 0, %v10042
    %v10044 = vrot.slane %v9949, %v10043
    %v10045 = vlaneseq
    %v10046 = vshrl.u32 %v10045, 7
    %v10047 = vsub.s32 0, %v10046
    %v10048 = vrot.slane %v9953, %v10047
    %v10049 = vlaneseq
    %v10050 = vshrl.u32 %v10049, 7
    %v10051 = vsub.s32 0, %v10050
    %v10052 = vrot.slane %v9957, %v10051
    %v10053 = vlaneseq
    %v10054 = vshrl.u32 %v10053, 7
    %v10055 = vsub.s32 0, %v10054
    %v10056 = vrot.slane %v9961, %v10055
    %v10057 = vlaneseq
    %v10058 = vshrl.u32 %v10057, 7
    %v10059 = vsub.s32 0, %v10058
    %v10060 = vrot.slane %v9965, %v10059
    %v10061 = vlaneseq
    %v10062 = vshrl.u32 %v10061, 7
    %v10063 = vsub.s32 0, %v10062
    %v10064 = vrot.slane %v9969, %v10063
    %v10065 = vlaneseq
    %v10066 = vshrl.u32 %v10065, 7
    %v10067 = vsub.s32 0, %v10066
    %v10068 = vrot.slane %v9973, %v10067
    %v10069 = vlaneseq
    %v10070 = vshrl.u32 %v10069, 7
    %v10071 = vsub.s32 0, %v10070
    %v10072 = vrot.slane %v9977, %v10071
    %v10073 = vlaneseq
    %v10074 = vshrl.u32 %v10073, 7
    %v10075 = vsub.s32 0, %v10074
    %v10076 = vrot.slane %v9981, %v10075
    %v10077 = vlaneseq
    %v10078 = vshrl.u32 %v10077, 7
    %v10079 = vsub.s32 0, %v10078
    %v10080 = vrot.slane %v9985, %v10079
    %v10081 = vlaneseq
    %v10082 = vshrl.u32 %v10081, 7
    %v10083 = vsub.s32 0, %v10082
    %v10084 = vrot.slane %v9989, %v10083
    %v10085 = vlaneseq
    %v10086 = vshrl.u32 %v10085, 7
    %v10087 = vsub.s32 0, %v10086
    %v10088 = vrot.slane %v9993, %v10087
    %v10089 = vlaneseq
    %v10090 = vshrl.u32 %v10089, 7
    %v10091 = vsub.s32 0, %v10090
    %v10092 = vrot.slane %v9997, %v10091
    %v10093 = vlaneseq
    %v10094 = vshrl.u32 %v10093, 7
    %v10095 = vsub.s32 0, %v10094
    %v10096 = vrot.slane %v10001, %v10095
    %v10257 = vunpack.c.l.b16 %v9745
    %v10258 = vunpack.c.h.b16 %v9745
    %v10259 = vunpack.c.l.b16 %v9746
    %v10260 = vunpack.c.h.b16 %v9746
    %v10261 = vunpack.c.l.b16 %v9747
    %v10262 = vunpack.c.h.b16 %v9747
    %v10263 = vunpack.c.l.b16 %v9748
    %v10264 = vunpack.c.h.b16 %v9748
    %v10265 = vunpack.c.l.b16 %v9749
    %v10266 = vunpack.c.h.b16 %v9749
    %v10267 = vunpack.c.l.b16 %v9750
    %v10268 = vunpack.c.h.b16 %v9750
    %v10269 = vunpack.c.l.b16 %v9751
    %v10270 = vunpack.c.h.b16 %v9751
    %v10271 = vunpack.c.l.b16 %v9752
    %v10272 = vunpack.c.h.b16 %v9752
    %v10273 = vunpack.c.l.b16 %v9753
    %v10274 = vunpack.c.h.b16 %v9753
    %v10275 = vunpack.c.l.b16 %v9754
    %v10276 = vunpack.c.l.b16 %v9755
    %v10277 = vunpack.c.h.b16 %v9755
    %v10278 = vunpack.c.l.b16 %v9756
    %v10279 = vunpack.c.h.b16 %v9756
    %v10280 = vunpack.c.l.b16 %v9757
    %v10281 = vunpack.c.h.b16 %v9757
    %v10282 = vunpack.c.l.b16 %v9758
    %v10283 = vunpack.c.h.b16 %v9758
    %v10284 = vunpack.c.l.b16 %v9759
    %v10285 = vunpack.c.h.b16 %v9759
    %v10286 = vunpack.c.l.b16 %v9760
    %v10287 = vunpack.c.h.b16 %v9760
    %v10288 = vunpack.c.l.b16 %v9761
    %v10289 = vunpack.c.h.b16 %v9761
    %v10290 = vunpack.c.l.b16 %v9762
    %v10291 = vunpack.c.h.b16 %v9762
    %v10292 = vunpack.c.l.b16 %v9763
    %v10293 = vunpack.c.h.b16 %v9763
    %v10294 = vunpack.c.l.b16 %v9764
    %v10295 = vunpack.c.l.b16 %v9765
    %v10296 = vunpack.c.h.b16 %v9765
    %v10297 = vunpack.c.l.b16 %v9766
    %v10298 = vunpack.c.h.b16 %v9766
    %v10299 = vunpack.c.l.b16 %v9767
    %v10300 = vunpack.c.h.b16 %v9767
    %v10301 = vunpack.c.l.b16 %v9768
    %v10302 = vunpack.c.h.b16 %v9768
    %v10303 = vunpack.c.l.b16 %v9769
    %v10304 = vunpack.c.h.b16 %v9769
    %v10305 = vunpack.c.l.b16 %v9770
    %v10306 = vunpack.c.h.b16 %v9770
    %v10307 = vunpack.c.l.b16 %v9771
    %v10308 = vunpack.c.h.b16 %v9771
    %v10309 = vunpack.c.l.b16 %v9772
    %v10310 = vunpack.c.h.b16 %v9772
    %v10311 = vunpack.c.l.b16 %v9773
    %v10312 = vunpack.c.h.b16 %v9773
    %v10313 = vunpack.c.l.b16 %v9774
    %v10314 = vunpack.c.l.b16 %v9775
    %v10315 = vunpack.c.h.b16 %v9775
    %v10316 = vunpack.c.l.b16 %v9776
    %v10317 = vunpack.c.h.b16 %v9776
    %v10318 = vunpack.c.l.b16 %v9777
    %v10319 = vunpack.c.h.b16 %v9777
    %v10320 = vunpack.c.l.b16 %v9778
    %v10321 = vunpack.c.h.b16 %v9778
    %v10322 = vunpack.c.l.b16 %v9779
    %v10323 = vunpack.c.h.b16 %v9779
    %v10324 = vunpack.c.l.b16 %v9780
    %v10325 = vunpack.c.h.b16 %v9780
    %v10326 = vunpack.c.l.b16 %v9781
    %v10327 = vunpack.c.h.b16 %v9781
    %v10328 = vunpack.c.l.b16 %v9782
    %v10329 = vunpack.c.h.b16 %v9782
    %v10330 = vunpack.c.l.b16 %v9783
    %v10331 = vunpack.c.h.b16 %v9783
    %v10332 = vunpack.c.l.b16 %v9784
    %v10333 = vunpack.c.l.b16 %v9785
    %v10334 = vunpack.c.h.b16 %v9785
    %v10335 = vunpack.c.l.b16 %v9786
    %v10336 = vunpack.c.h.b16 %v9786
    %v10337 = vunpack.c.l.b16 %v9787
    %v10338 = vunpack.c.h.b16 %v9787
    %v10339 = vunpack.c.l.b16 %v9788
    %v10340 = vunpack.c.h.b16 %v9788
    %v10341 = vunpack.c.l.b16 %v9789
    %v10342 = vunpack.c.h.b16 %v9789
    %v10343 = vunpack.c.l.b16 %v9790
    %v10344 = vunpack.c.h.b16 %v9790
    %v10345 = vunpack.c.l.b16 %v9791
    %v10346 = vunpack.c.h.b16 %v9791
    %v10347 = vunpack.c.l.b16 %v9792
    %v10348 = vunpack.c.h.b16 %v9792
    %v10349 = vunpack.c.l.b16 %v9793
    %v10350 = vunpack.c.h.b16 %v9793
    %v10351 = vunpack.c.l.b16 %v9794
    %v10352 = vunpack.c.l.b16 %v9795
    %v10353 = vunpack.c.h.b16 %v9795
    %v10354 = vunpack.c.l.b16 %v9796
    %v10355 = vunpack.c.h.b16 %v9796
    %v10356 = vunpack.c.l.b16 %v9797
    %v10357 = vunpack.c.h.b16 %v9797
    %v10358 = vunpack.c.l.b16 %v9798
    %v10359 = vunpack.c.h.b16 %v9798
    %v10360 = vunpack.c.l.b16 %v9799
    %v10361 = vunpack.c.h.b16 %v9799
    %v10362 = vunpack.c.l.b16 %v9800
    %v10363 = vunpack.c.h.b16 %v9800
    %v10364 = vunpack.c.l.b16 %v9801
    %v10365 = vunpack.c.h.b16 %v9801
    %v10366 = vunpack.c.l.b16 %v9802
    %v10367 = vunpack.c.h.b16 %v9802
    %v10368 = vunpack.c.l.b16 %v9803
    %v10369 = vunpack.c.h.b16 %v9803
    %v10370 = vunpack.c.l.b16 %v9804
    %v10371 = vunpack.c.l.b16 %v9805
    %v10372 = vunpack.c.h.b16 %v9805
    %v10373 = vunpack.c.l.b16 %v9806
    %v10374 = vunpack.c.h.b16 %v9806
    %v10375 = vunpack.c.l.b16 %v9807
    %v10376 = vunpack.c.h.b16 %v9807
    %v10377 = vunpack.c.l.b16 %v9808
    %v10378 = vunpack.c.h.b16 %v9808
    %v10379 = vunpack.c.l.b16 %v9809
    %v10380 = vunpack.c.h.b16 %v9809
    %v10381 = vunpack.c.l.b16 %v9810
    %v10382 = vunpack.c.h.b16 %v9810
    %v10383 = vunpack.c.l.b16 %v9811
    %v10384 = vunpack.c.h.b16 %v9811
    %v10385 = vunpack.c.l.b16 %v9812
    %v10386 = vunpack.c.h.b16 %v9812
    %v10387 = vunpack.c.l.b16 %v9813
    %v10388 = vunpack.c.h.b16 %v9813
    %v10389 = vunpack.c.l.b16 %v9814
    %v10390 = vunpack.c.l.b16 %v9815
    %v10391 = vunpack.c.h.b16 %v9815
    %v10392 = vunpack.c.l.b16 %v9816
    %v10393 = vunpack.c.h.b16 %v9816
    %v10394 = vunpack.c.l.b16 %v9817
    %v10395 = vunpack.c.h.b16 %v9817
    %v10396 = vunpack.c.l.b16 %v9818
    %v10397 = vunpack.c.h.b16 %v9818
    %v10398 = vunpack.c.l.b16 %v9819
    %v10399 = vunpack.c.h.b16 %v9819
    %v10400 = vunpack.c.l.b16 %v9820
    %v10401 = vunpack.c.h.b16 %v9820
    %v10402 = vunpack.c.l.b16 %v9821
    %v10403 = vunpack.c.h.b16 %v9821
    %v10404 = vunpack.c.l.b16 %v9822
    %v10405 = vunpack.c.h.b16 %v9822
    %v10406 = vunpack.c.l.b16 %v9823
    %v10407 = vunpack.c.h.b16 %v9823
    %v10408 = vunpack.c.l.b16 %v9824
    %v10409 = vunpack.c.l.b16 %v9825
    %v10410 = vunpack.c.h.b16 %v9825
    %v10411 = vunpack.c.l.b16 %v9826
    %v10412 = vunpack.c.h.b16 %v9826
    %v10413 = vunpack.c.l.b16 %v9827
    %v10414 = vunpack.c.h.b16 %v9827
    %v10415 = vunpack.c.l.b16 %v9828
    %v10416 = vunpack.c.h.b16 %v9828
    %v10417 = vunpack.c.l.b16 %v9829
    %v10418 = vunpack.c.h.b16 %v9829
    %v10419 = vunpack.c.l.b16 %v9830
    %v10420 = vunpack.c.h.b16 %v9830
    %v10421 = vunpack.c.l.b16 %v9831
    %v10422 = vunpack.c.h.b16 %v9831
    %v10423 = vunpack.c.l.b16 %v9832
    %v10424 = vunpack.c.h.b16 %v9832
    %v10425 = vunpack.c.l.b16 %v9833
    %v10426 = vunpack.c.h.b16 %v9833
    %v10427 = vunpack.c.l.b16 %v9834
    %v10428 = vunpack.c.l.b16 %v9835
    %v10429 = vunpack.c.h.b16 %v9835
    %v10430 = vunpack.c.l.b16 %v9836
    %v10431 = vunpack.c.h.b16 %v9836
    %v10432 = vunpack.c.l.b16 %v9837
    %v10433 = vunpack.c.h.b16 %v9837
    %v10434 = vunpack.c.l.b16 %v9838
    %v10435 = vunpack.c.h.b16 %v9838
    %v10436 = vunpack.c.l.b16 %v9839
    %v10437 = vunpack.c.h.b16 %v9839
    %v10438 = vunpack.c.l.b16 %v9840
    %v10439 = vunpack.c.h.b16 %v9840
    %v10440 = vunpack.c.l.b16 %v9841
    %v10441 = vunpack.c.h.b16 %v9841
    %v10442 = vunpack.c.l.b16 %v9842
    %v10443 = vunpack.c.h.b16 %v9842
    %v10444 = vunpack.c.l.b16 %v9843
    %v10445 = vunpack.c.h.b16 %v9843
    %v10446 = vunpack.c.l.b16 %v9844
    %v10447 = vunpack.c.l.b16 %v9845
    %v10448 = vunpack.c.h.b16 %v9845
    %v10449 = vunpack.c.l.b16 %v9846
    %v10450 = vunpack.c.h.b16 %v9846
    %v10451 = vunpack.c.l.b16 %v9847
    %v10452 = vunpack.c.h.b16 %v9847
    %v10453 = vunpack.c.l.b16 %v9848
    %v10454 = vunpack.c.h.b16 %v9848
    %v10455 = vunpack.c.l.b16 %v9849
    %v10456 = vunpack.c.h.b16 %v9849
    %v10457 = vunpack.c.l.b16 %v9850
    %v10458 = vunpack.c.h.b16 %v9850
    %v10459 = vunpack.c.l.b16 %v9851
    %v10460 = vunpack.c.h.b16 %v9851
    %v10461 = vunpack.c.l.b16 %v9852
    %v10462 = vunpack.c.h.b16 %v9852
    %v10463 = vunpack.c.l.b16 %v9853
    %v10464 = vunpack.c.h.b16 %v9853
    %v10465 = vunpack.c.l.b16 %v9854
    %v10466 = vunpack.c.l.b16 %v9855
    %v10467 = vunpack.c.h.b16 %v9855
    %v10468 = vunpack.c.l.b16 %v9856
    %v10469 = vunpack.c.h.b16 %v9856
    %v10470 = vunpack.c.l.b16 %v9857
    %v10471 = vunpack.c.h.b16 %v9857
    %v10472 = vunpack.c.l.b16 %v9858
    %v10473 = vunpack.c.h.b16 %v9858
    %v10474 = vunpack.c.l.b16 %v9859
    %v10475 = vunpack.c.h.b16 %v9859
    %v10476 = vunpack.c.l.b16 %v9860
    %v10477 = vunpack.c.h.b16 %v9860
    %v10478 = vunpack.c.l.b16 %v9861
    %v10479 = vunpack.c.h.b16 %v9861
    %v10480 = vunpack.c.l.b16 %v9862
    %v10481 = vunpack.c.h.b16 %v9862
    %v10482 = vunpack.c.l.b16 %v9863
    %v10483 = vunpack.c.h.b16 %v9863
    %v10484 = vunpack.c.l.b16 %v9864
    %v10485 = vunpack.c.l.b16 %v9865
    %v10486 = vunpack.c.h.b16 %v9865
    %v10487 = vunpack.c.l.b16 %v9866
    %v10488 = vunpack.c.h.b16 %v9866
    %v10489 = vunpack.c.l.b16 %v9867
    %v10490 = vunpack.c.h.b16 %v9867
    %v10491 = vunpack.c.l.b16 %v9868
    %v10492 = vunpack.c.h.b16 %v9868
    %v10493 = vunpack.c.l.b16 %v9869
    %v10494 = vunpack.c.h.b16 %v9869
    %v10495 = vunpack.c.l.b16 %v9870
    %v10496 = vunpack.c.h.b16 %v9870
    %v10497 = vunpack.c.l.b16 %v9871
    %v10498 = vunpack.c.h.b16 %v9871
    %v10499 = vunpack.c.l.b16 %v9872
    %v10500 = vunpack.c.h.b16 %v9872
    %v10501 = vunpack.c.l.b16 %v9873
    %v10502 = vunpack.c.h.b16 %v9873
    %v10503 = vunpack.c.l.b16 %v9874
    %v10504 = vunpack.c.l.b16 %v9875
    %v10505 = vunpack.c.h.b16 %v9875
    %v10506 = vunpack.c.l.b16 %v9876
    %v10507 = vunpack.c.h.b16 %v9876
    %v10508 = vunpack.c.l.b16 %v9877
    %v10509 = vunpack.c.h.b16 %v9877
    %v10510 = vunpack.c.l.b16 %v9878
    %v10511 = vunpack.c.h.b16 %v9878
    %v10512 = vunpack.c.l.b16 %v9879
    %v10513 = vunpack.c.h.b16 %v9879
    %v10514 = vunpack.c.l.b16 %v9880
    %v10515 = vunpack.c.h.b16 %v9880
    %v10516 = vunpack.c.l.b16 %v9881
    %v10517 = vunpack.c.h.b16 %v9881
    %v10518 = vunpack.c.l.b16 %v9882
    %v10519 = vunpack.c.h.b16 %v9882
    %v10520 = vunpack.c.l.b16 %v9883
    %v10521 = vunpack.c.h.b16 %v9883
    %v10522 = vunpack.c.l.b16 %v9884
    %v10523 = vunpack.c.l.b16 %v9885
    %v10524 = vunpack.c.h.b16 %v9885
    %v10525 = vunpack.c.l.b16 %v9886
    %v10526 = vunpack.c.h.b16 %v9886
    %v10527 = vunpack.c.l.b16 %v9887
    %v10528 = vunpack.c.h.b16 %v9887
    %v10529 = vunpack.c.l.b16 %v9888
    %v10530 = vunpack.c.h.b16 %v9888
    %v10531 = vunpack.c.l.b16 %v9889
    %v10532 = vunpack.c.h.b16 %v9889
    %v10533 = vunpack.c.l.b16 %v9890
    %v10534 = vunpack.c.h.b16 %v9890
    %v10535 = vunpack.c.l.b16 %v9891
    %v10536 = vunpack.c.h.b16 %v9891
    %v10537 = vunpack.c.l.b16 %v9892
    %v10538 = vunpack.c.h.b16 %v9892
    %v10539 = vunpack.c.l.b16 %v9893
    %v10540 = vunpack.c.h.b16 %v9893
    %v10541 = vunpack.c.l.b16 %v9894
    %v10542 = vunpack.c.l.b16 %v9895
    %v10543 = vunpack.c.h.b16 %v9895
    %v10544 = vunpack.c.l.b16 %v9896
    %v10545 = vunpack.c.h.b16 %v9896
    %v10546 = vunpack.c.l.b16 %v9897
    %v10547 = vunpack.c.h.b16 %v9897
    %v10548 = vunpack.c.l.b16 %v9898
    %v10549 = vunpack.c.h.b16 %v9898
    %v10550 = vunpack.c.l.b16 %v9899
    %v10551 = vunpack.c.h.b16 %v9899
    %v10552 = vunpack.c.l.b16 %v9900
    %v10553 = vunpack.c.h.b16 %v9900
    %v10554 = vunpack.c.l.b16 %v9901
    %v10555 = vunpack.c.h.b16 %v9901
    %v10556 = vunpack.c.l.b16 %v9902
    %v10557 = vunpack.c.h.b16 %v9902
    %v10558 = vunpack.c.l.b16 %v9903
    %v10559 = vunpack.c.h.b16 %v9903
    %v10560 = vunpack.c.l.b16 %v9904
    %v10561 = vpack.c.b16 %v10276, %v10257
    %v10562 = vpack.c.b16 %v10277, %v10258
    %v10563 = vpack.c.b16 %v10278, %v10259
    %v10564 = vpack.c.b16 %v10279, %v10260
    %v10565 = vpack.c.b16 %v10280, %v10261
    %v10566 = vpack.c.b16 %v10281, %v10262
    %v10567 = vpack.c.b16 %v10282, %v10263
    %v10568 = vpack.c.b16 %v10283, %v10264
    %v10569 = vpack.c.b16 %v10284, %v10265
    %v10570 = vpack.c.b16 %v10285, %v10266
    %v10571 = vpack.c.b16 %v10286, %v10267
    %v10572 = vpack.c.b16 %v10287, %v10268
    %v10573 = vpack.c.b16 %v10288, %v10269
    %v10574 = vpack.c.b16 %v10289, %v10270
    %v10575 = vpack.c.b16 %v10290, %v10271
    %v10576 = vpack.c.b16 %v10291, %v10272
    %v10577 = vpack.c.b16 %v10292, %v10273
    %v10578 = vpack.c.b16 %v10293, %v10274
    %v10579 = vpack.c.b16 %v10294, %v10275
    %v10580 = vpack.c.b16 %v10314, %v10295
    %v10581 = vpack.c.b16 %v10315, %v10296
    %v10582 = vpack.c.b16 %v10316, %v10297
    %v10583 = vpack.c.b16 %v10317, %v10298
    %v10584 = vpack.c.b16 %v10318, %v10299
    %v10585 = vpack.c.b16 %v10319, %v10300
    %v10586 = vpack.c.b16 %v10320, %v10301
    %v10587 = vpack.c.b16 %v10321, %v10302
    %v10588 = vpack.c.b16 %v10322, %v10303
    %v10589 = vpack.c.b16 %v10323, %v10304
    %v10590 = vpack.c.b16 %v10324, %v10305
    %v10591 = vpack.c.b16 %v10325, %v10306
    %v10592 = vpack.c.b16 %v10326, %v10307
    %v10593 = vpack.c.b16 %v10327, %v10308
    %v10594 = vpack.c.b16 %v10328, %v10309
    %v10595 = vpack.c.b16 %v10329, %v10310
    %v10596 = vpack.c.b16 %v10330, %v10311
    %v10597 = vpack.c.b16 %v10331, %v10312
    %v10598 = vpack.c.b16 %v10332, %v10313
    %v10599 = vpack.c.b16 %v10352, %v10333
    %v10600 = vpack.c.b16 %v10353, %v10334
    %v10601 = vpack.c.b16 %v10354, %v10335
    %v10602 = vpack.c.b16 %v10355, %v10336
    %v10603 = vpack.c.b16 %v10356, %v10337
    %v10604 = vpack.c.b16 %v10357, %v10338
    %v10605 = vpack.c.b16 %v10358, %v10339
    %v10606 = vpack.c.b16 %v10359, %v10340
    %v10607 = vpack.c.b16 %v10360, %v10341
    %v10608 = vpack.c.b16 %v10361, %v10342
    %v10609 = vpack.c.b16 %v10362, %v10343
    %v10610 = vpack.c.b16 %v10363, %v10344
    %v10611 = vpack.c.b16 %v10364, %v10345
    %v10612 = vpack.c.b16 %v10365, %v10346
    %v10613 = vpack.c.b16 %v10366, %v10347
    %v10614 = vpack.c.b16 %v10367, %v10348
    %v10615 = vpack.c.b16 %v10368, %v10349
    %v10616 = vpack.c.b16 %v10369, %v10350
    %v10617 = vpack.c.b16 %v10370, %v10351
    %v10618 = vpack.c.b16 %v10390, %v10371
    %v10619 = vpack.c.b16 %v10391, %v10372
    %v10620 = vpack.c.b16 %v10392, %v10373
    %v10621 = vpack.c.b16 %v10393, %v10374
    %v10622 = vpack.c.b16 %v10394, %v10375
    %v10623 = vpack.c.b16 %v10395, %v10376
    %v10624 = vpack.c.b16 %v10396, %v10377
    %v10625 = vpack.c.b16 %v10397, %v10378
    %v10626 = vpack.c.b16 %v10398, %v10379
    %v10627 = vpack.c.b16 %v10399, %v10380
    %v10628 = vpack.c.b16 %v10400, %v10381
    %v10629 = vpack.c.b16 %v10401, %v10382
    %v10630 = vpack.c.b16 %v10402, %v10383
    %v10631 = vpack.c.b16 %v10403, %v10384
    %v10632 = vpack.c.b16 %v10404, %v10385
    %v10633 = vpack.c.b16 %v10405, %v10386
    %v10634 = vpack.c.b16 %v10406, %v10387
    %v10635 = vpack.c.b16 %v10407, %v10388
    %v10636 = vpack.c.b16 %v10408, %v10389
    %v10637 = vpack.c.b16 %v10428, %v10409
    %v10638 = vpack.c.b16 %v10429, %v10410
    %v10639 = vpack.c.b16 %v10430, %v10411
    %v10640 = vpack.c.b16 %v10431, %v10412
    %v10641 = vpack.c.b16 %v10432, %v10413
    %v10642 = vpack.c.b16 %v10433, %v10414
    %v10643 = vpack.c.b16 %v10434, %v10415
    %v10644 = vpack.c.b16 %v10435, %v10416
    %v10645 = vpack.c.b16 %v10436, %v10417
    %v10646 = vpack.c.b16 %v10437, %v10418
    %v10647 = vpack.c.b16 %v10438, %v10419
    %v10648 = vpack.c.b16 %v10439, %v10420
    %v10649 = vpack.c.b16 %v10440, %v10421
    %v10650 = vpack.c.b16 %v10441, %v10422
    %v10651 = vpack.c.b16 %v10442, %v10423
    %v10652 = vpack.c.b16 %v10443, %v10424
    %v10653 = vpack.c.b16 %v10444, %v10425
    %v10654 = vpack.c.b16 %v10445, %v10426
    %v10655 = vpack.c.b16 %v10446, %v10427
    %v10656 = vpack.c.b16 %v10466, %v10447
    %v10657 = vpack.c.b16 %v10467, %v10448
    %v10658 = vpack.c.b16 %v10468, %v10449
    %v10659 = vpack.c.b16 %v10469, %v10450
    %v10660 = vpack.c.b16 %v10470, %v10451
    %v10661 = vpack.c.b16 %v10471, %v10452
    %v10662 = vpack.c.b16 %v10472, %v10453
    %v10663 = vpack.c.b16 %v10473, %v10454
    %v10664 = vpack.c.b16 %v10474, %v10455
    %v10665 = vpack.c.b16 %v10475, %v10456
    %v10666 = vpack.c.b16 %v10476, %v10457
    %v10667 = vpack.c.b16 %v10477, %v10458
    %v10668 = vpack.c.b16 %v10478, %v10459
    %v10669 = vpack.c.b16 %v10479, %v10460
    %v10670 = vpack.c.b16 %v10480, %v10461
    %v10671 = vpack.c.b16 %v10481, %v10462
    %v10672 = vpack.c.b16 %v10482, %v10463
    %v10673 = vpack.c.b16 %v10483, %v10464
    %v10674 = vpack.c.b16 %v10484, %v10465
    %v10675 = vpack.c.b16 %v10504, %v10485
    %v10676 = vpack.c.b16 %v10505, %v10486
    %v10677 = vpack.c.b16 %v10506, %v10487
    %v10678 = vpack.c.b16 %v10507, %v10488
    %v10679 = vpack.c.b16 %v10508, %v10489
    %v10680 = vpack.c.b16 %v10509, %v10490
    %v10681 = vpack.c.b16 %v10510, %v10491
    %v10682 = vpack.c.b16 %v10511, %v10492
    %v10683 = vpack.c.b16 %v10512, %v10493
    %v10684 = vpack.c.b16 %v10513, %v10494
    %v10685 = vpack.c.b16 %v10514, %v10495
    %v10686 = vpack.c.b16 %v10515, %v10496
    %v10687 = vpack.c.b16 %v10516, %v10497
    %v10688 = vpack.c.b16 %v10517, %v10498
    %v10689 = vpack.c.b16 %v10518, %v10499
    %v10690 = vpack.c.b16 %v10519, %v10500
    %v10691 = vpack.c.b16 %v10520, %v10501
    %v10692 = vpack.c.b16 %v10521, %v10502
    %v10693 = vpack.c.b16 %v10522, %v10503
    %v10694 = vpack.c.b16 %v10542, %v10523
    %v10695 = vpack.c.b16 %v10543, %v10524
    %v10696 = vpack.c.b16 %v10544, %v10525
    %v10697 = vpack.c.b16 %v10545, %v10526
    %v10698 = vpack.c.b16 %v10546, %v10527
    %v10699 = vpack.c.b16 %v10547, %v10528
    %v10700 = vpack.c.b16 %v10548, %v10529
    %v10701 = vpack.c.b16 %v10549, %v10530
    %v10702 = vpack.c.b16 %v10550, %v10531
    %v10703 = vpack.c.b16 %v10551, %v10532
    %v10704 = vpack.c.b16 %v10552, %v10533
    %v10705 = vpack.c.b16 %v10553, %v10534
    %v10706 = vpack.c.b16 %v10554, %v10535
    %v10707 = vpack.c.b16 %v10555, %v10536
    %v10708 = vpack.c.b16 %v10556, %v10537
    %v10709 = vpack.c.b16 %v10557, %v10538
    %v10710 = vpack.c.b16 %v10558, %v10539
    %v10711 = vpack.c.b16 %v10559, %v10540
    %v10712 = vpack.c.b16 %v10560, %v10541
    %10865 = vmatprep.subr.bf16.mxu0 %v10562
    %10866 = vmatpush1.bf16.msra.mxu0 %v10561
    %10867 = vmatprep.subr.bf16.mxu0 %v10581
    %10868 = vmatpush1.bf16.msra.mxu0 %v10580
    %10869 = vmatprep.subr.bf16.mxu0 %v10600
    %10870 = vmatpush1.bf16.msra.mxu0 %v10599
    %10871 = vmatprep.subr.bf16.mxu0 %v10619
    %10872 = vmatpush1.bf16.msra.mxu0 %v10618
    %10873 = vmatprep.subr.bf16.mxu0 %v10638
    %10874 = vmatpush1.bf16.msra.mxu0 %v10637
    %10875 = vmatprep.subr.bf16.mxu0 %v10657
    %10876 = vmatpush1.bf16.msra.mxu0 %v10656
    %10877 = vmatprep.subr.bf16.mxu0 %v10676
    %10878 = vmatpush1.bf16.msra.mxu0 %v10675
    %10879 = vmatprep.subr.bf16.mxu0 %v10695
    %10880 = vmatpush1.bf16.msra.mxu0 %v10694
    %10881 = vmatprep.subr.bf16.mxu0 0
    %10882 = vmatpush1.bf16.msra.mxu0 0
    %10883 = vmatprep.subr.bf16.mxu0 0
    %10884 = vmatpush1.bf16.msra.mxu0 0
    %10885 = vmatprep.subr.bf16.mxu0 0
    %10886 = vmatpush1.bf16.msra.mxu0 0
    %10887 = vmatprep.subr.bf16.mxu0 0
    %10888 = vmatpush1.bf16.msra.mxu0 0
    %10889 = vmatprep.subr.bf16.mxu0 0
    %10890 = vmatpush1.bf16.msra.mxu0 0
    %10891 = vmatprep.subr.bf16.mxu0 0
    %10892 = vmatpush1.bf16.msra.mxu0 0
    %10893 = vmatprep.subr.bf16.mxu0 0
    %10894 = vmatpush1.bf16.msra.mxu0 0
    %10895 = vmatprep.subr.bf16.mxu0 0
    %10896 = vmatpush1.bf16.msra.mxu0 0
    %10897 = vmatprep.mubr.bf16.mxu0 0
    %10898 = vmatmul.mubr.bf16.gmra.mrb[0].mxu0 %v9915
    %v10899 = vpop.f32.mrb[0].mxu0
    %v10900 = vadd.f32 %v10024, %v10899
    %v10901 = vpop.f32.mrb[0].mxu0
    %v10902 = vadd.f32 %v10028, %v10901
    %v10903 = vpop.f32.mrb[0].mxu0
    %v10904 = vpop.f32.mrb[0].mxu0
    %10905 = vdwg.mxu0
    %10906 = vmatprep.subr.bf16.mxu0 %v10564
    %10907 = vmatpush1.bf16.msra.mxu0 %v10563
    %10908 = vmatprep.subr.bf16.mxu0 %v10583
    %10909 = vmatpush1.bf16.msra.mxu0 %v10582
    %10910 = vmatprep.subr.bf16.mxu0 %v10602
    %10911 = vmatpush1.bf16.msra.mxu0 %v10601
    %10912 = vmatprep.subr.bf16.mxu0 %v10621
    %10913 = vmatpush1.bf16.msra.mxu0 %v10620
    %10914 = vmatprep.subr.bf16.mxu0 %v10640
    %10915 = vmatpush1.bf16.msra.mxu0 %v10639
    %10916 = vmatprep.subr.bf16.mxu0 %v10659
    %10917 = vmatpush1.bf16.msra.mxu0 %v10658
    %10918 = vmatprep.subr.bf16.mxu0 %v10678
    %10919 = vmatpush1.bf16.msra.mxu0 %v10677
    %10920 = vmatprep.subr.bf16.mxu0 %v10697
    %10921 = vmatpush1.bf16.msra.mxu0 %v10696
    %10922 = vmatprep.subr.bf16.mxu0 0
    %10923 = vmatpush1.bf16.msra.mxu0 0
    %10924 = vmatprep.subr.bf16.mxu0 0
    %10925 = vmatpush1.bf16.msra.mxu0 0
    %10926 = vmatprep.subr.bf16.mxu0 0
    %10927 = vmatpush1.bf16.msra.mxu0 0
    %10928 = vmatprep.subr.bf16.mxu0 0
    %10929 = vmatpush1.bf16.msra.mxu0 0
    %10930 = vmatprep.subr.bf16.mxu0 0
    %10931 = vmatpush1.bf16.msra.mxu0 0
    %10932 = vmatprep.subr.bf16.mxu0 0
    %10933 = vmatpush1.bf16.msra.mxu0 0
    %10934 = vmatprep.subr.bf16.mxu0 0
    %10935 = vmatpush1.bf16.msra.mxu0 0
    %10936 = vmatprep.subr.bf16.mxu0 0
    %10937 = vmatpush1.bf16.msra.mxu0 0
    %10938 = vmatprep.mubr.bf16.mxu0 0
    %10939 = vmatmul.mubr.bf16.gmra.mrb[0].mxu0 %v9915
    %v10940 = vpop.f32.mrb[0].mxu0
    %v10941 = vadd.f32 %v10032, %v10940
    %v10942 = vpop.f32.mrb[0].mxu0
    %v10943 = vadd.f32 %v10036, %v10942
    %v10944 = vpop.f32.mrb[0].mxu0
    %v10945 = vpop.f32.mrb[0].mxu0
    %10946 = vdwg.mxu0
    %10947 = vmatprep.subr.bf16.mxu0 %v10566
    %10948 = vmatpush1.bf16.msra.mxu0 %v10565
    %10949 = vmatprep.subr.bf16.mxu0 %v10585
    %10950 = vmatpush1.bf16.msra.mxu0 %v10584
    %10951 = vmatprep.subr.bf16.mxu0 %v10604
    %10952 = vmatpush1.bf16.msra.mxu0 %v10603
    %10953 = vmatprep.subr.bf16.mxu0 %v10623
    %10954 = vmatpush1.bf16.msra.mxu0 %v10622
    %10955 = vmatprep.subr.bf16.mxu0 %v10642
    %10956 = vmatpush1.bf16.msra.mxu0 %v10641
    %10957 = vmatprep.subr.bf16.mxu0 %v10661
    %10958 = vmatpush1.bf16.msra.mxu0 %v10660
    %10959 = vmatprep.subr.bf16.mxu0 %v10680
    %10960 = vmatpush1.bf16.msra.mxu0 %v10679
    %10961 = vmatprep.subr.bf16.mxu0 %v10699
    %10962 = vmatpush1.bf16.msra.mxu0 %v10698
    %10963 = vmatprep.subr.bf16.mxu0 0
    %10964 = vmatpush1.bf16.msra.mxu0 0
    %10965 = vmatprep.subr.bf16.mxu0 0
    %10966 = vmatpush1.bf16.msra.mxu0 0
    %10967 = vmatprep.subr.bf16.mxu0 0
    %10968 = vmatpush1.bf16.msra.mxu0 0
    %10969 = vmatprep.subr.bf16.mxu0 0
    %10970 = vmatpush1.bf16.msra.mxu0 0
    %10971 = vmatprep.subr.bf16.mxu0 0
    %10972 = vmatpush1.bf16.msra.mxu0 0
    %10973 = vmatprep.subr.bf16.mxu0 0
    %10974 = vmatpush1.bf16.msra.mxu0 0
    %10975 = vmatprep.subr.bf16.mxu0 0
    %10976 = vmatpush1.bf16.msra.mxu0 0
    %10977 = vmatprep.subr.bf16.mxu0 0
    %10978 = vmatpush1.bf16.msra.mxu0 0
    %10979 = vmatprep.mubr.bf16.mxu0 0
    %10980 = vmatmul.mubr.bf16.gmra.mrb[0].mxu0 %v9915
    %v10981 = vpop.f32.mrb[0].mxu0
    %v10982 = vadd.f32 %v10040, %v10981
    %v10983 = vpop.f32.mrb[0].mxu0
    %v10984 = vadd.f32 %v10044, %v10983
    %v10985 = vpop.f32.mrb[0].mxu0
    %v10986 = vpop.f32.mrb[0].mxu0
    %10987 = vdwg.mxu0
    %10988 = vmatprep.subr.bf16.mxu0 %v10568
    %10989 = vmatpush1.bf16.msra.mxu0 %v10567
    %10990 = vmatprep.subr.bf16.mxu0 %v10587
    %10991 = vmatpush1.bf16.msra.mxu0 %v10586
    %10992 = vmatprep.subr.bf16.mxu0 %v10606
    %10993 = vmatpush1.bf16.msra.mxu0 %v10605
    %10994 = vmatprep.subr.bf16.mxu0 %v10625
    %10995 = vmatpush1.bf16.msra.mxu0 %v10624
    %10996 = vmatprep.subr.bf16.mxu0 %v10644
    %10997 = vmatpush1.bf16.msra.mxu0 %v10643
    %10998 = vmatprep.subr.bf16.mxu0 %v10663
    %10999 = vmatpush1.bf16.msra.mxu0 %v10662
    %11000 = vmatprep.subr.bf16.mxu0 %v10682
    %11001 = vmatpush1.bf16.msra.mxu0 %v10681
    %11002 = vmatprep.subr.bf16.mxu0 %v10701
    %11003 = vmatpush1.bf16.msra.mxu0 %v10700
    %11004 = vmatprep.subr.bf16.mxu0 0
    %11005 = vmatpush1.bf16.msra.mxu0 0
    %11006 = vmatprep.subr.bf16.mxu0 0
    %11007 = vmatpush1.bf16.msra.mxu0 0
    %11008 = vmatprep.subr.bf16.mxu0 0
    %11009 = vmatpush1.bf16.msra.mxu0 0
    %11010 = vmatprep.subr.bf16.mxu0 0
    %11011 = vmatpush1.bf16.msra.mxu0 0
    %11012 = vmatprep.subr.bf16.mxu0 0
    %11013 = vmatpush1.bf16.msra.mxu0 0
    %11014 = vmatprep.subr.bf16.mxu0 0
    %11015 = vmatpush1.bf16.msra.mxu0 0
    %11016 = vmatprep.subr.bf16.mxu0 0
    %11017 = vmatpush1.bf16.msra.mxu0 0
    %11018 = vmatprep.subr.bf16.mxu0 0
    %11019 = vmatpush1.bf16.msra.mxu0 0
    %11020 = vmatprep.mubr.bf16.mxu0 0
    %11021 = vmatmul.mubr.bf16.gmra.mrb[0].mxu0 %v9915
    %v11022 = vpop.f32.mrb[0].mxu0
    %v11023 = vadd.f32 %v10048, %v11022
    %v11024 = vpop.f32.mrb[0].mxu0
    %v11025 = vadd.f32 %v10052, %v11024
    %v11026 = vpop.f32.mrb[0].mxu0
    %v11027 = vpop.f32.mrb[0].mxu0
    %11028 = vdwg.mxu0
    %11029 = vmatprep.subr.bf16.mxu0 %v10570
    %11030 = vmatpush1.bf16.msra.mxu0 %v10569
    %11031 = vmatprep.subr.bf16.mxu0 %v10589
    %11032 = vmatpush1.bf16.msra.mxu0 %v10588
    %11033 = vmatprep.subr.bf16.mxu0 %v10608
    %11034 = vmatpush1.bf16.msra.mxu0 %v10607
    %11035 = vmatprep.subr.bf16.mxu0 %v10627
    %11036 = vmatpush1.bf16.msra.mxu0 %v10626
    %11037 = vmatprep.subr.bf16.mxu0 %v10646
    %11038 = vmatpush1.bf16.msra.mxu0 %v10645
    %11039 = vmatprep.subr.bf16.mxu0 %v10665
    %11040 = vmatpush1.bf16.msra.mxu0 %v10664
    %11041 = vmatprep.subr.bf16.mxu0 %v10684
    %11042 = vmatpush1.bf16.msra.mxu0 %v10683
    %11043 = vmatprep.subr.bf16.mxu0 %v10703
    %11044 = vmatpush1.bf16.msra.mxu0 %v10702
    %11045 = vmatprep.subr.bf16.mxu0 0
    %11046 = vmatpush1.bf16.msra.mxu0 0
    %11047 = vmatprep.subr.bf16.mxu0 0
    %11048 = vmatpush1.bf16.msra.mxu0 0
    %11049 = vmatprep.subr.bf16.mxu0 0
    %11050 = vmatpush1.bf16.msra.mxu0 0
    %11051 = vmatprep.subr.bf16.mxu0 0
    %11052 = vmatpush1.bf16.msra.mxu0 0
    %11053 = vmatprep.subr.bf16.mxu0 0
    %11054 = vmatpush1.bf16.msra.mxu0 0
    %11055 = vmatprep.subr.bf16.mxu0 0
    %11056 = vmatpush1.bf16.msra.mxu0 0
    %11057 = vmatprep.subr.bf16.mxu0 0
    %11058 = vmatpush1.bf16.msra.mxu0 0
    %11059 = vmatprep.subr.bf16.mxu0 0
    %11060 = vmatpush1.bf16.msra.mxu0 0
    %11061 = vmatprep.mubr.bf16.mxu0 0
    %11062 = vmatmul.mubr.bf16.gmra.mrb[0].mxu0 %v9915
    %v11063 = vpop.f32.mrb[0].mxu0
    %v11064 = vadd.f32 %v10056, %v11063
    %v11065 = vpop.f32.mrb[0].mxu0
    %v11066 = vadd.f32 %v10060, %v11065
    %v11067 = vpop.f32.mrb[0].mxu0
    %v11068 = vpop.f32.mrb[0].mxu0
    %11069 = vdwg.mxu0
    %11070 = vmatprep.subr.bf16.mxu0 %v10572
    %11071 = vmatpush1.bf16.msra.mxu0 %v10571
    %11072 = vmatprep.subr.bf16.mxu0 %v10591
    %11073 = vmatpush1.bf16.msra.mxu0 %v10590
    %11074 = vmatprep.subr.bf16.mxu0 %v10610
    %11075 = vmatpush1.bf16.msra.mxu0 %v10609
    %11076 = vmatprep.subr.bf16.mxu0 %v10629
    %11077 = vmatpush1.bf16.msra.mxu0 %v10628
    %11078 = vmatprep.subr.bf16.mxu0 %v10648
    %11079 = vmatpush1.bf16.msra.mxu0 %v10647
    %11080 = vmatprep.subr.bf16.mxu0 %v10667
    %11081 = vmatpush1.bf16.msra.mxu0 %v10666
    %11082 = vmatprep.subr.bf16.mxu0 %v10686
    %11083 = vmatpush1.bf16.msra.mxu0 %v10685
    %11084 = vmatprep.subr.bf16.mxu0 %v10705
    %11085 = vmatpush1.bf16.msra.mxu0 %v10704
    %11086 = vmatprep.subr.bf16.mxu0 0
    %11087 = vmatpush1.bf16.msra.mxu0 0
    %11088 = vmatprep.subr.bf16.mxu0 0
    %11089 = vmatpush1.bf16.msra.mxu0 0
    %11090 = vmatprep.subr.bf16.mxu0 0
    %11091 = vmatpush1.bf16.msra.mxu0 0
    %11092 = vmatprep.subr.bf16.mxu0 0
    %11093 = vmatpush1.bf16.msra.mxu0 0
    %11094 = vmatprep.subr.bf16.mxu0 0
    %11095 = vmatpush1.bf16.msra.mxu0 0
    %11096 = vmatprep.subr.bf16.mxu0 0
    %11097 = vmatpush1.bf16.msra.mxu0 0
    %11098 = vmatprep.subr.bf16.mxu0 0
    %11099 = vmatpush1.bf16.msra.mxu0 0
    %11100 = vmatprep.subr.bf16.mxu0 0
    %11101 = vmatpush1.bf16.msra.mxu0 0
    %11102 = vmatprep.mubr.bf16.mxu0 0
    %11103 = vmatmul.mubr.bf16.gmra.mrb[0].mxu0 %v9915
    %v11104 = vpop.f32.mrb[0].mxu0
    %v11105 = vadd.f32 %v10064, %v11104
    %v11106 = vpop.f32.mrb[0].mxu0
    %v11107 = vadd.f32 %v10068, %v11106
    %v11108 = vpop.f32.mrb[0].mxu0
    %v11109 = vpop.f32.mrb[0].mxu0
    %11110 = vdwg.mxu0
    %11111 = vmatprep.subr.bf16.mxu0 %v10574
    %11112 = vmatpush1.bf16.msra.mxu0 %v10573
    %11113 = vmatprep.subr.bf16.mxu0 %v10593
    %11114 = vmatpush1.bf16.msra.mxu0 %v10592
    %11115 = vmatprep.subr.bf16.mxu0 %v10612
    %11116 = vmatpush1.bf16.msra.mxu0 %v10611
    %11117 = vmatprep.subr.bf16.mxu0 %v10631
    %11118 = vmatpush1.bf16.msra.mxu0 %v10630
    %11119 = vmatprep.subr.bf16.mxu0 %v10650
    %11120 = vmatpush1.bf16.msra.mxu0 %v10649
    %11121 = vmatprep.subr.bf16.mxu0 %v10669
    %11122 = vmatpush1.bf16.msra.mxu0 %v10668
    %11123 = vmatprep.subr.bf16.mxu0 %v10688
    %11124 = vmatpush1.bf16.msra.mxu0 %v10687
    %11125 = vmatprep.subr.bf16.mxu0 %v10707
    %11126 = vmatpush1.bf16.msra.mxu0 %v10706
    %11127 = vmatprep.subr.bf16.mxu0 0
    %11128 = vmatpush1.bf16.msra.mxu0 0
    %11129 = vmatprep.subr.bf16.mxu0 0
    %11130 = vmatpush1.bf16.msra.mxu0 0
    %11131 = vmatprep.subr.bf16.mxu0 0
    %11132 = vmatpush1.bf16.msra.mxu0 0
    %11133 = vmatprep.subr.bf16.mxu0 0
    %11134 = vmatpush1.bf16.msra.mxu0 0
    %11135 = vmatprep.subr.bf16.mxu0 0
    %11136 = vmatpush1.bf16.msra.mxu0 0
    %11137 = vmatprep.subr.bf16.mxu0 0
    %11138 = vmatpush1.bf16.msra.mxu0 0
    %11139 = vmatprep.subr.bf16.mxu0 0
    %11140 = vmatpush1.bf16.msra.mxu0 0
    %11141 = vmatprep.subr.bf16.mxu0 0
    %11142 = vmatpush1.bf16.msra.mxu0 0
    %11143 = vmatprep.mubr.bf16.mxu0 0
    %11144 = vmatmul.mubr.bf16.gmra.mrb[0].mxu0 %v9915
    %v11145 = vpop.f32.mrb[0].mxu0
    %v11146 = vadd.f32 %v10072, %v11145
    %v11147 = vpop.f32.mrb[0].mxu0
    %v11148 = vadd.f32 %v10076, %v11147
    %v11149 = vpop.f32.mrb[0].mxu0
    %v11150 = vpop.f32.mrb[0].mxu0
    %11151 = vdwg.mxu0
    %11152 = vmatprep.subr.bf16.mxu0 %v10576
    %11153 = vmatpush1.bf16.msra.mxu0 %v10575
    %11154 = vmatprep.subr.bf16.mxu0 %v10595
    %11155 = vmatpush1.bf16.msra.mxu0 %v10594
    %11156 = vmatprep.subr.bf16.mxu0 %v10614
    %11157 = vmatpush1.bf16.msra.mxu0 %v10613
    %11158 = vmatprep.subr.bf16.mxu0 %v10633
    %11159 = vmatpush1.bf16.msra.mxu0 %v10632
    %11160 = vmatprep.subr.bf16.mxu0 %v10652
    %11161 = vmatpush1.bf16.msra.mxu0 %v10651
    %11162 = vmatprep.subr.bf16.mxu0 %v10671
    %11163 = vmatpush1.bf16.msra.mxu0 %v10670
    %11164 = vmatprep.subr.bf16.mxu0 %v10690
    %11165 = vmatpush1.bf16.msra.mxu0 %v10689
    %11166 = vmatprep.subr.bf16.mxu0 %v10709
    %11167 = vmatpush1.bf16.msra.mxu0 %v10708
    %11168 = vmatprep.subr.bf16.mxu0 0
    %11169 = vmatpush1.bf16.msra.mxu0 0
    %11170 = vmatprep.subr.bf16.mxu0 0
    %11171 = vmatpush1.bf16.msra.mxu0 0
    %11172 = vmatprep.subr.bf16.mxu0 0
    %11173 = vmatpush1.bf16.msra.mxu0 0
    %11174 = vmatprep.subr.bf16.mxu0 0
    %11175 = vmatpush1.bf16.msra.mxu0 0
    %11176 = vmatprep.subr.bf16.mxu0 0
    %11177 = vmatpush1.bf16.msra.mxu0 0
    %11178 = vmatprep.subr.bf16.mxu0 0
    %11179 = vmatpush1.bf16.msra.mxu0 0
    %11180 = vmatprep.subr.bf16.mxu0 0
    %11181 = vmatpush1.bf16.msra.mxu0 0
    %11182 = vmatprep.subr.bf16.mxu0 0
    %11183 = vmatpush1.bf16.msra.mxu0 0
    %11184 = vmatprep.mubr.bf16.mxu0 0
    %11185 = vmatmul.mubr.bf16.gmra.mrb[0].mxu0 %v9915
    %v11186 = vpop.f32.mrb[0].mxu0
    %v11187 = vadd.f32 %v10080, %v11186
    %v11188 = vpop.f32.mrb[0].mxu0
    %v11189 = vadd.f32 %v10084, %v11188
    %v11190 = vpop.f32.mrb[0].mxu0
    %v11191 = vpop.f32.mrb[0].mxu0
    %11192 = vdwg.mxu0
    %11193 = vmatprep.subr.bf16.mxu0 %v10578
    %11194 = vmatpush1.bf16.msra.mxu0 %v10577
    %11195 = vmatprep.subr.bf16.mxu0 %v10597
    %11196 = vmatpush1.bf16.msra.mxu0 %v10596
    %11197 = vmatprep.subr.bf16.mxu0 %v10616
    %11198 = vmatpush1.bf16.msra.mxu0 %v10615
    %11199 = vmatprep.subr.bf16.mxu0 %v10635
    %11200 = vmatpush1.bf16.msra.mxu0 %v10634
    %11201 = vmatprep.subr.bf16.mxu0 %v10654
    %11202 = vmatpush1.bf16.msra.mxu0 %v10653
    %11203 = vmatprep.subr.bf16.mxu0 %v10673
    %11204 = vmatpush1.bf16.msra.mxu0 %v10672
    %11205 = vmatprep.subr.bf16.mxu0 %v10692
    %11206 = vmatpush1.bf16.msra.mxu0 %v10691
    %11207 = vmatprep.subr.bf16.mxu0 %v10711
    %11208 = vmatpush1.bf16.msra.mxu0 %v10710
    %11209 = vmatprep.subr.bf16.mxu0 0
    %11210 = vmatpush1.bf16.msra.mxu0 0
    %11211 = vmatprep.subr.bf16.mxu0 0
    %11212 = vmatpush1.bf16.msra.mxu0 0
    %11213 = vmatprep.subr.bf16.mxu0 0
    %11214 = vmatpush1.bf16.msra.mxu0 0
    %11215 = vmatprep.subr.bf16.mxu0 0
    %11216 = vmatpush1.bf16.msra.mxu0 0
    %11217 = vmatprep.subr.bf16.mxu0 0
    %11218 = vmatpush1.bf16.msra.mxu0 0
    %11219 = vmatprep.subr.bf16.mxu0 0
    %11220 = vmatpush1.bf16.msra.mxu0 0
    %11221 = vmatprep.subr.bf16.mxu0 0
    %11222 = vmatpush1.bf16.msra.mxu0 0
    %11223 = vmatprep.subr.bf16.mxu0 0
    %11224 = vmatpush1.bf16.msra.mxu0 0
    %11225 = vmatprep.mubr.bf16.mxu0 0
    %11226 = vmatmul.mubr.bf16.gmra.mrb[0].mxu0 %v9915
    %v11227 = vpop.f32.mrb[0].mxu0
    %v11228 = vadd.f32 %v10088, %v11227
    %v11229 = vpop.f32.mrb[0].mxu0
    %v11230 = vadd.f32 %v10092, %v11229
    %v11231 = vpop.f32.mrb[0].mxu0
    %v11232 = vpop.f32.mrb[0].mxu0
    %11233 = vdwg.mxu0
    %11234 = vmatprep.subr.bf16.mxu0 0
    %11235 = vmatpush1.bf16.msra.mxu0 %v10579
    %11236 = vmatprep.subr.bf16.mxu0 0
    %11237 = vmatpush1.bf16.msra.mxu0 %v10598
    %11238 = vmatprep.subr.bf16.mxu0 0
    %11239 = vmatpush1.bf16.msra.mxu0 %v10617
    %11240 = vmatprep.subr.bf16.mxu0 0
    %11241 = vmatpush1.bf16.msra.mxu0 %v10636
    %11242 = vmatprep.subr.bf16.mxu0 0
    %11243 = vmatpush1.bf16.msra.mxu0 %v10655
    %11244 = vmatprep.subr.bf16.mxu0 0
    %11245 = vmatpush1.bf16.msra.mxu0 %v10674
    %11246 = vmatprep.subr.bf16.mxu0 0
    %11247 = vmatpush1.bf16.msra.mxu0 %v10693
    %11248 = vmatprep.subr.bf16.mxu0 0
    %11249 = vmatpush1.bf16.msra.mxu0 %v10712
    %11250 = vmatprep.subr.bf16.mxu0 0
    %11251 = vmatpush1.bf16.msra.mxu0 0
    %11252 = vmatprep.subr.bf16.mxu0 0
    %11253 = vmatpush1.bf16.msra.mxu0 0
    %11254 = vmatprep.subr.bf16.mxu0 0
    %11255 = vmatpush1.bf16.msra.mxu0 0
    %11256 = vmatprep.subr.bf16.mxu0 0
    %11257 = vmatpush1.bf16.msra.mxu0 0
    %11258 = vmatprep.subr.bf16.mxu0 0
    %11259 = vmatpush1.bf16.msra.mxu0 0
    %11260 = vmatprep.subr.bf16.mxu0 0
    %11261 = vmatpush1.bf16.msra.mxu0 0
    %11262 = vmatprep.subr.bf16.mxu0 0
    %11263 = vmatpush1.bf16.msra.mxu0 0
    %11264 = vmatprep.subr.bf16.mxu0 0
    %11265 = vmatpush1.bf16.msra.mxu0 0
    %11266 = vmatprep.mubr.bf16.mxu0 0
    %11267 = vmatmul.mubr.bf16.gmra.mrb[0].mxu0 %v9915
    %v11268 = vpop.f32.mrb[0].mxu0
    %v11269 = vadd.f32 %v10096, %v11268
    %v11270 = vpop.f32.mrb[0].mxu0
    %v11271 = vpop.f32.mrb[0].mxu0
    %v11272 = vpop.f32.mrb[0].mxu0
    %11273 = vdwg.mxu0
    %v11274 = vrot.slane %v10900, 4
    %v11275 = vadd.f32 %v10900, %v11274
    %v11276 = vrot.slane %v11275, 2
    %v11277 = vadd.f32 %v11275, %v11276
    %v11278 = vrot.slane %v11277, 1
    %v11279 = vadd.f32 %v11277, %v11278
    %v11280 = vrot.slane %v10902, 4
    %v11281 = vadd.f32 %v10902, %v11280
    %v11282 = vrot.slane %v11281, 2
    %v11283 = vadd.f32 %v11281, %v11282
    %v11284 = vrot.slane %v11283, 1
    %v11285 = vadd.f32 %v11283, %v11284
    %v11286 = vrot.slane %v10941, 4
    %v11287 = vadd.f32 %v10941, %v11286
    %v11288 = vrot.slane %v11287, 2
    %v11289 = vadd.f32 %v11287, %v11288
    %v11290 = vrot.slane %v11289, 1
    %v11291 = vadd.f32 %v11289, %v11290
    %v11292 = vrot.slane %v10943, 4
    %v11293 = vadd.f32 %v10943, %v11292
    %v11294 = vrot.slane %v11293, 2
    %v11295 = vadd.f32 %v11293, %v11294
    %v11296 = vrot.slane %v11295, 1
    %v11297 = vadd.f32 %v11295, %v11296
    %v11298 = vrot.slane %v10982, 4
    %v11299 = vadd.f32 %v10982, %v11298
    %v11300 = vrot.slane %v11299, 2
    %v11301 = vadd.f32 %v11299, %v11300
    %v11302 = vrot.slane %v11301, 1
    %v11303 = vadd.f32 %v11301, %v11302
    %v11304 = vrot.slane %v10984, 4
    %v11305 = vadd.f32 %v10984, %v11304
    %v11306 = vrot.slane %v11305, 2
    %v11307 = vadd.f32 %v11305, %v11306
    %v11308 = vrot.slane %v11307, 1
    %v11309 = vadd.f32 %v11307, %v11308
    %v11310 = vrot.slane %v11023, 4
    %v11311 = vadd.f32 %v11023, %v11310
    %v11312 = vrot.slane %v11311, 2
    %v11313 = vadd.f32 %v11311, %v11312
    %v11314 = vrot.slane %v11313, 1
    %v11315 = vadd.f32 %v11313, %v11314
    %v11316 = vrot.slane %v11025, 4
    %v11317 = vadd.f32 %v11025, %v11316
    %v11318 = vrot.slane %v11317, 2
    %v11319 = vadd.f32 %v11317, %v11318
    %v11320 = vrot.slane %v11319, 1
    %v11321 = vadd.f32 %v11319, %v11320
    %v11322 = vrot.slane %v11064, 4
    %v11323 = vadd.f32 %v11064, %v11322
    %v11324 = vrot.slane %v11323, 2
    %v11325 = vadd.f32 %v11323, %v11324
    %v11326 = vrot.slane %v11325, 1
    %v11327 = vadd.f32 %v11325, %v11326
    %v11328 = vrot.slane %v11066, 4
    %v11329 = vadd.f32 %v11066, %v11328
    %v11330 = vrot.slane %v11329, 2
    %v11331 = vadd.f32 %v11329, %v11330
    %v11332 = vrot.slane %v11331, 1
    %v11333 = vadd.f32 %v11331, %v11332
    %v11334 = vrot.slane %v11105, 4
    %v11335 = vadd.f32 %v11105, %v11334
    %v11336 = vrot.slane %v11335, 2
    %v11337 = vadd.f32 %v11335, %v11336
    %v11338 = vrot.slane %v11337, 1
    %v11339 = vadd.f32 %v11337, %v11338
    %v11340 = vrot.slane %v11107, 4
    %v11341 = vadd.f32 %v11107, %v11340
    %v11342 = vrot.slane %v11341, 2
    %v11343 = vadd.f32 %v11341, %v11342
    %v11344 = vrot.slane %v11343, 1
    %v11345 = vadd.f32 %v11343, %v11344
    %v11346 = vrot.slane %v11146, 4
    %v11347 = vadd.f32 %v11146, %v11346
    %v11348 = vrot.slane %v11347, 2
    %v11349 = vadd.f32 %v11347, %v11348
    %v11350 = vrot.slane %v11349, 1
    %v11351 = vadd.f32 %v11349, %v11350
    %v11352 = vrot.slane %v11148, 4
    %v11353 = vadd.f32 %v11148, %v11352
    %v11354 = vrot.slane %v11353, 2
    %v11355 = vadd.f32 %v11353, %v11354
    %v11356 = vrot.slane %v11355, 1
    %v11357 = vadd.f32 %v11355, %v11356
    %v11358 = vrot.slane %v11187, 4
    %v11359 = vadd.f32 %v11187, %v11358
    %v11360 = vrot.slane %v11359, 2
    %v11361 = vadd.f32 %v11359, %v11360
    %v11362 = vrot.slane %v11361, 1
    %v11363 = vadd.f32 %v11361, %v11362
    %v11364 = vrot.slane %v11189, 4
    %v11365 = vadd.f32 %v11189, %v11364
    %v11366 = vrot.slane %v11365, 2
    %v11367 = vadd.f32 %v11365, %v11366
    %v11368 = vrot.slane %v11367, 1
    %v11369 = vadd.f32 %v11367, %v11368
    %v11370 = vrot.slane %v11228, 4
    %v11371 = vadd.f32 %v11228, %v11370
    %v11372 = vrot.slane %v11371, 2
    %v11373 = vadd.f32 %v11371, %v11372
    %v11374 = vrot.slane %v11373, 1
    %v11375 = vadd.f32 %v11373, %v11374
    %v11376 = vrot.slane %v11230, 4
    %v11377 = vadd.f32 %v11230, %v11376
    %v11378 = vrot.slane %v11377, 2
    %v11379 = vadd.f32 %v11377, %v11378
    %v11380 = vrot.slane %v11379, 1
    %v11381 = vadd.f32 %v11379, %v11380
    %vm11382 = vcmask 244736
    %v11383 = vsel %vm11382, %v11269, 0.0
    %v11384 = vrot.slane %v11383, 4
    %v11385 = vadd.f32 %v11383, %v11384
    %v11386 = vrot.slane %v11385, 2
    %v11387 = vadd.f32 %v11385, %v11386
    %v11388 = vrot.slane %v11387, 1
    %v11389 = vadd.f32 %v11387, %v11388
    %v11390 = vmul.f32 %v11279, %v3419
    %v11391 = vmul.f32 %v11285, %v3419
    %v11392 = vmul.f32 %v11291, %v3419
    %v11393 = vmul.f32 %v11297, %v3419
    %v11394 = vmul.f32 %v11303, %v3419
    %v11395 = vmul.f32 %v11309, %v3419
    %v11396 = vmul.f32 %v11315, %v3419
    %v11397 = vmul.f32 %v11321, %v3419
    %v11398 = vmul.f32 %v11327, %v3419
    %v11399 = vmul.f32 %v11333, %v3419
    %v11400 = vmul.f32 %v11339, %v3419
    %v11401 = vmul.f32 %v11345, %v3419
    %v11402 = vmul.f32 %v11351, %v3419
    %v11403 = vmul.f32 %v11357, %v3419
    %v11404 = vmul.f32 %v11363, %v3419
    %v11405 = vmul.f32 %v11369, %v3419
    %v11406 = vmul.f32 %v11375, %v3419
    %v11407 = vmul.f32 %v11381, %v3419
    %v11408 = vmul.f32 %v11389, %v3419
    %v11409 = vsub.f32 %v10900, %v11390
    %v11410 = vsub.f32 %v10902, %v11391
    %v11411 = vsub.f32 %v10941, %v11392
    %v11412 = vsub.f32 %v10943, %v11393
    %v11413 = vsub.f32 %v10982, %v11394
    %v11414 = vsub.f32 %v10984, %v11395
    %v11415 = vsub.f32 %v11023, %v11396
    %v11416 = vsub.f32 %v11025, %v11397
    %v11417 = vsub.f32 %v11064, %v11398
    %v11418 = vsub.f32 %v11066, %v11399
    %v11419 = vsub.f32 %v11105, %v11400
    %v11420 = vsub.f32 %v11107, %v11401
    %v11421 = vsub.f32 %v11146, %v11402
    %v11422 = vsub.f32 %v11148, %v11403
    %v11423 = vsub.f32 %v11187, %v11404
    %v11424 = vsub.f32 %v11189, %v11405
    %v11425 = vsub.f32 %v11228, %v11406
    %v11426 = vsub.f32 %v11230, %v11407
    %v11427 = vsub.f32 %v11269, %v11408
    %v11428 = vmul.f32 %v11409, %v11409
    %v11429 = vmul.f32 %v11410, %v11410
    %v11430 = vmul.f32 %v11411, %v11411
    %v11431 = vmul.f32 %v11412, %v11412
    %v11432 = vmul.f32 %v11413, %v11413
    %v11433 = vmul.f32 %v11414, %v11414
    %v11434 = vmul.f32 %v11415, %v11415
    %v11435 = vmul.f32 %v11416, %v11416
    %v11436 = vmul.f32 %v11417, %v11417
    %v11437 = vmul.f32 %v11418, %v11418
    %v11438 = vmul.f32 %v11419, %v11419
    %v11439 = vmul.f32 %v11420, %v11420
    %v11440 = vmul.f32 %v11421, %v11421
    %v11441 = vmul.f32 %v11422, %v11422
    %v11442 = vmul.f32 %v11423, %v11423
    %v11443 = vmul.f32 %v11424, %v11424
    %v11444 = vmul.f32 %v11425, %v11425
    %v11445 = vmul.f32 %v11426, %v11426
    %v11446 = vmul.f32 %v11427, %v11427
    %v11447 = vrot.slane %v11428, 4
    %v11448 = vadd.f32 %v11428, %v11447
    %v11449 = vrot.slane %v11448, 2
    %v11450 = vadd.f32 %v11448, %v11449
    %v11451 = vrot.slane %v11450, 1
    %v11452 = vadd.f32 %v11450, %v11451
    %v11453 = vrot.slane %v11429, 4
    %v11454 = vadd.f32 %v11429, %v11453
    %v11455 = vrot.slane %v11454, 2
    %v11456 = vadd.f32 %v11454, %v11455
    %v11457 = vrot.slane %v11456, 1
    %v11458 = vadd.f32 %v11456, %v11457
    %v11459 = vrot.slane %v11430, 4
    %v11460 = vadd.f32 %v11430, %v11459
    %v11461 = vrot.slane %v11460, 2
    %v11462 = vadd.f32 %v11460, %v11461
    %v11463 = vrot.slane %v11462, 1
    %v11464 = vadd.f32 %v11462, %v11463
    %v11465 = vrot.slane %v11431, 4
    %v11466 = vadd.f32 %v11431, %v11465
    %v11467 = vrot.slane %v11466, 2
    %v11468 = vadd.f32 %v11466, %v11467
    %v11469 = vrot.slane %v11468, 1
    %v11470 = vadd.f32 %v11468, %v11469
    %v11471 = vrot.slane %v11432, 4
    %v11472 = vadd.f32 %v11432, %v11471
    %v11473 = vrot.slane %v11472, 2
    %v11474 = vadd.f32 %v11472, %v11473
    %v11475 = vrot.slane %v11474, 1
    %v11476 = vadd.f32 %v11474, %v11475
    %v11477 = vrot.slane %v11433, 4
    %v11478 = vadd.f32 %v11433, %v11477
    %v11479 = vrot.slane %v11478, 2
    %v11480 = vadd.f32 %v11478, %v11479
    %v11481 = vrot.slane %v11480, 1
    %v11482 = vadd.f32 %v11480, %v11481
    %v11483 = vrot.slane %v11434, 4
    %v11484 = vadd.f32 %v11434, %v11483
    %v11485 = vrot.slane %v11484, 2
    %v11486 = vadd.f32 %v11484, %v11485
    %v11487 = vrot.slane %v11486, 1
    %v11488 = vadd.f32 %v11486, %v11487
    %v11489 = vrot.slane %v11435, 4
    %v11490 = vadd.f32 %v11435, %v11489
    %v11491 = vrot.slane %v11490, 2
    %v11492 = vadd.f32 %v11490, %v11491
    %v11493 = vrot.slane %v11492, 1
    %v11494 = vadd.f32 %v11492, %v11493
    %v11495 = vrot.slane %v11436, 4
    %v11496 = vadd.f32 %v11436, %v11495
    %v11497 = vrot.slane %v11496, 2
    %v11498 = vadd.f32 %v11496, %v11497
    %v11499 = vrot.slane %v11498, 1
    %v11500 = vadd.f32 %v11498, %v11499
    %v11501 = vrot.slane %v11437, 4
    %v11502 = vadd.f32 %v11437, %v11501
    %v11503 = vrot.slane %v11502, 2
    %v11504 = vadd.f32 %v11502, %v11503
    %v11505 = vrot.slane %v11504, 1
    %v11506 = vadd.f32 %v11504, %v11505
    %v11507 = vrot.slane %v11438, 4
    %v11508 = vadd.f32 %v11438, %v11507
    %v11509 = vrot.slane %v11508, 2
    %v11510 = vadd.f32 %v11508, %v11509
    %v11511 = vrot.slane %v11510, 1
    %v11512 = vadd.f32 %v11510, %v11511
    %v11513 = vrot.slane %v11439, 4
    %v11514 = vadd.f32 %v11439, %v11513
    %v11515 = vrot.slane %v11514, 2
    %v11516 = vadd.f32 %v11514, %v11515
    %v11517 = vrot.slane %v11516, 1
    %v11518 = vadd.f32 %v11516, %v11517
    %v11519 = vrot.slane %v11440, 4
    %v11520 = vadd.f32 %v11440, %v11519
    %v11521 = vrot.slane %v11520, 2
    %v11522 = vadd.f32 %v11520, %v11521
    %v11523 = vrot.slane %v11522, 1
    %v11524 = vadd.f32 %v11522, %v11523
    %v11525 = vrot.slane %v11441, 4
    %v11526 = vadd.f32 %v11441, %v11525
    %v11527 = vrot.slane %v11526, 2
    %v11528 = vadd.f32 %v11526, %v11527
    %v11529 = vrot.slane %v11528, 1
    %v11530 = vadd.f32 %v11528, %v11529
    %v11531 = vrot.slane %v11442, 4
    %v11532 = vadd.f32 %v11442, %v11531
    %v11533 = vrot.slane %v11532, 2
    %v11534 = vadd.f32 %v11532, %v11533
    %v11535 = vrot.slane %v11534, 1
    %v11536 = vadd.f32 %v11534, %v11535
    %v11537 = vrot.slane %v11443, 4
    %v11538 = vadd.f32 %v11443, %v11537
    %v11539 = vrot.slane %v11538, 2
    %v11540 = vadd.f32 %v11538, %v11539
    %v11541 = vrot.slane %v11540, 1
    %v11542 = vadd.f32 %v11540, %v11541
    %v11543 = vrot.slane %v11444, 4
    %v11544 = vadd.f32 %v11444, %v11543
    %v11545 = vrot.slane %v11544, 2
    %v11546 = vadd.f32 %v11544, %v11545
    %v11547 = vrot.slane %v11546, 1
    %v11548 = vadd.f32 %v11546, %v11547
    %v11549 = vrot.slane %v11445, 4
    %v11550 = vadd.f32 %v11445, %v11549
    %v11551 = vrot.slane %v11550, 2
    %v11552 = vadd.f32 %v11550, %v11551
    %v11553 = vrot.slane %v11552, 1
    %v11554 = vadd.f32 %v11552, %v11553
    %v11555 = vsel %vm11382, %v11446, 0.0
    %v11556 = vrot.slane %v11555, 4
    %v11557 = vadd.f32 %v11555, %v11556
    %v11558 = vrot.slane %v11557, 2
    %v11559 = vadd.f32 %v11557, %v11558
    %v11560 = vrot.slane %v11559, 1
    %v11561 = vadd.f32 %v11559, %v11560
    %v11562 = vmul.f32 %v11452, %v3419
    %v11563 = vmul.f32 %v11458, %v3419
    %v11564 = vmul.f32 %v11464, %v3419
    %v11565 = vmul.f32 %v11470, %v3419
    %v11566 = vmul.f32 %v11476, %v3419
    %v11567 = vmul.f32 %v11482, %v3419
    %v11568 = vmul.f32 %v11488, %v3419
    %v11569 = vmul.f32 %v11494, %v3419
    %v11570 = vmul.f32 %v11500, %v3419
    %v11571 = vmul.f32 %v11506, %v3419
    %v11572 = vmul.f32 %v11512, %v3419
    %v11573 = vmul.f32 %v11518, %v3419
    %v11574 = vmul.f32 %v11524, %v3419
    %v11575 = vmul.f32 %v11530, %v3419
    %v11576 = vmul.f32 %v11536, %v3419
    %v11577 = vmul.f32 %v11542, %v3419
    %v11578 = vmul.f32 %v11548, %v3419
    %v11579 = vmul.f32 %v11554, %v3419
    %v11580 = vmul.f32 %v11561, %v3419
    %v11581 = vadd.f32 %v11562, 1e-05
    %v11582 = vadd.f32 %v11563, 1e-05
    %v11583 = vadd.f32 %v11564, 1e-05
    %v11584 = vadd.f32 %v11565, 1e-05
    %v11585 = vadd.f32 %v11566, 1e-05
    %v11586 = vadd.f32 %v11567, 1e-05
    %v11587 = vadd.f32 %v11568, 1e-05
    %v11588 = vadd.f32 %v11569, 1e-05
    %v11589 = vadd.f32 %v11570, 1e-05
    %v11590 = vadd.f32 %v11571, 1e-05
    %v11591 = vadd.f32 %v11572, 1e-05
    %v11592 = vadd.f32 %v11573, 1e-05
    %v11593 = vadd.f32 %v11574, 1e-05
    %v11594 = vadd.f32 %v11575, 1e-05
    %v11595 = vadd.f32 %v11576, 1e-05
    %v11596 = vadd.f32 %v11577, 1e-05
    %v11597 = vadd.f32 %v11578, 1e-05
    %v11598 = vadd.f32 %v11579, 1e-05
    %v11599 = vadd.f32 %v11580, 1e-05
    %v11600 = vrsqrt.pop %v11581
    %v11601 = vrsqrt.pop %v11582
    %v11602 = vrsqrt.pop %v11583
    %v11603 = vrsqrt.pop %v11584
    %v11604 = vrsqrt.pop %v11585
    %v11605 = vrsqrt.pop %v11586
    %v11606 = vrsqrt.pop %v11587
    %v11607 = vrsqrt.pop %v11588
    %v11608 = vrsqrt.pop %v11589
    %v11609 = vrsqrt.pop %v11590
    %v11610 = vrsqrt.pop %v11591
    %v11611 = vrsqrt.pop %v11592
    %v11612 = vrsqrt.pop %v11593
    %v11613 = vrsqrt.pop %v11594
    %v11614 = vrsqrt.pop %v11595
    %v11615 = vrsqrt.pop %v11596
    %v11616 = vrsqrt.pop %v11597
    %v11617 = vrsqrt.pop %v11598
    %v11618 = vrsqrt.pop %v11599
    %v11619 = vmul.f32 %v11409, %v11600
    %v11620 = vmul.f32 %v11410, %v11601
    %v11621 = vmul.f32 %v11411, %v11602
    %v11622 = vmul.f32 %v11412, %v11603
    %v11623 = vmul.f32 %v11413, %v11604
    %v11624 = vmul.f32 %v11414, %v11605
    %v11625 = vmul.f32 %v11415, %v11606
    %v11626 = vmul.f32 %v11416, %v11607
    %v11627 = vmul.f32 %v11417, %v11608
    %v11628 = vmul.f32 %v11418, %v11609
    %v11629 = vmul.f32 %v11419, %v11610
    %v11630 = vmul.f32 %v11420, %v11611
    %v11631 = vmul.f32 %v11421, %v11612
    %v11632 = vmul.f32 %v11422, %v11613
    %v11633 = vmul.f32 %v11423, %v11614
    %v11634 = vmul.f32 %v11424, %v11615
    %v11635 = vmul.f32 %v11425, %v11616
    %v11636 = vmul.f32 %v11426, %v11617
    %v11637 = vmul.f32 %v11427, %v11618
    %v11638 = vlaneseq
    %v11639 = vshrl.u32 %v11638, 7
    %v11640 = vsub.s32 1, %v11639
    %v11641 = vrot.slane %v9905, %v11640
    %v11642 = vlaneseq
    %v11643 = vshrl.u32 %v11642, 7
    %v11644 = vsub.s32 5, %v11643
    %v11645 = vrot.slane %v9905, %v11644
    %v11646 = vlaneseq
    %v11647 = vshrl.u32 %v11646, 7
    %v11648 = vsub.s32 1, %v11647
    %v11649 = vrot.slane %v9906, %v11648
    %v11650 = vlaneseq
    %v11651 = vshrl.u32 %v11650, 7
    %v11652 = vsub.s32 5, %v11651
    %v11653 = vrot.slane %v9906, %v11652
    %v11654 = vlaneseq
    %v11655 = vshrl.u32 %v11654, 7
    %v11656 = vsub.s32 1, %v11655
    %v11657 = vrot.slane %v9907, %v11656
    %v11658 = vlaneseq
    %v11659 = vshrl.u32 %v11658, 7
    %v11660 = vsub.s32 5, %v11659
    %v11661 = vrot.slane %v9907, %v11660
    %v11662 = vlaneseq
    %v11663 = vshrl.u32 %v11662, 7
    %v11664 = vsub.s32 1, %v11663
    %v11665 = vrot.slane %v9908, %v11664
    %v11666 = vlaneseq
    %v11667 = vshrl.u32 %v11666, 7
    %v11668 = vsub.s32 5, %v11667
    %v11669 = vrot.slane %v9908, %v11668
    %v11670 = vlaneseq
    %v11671 = vshrl.u32 %v11670, 7
    %v11672 = vsub.s32 1, %v11671
    %v11673 = vrot.slane %v9909, %v11672
    %v11674 = vlaneseq
    %v11675 = vshrl.u32 %v11674, 7
    %v11676 = vsub.s32 5, %v11675
    %v11677 = vrot.slane %v9909, %v11676
    %v11678 = vlaneseq
    %v11679 = vshrl.u32 %v11678, 7
    %v11680 = vsub.s32 1, %v11679
    %v11681 = vrot.slane %v9910, %v11680
    %v11682 = vlaneseq
    %v11683 = vshrl.u32 %v11682, 7
    %v11684 = vsub.s32 5, %v11683
    %v11685 = vrot.slane %v9910, %v11684
    %v11686 = vlaneseq
    %v11687 = vshrl.u32 %v11686, 7
    %v11688 = vsub.s32 1, %v11687
    %v11689 = vrot.slane %v9911, %v11688
    %v11690 = vlaneseq
    %v11691 = vshrl.u32 %v11690, 7
    %v11692 = vsub.s32 5, %v11691
    %v11693 = vrot.slane %v9911, %v11692
    %v11694 = vlaneseq
    %v11695 = vshrl.u32 %v11694, 7
    %v11696 = vsub.s32 1, %v11695
    %v11697 = vrot.slane %v9912, %v11696
    %v11698 = vlaneseq
    %v11699 = vshrl.u32 %v11698, 7
    %v11700 = vsub.s32 5, %v11699
    %v11701 = vrot.slane %v9912, %v11700
    %v11702 = vlaneseq
    %v11703 = vshrl.u32 %v11702, 7
    %v11704 = vsub.s32 1, %v11703
    %v11705 = vrot.slane %v9913, %v11704
    %v11706 = vlaneseq
    %v11707 = vshrl.u32 %v11706, 7
    %v11708 = vsub.s32 5, %v11707
    %v11709 = vrot.slane %v9913, %v11708
    %v11710 = vlaneseq
    %v11711 = vshrl.u32 %v11710, 7
    %v11712 = vsub.s32 1, %v11711
    %v11713 = vrot.slane %v9914, %v11712
    %v11733 = vlaneseq
    %v11734 = vshrl.u32 %v11733, 7
    %v11735 = vsub.s32 1, %v11734
    %v11736 = vrot.slane %v11641, %v11735
    %v11737 = vlaneseq
    %v11738 = vshrl.u32 %v11737, 7
    %v11739 = vsub.s32 1, %v11738
    %v11740 = vrot.slane %v11645, %v11739
    %v11741 = vlaneseq
    %v11742 = vshrl.u32 %v11741, 7
    %v11743 = vsub.s32 1, %v11742
    %v11744 = vrot.slane %v11649, %v11743
    %v11745 = vlaneseq
    %v11746 = vshrl.u32 %v11745, 7
    %v11747 = vsub.s32 1, %v11746
    %v11748 = vrot.slane %v11653, %v11747
    %v11749 = vlaneseq
    %v11750 = vshrl.u32 %v11749, 7
    %v11751 = vsub.s32 1, %v11750
    %v11752 = vrot.slane %v11657, %v11751
    %v11753 = vlaneseq
    %v11754 = vshrl.u32 %v11753, 7
    %v11755 = vsub.s32 1, %v11754
    %v11756 = vrot.slane %v11661, %v11755
    %v11757 = vlaneseq
    %v11758 = vshrl.u32 %v11757, 7
    %v11759 = vsub.s32 1, %v11758
    %v11760 = vrot.slane %v11665, %v11759
    %v11761 = vlaneseq
    %v11762 = vshrl.u32 %v11761, 7
    %v11763 = vsub.s32 1, %v11762
    %v11764 = vrot.slane %v11669, %v11763
    %v11765 = vlaneseq
    %v11766 = vshrl.u32 %v11765, 7
    %v11767 = vsub.s32 1, %v11766
    %v11768 = vrot.slane %v11673, %v11767
    %v11769 = vlaneseq
    %v11770 = vshrl.u32 %v11769, 7
    %v11771 = vsub.s32 1, %v11770
    %v11772 = vrot.slane %v11677, %v11771
    %v11773 = vlaneseq
    %v11774 = vshrl.u32 %v11773, 7
    %v11775 = vsub.s32 1, %v11774
    %v11776 = vrot.slane %v11681, %v11775
    %v11777 = vlaneseq
    %v11778 = vshrl.u32 %v11777, 7
    %v11779 = vsub.s32 1, %v11778
    %v11780 = vrot.slane %v11685, %v11779
    %v11781 = vlaneseq
    %v11782 = vshrl.u32 %v11781, 7
    %v11783 = vsub.s32 1, %v11782
    %v11784 = vrot.slane %v11689, %v11783
    %v11785 = vlaneseq
    %v11786 = vshrl.u32 %v11785, 7
    %v11787 = vsub.s32 1, %v11786
    %v11788 = vrot.slane %v11693, %v11787
    %v11789 = vlaneseq
    %v11790 = vshrl.u32 %v11789, 7
    %v11791 = vsub.s32 1, %v11790
    %v11792 = vrot.slane %v11697, %v11791
    %v11793 = vlaneseq
    %v11794 = vshrl.u32 %v11793, 7
    %v11795 = vsub.s32 1, %v11794
    %v11796 = vrot.slane %v11701, %v11795
    %v11797 = vlaneseq
    %v11798 = vshrl.u32 %v11797, 7
    %v11799 = vsub.s32 1, %v11798
    %v11800 = vrot.slane %v11705, %v11799
    %v11801 = vlaneseq
    %v11802 = vshrl.u32 %v11801, 7
    %v11803 = vsub.s32 1, %v11802
    %v11804 = vrot.slane %v11709, %v11803
    %v11805 = vlaneseq
    %v11806 = vshrl.u32 %v11805, 7
    %v11807 = vsub.s32 1, %v11806
    %v11808 = vrot.slane %v11713, %v11807
    %v11809 = vmul.f32 %v11619, %v11736
    %v11810 = vmul.f32 %v11620, %v11740
    %v11811 = vmul.f32 %v11621, %v11744
    %v11812 = vmul.f32 %v11622, %v11748
    %v11813 = vmul.f32 %v11623, %v11752
    %v11814 = vmul.f32 %v11624, %v11756
    %v11815 = vmul.f32 %v11625, %v11760
    %v11816 = vmul.f32 %v11626, %v11764
    %v11817 = vmul.f32 %v11627, %v11768
    %v11818 = vmul.f32 %v11628, %v11772
    %v11819 = vmul.f32 %v11629, %v11776
    %v11820 = vmul.f32 %v11630, %v11780
    %v11821 = vmul.f32 %v11631, %v11784
    %v11822 = vmul.f32 %v11632, %v11788
    %v11823 = vmul.f32 %v11633, %v11792
    %v11824 = vmul.f32 %v11634, %v11796
    %v11825 = vmul.f32 %v11635, %v11800
    %v11826 = vmul.f32 %v11636, %v11804
    %v11827 = vmul.f32 %v11637, %v11808
    %v11828 = vlaneseq
    %v11829 = vshrl.u32 %v11828, 7
    %v11830 = vsub.s32 2, %v11829
    %v11831 = vrot.slane %v9905, %v11830
    %v11832 = vlaneseq
    %v11833 = vshrl.u32 %v11832, 7
    %v11834 = vsub.s32 6, %v11833
    %v11835 = vrot.slane %v9905, %v11834
    %v11836 = vlaneseq
    %v11837 = vshrl.u32 %v11836, 7
    %v11838 = vsub.s32 2, %v11837
    %v11839 = vrot.slane %v9906, %v11838
    %v11840 = vlaneseq
    %v11841 = vshrl.u32 %v11840, 7
    %v11842 = vsub.s32 6, %v11841
    %v11843 = vrot.slane %v9906, %v11842
    %v11844 = vlaneseq
    %v11845 = vshrl.u32 %v11844, 7
    %v11846 = vsub.s32 2, %v11845
    %v11847 = vrot.slane %v9907, %v11846
    %v11848 = vlaneseq
    %v11849 = vshrl.u32 %v11848, 7
    %v11850 = vsub.s32 6, %v11849
    %v11851 = vrot.slane %v9907, %v11850
    %v11852 = vlaneseq
    %v11853 = vshrl.u32 %v11852, 7
    %v11854 = vsub.s32 2, %v11853
    %v11855 = vrot.slane %v9908, %v11854
    %v11856 = vlaneseq
    %v11857 = vshrl.u32 %v11856, 7
    %v11858 = vsub.s32 6, %v11857
    %v11859 = vrot.slane %v9908, %v11858
    %v11860 = vlaneseq
    %v11861 = vshrl.u32 %v11860, 7
    %v11862 = vsub.s32 2, %v11861
    %v11863 = vrot.slane %v9909, %v11862
    %v11864 = vlaneseq
    %v11865 = vshrl.u32 %v11864, 7
    %v11866 = vsub.s32 6, %v11865
    %v11867 = vrot.slane %v9909, %v11866
    %v11868 = vlaneseq
    %v11869 = vshrl.u32 %v11868, 7
    %v11870 = vsub.s32 2, %v11869
    %v11871 = vrot.slane %v9910, %v11870
    %v11872 = vlaneseq
    %v11873 = vshrl.u32 %v11872, 7
    %v11874 = vsub.s32 6, %v11873
    %v11875 = vrot.slane %v9910, %v11874
    %v11876 = vlaneseq
    %v11877 = vshrl.u32 %v11876, 7
    %v11878 = vsub.s32 2, %v11877
    %v11879 = vrot.slane %v9911, %v11878
    %v11880 = vlaneseq
    %v11881 = vshrl.u32 %v11880, 7
    %v11882 = vsub.s32 6, %v11881
    %v11883 = vrot.slane %v9911, %v11882
    %v11884 = vlaneseq
    %v11885 = vshrl.u32 %v11884, 7
    %v11886 = vsub.s32 2, %v11885
    %v11887 = vrot.slane %v9912, %v11886
    %v11888 = vlaneseq
    %v11889 = vshrl.u32 %v11888, 7
    %v11890 = vsub.s32 6, %v11889
    %v11891 = vrot.slane %v9912, %v11890
    %v11892 = vlaneseq
    %v11893 = vshrl.u32 %v11892, 7
    %v11894 = vsub.s32 2, %v11893
    %v11895 = vrot.slane %v9913, %v11894
    %v11896 = vlaneseq
    %v11897 = vshrl.u32 %v11896, 7
    %v11898 = vsub.s32 6, %v11897
    %v11899 = vrot.slane %v9913, %v11898
    %v11900 = vlaneseq
    %v11901 = vshrl.u32 %v11900, 7
    %v11902 = vsub.s32 2, %v11901
    %v11903 = vrot.slane %v9914, %v11902
    %v11923 = vlaneseq
    %v11924 = vshrl.u32 %v11923, 7
    %v11925 = vsub.s32 2, %v11924
    %v11926 = vrot.slane %v11831, %v11925
    %v11927 = vlaneseq
    %v11928 = vshrl.u32 %v11927, 7
    %v11929 = vsub.s32 2, %v11928
    %v11930 = vrot.slane %v11835, %v11929
    %v11931 = vlaneseq
    %v11932 = vshrl.u32 %v11931, 7
    %v11933 = vsub.s32 2, %v11932
    %v11934 = vrot.slane %v11839, %v11933
    %v11935 = vlaneseq
    %v11936 = vshrl.u32 %v11935, 7
    %v11937 = vsub.s32 2, %v11936
    %v11938 = vrot.slane %v11843, %v11937
    %v11939 = vlaneseq
    %v11940 = vshrl.u32 %v11939, 7
    %v11941 = vsub.s32 2, %v11940
    %v11942 = vrot.slane %v11847, %v11941
    %v11943 = vlaneseq
    %v11944 = vshrl.u32 %v11943, 7
    %v11945 = vsub.s32 2, %v11944
    %v11946 = vrot.slane %v11851, %v11945
    %v11947 = vlaneseq
    %v11948 = vshrl.u32 %v11947, 7
    %v11949 = vsub.s32 2, %v11948
    %v11950 = vrot.slane %v11855, %v11949
    %v11951 = vlaneseq
    %v11952 = vshrl.u32 %v11951, 7
    %v11953 = vsub.s32 2, %v11952
    %v11954 = vrot.slane %v11859, %v11953
    %v11955 = vlaneseq
    %v11956 = vshrl.u32 %v11955, 7
    %v11957 = vsub.s32 2, %v11956
    %v11958 = vrot.slane %v11863, %v11957
    %v11959 = vlaneseq
    %v11960 = vshrl.u32 %v11959, 7
    %v11961 = vsub.s32 2, %v11960
    %v11962 = vrot.slane %v11867, %v11961
    %v11963 = vlaneseq
    %v11964 = vshrl.u32 %v11963, 7
    %v11965 = vsub.s32 2, %v11964
    %v11966 = vrot.slane %v11871, %v11965
    %v11967 = vlaneseq
    %v11968 = vshrl.u32 %v11967, 7
    %v11969 = vsub.s32 2, %v11968
    %v11970 = vrot.slane %v11875, %v11969
    %v11971 = vlaneseq
    %v11972 = vshrl.u32 %v11971, 7
    %v11973 = vsub.s32 2, %v11972
    %v11974 = vrot.slane %v11879, %v11973
    %v11975 = vlaneseq
    %v11976 = vshrl.u32 %v11975, 7
    %v11977 = vsub.s32 2, %v11976
    %v11978 = vrot.slane %v11883, %v11977
    %v11979 = vlaneseq
    %v11980 = vshrl.u32 %v11979, 7
    %v11981 = vsub.s32 2, %v11980
    %v11982 = vrot.slane %v11887, %v11981
    %v11983 = vlaneseq
    %v11984 = vshrl.u32 %v11983, 7
    %v11985 = vsub.s32 2, %v11984
    %v11986 = vrot.slane %v11891, %v11985
    %v11987 = vlaneseq
    %v11988 = vshrl.u32 %v11987, 7
    %v11989 = vsub.s32 2, %v11988
    %v11990 = vrot.slane %v11895, %v11989
    %v11991 = vlaneseq
    %v11992 = vshrl.u32 %v11991, 7
    %v11993 = vsub.s32 2, %v11992
    %v11994 = vrot.slane %v11899, %v11993
    %v11995 = vlaneseq
    %v11996 = vshrl.u32 %v11995, 7
    %v11997 = vsub.s32 2, %v11996
    %v11998 = vrot.slane %v11903, %v11997
    %v11999 = vadd.f32 %v11809, %v11926
    %v12000 = vadd.f32 %v11810, %v11930
    %v12001 = vadd.f32 %v11811, %v11934
    %v12002 = vadd.f32 %v11812, %v11938
    %v12003 = vadd.f32 %v11813, %v11942
    %v12004 = vadd.f32 %v11814, %v11946
    %v12005 = vadd.f32 %v11815, %v11950
    %v12006 = vadd.f32 %v11816, %v11954
    %v12007 = vadd.f32 %v11817, %v11958
    %v12008 = vadd.f32 %v11818, %v11962
    %v12009 = vadd.f32 %v11819, %v11966
    %v12010 = vadd.f32 %v11820, %v11970
    %v12011 = vadd.f32 %v11821, %v11974
    %v12012 = vadd.f32 %v11822, %v11978
    %v12013 = vadd.f32 %v11823, %v11982
    %v12014 = vadd.f32 %v11824, %v11986
    %v12015 = vadd.f32 %v11825, %v11990
    %v12016 = vadd.f32 %v11826, %v11994
    %v12017 = vadd.f32 %v11827, %v11998
    %12018 = vst [vmem:[%s21] sm:$0xff] %v11999
    %12019 = vst [vmem:[%s21 + $0x8] sm:$0xff] %v12000
    %12020 = vst [vmem:[%s21 + $0x10] sm:$0xff] %v12001
    %12021 = vst [vmem:[%s21 + $0x18] sm:$0xff] %v12002
    %12022 = vst [vmem:[%s21 + $0x20] sm:$0xff] %v12003
    %12023 = vst [vmem:[%s21 + $0x28] sm:$0xff] %v12004
    %12024 = vst [vmem:[%s21 + $0x30] sm:$0xff] %v12005
    %12025 = vst [vmem:[%s21 + $0x38] sm:$0xff] %v12006
    %12026 = vst [vmem:[%s21 + $0x40] sm:$0xff] %v12007
    %12027 = vst [vmem:[%s21 + $0x48] sm:$0xff] %v12008
    %12028 = vst [vmem:[%s21 + $0x50] sm:$0xff] %v12009
    %12029 = vst [vmem:[%s21 + $0x58] sm:$0xff] %v12010
    %12030 = vst [vmem:[%s21 + $0x60] sm:$0xff] %v12011
    %12031 = vst [vmem:[%s21 + $0x68] sm:$0xff] %v12012
    %12032 = vst [vmem:[%s21 + $0x70] sm:$0xff] %v12013
    %12033 = vst [vmem:[%s21 + $0x78] sm:$0xff] %v12014
    %12034 = vst [vmem:[%s21 + $0x80] sm:$0xff] %v12015
    %12035 = vst [vmem:[%s21 + $0x88] sm:$0xff] %v12016
    %12036 = vst.msk [vmem:[%s21 + $0x90] sm:$0xff] %vm11382, %v12017
    // Predicated region
    $region130: #{pointnet_encoder_forward.1} parent=1 // pred_check
      _
    $region131: #{pointnet_encoder_forward.1} parent=1 // pred_check_branch
      %12038 = sbr.rel (0) target = $region133
    $region132: #{pointnet_encoder_forward.1} parent=1 // pred_region
      _
    $region133: #{pointnet_encoder_forward.1} parent=1 // pred_fallthru
      _
    // Predicated region
    $region134: #{pointnet_encoder_forward.1} parent=1 // pred_check
      _
    $region135: #{pointnet_encoder_forward.1} parent=1 // pred_check_branch
      %12040 = sbr.rel (0) target = $region137
    $region136: #{pointnet_encoder_forward.1} parent=1 // pred_region
      _
    $region137: #{pointnet_encoder_forward.1} parent=1 // pred_fallthru
      _
    %12041 = vsyncpa [#allocation3], 1
    %12042 = vsyncpa [#allocation5], 1
    %12043 = vsyncpa [#allocation8], 1
    %12044 = vsyncpa [#allocation11], 1
    %12045 = vsyncpa [#allocation14], 1
    %12046 = vsyncpa [#allocation17], 1

</llo_original>
